<compile_context>
chip_gen: v7x
topology: tpu7x:2x2x1
jax: 0.10.0
libtpu: 0.0.40
codegen_flags: <defaults>
</compile_context>

<pallas_src>
import functools
import math

import jax
import jax.numpy as jnp
import numpy as np
from jax.experimental import pallas as pl
from jax.experimental.pallas import tpu as pltpu


def _conv_sigmoid_kernel(x_ref, w_ref, b_ref, o_ref, *, nb, c, kh, kw, oc, oh, ow):
    """Fused 3x3 / stride-2 conv + bias + sigmoid for NB images.

    x_ref: (NB, C*2*2, OH+1, OW+1) VMEM -- parity-split padded input:
           plane = ci*4 + rp*2 + sp holds x_padded[ci, 2*r + rp, 2*s + sp]
    w_ref: (C*KH*KW*OC,) f32 SMEM, tap-major: w_ref[t*OC + o] = weight[o, ci, ki, kj]
    b_ref: (OC,)          f32 SMEM
    o_ref: (NB, OC, OH, OW) VMEM
    """
    for b in range(nb):                                    # NB is small & static -> unroll
        # Tap-outer / channel-inner: 16 live accumulators (~32 vregs); each tap is
        # loaded once and scalar-splat FMA'd into every channel on the VPU.
        accs = [jnp.zeros((oh, ow), jnp.float32) for _ in range(oc)]
        t = 0
        for ci in range(c):
            for ki in range(kh):
                for kj in range(kw):
                    plane = ci * 4 + (ki % 2) * 2 + (kj % 2)
                    tap = x_ref[b, plane,
                                ki // 2: ki // 2 + oh,
                                kj // 2: kj // 2 + ow]                 # (OH, OW)
                    wts = [w_ref[t * oc + o] for o in range(oc)]       # hoisted scalar reads
                    for o in range(oc):
                        accs[o] = accs[o] + wts[o] * tap               # VPU FMA
                    t += 1

        for o in range(oc):
            z = accs[o] + b_ref[o]
            # sigmoid(z) = 0.5*tanh(0.5*z) + 0.5 -- tanh goes to the EUP (free slot),
            # keeping the VALU free for the FMAs above.
            o_ref[b, o, :, :] = 0.5 * jnp.tanh(0.5 * z) + 0.5


@functools.partial(jax.jit, static_argnames=("stride", "pad"))
def conv2d_sigmoid(x_nchw, weight, bias, stride=2, pad=1):
    """x_nchw: (N, 3, H, W); weight: (16, 3, 3, 3) [PyTorch OIHW]; bias: (16,)."""
    n, c, h, w = x_nchw.shape
    oc, ic, kh, kw = weight.shape
    assert ic == c and stride == 2 and pad == 1 and kh == 3 and kw == 3

    oh = (h + 2 * pad - kh) // stride + 1
    ow = (w + 2 * pad - kw) // stride + 1
    hp, wp = h + 2 * pad, w + 2 * pad          # padded spatial dims (even)
    hh, wh = hp // stride, wp // stride        # per-parity spatial dims (= OH+1, OW+1)

    # Layout plumbing only (tiny data): pad, then split even/odd rows & cols so every
    # stride-2 tap becomes a contiguous slice inside the kernel.
    xp = jnp.pad(x_nchw, ((0, 0), (0, 0), (pad, pad), (pad, pad))).astype(jnp.float32)
    xs = (xp.reshape(n, c, hh, 2, wh, 2)
            .transpose(0, 1, 3, 5, 2, 4)       # (N, C, rp, sp, hh, wh)
            .reshape(n, c * 4, hh, wh))        # plane = ci*4 + rp*2 + sp

    # Batch blocking: NB images per grid step; keep >= 2 grid steps when N >= 2 (v7x 2 TCs).
    nb = max(1, min(8, -(-n // 2)))            # min(8, cdiv(N, 2))
    n_blocks = -(-n // nb)                     # cdiv(N, NB)
    n_padded = n_blocks * nb
    if n_padded != n:
        xs = jnp.pad(xs, ((0, n_padded - n), (0, 0), (0, 0), (0, 0)))

    # Weights: tap-major 1-D layout for SMEM (no 2-D SMEM padding, contiguous per-tap reads).
    w_flat = jnp.transpose(weight, (1, 2, 3, 0)).reshape(ic * kh * kw * oc).astype(jnp.float32)
    b1 = bias.astype(jnp.float32)

    kernel = functools.partial(_conv_sigmoid_kernel,
                               nb=nb, c=c, kh=kh, kw=kw, oc=oc, oh=oh, ow=ow)

    out = pl.pallas_call(
        kernel,
        out_shape=jax.ShapeDtypeStruct((n_padded, oc, oh, ow), jnp.float32),
        grid=(n_blocks,),
        in_specs=[
            pl.BlockSpec((nb, c * 4, hh, wh), lambda i: (i, 0, 0, 0)),
            pl.BlockSpec(memory_space=pltpu.MemorySpace.SMEM),
            pl.BlockSpec(memory_space=pltpu.MemorySpace.SMEM),
        ],
        out_specs=pl.BlockSpec((nb, oc, oh, ow), lambda i: (i, 0, 0, 0)),
        compiler_params=pltpu.CompilerParams(dimension_semantics=("parallel",)),
    )(xs, w_flat, b1)
    return out[:n]  # drop batch padding; already NCHW, no transpose needed


def _reference(x_nchw, weight, bias, stride=2, pad=1):
    y = jax.lax.conv_general_dilated(
        x_nchw, weight,
        window_strides=(stride, stride),
        padding=((pad, pad), (pad, pad)),
        dimension_numbers=("NCHW", "OIHW", "NCHW"),
    )
    y = y + bias.reshape(1, -1, 1, 1)
    return jax.nn.sigmoid(y)


if __name__ == "__main__":
    key = jax.random.PRNGKey(0)
    kx, kw_, kb, kx2 = jax.random.split(key, 4)

    # Input matching the module: (1, 3, 28, 28), NCHW
    x1 = jax.random.normal(kx, (1, 3, 28, 28), dtype=jnp.float32)

    # Deterministic Conv2d(3, 16, 3, stride=2, padding=1) parameters
    fan_in = 3 * 3 * 3
    bound = 1.0 / math.sqrt(fan_in)
    weight = jax.random.uniform(kw_, (16, 3, 3, 3), minval=-bound, maxval=bound,
                                dtype=jnp.float32)
    bias = jax.random.uniform(kb, (16,), minval=-bound, maxval=bound,
                              dtype=jnp.float32)

    out = jax.block_until_ready(conv2d_sigmoid(x1, weight, bias))
    ref = jax.block_until_ready(_reference(x1, weight, bias))
    assert out.shape == (1, 16, 14, 14), out.shape
    np.testing.assert_allclose(np.asarray(out), np.asarray(ref), rtol=1e-5, atol=1e-5)

    # Exercise the batch-blocked grid (NB=3, 2 grid steps, batch padding path).
    x2 = jax.random.normal(kx2, (5, 3, 28, 28), dtype=jnp.float32)
    out2 = jax.block_until_ready(conv2d_sigmoid(x2, weight, bias))
    ref2 = jax.block_until_ready(_reference(x2, weight, bias))
    assert out2.shape == (5, 16, 14, 14), out2.shape
    np.testing.assert_allclose(np.asarray(out2), np.asarray(ref2), rtol=1e-5, atol=1e-5)

    print("KERNEL_OK")
</pallas_src>

<mosaic_0001>
module attributes {stable_mosaic.version = 11 : i64} {
  func.func @_conv_sigmoid_kernel(%arg0: i32, %arg1: memref<1x12x15x15xf32, #tpu.memory_space<vmem>>, %arg2: memref<432xf32, #tpu.memory_space<smem>>, %arg3: memref<16xf32, #tpu.memory_space<smem>>, %arg4: memref<1x16x14x14xf32, #tpu.memory_space<vmem>>) attributes {dimension_semantics = [#tpu.dimension_semantics<parallel>], iteration_bounds = array<i64: 1>, scalar_prefetch = 0 : i64, scratch_operands = 0 : i64, tpu.core_type = #tpu.core_type<tc>, window_params = [{transform_indices = @transform_0, window_bounds = array<i64: 1, 12, 15, 15>}, {transform_indices = @transform_1, window_bounds = array<i64: 432>}, {transform_indices = @transform_2, window_bounds = array<i64: 16>}, {transform_indices = @transform_3, window_bounds = array<i64: 1, 16, 14, 14>}]} {
    %cst = arith.constant 0.000000e+00 : f32
    %0 = vector.broadcast %cst : f32 to vector<14x14xf32>
    %cst_0 = arith.constant 0.000000e+00 : f32
    %1 = vector.broadcast %cst_0 : f32 to vector<14x14xf32>
    %cst_1 = arith.constant 0.000000e+00 : f32
    %2 = vector.broadcast %cst_1 : f32 to vector<14x14xf32>
    %cst_2 = arith.constant 0.000000e+00 : f32
    %3 = vector.broadcast %cst_2 : f32 to vector<14x14xf32>
    %cst_3 = arith.constant 0.000000e+00 : f32
    %4 = vector.broadcast %cst_3 : f32 to vector<14x14xf32>
    %cst_4 = arith.constant 0.000000e+00 : f32
    %5 = vector.broadcast %cst_4 : f32 to vector<14x14xf32>
    %cst_5 = arith.constant 0.000000e+00 : f32
    %6 = vector.broadcast %cst_5 : f32 to vector<14x14xf32>
    %cst_6 = arith.constant 0.000000e+00 : f32
    %7 = vector.broadcast %cst_6 : f32 to vector<14x14xf32>
    %cst_7 = arith.constant 0.000000e+00 : f32
    %8 = vector.broadcast %cst_7 : f32 to vector<14x14xf32>
    %cst_8 = arith.constant 0.000000e+00 : f32
    %9 = vector.broadcast %cst_8 : f32 to vector<14x14xf32>
    %cst_9 = arith.constant 0.000000e+00 : f32
    %10 = vector.broadcast %cst_9 : f32 to vector<14x14xf32>
    %cst_10 = arith.constant 0.000000e+00 : f32
    %11 = vector.broadcast %cst_10 : f32 to vector<14x14xf32>
    %cst_11 = arith.constant 0.000000e+00 : f32
    %12 = vector.broadcast %cst_11 : f32 to vector<14x14xf32>
    %cst_12 = arith.constant 0.000000e+00 : f32
    %13 = vector.broadcast %cst_12 : f32 to vector<14x14xf32>
    %cst_13 = arith.constant 0.000000e+00 : f32
    %14 = vector.broadcast %cst_13 : f32 to vector<14x14xf32>
    %cst_14 = arith.constant 0.000000e+00 : f32
    %15 = vector.broadcast %cst_14 : f32 to vector<14x14xf32>
    %c0 = arith.constant 0 : index
    %c0_15 = arith.constant 0 : index
    %c0_16 = arith.constant 0 : index
    %c0_17 = arith.constant 0 : index
    %16 = vector.load %arg1[%c0, %c0_15, %c0_16, %c0_17] : memref<1x12x15x15xf32, #tpu.memory_space<vmem>>, vector<1x1x14x14xf32>
    %17 = vector.shape_cast %16 : vector<1x1x14x14xf32> to vector<14x14xf32>
    %c0_18 = arith.constant 0 : index
    %18 = memref.load %arg2[%c0_18] : memref<432xf32, #tpu.memory_space<smem>>
    %c1 = arith.constant 1 : index
    %19 = memref.load %arg2[%c1] : memref<432xf32, #tpu.memory_space<smem>>
    %c2 = arith.constant 2 : index
    %20 = memref.load %arg2[%c2] : memref<432xf32, #tpu.memory_space<smem>>
    %c3 = arith.constant 3 : index
    %21 = memref.load %arg2[%c3] : memref<432xf32, #tpu.memory_space<smem>>
    %c4 = arith.constant 4 : index
    %22 = memref.load %arg2[%c4] : memref<432xf32, #tpu.memory_space<smem>>
    %c5 = arith.constant 5 : index
    %23 = memref.load %arg2[%c5] : memref<432xf32, #tpu.memory_space<smem>>
    %c6 = arith.constant 6 : index
    %24 = memref.load %arg2[%c6] : memref<432xf32, #tpu.memory_space<smem>>
    %c7 = arith.constant 7 : index
    %25 = memref.load %arg2[%c7] : memref<432xf32, #tpu.memory_space<smem>>
    %c8 = arith.constant 8 : index
    %26 = memref.load %arg2[%c8] : memref<432xf32, #tpu.memory_space<smem>>
    %c9 = arith.constant 9 : index
    %27 = memref.load %arg2[%c9] : memref<432xf32, #tpu.memory_space<smem>>
    %c10 = arith.constant 10 : index
    %28 = memref.load %arg2[%c10] : memref<432xf32, #tpu.memory_space<smem>>
    %c11 = arith.constant 11 : index
    %29 = memref.load %arg2[%c11] : memref<432xf32, #tpu.memory_space<smem>>
    %c12 = arith.constant 12 : index
    %30 = memref.load %arg2[%c12] : memref<432xf32, #tpu.memory_space<smem>>
    %c13 = arith.constant 13 : index
    %31 = memref.load %arg2[%c13] : memref<432xf32, #tpu.memory_space<smem>>
    %c14 = arith.constant 14 : index
    %32 = memref.load %arg2[%c14] : memref<432xf32, #tpu.memory_space<smem>>
    %c15 = arith.constant 15 : index
    %33 = memref.load %arg2[%c15] : memref<432xf32, #tpu.memory_space<smem>>
    %34 = vector.broadcast %18 : f32 to vector<14x14xf32>
    %35 = arith.mulf %34, %17 : vector<14x14xf32>
    %36 = arith.addf %0, %35 : vector<14x14xf32>
    %37 = vector.broadcast %19 : f32 to vector<14x14xf32>
    %38 = arith.mulf %37, %17 : vector<14x14xf32>
    %39 = arith.addf %1, %38 : vector<14x14xf32>
    %40 = vector.broadcast %20 : f32 to vector<14x14xf32>
    %41 = arith.mulf %40, %17 : vector<14x14xf32>
    %42 = arith.addf %2, %41 : vector<14x14xf32>
    %43 = vector.broadcast %21 : f32 to vector<14x14xf32>
    %44 = arith.mulf %43, %17 : vector<14x14xf32>
    %45 = arith.addf %3, %44 : vector<14x14xf32>
    %46 = vector.broadcast %22 : f32 to vector<14x14xf32>
    %47 = arith.mulf %46, %17 : vector<14x14xf32>
    %48 = arith.addf %4, %47 : vector<14x14xf32>
    %49 = vector.broadcast %23 : f32 to vector<14x14xf32>
    %50 = arith.mulf %49, %17 : vector<14x14xf32>
    %51 = arith.addf %5, %50 : vector<14x14xf32>
    %52 = vector.broadcast %24 : f32 to vector<14x14xf32>
    %53 = arith.mulf %52, %17 : vector<14x14xf32>
    %54 = arith.addf %6, %53 : vector<14x14xf32>
    %55 = vector.broadcast %25 : f32 to vector<14x14xf32>
    %56 = arith.mulf %55, %17 : vector<14x14xf32>
    %57 = arith.addf %7, %56 : vector<14x14xf32>
    %58 = vector.broadcast %26 : f32 to vector<14x14xf32>
    %59 = arith.mulf %58, %17 : vector<14x14xf32>
    %60 = arith.addf %8, %59 : vector<14x14xf32>
    %61 = vector.broadcast %27 : f32 to vector<14x14xf32>
    %62 = arith.mulf %61, %17 : vector<14x14xf32>
    %63 = arith.addf %9, %62 : vector<14x14xf32>
    %64 = vector.broadcast %28 : f32 to vector<14x14xf32>
    %65 = arith.mulf %64, %17 : vector<14x14xf32>
    %66 = arith.addf %10, %65 : vector<14x14xf32>
    %67 = vector.broadcast %29 : f32 to vector<14x14xf32>
    %68 = arith.mulf %67, %17 : vector<14x14xf32>
    %69 = arith.addf %11, %68 : vector<14x14xf32>
    %70 = vector.broadcast %30 : f32 to vector<14x14xf32>
    %71 = arith.mulf %70, %17 : vector<14x14xf32>
    %72 = arith.addf %12, %71 : vector<14x14xf32>
    %73 = vector.broadcast %31 : f32 to vector<14x14xf32>
    %74 = arith.mulf %73, %17 : vector<14x14xf32>
    %75 = arith.addf %13, %74 : vector<14x14xf32>
    %76 = vector.broadcast %32 : f32 to vector<14x14xf32>
    %77 = arith.mulf %76, %17 : vector<14x14xf32>
    %78 = arith.addf %14, %77 : vector<14x14xf32>
    %79 = vector.broadcast %33 : f32 to vector<14x14xf32>
    %80 = arith.mulf %79, %17 : vector<14x14xf32>
    %81 = arith.addf %15, %80 : vector<14x14xf32>
    %c0_19 = arith.constant 0 : index
    %c1_20 = arith.constant 1 : index
    %c0_21 = arith.constant 0 : index
    %c0_22 = arith.constant 0 : index
    %82 = vector.load %arg1[%c0_19, %c1_20, %c0_21, %c0_22] : memref<1x12x15x15xf32, #tpu.memory_space<vmem>>, vector<1x1x14x14xf32>
    %83 = vector.shape_cast %82 : vector<1x1x14x14xf32> to vector<14x14xf32>
    %c16 = arith.constant 16 : index
    %84 = memref.load %arg2[%c16] : memref<432xf32, #tpu.memory_space<smem>>
    %c17 = arith.constant 17 : index
    %85 = memref.load %arg2[%c17] : memref<432xf32, #tpu.memory_space<smem>>
    %c18 = arith.constant 18 : index
    %86 = memref.load %arg2[%c18] : memref<432xf32, #tpu.memory_space<smem>>
    %c19 = arith.constant 19 : index
    %87 = memref.load %arg2[%c19] : memref<432xf32, #tpu.memory_space<smem>>
    %c20 = arith.constant 20 : index
    %88 = memref.load %arg2[%c20] : memref<432xf32, #tpu.memory_space<smem>>
    %c21 = arith.constant 21 : index
    %89 = memref.load %arg2[%c21] : memref<432xf32, #tpu.memory_space<smem>>
    %c22 = arith.constant 22 : index
    %90 = memref.load %arg2[%c22] : memref<432xf32, #tpu.memory_space<smem>>
    %c23 = arith.constant 23 : index
    %91 = memref.load %arg2[%c23] : memref<432xf32, #tpu.memory_space<smem>>
    %c24 = arith.constant 24 : index
    %92 = memref.load %arg2[%c24] : memref<432xf32, #tpu.memory_space<smem>>
    %c25 = arith.constant 25 : index
    %93 = memref.load %arg2[%c25] : memref<432xf32, #tpu.memory_space<smem>>
    %c26 = arith.constant 26 : index
    %94 = memref.load %arg2[%c26] : memref<432xf32, #tpu.memory_space<smem>>
    %c27 = arith.constant 27 : index
    %95 = memref.load %arg2[%c27] : memref<432xf32, #tpu.memory_space<smem>>
    %c28 = arith.constant 28 : index
    %96 = memref.load %arg2[%c28] : memref<432xf32, #tpu.memory_space<smem>>
    %c29 = arith.constant 29 : index
    %97 = memref.load %arg2[%c29] : memref<432xf32, #tpu.memory_space<smem>>
    %c30 = arith.constant 30 : index
    %98 = memref.load %arg2[%c30] : memref<432xf32, #tpu.memory_space<smem>>
    %c31 = arith.constant 31 : index
    %99 = memref.load %arg2[%c31] : memref<432xf32, #tpu.memory_space<smem>>
    %100 = vector.broadcast %84 : f32 to vector<14x14xf32>
    %101 = arith.mulf %100, %83 : vector<14x14xf32>
    %102 = arith.addf %36, %101 : vector<14x14xf32>
    %103 = vector.broadcast %85 : f32 to vector<14x14xf32>
    %104 = arith.mulf %103, %83 : vector<14x14xf32>
    %105 = arith.addf %39, %104 : vector<14x14xf32>
    %106 = vector.broadcast %86 : f32 to vector<14x14xf32>
    %107 = arith.mulf %106, %83 : vector<14x14xf32>
    %108 = arith.addf %42, %107 : vector<14x14xf32>
    %109 = vector.broadcast %87 : f32 to vector<14x14xf32>
    %110 = arith.mulf %109, %83 : vector<14x14xf32>
    %111 = arith.addf %45, %110 : vector<14x14xf32>
    %112 = vector.broadcast %88 : f32 to vector<14x14xf32>
    %113 = arith.mulf %112, %83 : vector<14x14xf32>
    %114 = arith.addf %48, %113 : vector<14x14xf32>
    %115 = vector.broadcast %89 : f32 to vector<14x14xf32>
    %116 = arith.mulf %115, %83 : vector<14x14xf32>
    %117 = arith.addf %51, %116 : vector<14x14xf32>
    %118 = vector.broadcast %90 : f32 to vector<14x14xf32>
    %119 = arith.mulf %118, %83 : vector<14x14xf32>
    %120 = arith.addf %54, %119 : vector<14x14xf32>
    %121 = vector.broadcast %91 : f32 to vector<14x14xf32>
    %122 = arith.mulf %121, %83 : vector<14x14xf32>
    %123 = arith.addf %57, %122 : vector<14x14xf32>
    %124 = vector.broadcast %92 : f32 to vector<14x14xf32>
    %125 = arith.mulf %124, %83 : vector<14x14xf32>
    %126 = arith.addf %60, %125 : vector<14x14xf32>
    %127 = vector.broadcast %93 : f32 to vector<14x14xf32>
    %128 = arith.mulf %127, %83 : vector<14x14xf32>
    %129 = arith.addf %63, %128 : vector<14x14xf32>
    %130 = vector.broadcast %94 : f32 to vector<14x14xf32>
    %131 = arith.mulf %130, %83 : vector<14x14xf32>
    %132 = arith.addf %66, %131 : vector<14x14xf32>
    %133 = vector.broadcast %95 : f32 to vector<14x14xf32>
    %134 = arith.mulf %133, %83 : vector<14x14xf32>
    %135 = arith.addf %69, %134 : vector<14x14xf32>
    %136 = vector.broadcast %96 : f32 to vector<14x14xf32>
    %137 = arith.mulf %136, %83 : vector<14x14xf32>
    %138 = arith.addf %72, %137 : vector<14x14xf32>
    %139 = vector.broadcast %97 : f32 to vector<14x14xf32>
    %140 = arith.mulf %139, %83 : vector<14x14xf32>
    %141 = arith.addf %75, %140 : vector<14x14xf32>
    %142 = vector.broadcast %98 : f32 to vector<14x14xf32>
    %143 = arith.mulf %142, %83 : vector<14x14xf32>
    %144 = arith.addf %78, %143 : vector<14x14xf32>
    %145 = vector.broadcast %99 : f32 to vector<14x14xf32>
    %146 = arith.mulf %145, %83 : vector<14x14xf32>
    %147 = arith.addf %81, %146 : vector<14x14xf32>
    %c0_23 = arith.constant 0 : index
    %c0_24 = arith.constant 0 : index
    %c0_25 = arith.constant 0 : index
    %c1_26 = arith.constant 1 : index
    %148 = vector.load %arg1[%c0_23, %c0_24, %c0_25, %c1_26] : memref<1x12x15x15xf32, #tpu.memory_space<vmem>>, vector<1x1x14x14xf32>
    %149 = vector.shape_cast %148 : vector<1x1x14x14xf32> to vector<14x14xf32>
    %c32 = arith.constant 32 : index
    %150 = memref.load %arg2[%c32] : memref<432xf32, #tpu.memory_space<smem>>
    %c33 = arith.constant 33 : index
    %151 = memref.load %arg2[%c33] : memref<432xf32, #tpu.memory_space<smem>>
    %c34 = arith.constant 34 : index
    %152 = memref.load %arg2[%c34] : memref<432xf32, #tpu.memory_space<smem>>
    %c35 = arith.constant 35 : index
    %153 = memref.load %arg2[%c35] : memref<432xf32, #tpu.memory_space<smem>>
    %c36 = arith.constant 36 : index
    %154 = memref.load %arg2[%c36] : memref<432xf32, #tpu.memory_space<smem>>
    %c37 = arith.constant 37 : index
    %155 = memref.load %arg2[%c37] : memref<432xf32, #tpu.memory_space<smem>>
    %c38 = arith.constant 38 : index
    %156 = memref.load %arg2[%c38] : memref<432xf32, #tpu.memory_space<smem>>
    %c39 = arith.constant 39 : index
    %157 = memref.load %arg2[%c39] : memref<432xf32, #tpu.memory_space<smem>>
    %c40 = arith.constant 40 : index
    %158 = memref.load %arg2[%c40] : memref<432xf32, #tpu.memory_space<smem>>
    %c41 = arith.constant 41 : index
    %159 = memref.load %arg2[%c41] : memref<432xf32, #tpu.memory_space<smem>>
    %c42 = arith.constant 42 : index
    %160 = memref.load %arg2[%c42] : memref<432xf32, #tpu.memory_space<smem>>
    %c43 = arith.constant 43 : index
    %161 = memref.load %arg2[%c43] : memref<432xf32, #tpu.memory_space<smem>>
    %c44 = arith.constant 44 : index
    %162 = memref.load %arg2[%c44] : memref<432xf32, #tpu.memory_space<smem>>
    %c45 = arith.constant 45 : index
    %163 = memref.load %arg2[%c45] : memref<432xf32, #tpu.memory_space<smem>>
    %c46 = arith.constant 46 : index
    %164 = memref.load %arg2[%c46] : memref<432xf32, #tpu.memory_space<smem>>
    %c47 = arith.constant 47 : index
    %165 = memref.load %arg2[%c47] : memref<432xf32, #tpu.memory_space<smem>>
    %166 = vector.broadcast %150 : f32 to vector<14x14xf32>
    %167 = arith.mulf %166, %149 : vector<14x14xf32>
    %168 = arith.addf %102, %167 : vector<14x14xf32>
    %169 = vector.broadcast %151 : f32 to vector<14x14xf32>
    %170 = arith.mulf %169, %149 : vector<14x14xf32>
    %171 = arith.addf %105, %170 : vector<14x14xf32>
    %172 = vector.broadcast %152 : f32 to vector<14x14xf32>
    %173 = arith.mulf %172, %149 : vector<14x14xf32>
    %174 = arith.addf %108, %173 : vector<14x14xf32>
    %175 = vector.broadcast %153 : f32 to vector<14x14xf32>
    %176 = arith.mulf %175, %149 : vector<14x14xf32>
    %177 = arith.addf %111, %176 : vector<14x14xf32>
    %178 = vector.broadcast %154 : f32 to vector<14x14xf32>
    %179 = arith.mulf %178, %149 : vector<14x14xf32>
    %180 = arith.addf %114, %179 : vector<14x14xf32>
    %181 = vector.broadcast %155 : f32 to vector<14x14xf32>
    %182 = arith.mulf %181, %149 : vector<14x14xf32>
    %183 = arith.addf %117, %182 : vector<14x14xf32>
    %184 = vector.broadcast %156 : f32 to vector<14x14xf32>
    %185 = arith.mulf %184, %149 : vector<14x14xf32>
    %186 = arith.addf %120, %185 : vector<14x14xf32>
    %187 = vector.broadcast %157 : f32 to vector<14x14xf32>
    %188 = arith.mulf %187, %149 : vector<14x14xf32>
    %189 = arith.addf %123, %188 : vector<14x14xf32>
    %190 = vector.broadcast %158 : f32 to vector<14x14xf32>
    %191 = arith.mulf %190, %149 : vector<14x14xf32>
    %192 = arith.addf %126, %191 : vector<14x14xf32>
    %193 = vector.broadcast %159 : f32 to vector<14x14xf32>
    %194 = arith.mulf %193, %149 : vector<14x14xf32>
    %195 = arith.addf %129, %194 : vector<14x14xf32>
    %196 = vector.broadcast %160 : f32 to vector<14x14xf32>
    %197 = arith.mulf %196, %149 : vector<14x14xf32>
    %198 = arith.addf %132, %197 : vector<14x14xf32>
    %199 = vector.broadcast %161 : f32 to vector<14x14xf32>
    %200 = arith.mulf %199, %149 : vector<14x14xf32>
    %201 = arith.addf %135, %200 : vector<14x14xf32>
    %202 = vector.broadcast %162 : f32 to vector<14x14xf32>
    %203 = arith.mulf %202, %149 : vector<14x14xf32>
    %204 = arith.addf %138, %203 : vector<14x14xf32>
    %205 = vector.broadcast %163 : f32 to vector<14x14xf32>
    %206 = arith.mulf %205, %149 : vector<14x14xf32>
    %207 = arith.addf %141, %206 : vector<14x14xf32>
    %208 = vector.broadcast %164 : f32 to vector<14x14xf32>
    %209 = arith.mulf %208, %149 : vector<14x14xf32>
    %210 = arith.addf %144, %209 : vector<14x14xf32>
    %211 = vector.broadcast %165 : f32 to vector<14x14xf32>
    %212 = arith.mulf %211, %149 : vector<14x14xf32>
    %213 = arith.addf %147, %212 : vector<14x14xf32>
    %c0_27 = arith.constant 0 : index
    %c2_28 = arith.constant 2 : index
    %c0_29 = arith.constant 0 : index
    %c0_30 = arith.constant 0 : index
    %214 = vector.load %arg1[%c0_27, %c2_28, %c0_29, %c0_30] : memref<1x12x15x15xf32, #tpu.memory_space<vmem>>, vector<1x1x14x14xf32>
    %215 = vector.shape_cast %214 : vector<1x1x14x14xf32> to vector<14x14xf32>
    %c48 = arith.constant 48 : index
    %216 = memref.load %arg2[%c48] : memref<432xf32, #tpu.memory_space<smem>>
    %c49 = arith.constant 49 : index
    %217 = memref.load %arg2[%c49] : memref<432xf32, #tpu.memory_space<smem>>
    %c50 = arith.constant 50 : index
    %218 = memref.load %arg2[%c50] : memref<432xf32, #tpu.memory_space<smem>>
    %c51 = arith.constant 51 : index
    %219 = memref.load %arg2[%c51] : memref<432xf32, #tpu.memory_space<smem>>
    %c52 = arith.constant 52 : index
    %220 = memref.load %arg2[%c52] : memref<432xf32, #tpu.memory_space<smem>>
    %c53 = arith.constant 53 : index
    %221 = memref.load %arg2[%c53] : memref<432xf32, #tpu.memory_space<smem>>
    %c54 = arith.constant 54 : index
    %222 = memref.load %arg2[%c54] : memref<432xf32, #tpu.memory_space<smem>>
    %c55 = arith.constant 55 : index
    %223 = memref.load %arg2[%c55] : memref<432xf32, #tpu.memory_space<smem>>
    %c56 = arith.constant 56 : index
    %224 = memref.load %arg2[%c56] : memref<432xf32, #tpu.memory_space<smem>>
    %c57 = arith.constant 57 : index
    %225 = memref.load %arg2[%c57] : memref<432xf32, #tpu.memory_space<smem>>
    %c58 = arith.constant 58 : index
    %226 = memref.load %arg2[%c58] : memref<432xf32, #tpu.memory_space<smem>>
    %c59 = arith.constant 59 : index
    %227 = memref.load %arg2[%c59] : memref<432xf32, #tpu.memory_space<smem>>
    %c60 = arith.constant 60 : index
    %228 = memref.load %arg2[%c60] : memref<432xf32, #tpu.memory_space<smem>>
    %c61 = arith.constant 61 : index
    %229 = memref.load %arg2[%c61] : memref<432xf32, #tpu.memory_space<smem>>
    %c62 = arith.constant 62 : index
    %230 = memref.load %arg2[%c62] : memref<432xf32, #tpu.memory_space<smem>>
    %c63 = arith.constant 63 : index
    %231 = memref.load %arg2[%c63] : memref<432xf32, #tpu.memory_space<smem>>
    %232 = vector.broadcast %216 : f32 to vector<14x14xf32>
    %233 = arith.mulf %232, %215 : vector<14x14xf32>
    %234 = arith.addf %168, %233 : vector<14x14xf32>
    %235 = vector.broadcast %217 : f32 to vector<14x14xf32>
    %236 = arith.mulf %235, %215 : vector<14x14xf32>
    %237 = arith.addf %171, %236 : vector<14x14xf32>
    %238 = vector.broadcast %218 : f32 to vector<14x14xf32>
    %239 = arith.mulf %238, %215 : vector<14x14xf32>
    %240 = arith.addf %174, %239 : vector<14x14xf32>
    %241 = vector.broadcast %219 : f32 to vector<14x14xf32>
    %242 = arith.mulf %241, %215 : vector<14x14xf32>
    %243 = arith.addf %177, %242 : vector<14x14xf32>
    %244 = vector.broadcast %220 : f32 to vector<14x14xf32>
    %245 = arith.mulf %244, %215 : vector<14x14xf32>
    %246 = arith.addf %180, %245 : vector<14x14xf32>
    %247 = vector.broadcast %221 : f32 to vector<14x14xf32>
    %248 = arith.mulf %247, %215 : vector<14x14xf32>
    %249 = arith.addf %183, %248 : vector<14x14xf32>
    %250 = vector.broadcast %222 : f32 to vector<14x14xf32>
    %251 = arith.mulf %250, %215 : vector<14x14xf32>
    %252 = arith.addf %186, %251 : vector<14x14xf32>
    %253 = vector.broadcast %223 : f32 to vector<14x14xf32>
    %254 = arith.mulf %253, %215 : vector<14x14xf32>
    %255 = arith.addf %189, %254 : vector<14x14xf32>
    %256 = vector.broadcast %224 : f32 to vector<14x14xf32>
    %257 = arith.mulf %256, %215 : vector<14x14xf32>
    %258 = arith.addf %192, %257 : vector<14x14xf32>
    %259 = vector.broadcast %225 : f32 to vector<14x14xf32>
    %260 = arith.mulf %259, %215 : vector<14x14xf32>
    %261 = arith.addf %195, %260 : vector<14x14xf32>
    %262 = vector.broadcast %226 : f32 to vector<14x14xf32>
    %263 = arith.mulf %262, %215 : vector<14x14xf32>
    %264 = arith.addf %198, %263 : vector<14x14xf32>
    %265 = vector.broadcast %227 : f32 to vector<14x14xf32>
    %266 = arith.mulf %265, %215 : vector<14x14xf32>
    %267 = arith.addf %201, %266 : vector<14x14xf32>
    %268 = vector.broadcast %228 : f32 to vector<14x14xf32>
    %269 = arith.mulf %268, %215 : vector<14x14xf32>
    %270 = arith.addf %204, %269 : vector<14x14xf32>
    %271 = vector.broadcast %229 : f32 to vector<14x14xf32>
    %272 = arith.mulf %271, %215 : vector<14x14xf32>
    %273 = arith.addf %207, %272 : vector<14x14xf32>
    %274 = vector.broadcast %230 : f32 to vector<14x14xf32>
    %275 = arith.mulf %274, %215 : vector<14x14xf32>
    %276 = arith.addf %210, %275 : vector<14x14xf32>
    %277 = vector.broadcast %231 : f32 to vector<14x14xf32>
    %278 = arith.mulf %277, %215 : vector<14x14xf32>
    %279 = arith.addf %213, %278 : vector<14x14xf32>
    %c0_31 = arith.constant 0 : index
    %c3_32 = arith.constant 3 : index
    %c0_33 = arith.constant 0 : index
    %c0_34 = arith.constant 0 : index
    %280 = vector.load %arg1[%c0_31, %c3_32, %c0_33, %c0_34] : memref<1x12x15x15xf32, #tpu.memory_space<vmem>>, vector<1x1x14x14xf32>
    %281 = vector.shape_cast %280 : vector<1x1x14x14xf32> to vector<14x14xf32>
    %c64 = arith.constant 64 : index
    %282 = memref.load %arg2[%c64] : memref<432xf32, #tpu.memory_space<smem>>
    %c65 = arith.constant 65 : index
    %283 = memref.load %arg2[%c65] : memref<432xf32, #tpu.memory_space<smem>>
    %c66 = arith.constant 66 : index
    %284 = memref.load %arg2[%c66] : memref<432xf32, #tpu.memory_space<smem>>
    %c67 = arith.constant 67 : index
    %285 = memref.load %arg2[%c67] : memref<432xf32, #tpu.memory_space<smem>>
    %c68 = arith.constant 68 : index
    %286 = memref.load %arg2[%c68] : memref<432xf32, #tpu.memory_space<smem>>
    %c69 = arith.constant 69 : index
    %287 = memref.load %arg2[%c69] : memref<432xf32, #tpu.memory_space<smem>>
    %c70 = arith.constant 70 : index
    %288 = memref.load %arg2[%c70] : memref<432xf32, #tpu.memory_space<smem>>
    %c71 = arith.constant 71 : index
    %289 = memref.load %arg2[%c71] : memref<432xf32, #tpu.memory_space<smem>>
    %c72 = arith.constant 72 : index
    %290 = memref.load %arg2[%c72] : memref<432xf32, #tpu.memory_space<smem>>
    %c73 = arith.constant 73 : index
    %291 = memref.load %arg2[%c73] : memref<432xf32, #tpu.memory_space<smem>>
    %c74 = arith.constant 74 : index
    %292 = memref.load %arg2[%c74] : memref<432xf32, #tpu.memory_space<smem>>
    %c75 = arith.constant 75 : index
    %293 = memref.load %arg2[%c75] : memref<432xf32, #tpu.memory_space<smem>>
    %c76 = arith.constant 76 : index
    %294 = memref.load %arg2[%c76] : memref<432xf32, #tpu.memory_space<smem>>
    %c77 = arith.constant 77 : index
    %295 = memref.load %arg2[%c77] : memref<432xf32, #tpu.memory_space<smem>>
    %c78 = arith.constant 78 : index
    %296 = memref.load %arg2[%c78] : memref<432xf32, #tpu.memory_space<smem>>
    %c79 = arith.constant 79 : index
    %297 = memref.load %arg2[%c79] : memref<432xf32, #tpu.memory_space<smem>>
    %298 = vector.broadcast %282 : f32 to vector<14x14xf32>
    %299 = arith.mulf %298, %281 : vector<14x14xf32>
    %300 = arith.addf %234, %299 : vector<14x14xf32>
    %301 = vector.broadcast %283 : f32 to vector<14x14xf32>
    %302 = arith.mulf %301, %281 : vector<14x14xf32>
    %303 = arith.addf %237, %302 : vector<14x14xf32>
    %304 = vector.broadcast %284 : f32 to vector<14x14xf32>
    %305 = arith.mulf %304, %281 : vector<14x14xf32>
    %306 = arith.addf %240, %305 : vector<14x14xf32>
    %307 = vector.broadcast %285 : f32 to vector<14x14xf32>
    %308 = arith.mulf %307, %281 : vector<14x14xf32>
    %309 = arith.addf %243, %308 : vector<14x14xf32>
    %310 = vector.broadcast %286 : f32 to vector<14x14xf32>
    %311 = arith.mulf %310, %281 : vector<14x14xf32>
    %312 = arith.addf %246, %311 : vector<14x14xf32>
    %313 = vector.broadcast %287 : f32 to vector<14x14xf32>
    %314 = arith.mulf %313, %281 : vector<14x14xf32>
    %315 = arith.addf %249, %314 : vector<14x14xf32>
    %316 = vector.broadcast %288 : f32 to vector<14x14xf32>
    %317 = arith.mulf %316, %281 : vector<14x14xf32>
    %318 = arith.addf %252, %317 : vector<14x14xf32>
    %319 = vector.broadcast %289 : f32 to vector<14x14xf32>
    %320 = arith.mulf %319, %281 : vector<14x14xf32>
    %321 = arith.addf %255, %320 : vector<14x14xf32>
    %322 = vector.broadcast %290 : f32 to vector<14x14xf32>
    %323 = arith.mulf %322, %281 : vector<14x14xf32>
    %324 = arith.addf %258, %323 : vector<14x14xf32>
    %325 = vector.broadcast %291 : f32 to vector<14x14xf32>
    %326 = arith.mulf %325, %281 : vector<14x14xf32>
    %327 = arith.addf %261, %326 : vector<14x14xf32>
    %328 = vector.broadcast %292 : f32 to vector<14x14xf32>
    %329 = arith.mulf %328, %281 : vector<14x14xf32>
    %330 = arith.addf %264, %329 : vector<14x14xf32>
    %331 = vector.broadcast %293 : f32 to vector<14x14xf32>
    %332 = arith.mulf %331, %281 : vector<14x14xf32>
    %333 = arith.addf %267, %332 : vector<14x14xf32>
    %334 = vector.broadcast %294 : f32 to vector<14x14xf32>
    %335 = arith.mulf %334, %281 : vector<14x14xf32>
    %336 = arith.addf %270, %335 : vector<14x14xf32>
    %337 = vector.broadcast %295 : f32 to vector<14x14xf32>
    %338 = arith.mulf %337, %281 : vector<14x14xf32>
    %339 = arith.addf %273, %338 : vector<14x14xf32>
    %340 = vector.broadcast %296 : f32 to vector<14x14xf32>
    %341 = arith.mulf %340, %281 : vector<14x14xf32>
    %342 = arith.addf %276, %341 : vector<14x14xf32>
    %343 = vector.broadcast %297 : f32 to vector<14x14xf32>
    %344 = arith.mulf %343, %281 : vector<14x14xf32>
    %345 = arith.addf %279, %344 : vector<14x14xf32>
    %c0_35 = arith.constant 0 : index
    %c2_36 = arith.constant 2 : index
    %c0_37 = arith.constant 0 : index
    %c1_38 = arith.constant 1 : index
    %346 = vector.load %arg1[%c0_35, %c2_36, %c0_37, %c1_38] : memref<1x12x15x15xf32, #tpu.memory_space<vmem>>, vector<1x1x14x14xf32>
    %347 = vector.shape_cast %346 : vector<1x1x14x14xf32> to vector<14x14xf32>
    %c80 = arith.constant 80 : index
    %348 = memref.load %arg2[%c80] : memref<432xf32, #tpu.memory_space<smem>>
    %c81 = arith.constant 81 : index
    %349 = memref.load %arg2[%c81] : memref<432xf32, #tpu.memory_space<smem>>
    %c82 = arith.constant 82 : index
    %350 = memref.load %arg2[%c82] : memref<432xf32, #tpu.memory_space<smem>>
    %c83 = arith.constant 83 : index
    %351 = memref.load %arg2[%c83] : memref<432xf32, #tpu.memory_space<smem>>
    %c84 = arith.constant 84 : index
    %352 = memref.load %arg2[%c84] : memref<432xf32, #tpu.memory_space<smem>>
    %c85 = arith.constant 85 : index
    %353 = memref.load %arg2[%c85] : memref<432xf32, #tpu.memory_space<smem>>
    %c86 = arith.constant 86 : index
    %354 = memref.load %arg2[%c86] : memref<432xf32, #tpu.memory_space<smem>>
    %c87 = arith.constant 87 : index
    %355 = memref.load %arg2[%c87] : memref<432xf32, #tpu.memory_space<smem>>
    %c88 = arith.constant 88 : index
    %356 = memref.load %arg2[%c88] : memref<432xf32, #tpu.memory_space<smem>>
    %c89 = arith.constant 89 : index
    %357 = memref.load %arg2[%c89] : memref<432xf32, #tpu.memory_space<smem>>
    %c90 = arith.constant 90 : index
    %358 = memref.load %arg2[%c90] : memref<432xf32, #tpu.memory_space<smem>>
    %c91 = arith.constant 91 : index
    %359 = memref.load %arg2[%c91] : memref<432xf32, #tpu.memory_space<smem>>
    %c92 = arith.constant 92 : index
    %360 = memref.load %arg2[%c92] : memref<432xf32, #tpu.memory_space<smem>>
    %c93 = arith.constant 93 : index
    %361 = memref.load %arg2[%c93] : memref<432xf32, #tpu.memory_space<smem>>
    %c94 = arith.constant 94 : index
    %362 = memref.load %arg2[%c94] : memref<432xf32, #tpu.memory_space<smem>>
    %c95 = arith.constant 95 : index
    %363 = memref.load %arg2[%c95] : memref<432xf32, #tpu.memory_space<smem>>
    %364 = vector.broadcast %348 : f32 to vector<14x14xf32>
    %365 = arith.mulf %364, %347 : vector<14x14xf32>
    %366 = arith.addf %300, %365 : vector<14x14xf32>
    %367 = vector.broadcast %349 : f32 to vector<14x14xf32>
    %368 = arith.mulf %367, %347 : vector<14x14xf32>
    %369 = arith.addf %303, %368 : vector<14x14xf32>
    %370 = vector.broadcast %350 : f32 to vector<14x14xf32>
    %371 = arith.mulf %370, %347 : vector<14x14xf32>
    %372 = arith.addf %306, %371 : vector<14x14xf32>
    %373 = vector.broadcast %351 : f32 to vector<14x14xf32>
    %374 = arith.mulf %373, %347 : vector<14x14xf32>
    %375 = arith.addf %309, %374 : vector<14x14xf32>
    %376 = vector.broadcast %352 : f32 to vector<14x14xf32>
    %377 = arith.mulf %376, %347 : vector<14x14xf32>
    %378 = arith.addf %312, %377 : vector<14x14xf32>
    %379 = vector.broadcast %353 : f32 to vector<14x14xf32>
    %380 = arith.mulf %379, %347 : vector<14x14xf32>
    %381 = arith.addf %315, %380 : vector<14x14xf32>
    %382 = vector.broadcast %354 : f32 to vector<14x14xf32>
    %383 = arith.mulf %382, %347 : vector<14x14xf32>
    %384 = arith.addf %318, %383 : vector<14x14xf32>
    %385 = vector.broadcast %355 : f32 to vector<14x14xf32>
    %386 = arith.mulf %385, %347 : vector<14x14xf32>
    %387 = arith.addf %321, %386 : vector<14x14xf32>
    %388 = vector.broadcast %356 : f32 to vector<14x14xf32>
    %389 = arith.mulf %388, %347 : vector<14x14xf32>
    %390 = arith.addf %324, %389 : vector<14x14xf32>
    %391 = vector.broadcast %357 : f32 to vector<14x14xf32>
    %392 = arith.mulf %391, %347 : vector<14x14xf32>
    %393 = arith.addf %327, %392 : vector<14x14xf32>
    %394 = vector.broadcast %358 : f32 to vector<14x14xf32>
    %395 = arith.mulf %394, %347 : vector<14x14xf32>
    %396 = arith.addf %330, %395 : vector<14x14xf32>
    %397 = vector.broadcast %359 : f32 to vector<14x14xf32>
    %398 = arith.mulf %397, %347 : vector<14x14xf32>
    %399 = arith.addf %333, %398 : vector<14x14xf32>
    %400 = vector.broadcast %360 : f32 to vector<14x14xf32>
    %401 = arith.mulf %400, %347 : vector<14x14xf32>
    %402 = arith.addf %336, %401 : vector<14x14xf32>
    %403 = vector.broadcast %361 : f32 to vector<14x14xf32>
    %404 = arith.mulf %403, %347 : vector<14x14xf32>
    %405 = arith.addf %339, %404 : vector<14x14xf32>
    %406 = vector.broadcast %362 : f32 to vector<14x14xf32>
    %407 = arith.mulf %406, %347 : vector<14x14xf32>
    %408 = arith.addf %342, %407 : vector<14x14xf32>
    %409 = vector.broadcast %363 : f32 to vector<14x14xf32>
    %410 = arith.mulf %409, %347 : vector<14x14xf32>
    %411 = arith.addf %345, %410 : vector<14x14xf32>
    %c0_39 = arith.constant 0 : index
    %c0_40 = arith.constant 0 : index
    %c1_41 = arith.constant 1 : index
    %c0_42 = arith.constant 0 : index
    %412 = vector.load %arg1[%c0_39, %c0_40, %c1_41, %c0_42] : memref<1x12x15x15xf32, #tpu.memory_space<vmem>>, vector<1x1x14x14xf32>
    %413 = vector.shape_cast %412 : vector<1x1x14x14xf32> to vector<14x14xf32>
    %c96 = arith.constant 96 : index
    %414 = memref.load %arg2[%c96] : memref<432xf32, #tpu.memory_space<smem>>
    %c97 = arith.constant 97 : index
    %415 = memref.load %arg2[%c97] : memref<432xf32, #tpu.memory_space<smem>>
    %c98 = arith.constant 98 : index
    %416 = memref.load %arg2[%c98] : memref<432xf32, #tpu.memory_space<smem>>
    %c99 = arith.constant 99 : index
    %417 = memref.load %arg2[%c99] : memref<432xf32, #tpu.memory_space<smem>>
    %c100 = arith.constant 100 : index
    %418 = memref.load %arg2[%c100] : memref<432xf32, #tpu.memory_space<smem>>
    %c101 = arith.constant 101 : index
    %419 = memref.load %arg2[%c101] : memref<432xf32, #tpu.memory_space<smem>>
    %c102 = arith.constant 102 : index
    %420 = memref.load %arg2[%c102] : memref<432xf32, #tpu.memory_space<smem>>
    %c103 = arith.constant 103 : index
    %421 = memref.load %arg2[%c103] : memref<432xf32, #tpu.memory_space<smem>>
    %c104 = arith.constant 104 : index
    %422 = memref.load %arg2[%c104] : memref<432xf32, #tpu.memory_space<smem>>
    %c105 = arith.constant 105 : index
    %423 = memref.load %arg2[%c105] : memref<432xf32, #tpu.memory_space<smem>>
    %c106 = arith.constant 106 : index
    %424 = memref.load %arg2[%c106] : memref<432xf32, #tpu.memory_space<smem>>
    %c107 = arith.constant 107 : index
    %425 = memref.load %arg2[%c107] : memref<432xf32, #tpu.memory_space<smem>>
    %c108 = arith.constant 108 : index
    %426 = memref.load %arg2[%c108] : memref<432xf32, #tpu.memory_space<smem>>
    %c109 = arith.constant 109 : index
    %427 = memref.load %arg2[%c109] : memref<432xf32, #tpu.memory_space<smem>>
    %c110 = arith.constant 110 : index
    %428 = memref.load %arg2[%c110] : memref<432xf32, #tpu.memory_space<smem>>
    %c111 = arith.constant 111 : index
    %429 = memref.load %arg2[%c111] : memref<432xf32, #tpu.memory_space<smem>>
    %430 = vector.broadcast %414 : f32 to vector<14x14xf32>
    %431 = arith.mulf %430, %413 : vector<14x14xf32>
    %432 = arith.addf %366, %431 : vector<14x14xf32>
    %433 = vector.broadcast %415 : f32 to vector<14x14xf32>
    %434 = arith.mulf %433, %413 : vector<14x14xf32>
    %435 = arith.addf %369, %434 : vector<14x14xf32>
    %436 = vector.broadcast %416 : f32 to vector<14x14xf32>
    %437 = arith.mulf %436, %413 : vector<14x14xf32>
    %438 = arith.addf %372, %437 : vector<14x14xf32>
    %439 = vector.broadcast %417 : f32 to vector<14x14xf32>
    %440 = arith.mulf %439, %413 : vector<14x14xf32>
    %441 = arith.addf %375, %440 : vector<14x14xf32>
    %442 = vector.broadcast %418 : f32 to vector<14x14xf32>
    %443 = arith.mulf %442, %413 : vector<14x14xf32>
    %444 = arith.addf %378, %443 : vector<14x14xf32>
    %445 = vector.broadcast %419 : f32 to vector<14x14xf32>
    %446 = arith.mulf %445, %413 : vector<14x14xf32>
    %447 = arith.addf %381, %446 : vector<14x14xf32>
    %448 = vector.broadcast %420 : f32 to vector<14x14xf32>
    %449 = arith.mulf %448, %413 : vector<14x14xf32>
    %450 = arith.addf %384, %449 : vector<14x14xf32>
    %451 = vector.broadcast %421 : f32 to vector<14x14xf32>
    %452 = arith.mulf %451, %413 : vector<14x14xf32>
    %453 = arith.addf %387, %452 : vector<14x14xf32>
    %454 = vector.broadcast %422 : f32 to vector<14x14xf32>
    %455 = arith.mulf %454, %413 : vector<14x14xf32>
    %456 = arith.addf %390, %455 : vector<14x14xf32>
    %457 = vector.broadcast %423 : f32 to vector<14x14xf32>
    %458 = arith.mulf %457, %413 : vector<14x14xf32>
    %459 = arith.addf %393, %458 : vector<14x14xf32>
    %460 = vector.broadcast %424 : f32 to vector<14x14xf32>
    %461 = arith.mulf %460, %413 : vector<14x14xf32>
    %462 = arith.addf %396, %461 : vector<14x14xf32>
    %463 = vector.broadcast %425 : f32 to vector<14x14xf32>
    %464 = arith.mulf %463, %413 : vector<14x14xf32>
    %465 = arith.addf %399, %464 : vector<14x14xf32>
    %466 = vector.broadcast %426 : f32 to vector<14x14xf32>
    %467 = arith.mulf %466, %413 : vector<14x14xf32>
    %468 = arith.addf %402, %467 : vector<14x14xf32>
    %469 = vector.broadcast %427 : f32 to vector<14x14xf32>
    %470 = arith.mulf %469, %413 : vector<14x14xf32>
    %471 = arith.addf %405, %470 : vector<14x14xf32>
    %472 = vector.broadcast %428 : f32 to vector<14x14xf32>
    %473 = arith.mulf %472, %413 : vector<14x14xf32>
    %474 = arith.addf %408, %473 : vector<14x14xf32>
    %475 = vector.broadcast %429 : f32 to vector<14x14xf32>
    %476 = arith.mulf %475, %413 : vector<14x14xf32>
    %477 = arith.addf %411, %476 : vector<14x14xf32>
    %c0_43 = arith.constant 0 : index
    %c1_44 = arith.constant 1 : index
    %c1_45 = arith.constant 1 : index
    %c0_46 = arith.constant 0 : index
    %478 = vector.load %arg1[%c0_43, %c1_44, %c1_45, %c0_46] : memref<1x12x15x15xf32, #tpu.memory_space<vmem>>, vector<1x1x14x14xf32>
    %479 = vector.shape_cast %478 : vector<1x1x14x14xf32> to vector<14x14xf32>
    %c112 = arith.constant 112 : index
    %480 = memref.load %arg2[%c112] : memref<432xf32, #tpu.memory_space<smem>>
    %c113 = arith.constant 113 : index
    %481 = memref.load %arg2[%c113] : memref<432xf32, #tpu.memory_space<smem>>
    %c114 = arith.constant 114 : index
    %482 = memref.load %arg2[%c114] : memref<432xf32, #tpu.memory_space<smem>>
    %c115 = arith.constant 115 : index
    %483 = memref.load %arg2[%c115] : memref<432xf32, #tpu.memory_space<smem>>
    %c116 = arith.constant 116 : index
    %484 = memref.load %arg2[%c116] : memref<432xf32, #tpu.memory_space<smem>>
    %c117 = arith.constant 117 : index
    %485 = memref.load %arg2[%c117] : memref<432xf32, #tpu.memory_space<smem>>
    %c118 = arith.constant 118 : index
    %486 = memref.load %arg2[%c118] : memref<432xf32, #tpu.memory_space<smem>>
    %c119 = arith.constant 119 : index
    %487 = memref.load %arg2[%c119] : memref<432xf32, #tpu.memory_space<smem>>
    %c120 = arith.constant 120 : index
    %488 = memref.load %arg2[%c120] : memref<432xf32, #tpu.memory_space<smem>>
    %c121 = arith.constant 121 : index
    %489 = memref.load %arg2[%c121] : memref<432xf32, #tpu.memory_space<smem>>
    %c122 = arith.constant 122 : index
    %490 = memref.load %arg2[%c122] : memref<432xf32, #tpu.memory_space<smem>>
    %c123 = arith.constant 123 : index
    %491 = memref.load %arg2[%c123] : memref<432xf32, #tpu.memory_space<smem>>
    %c124 = arith.constant 124 : index
    %492 = memref.load %arg2[%c124] : memref<432xf32, #tpu.memory_space<smem>>
    %c125 = arith.constant 125 : index
    %493 = memref.load %arg2[%c125] : memref<432xf32, #tpu.memory_space<smem>>
    %c126 = arith.constant 126 : index
    %494 = memref.load %arg2[%c126] : memref<432xf32, #tpu.memory_space<smem>>
    %c127 = arith.constant 127 : index
    %495 = memref.load %arg2[%c127] : memref<432xf32, #tpu.memory_space<smem>>
    %496 = vector.broadcast %480 : f32 to vector<14x14xf32>
    %497 = arith.mulf %496, %479 : vector<14x14xf32>
    %498 = arith.addf %432, %497 : vector<14x14xf32>
    %499 = vector.broadcast %481 : f32 to vector<14x14xf32>
    %500 = arith.mulf %499, %479 : vector<14x14xf32>
    %501 = arith.addf %435, %500 : vector<14x14xf32>
    %502 = vector.broadcast %482 : f32 to vector<14x14xf32>
    %503 = arith.mulf %502, %479 : vector<14x14xf32>
    %504 = arith.addf %438, %503 : vector<14x14xf32>
    %505 = vector.broadcast %483 : f32 to vector<14x14xf32>
    %506 = arith.mulf %505, %479 : vector<14x14xf32>
    %507 = arith.addf %441, %506 : vector<14x14xf32>
    %508 = vector.broadcast %484 : f32 to vector<14x14xf32>
    %509 = arith.mulf %508, %479 : vector<14x14xf32>
    %510 = arith.addf %444, %509 : vector<14x14xf32>
    %511 = vector.broadcast %485 : f32 to vector<14x14xf32>
    %512 = arith.mulf %511, %479 : vector<14x14xf32>
    %513 = arith.addf %447, %512 : vector<14x14xf32>
    %514 = vector.broadcast %486 : f32 to vector<14x14xf32>
    %515 = arith.mulf %514, %479 : vector<14x14xf32>
    %516 = arith.addf %450, %515 : vector<14x14xf32>
    %517 = vector.broadcast %487 : f32 to vector<14x14xf32>
    %518 = arith.mulf %517, %479 : vector<14x14xf32>
    %519 = arith.addf %453, %518 : vector<14x14xf32>
    %520 = vector.broadcast %488 : f32 to vector<14x14xf32>
    %521 = arith.mulf %520, %479 : vector<14x14xf32>
    %522 = arith.addf %456, %521 : vector<14x14xf32>
    %523 = vector.broadcast %489 : f32 to vector<14x14xf32>
    %524 = arith.mulf %523, %479 : vector<14x14xf32>
    %525 = arith.addf %459, %524 : vector<14x14xf32>
    %526 = vector.broadcast %490 : f32 to vector<14x14xf32>
    %527 = arith.mulf %526, %479 : vector<14x14xf32>
    %528 = arith.addf %462, %527 : vector<14x14xf32>
    %529 = vector.broadcast %491 : f32 to vector<14x14xf32>
    %530 = arith.mulf %529, %479 : vector<14x14xf32>
    %531 = arith.addf %465, %530 : vector<14x14xf32>
    %532 = vector.broadcast %492 : f32 to vector<14x14xf32>
    %533 = arith.mulf %532, %479 : vector<14x14xf32>
    %534 = arith.addf %468, %533 : vector<14x14xf32>
    %535 = vector.broadcast %493 : f32 to vector<14x14xf32>
    %536 = arith.mulf %535, %479 : vector<14x14xf32>
    %537 = arith.addf %471, %536 : vector<14x14xf32>
    %538 = vector.broadcast %494 : f32 to vector<14x14xf32>
    %539 = arith.mulf %538, %479 : vector<14x14xf32>
    %540 = arith.addf %474, %539 : vector<14x14xf32>
    %541 = vector.broadcast %495 : f32 to vector<14x14xf32>
    %542 = arith.mulf %541, %479 : vector<14x14xf32>
    %543 = arith.addf %477, %542 : vector<14x14xf32>
    %c0_47 = arith.constant 0 : index
    %c0_48 = arith.constant 0 : index
    %c1_49 = arith.constant 1 : index
    %c1_50 = arith.constant 1 : index
    %544 = vector.load %arg1[%c0_47, %c0_48, %c1_49, %c1_50] : memref<1x12x15x15xf32, #tpu.memory_space<vmem>>, vector<1x1x14x14xf32>
    %545 = vector.shape_cast %544 : vector<1x1x14x14xf32> to vector<14x14xf32>
    %c128 = arith.constant 128 : index
    %546 = memref.load %arg2[%c128] : memref<432xf32, #tpu.memory_space<smem>>
    %c129 = arith.constant 129 : index
    %547 = memref.load %arg2[%c129] : memref<432xf32, #tpu.memory_space<smem>>
    %c130 = arith.constant 130 : index
    %548 = memref.load %arg2[%c130] : memref<432xf32, #tpu.memory_space<smem>>
    %c131 = arith.constant 131 : index
    %549 = memref.load %arg2[%c131] : memref<432xf32, #tpu.memory_space<smem>>
    %c132 = arith.constant 132 : index
    %550 = memref.load %arg2[%c132] : memref<432xf32, #tpu.memory_space<smem>>
    %c133 = arith.constant 133 : index
    %551 = memref.load %arg2[%c133] : memref<432xf32, #tpu.memory_space<smem>>
    %c134 = arith.constant 134 : index
    %552 = memref.load %arg2[%c134] : memref<432xf32, #tpu.memory_space<smem>>
    %c135 = arith.constant 135 : index
    %553 = memref.load %arg2[%c135] : memref<432xf32, #tpu.memory_space<smem>>
    %c136 = arith.constant 136 : index
    %554 = memref.load %arg2[%c136] : memref<432xf32, #tpu.memory_space<smem>>
    %c137 = arith.constant 137 : index
    %555 = memref.load %arg2[%c137] : memref<432xf32, #tpu.memory_space<smem>>
    %c138 = arith.constant 138 : index
    %556 = memref.load %arg2[%c138] : memref<432xf32, #tpu.memory_space<smem>>
    %c139 = arith.constant 139 : index
    %557 = memref.load %arg2[%c139] : memref<432xf32, #tpu.memory_space<smem>>
    %c140 = arith.constant 140 : index
    %558 = memref.load %arg2[%c140] : memref<432xf32, #tpu.memory_space<smem>>
    %c141 = arith.constant 141 : index
    %559 = memref.load %arg2[%c141] : memref<432xf32, #tpu.memory_space<smem>>
    %c142 = arith.constant 142 : index
    %560 = memref.load %arg2[%c142] : memref<432xf32, #tpu.memory_space<smem>>
    %c143 = arith.constant 143 : index
    %561 = memref.load %arg2[%c143] : memref<432xf32, #tpu.memory_space<smem>>
    %562 = vector.broadcast %546 : f32 to vector<14x14xf32>
    %563 = arith.mulf %562, %545 : vector<14x14xf32>
    %564 = arith.addf %498, %563 : vector<14x14xf32>
    %565 = vector.broadcast %547 : f32 to vector<14x14xf32>
    %566 = arith.mulf %565, %545 : vector<14x14xf32>
    %567 = arith.addf %501, %566 : vector<14x14xf32>
    %568 = vector.broadcast %548 : f32 to vector<14x14xf32>
    %569 = arith.mulf %568, %545 : vector<14x14xf32>
    %570 = arith.addf %504, %569 : vector<14x14xf32>
    %571 = vector.broadcast %549 : f32 to vector<14x14xf32>
    %572 = arith.mulf %571, %545 : vector<14x14xf32>
    %573 = arith.addf %507, %572 : vector<14x14xf32>
    %574 = vector.broadcast %550 : f32 to vector<14x14xf32>
    %575 = arith.mulf %574, %545 : vector<14x14xf32>
    %576 = arith.addf %510, %575 : vector<14x14xf32>
    %577 = vector.broadcast %551 : f32 to vector<14x14xf32>
    %578 = arith.mulf %577, %545 : vector<14x14xf32>
    %579 = arith.addf %513, %578 : vector<14x14xf32>
    %580 = vector.broadcast %552 : f32 to vector<14x14xf32>
    %581 = arith.mulf %580, %545 : vector<14x14xf32>
    %582 = arith.addf %516, %581 : vector<14x14xf32>
    %583 = vector.broadcast %553 : f32 to vector<14x14xf32>
    %584 = arith.mulf %583, %545 : vector<14x14xf32>
    %585 = arith.addf %519, %584 : vector<14x14xf32>
    %586 = vector.broadcast %554 : f32 to vector<14x14xf32>
    %587 = arith.mulf %586, %545 : vector<14x14xf32>
    %588 = arith.addf %522, %587 : vector<14x14xf32>
    %589 = vector.broadcast %555 : f32 to vector<14x14xf32>
    %590 = arith.mulf %589, %545 : vector<14x14xf32>
    %591 = arith.addf %525, %590 : vector<14x14xf32>
    %592 = vector.broadcast %556 : f32 to vector<14x14xf32>
    %593 = arith.mulf %592, %545 : vector<14x14xf32>
    %594 = arith.addf %528, %593 : vector<14x14xf32>
    %595 = vector.broadcast %557 : f32 to vector<14x14xf32>
    %596 = arith.mulf %595, %545 : vector<14x14xf32>
    %597 = arith.addf %531, %596 : vector<14x14xf32>
    %598 = vector.broadcast %558 : f32 to vector<14x14xf32>
    %599 = arith.mulf %598, %545 : vector<14x14xf32>
    %600 = arith.addf %534, %599 : vector<14x14xf32>
    %601 = vector.broadcast %559 : f32 to vector<14x14xf32>
    %602 = arith.mulf %601, %545 : vector<14x14xf32>
    %603 = arith.addf %537, %602 : vector<14x14xf32>
    %604 = vector.broadcast %560 : f32 to vector<14x14xf32>
    %605 = arith.mulf %604, %545 : vector<14x14xf32>
    %606 = arith.addf %540, %605 : vector<14x14xf32>
    %607 = vector.broadcast %561 : f32 to vector<14x14xf32>
    %608 = arith.mulf %607, %545 : vector<14x14xf32>
    %609 = arith.addf %543, %608 : vector<14x14xf32>
    %c0_51 = arith.constant 0 : index
    %c4_52 = arith.constant 4 : index
    %c0_53 = arith.constant 0 : index
    %c0_54 = arith.constant 0 : index
    %610 = vector.load %arg1[%c0_51, %c4_52, %c0_53, %c0_54] : memref<1x12x15x15xf32, #tpu.memory_space<vmem>>, vector<1x1x14x14xf32>
    %611 = vector.shape_cast %610 : vector<1x1x14x14xf32> to vector<14x14xf32>
    %c144 = arith.constant 144 : index
    %612 = memref.load %arg2[%c144] : memref<432xf32, #tpu.memory_space<smem>>
    %c145 = arith.constant 145 : index
    %613 = memref.load %arg2[%c145] : memref<432xf32, #tpu.memory_space<smem>>
    %c146 = arith.constant 146 : index
    %614 = memref.load %arg2[%c146] : memref<432xf32, #tpu.memory_space<smem>>
    %c147 = arith.constant 147 : index
    %615 = memref.load %arg2[%c147] : memref<432xf32, #tpu.memory_space<smem>>
    %c148 = arith.constant 148 : index
    %616 = memref.load %arg2[%c148] : memref<432xf32, #tpu.memory_space<smem>>
    %c149 = arith.constant 149 : index
    %617 = memref.load %arg2[%c149] : memref<432xf32, #tpu.memory_space<smem>>
    %c150 = arith.constant 150 : index
    %618 = memref.load %arg2[%c150] : memref<432xf32, #tpu.memory_space<smem>>
    %c151 = arith.constant 151 : index
    %619 = memref.load %arg2[%c151] : memref<432xf32, #tpu.memory_space<smem>>
    %c152 = arith.constant 152 : index
    %620 = memref.load %arg2[%c152] : memref<432xf32, #tpu.memory_space<smem>>
    %c153 = arith.constant 153 : index
    %621 = memref.load %arg2[%c153] : memref<432xf32, #tpu.memory_space<smem>>
    %c154 = arith.constant 154 : index
    %622 = memref.load %arg2[%c154] : memref<432xf32, #tpu.memory_space<smem>>
    %c155 = arith.constant 155 : index
    %623 = memref.load %arg2[%c155] : memref<432xf32, #tpu.memory_space<smem>>
    %c156 = arith.constant 156 : index
    %624 = memref.load %arg2[%c156] : memref<432xf32, #tpu.memory_space<smem>>
    %c157 = arith.constant 157 : index
    %625 = memref.load %arg2[%c157] : memref<432xf32, #tpu.memory_space<smem>>
    %c158 = arith.constant 158 : index
    %626 = memref.load %arg2[%c158] : memref<432xf32, #tpu.memory_space<smem>>
    %c159 = arith.constant 159 : index
    %627 = memref.load %arg2[%c159] : memref<432xf32, #tpu.memory_space<smem>>
    %628 = vector.broadcast %612 : f32 to vector<14x14xf32>
    %629 = arith.mulf %628, %611 : vector<14x14xf32>
    %630 = arith.addf %564, %629 : vector<14x14xf32>
    %631 = vector.broadcast %613 : f32 to vector<14x14xf32>
    %632 = arith.mulf %631, %611 : vector<14x14xf32>
    %633 = arith.addf %567, %632 : vector<14x14xf32>
    %634 = vector.broadcast %614 : f32 to vector<14x14xf32>
    %635 = arith.mulf %634, %611 : vector<14x14xf32>
    %636 = arith.addf %570, %635 : vector<14x14xf32>
    %637 = vector.broadcast %615 : f32 to vector<14x14xf32>
    %638 = arith.mulf %637, %611 : vector<14x14xf32>
    %639 = arith.addf %573, %638 : vector<14x14xf32>
    %640 = vector.broadcast %616 : f32 to vector<14x14xf32>
    %641 = arith.mulf %640, %611 : vector<14x14xf32>
    %642 = arith.addf %576, %641 : vector<14x14xf32>
    %643 = vector.broadcast %617 : f32 to vector<14x14xf32>
    %644 = arith.mulf %643, %611 : vector<14x14xf32>
    %645 = arith.addf %579, %644 : vector<14x14xf32>
    %646 = vector.broadcast %618 : f32 to vector<14x14xf32>
    %647 = arith.mulf %646, %611 : vector<14x14xf32>
    %648 = arith.addf %582, %647 : vector<14x14xf32>
    %649 = vector.broadcast %619 : f32 to vector<14x14xf32>
    %650 = arith.mulf %649, %611 : vector<14x14xf32>
    %651 = arith.addf %585, %650 : vector<14x14xf32>
    %652 = vector.broadcast %620 : f32 to vector<14x14xf32>
    %653 = arith.mulf %652, %611 : vector<14x14xf32>
    %654 = arith.addf %588, %653 : vector<14x14xf32>
    %655 = vector.broadcast %621 : f32 to vector<14x14xf32>
    %656 = arith.mulf %655, %611 : vector<14x14xf32>
    %657 = arith.addf %591, %656 : vector<14x14xf32>
    %658 = vector.broadcast %622 : f32 to vector<14x14xf32>
    %659 = arith.mulf %658, %611 : vector<14x14xf32>
    %660 = arith.addf %594, %659 : vector<14x14xf32>
    %661 = vector.broadcast %623 : f32 to vector<14x14xf32>
    %662 = arith.mulf %661, %611 : vector<14x14xf32>
    %663 = arith.addf %597, %662 : vector<14x14xf32>
    %664 = vector.broadcast %624 : f32 to vector<14x14xf32>
    %665 = arith.mulf %664, %611 : vector<14x14xf32>
    %666 = arith.addf %600, %665 : vector<14x14xf32>
    %667 = vector.broadcast %625 : f32 to vector<14x14xf32>
    %668 = arith.mulf %667, %611 : vector<14x14xf32>
    %669 = arith.addf %603, %668 : vector<14x14xf32>
    %670 = vector.broadcast %626 : f32 to vector<14x14xf32>
    %671 = arith.mulf %670, %611 : vector<14x14xf32>
    %672 = arith.addf %606, %671 : vector<14x14xf32>
    %673 = vector.broadcast %627 : f32 to vector<14x14xf32>
    %674 = arith.mulf %673, %611 : vector<14x14xf32>
    %675 = arith.addf %609, %674 : vector<14x14xf32>
    %c0_55 = arith.constant 0 : index
    %c5_56 = arith.constant 5 : index
    %c0_57 = arith.constant 0 : index
    %c0_58 = arith.constant 0 : index
    %676 = vector.load %arg1[%c0_55, %c5_56, %c0_57, %c0_58] : memref<1x12x15x15xf32, #tpu.memory_space<vmem>>, vector<1x1x14x14xf32>
    %677 = vector.shape_cast %676 : vector<1x1x14x14xf32> to vector<14x14xf32>
    %c160 = arith.constant 160 : index
    %678 = memref.load %arg2[%c160] : memref<432xf32, #tpu.memory_space<smem>>
    %c161 = arith.constant 161 : index
    %679 = memref.load %arg2[%c161] : memref<432xf32, #tpu.memory_space<smem>>
    %c162 = arith.constant 162 : index
    %680 = memref.load %arg2[%c162] : memref<432xf32, #tpu.memory_space<smem>>
    %c163 = arith.constant 163 : index
    %681 = memref.load %arg2[%c163] : memref<432xf32, #tpu.memory_space<smem>>
    %c164 = arith.constant 164 : index
    %682 = memref.load %arg2[%c164] : memref<432xf32, #tpu.memory_space<smem>>
    %c165 = arith.constant 165 : index
    %683 = memref.load %arg2[%c165] : memref<432xf32, #tpu.memory_space<smem>>
    %c166 = arith.constant 166 : index
    %684 = memref.load %arg2[%c166] : memref<432xf32, #tpu.memory_space<smem>>
    %c167 = arith.constant 167 : index
    %685 = memref.load %arg2[%c167] : memref<432xf32, #tpu.memory_space<smem>>
    %c168 = arith.constant 168 : index
    %686 = memref.load %arg2[%c168] : memref<432xf32, #tpu.memory_space<smem>>
    %c169 = arith.constant 169 : index
    %687 = memref.load %arg2[%c169] : memref<432xf32, #tpu.memory_space<smem>>
    %c170 = arith.constant 170 : index
    %688 = memref.load %arg2[%c170] : memref<432xf32, #tpu.memory_space<smem>>
    %c171 = arith.constant 171 : index
    %689 = memref.load %arg2[%c171] : memref<432xf32, #tpu.memory_space<smem>>
    %c172 = arith.constant 172 : index
    %690 = memref.load %arg2[%c172] : memref<432xf32, #tpu.memory_space<smem>>
    %c173 = arith.constant 173 : index
    %691 = memref.load %arg2[%c173] : memref<432xf32, #tpu.memory_space<smem>>
    %c174 = arith.constant 174 : index
    %692 = memref.load %arg2[%c174] : memref<432xf32, #tpu.memory_space<smem>>
    %c175 = arith.constant 175 : index
    %693 = memref.load %arg2[%c175] : memref<432xf32, #tpu.memory_space<smem>>
    %694 = vector.broadcast %678 : f32 to vector<14x14xf32>
    %695 = arith.mulf %694, %677 : vector<14x14xf32>
    %696 = arith.addf %630, %695 : vector<14x14xf32>
    %697 = vector.broadcast %679 : f32 to vector<14x14xf32>
    %698 = arith.mulf %697, %677 : vector<14x14xf32>
    %699 = arith.addf %633, %698 : vector<14x14xf32>
    %700 = vector.broadcast %680 : f32 to vector<14x14xf32>
    %701 = arith.mulf %700, %677 : vector<14x14xf32>
    %702 = arith.addf %636, %701 : vector<14x14xf32>
    %703 = vector.broadcast %681 : f32 to vector<14x14xf32>
    %704 = arith.mulf %703, %677 : vector<14x14xf32>
    %705 = arith.addf %639, %704 : vector<14x14xf32>
    %706 = vector.broadcast %682 : f32 to vector<14x14xf32>
    %707 = arith.mulf %706, %677 : vector<14x14xf32>
    %708 = arith.addf %642, %707 : vector<14x14xf32>
    %709 = vector.broadcast %683 : f32 to vector<14x14xf32>
    %710 = arith.mulf %709, %677 : vector<14x14xf32>
    %711 = arith.addf %645, %710 : vector<14x14xf32>
    %712 = vector.broadcast %684 : f32 to vector<14x14xf32>
    %713 = arith.mulf %712, %677 : vector<14x14xf32>
    %714 = arith.addf %648, %713 : vector<14x14xf32>
    %715 = vector.broadcast %685 : f32 to vector<14x14xf32>
    %716 = arith.mulf %715, %677 : vector<14x14xf32>
    %717 = arith.addf %651, %716 : vector<14x14xf32>
    %718 = vector.broadcast %686 : f32 to vector<14x14xf32>
    %719 = arith.mulf %718, %677 : vector<14x14xf32>
    %720 = arith.addf %654, %719 : vector<14x14xf32>
    %721 = vector.broadcast %687 : f32 to vector<14x14xf32>
    %722 = arith.mulf %721, %677 : vector<14x14xf32>
    %723 = arith.addf %657, %722 : vector<14x14xf32>
    %724 = vector.broadcast %688 : f32 to vector<14x14xf32>
    %725 = arith.mulf %724, %677 : vector<14x14xf32>
    %726 = arith.addf %660, %725 : vector<14x14xf32>
    %727 = vector.broadcast %689 : f32 to vector<14x14xf32>
    %728 = arith.mulf %727, %677 : vector<14x14xf32>
    %729 = arith.addf %663, %728 : vector<14x14xf32>
    %730 = vector.broadcast %690 : f32 to vector<14x14xf32>
    %731 = arith.mulf %730, %677 : vector<14x14xf32>
    %732 = arith.addf %666, %731 : vector<14x14xf32>
    %733 = vector.broadcast %691 : f32 to vector<14x14xf32>
    %734 = arith.mulf %733, %677 : vector<14x14xf32>
    %735 = arith.addf %669, %734 : vector<14x14xf32>
    %736 = vector.broadcast %692 : f32 to vector<14x14xf32>
    %737 = arith.mulf %736, %677 : vector<14x14xf32>
    %738 = arith.addf %672, %737 : vector<14x14xf32>
    %739 = vector.broadcast %693 : f32 to vector<14x14xf32>
    %740 = arith.mulf %739, %677 : vector<14x14xf32>
    %741 = arith.addf %675, %740 : vector<14x14xf32>
    %c0_59 = arith.constant 0 : index
    %c4_60 = arith.constant 4 : index
    %c0_61 = arith.constant 0 : index
    %c1_62 = arith.constant 1 : index
    %742 = vector.load %arg1[%c0_59, %c4_60, %c0_61, %c1_62] : memref<1x12x15x15xf32, #tpu.memory_space<vmem>>, vector<1x1x14x14xf32>
    %743 = vector.shape_cast %742 : vector<1x1x14x14xf32> to vector<14x14xf32>
    %c176 = arith.constant 176 : index
    %744 = memref.load %arg2[%c176] : memref<432xf32, #tpu.memory_space<smem>>
    %c177 = arith.constant 177 : index
    %745 = memref.load %arg2[%c177] : memref<432xf32, #tpu.memory_space<smem>>
    %c178 = arith.constant 178 : index
    %746 = memref.load %arg2[%c178] : memref<432xf32, #tpu.memory_space<smem>>
    %c179 = arith.constant 179 : index
    %747 = memref.load %arg2[%c179] : memref<432xf32, #tpu.memory_space<smem>>
    %c180 = arith.constant 180 : index
    %748 = memref.load %arg2[%c180] : memref<432xf32, #tpu.memory_space<smem>>
    %c181 = arith.constant 181 : index
    %749 = memref.load %arg2[%c181] : memref<432xf32, #tpu.memory_space<smem>>
    %c182 = arith.constant 182 : index
    %750 = memref.load %arg2[%c182] : memref<432xf32, #tpu.memory_space<smem>>
    %c183 = arith.constant 183 : index
    %751 = memref.load %arg2[%c183] : memref<432xf32, #tpu.memory_space<smem>>
    %c184 = arith.constant 184 : index
    %752 = memref.load %arg2[%c184] : memref<432xf32, #tpu.memory_space<smem>>
    %c185 = arith.constant 185 : index
    %753 = memref.load %arg2[%c185] : memref<432xf32, #tpu.memory_space<smem>>
    %c186 = arith.constant 186 : index
    %754 = memref.load %arg2[%c186] : memref<432xf32, #tpu.memory_space<smem>>
    %c187 = arith.constant 187 : index
    %755 = memref.load %arg2[%c187] : memref<432xf32, #tpu.memory_space<smem>>
    %c188 = arith.constant 188 : index
    %756 = memref.load %arg2[%c188] : memref<432xf32, #tpu.memory_space<smem>>
    %c189 = arith.constant 189 : index
    %757 = memref.load %arg2[%c189] : memref<432xf32, #tpu.memory_space<smem>>
    %c190 = arith.constant 190 : index
    %758 = memref.load %arg2[%c190] : memref<432xf32, #tpu.memory_space<smem>>
    %c191 = arith.constant 191 : index
    %759 = memref.load %arg2[%c191] : memref<432xf32, #tpu.memory_space<smem>>
    %760 = vector.broadcast %744 : f32 to vector<14x14xf32>
    %761 = arith.mulf %760, %743 : vector<14x14xf32>
    %762 = arith.addf %696, %761 : vector<14x14xf32>
    %763 = vector.broadcast %745 : f32 to vector<14x14xf32>
    %764 = arith.mulf %763, %743 : vector<14x14xf32>
    %765 = arith.addf %699, %764 : vector<14x14xf32>
    %766 = vector.broadcast %746 : f32 to vector<14x14xf32>
    %767 = arith.mulf %766, %743 : vector<14x14xf32>
    %768 = arith.addf %702, %767 : vector<14x14xf32>
    %769 = vector.broadcast %747 : f32 to vector<14x14xf32>
    %770 = arith.mulf %769, %743 : vector<14x14xf32>
    %771 = arith.addf %705, %770 : vector<14x14xf32>
    %772 = vector.broadcast %748 : f32 to vector<14x14xf32>
    %773 = arith.mulf %772, %743 : vector<14x14xf32>
    %774 = arith.addf %708, %773 : vector<14x14xf32>
    %775 = vector.broadcast %749 : f32 to vector<14x14xf32>
    %776 = arith.mulf %775, %743 : vector<14x14xf32>
    %777 = arith.addf %711, %776 : vector<14x14xf32>
    %778 = vector.broadcast %750 : f32 to vector<14x14xf32>
    %779 = arith.mulf %778, %743 : vector<14x14xf32>
    %780 = arith.addf %714, %779 : vector<14x14xf32>
    %781 = vector.broadcast %751 : f32 to vector<14x14xf32>
    %782 = arith.mulf %781, %743 : vector<14x14xf32>
    %783 = arith.addf %717, %782 : vector<14x14xf32>
    %784 = vector.broadcast %752 : f32 to vector<14x14xf32>
    %785 = arith.mulf %784, %743 : vector<14x14xf32>
    %786 = arith.addf %720, %785 : vector<14x14xf32>
    %787 = vector.broadcast %753 : f32 to vector<14x14xf32>
    %788 = arith.mulf %787, %743 : vector<14x14xf32>
    %789 = arith.addf %723, %788 : vector<14x14xf32>
    %790 = vector.broadcast %754 : f32 to vector<14x14xf32>
    %791 = arith.mulf %790, %743 : vector<14x14xf32>
    %792 = arith.addf %726, %791 : vector<14x14xf32>
    %793 = vector.broadcast %755 : f32 to vector<14x14xf32>
    %794 = arith.mulf %793, %743 : vector<14x14xf32>
    %795 = arith.addf %729, %794 : vector<14x14xf32>
    %796 = vector.broadcast %756 : f32 to vector<14x14xf32>
    %797 = arith.mulf %796, %743 : vector<14x14xf32>
    %798 = arith.addf %732, %797 : vector<14x14xf32>
    %799 = vector.broadcast %757 : f32 to vector<14x14xf32>
    %800 = arith.mulf %799, %743 : vector<14x14xf32>
    %801 = arith.addf %735, %800 : vector<14x14xf32>
    %802 = vector.broadcast %758 : f32 to vector<14x14xf32>
    %803 = arith.mulf %802, %743 : vector<14x14xf32>
    %804 = arith.addf %738, %803 : vector<14x14xf32>
    %805 = vector.broadcast %759 : f32 to vector<14x14xf32>
    %806 = arith.mulf %805, %743 : vector<14x14xf32>
    %807 = arith.addf %741, %806 : vector<14x14xf32>
    %c0_63 = arith.constant 0 : index
    %c6_64 = arith.constant 6 : index
    %c0_65 = arith.constant 0 : index
    %c0_66 = arith.constant 0 : index
    %808 = vector.load %arg1[%c0_63, %c6_64, %c0_65, %c0_66] : memref<1x12x15x15xf32, #tpu.memory_space<vmem>>, vector<1x1x14x14xf32>
    %809 = vector.shape_cast %808 : vector<1x1x14x14xf32> to vector<14x14xf32>
    %c192 = arith.constant 192 : index
    %810 = memref.load %arg2[%c192] : memref<432xf32, #tpu.memory_space<smem>>
    %c193 = arith.constant 193 : index
    %811 = memref.load %arg2[%c193] : memref<432xf32, #tpu.memory_space<smem>>
    %c194 = arith.constant 194 : index
    %812 = memref.load %arg2[%c194] : memref<432xf32, #tpu.memory_space<smem>>
    %c195 = arith.constant 195 : index
    %813 = memref.load %arg2[%c195] : memref<432xf32, #tpu.memory_space<smem>>
    %c196 = arith.constant 196 : index
    %814 = memref.load %arg2[%c196] : memref<432xf32, #tpu.memory_space<smem>>
    %c197 = arith.constant 197 : index
    %815 = memref.load %arg2[%c197] : memref<432xf32, #tpu.memory_space<smem>>
    %c198 = arith.constant 198 : index
    %816 = memref.load %arg2[%c198] : memref<432xf32, #tpu.memory_space<smem>>
    %c199 = arith.constant 199 : index
    %817 = memref.load %arg2[%c199] : memref<432xf32, #tpu.memory_space<smem>>
    %c200 = arith.constant 200 : index
    %818 = memref.load %arg2[%c200] : memref<432xf32, #tpu.memory_space<smem>>
    %c201 = arith.constant 201 : index
    %819 = memref.load %arg2[%c201] : memref<432xf32, #tpu.memory_space<smem>>
    %c202 = arith.constant 202 : index
    %820 = memref.load %arg2[%c202] : memref<432xf32, #tpu.memory_space<smem>>
    %c203 = arith.constant 203 : index
    %821 = memref.load %arg2[%c203] : memref<432xf32, #tpu.memory_space<smem>>
    %c204 = arith.constant 204 : index
    %822 = memref.load %arg2[%c204] : memref<432xf32, #tpu.memory_space<smem>>
    %c205 = arith.constant 205 : index
    %823 = memref.load %arg2[%c205] : memref<432xf32, #tpu.memory_space<smem>>
    %c206 = arith.constant 206 : index
    %824 = memref.load %arg2[%c206] : memref<432xf32, #tpu.memory_space<smem>>
    %c207 = arith.constant 207 : index
    %825 = memref.load %arg2[%c207] : memref<432xf32, #tpu.memory_space<smem>>
    %826 = vector.broadcast %810 : f32 to vector<14x14xf32>
    %827 = arith.mulf %826, %809 : vector<14x14xf32>
    %828 = arith.addf %762, %827 : vector<14x14xf32>
    %829 = vector.broadcast %811 : f32 to vector<14x14xf32>
    %830 = arith.mulf %829, %809 : vector<14x14xf32>
    %831 = arith.addf %765, %830 : vector<14x14xf32>
    %832 = vector.broadcast %812 : f32 to vector<14x14xf32>
    %833 = arith.mulf %832, %809 : vector<14x14xf32>
    %834 = arith.addf %768, %833 : vector<14x14xf32>
    %835 = vector.broadcast %813 : f32 to vector<14x14xf32>
    %836 = arith.mulf %835, %809 : vector<14x14xf32>
    %837 = arith.addf %771, %836 : vector<14x14xf32>
    %838 = vector.broadcast %814 : f32 to vector<14x14xf32>
    %839 = arith.mulf %838, %809 : vector<14x14xf32>
    %840 = arith.addf %774, %839 : vector<14x14xf32>
    %841 = vector.broadcast %815 : f32 to vector<14x14xf32>
    %842 = arith.mulf %841, %809 : vector<14x14xf32>
    %843 = arith.addf %777, %842 : vector<14x14xf32>
    %844 = vector.broadcast %816 : f32 to vector<14x14xf32>
    %845 = arith.mulf %844, %809 : vector<14x14xf32>
    %846 = arith.addf %780, %845 : vector<14x14xf32>
    %847 = vector.broadcast %817 : f32 to vector<14x14xf32>
    %848 = arith.mulf %847, %809 : vector<14x14xf32>
    %849 = arith.addf %783, %848 : vector<14x14xf32>
    %850 = vector.broadcast %818 : f32 to vector<14x14xf32>
    %851 = arith.mulf %850, %809 : vector<14x14xf32>
    %852 = arith.addf %786, %851 : vector<14x14xf32>
    %853 = vector.broadcast %819 : f32 to vector<14x14xf32>
    %854 = arith.mulf %853, %809 : vector<14x14xf32>
    %855 = arith.addf %789, %854 : vector<14x14xf32>
    %856 = vector.broadcast %820 : f32 to vector<14x14xf32>
    %857 = arith.mulf %856, %809 : vector<14x14xf32>
    %858 = arith.addf %792, %857 : vector<14x14xf32>
    %859 = vector.broadcast %821 : f32 to vector<14x14xf32>
    %860 = arith.mulf %859, %809 : vector<14x14xf32>
    %861 = arith.addf %795, %860 : vector<14x14xf32>
    %862 = vector.broadcast %822 : f32 to vector<14x14xf32>
    %863 = arith.mulf %862, %809 : vector<14x14xf32>
    %864 = arith.addf %798, %863 : vector<14x14xf32>
    %865 = vector.broadcast %823 : f32 to vector<14x14xf32>
    %866 = arith.mulf %865, %809 : vector<14x14xf32>
    %867 = arith.addf %801, %866 : vector<14x14xf32>
    %868 = vector.broadcast %824 : f32 to vector<14x14xf32>
    %869 = arith.mulf %868, %809 : vector<14x14xf32>
    %870 = arith.addf %804, %869 : vector<14x14xf32>
    %871 = vector.broadcast %825 : f32 to vector<14x14xf32>
    %872 = arith.mulf %871, %809 : vector<14x14xf32>
    %873 = arith.addf %807, %872 : vector<14x14xf32>
    %c0_67 = arith.constant 0 : index
    %c7_68 = arith.constant 7 : index
    %c0_69 = arith.constant 0 : index
    %c0_70 = arith.constant 0 : index
    %874 = vector.load %arg1[%c0_67, %c7_68, %c0_69, %c0_70] : memref<1x12x15x15xf32, #tpu.memory_space<vmem>>, vector<1x1x14x14xf32>
    %875 = vector.shape_cast %874 : vector<1x1x14x14xf32> to vector<14x14xf32>
    %c208 = arith.constant 208 : index
    %876 = memref.load %arg2[%c208] : memref<432xf32, #tpu.memory_space<smem>>
    %c209 = arith.constant 209 : index
    %877 = memref.load %arg2[%c209] : memref<432xf32, #tpu.memory_space<smem>>
    %c210 = arith.constant 210 : index
    %878 = memref.load %arg2[%c210] : memref<432xf32, #tpu.memory_space<smem>>
    %c211 = arith.constant 211 : index
    %879 = memref.load %arg2[%c211] : memref<432xf32, #tpu.memory_space<smem>>
    %c212 = arith.constant 212 : index
    %880 = memref.load %arg2[%c212] : memref<432xf32, #tpu.memory_space<smem>>
    %c213 = arith.constant 213 : index
    %881 = memref.load %arg2[%c213] : memref<432xf32, #tpu.memory_space<smem>>
    %c214 = arith.constant 214 : index
    %882 = memref.load %arg2[%c214] : memref<432xf32, #tpu.memory_space<smem>>
    %c215 = arith.constant 215 : index
    %883 = memref.load %arg2[%c215] : memref<432xf32, #tpu.memory_space<smem>>
    %c216 = arith.constant 216 : index
    %884 = memref.load %arg2[%c216] : memref<432xf32, #tpu.memory_space<smem>>
    %c217 = arith.constant 217 : index
    %885 = memref.load %arg2[%c217] : memref<432xf32, #tpu.memory_space<smem>>
    %c218 = arith.constant 218 : index
    %886 = memref.load %arg2[%c218] : memref<432xf32, #tpu.memory_space<smem>>
    %c219 = arith.constant 219 : index
    %887 = memref.load %arg2[%c219] : memref<432xf32, #tpu.memory_space<smem>>
    %c220 = arith.constant 220 : index
    %888 = memref.load %arg2[%c220] : memref<432xf32, #tpu.memory_space<smem>>
    %c221 = arith.constant 221 : index
    %889 = memref.load %arg2[%c221] : memref<432xf32, #tpu.memory_space<smem>>
    %c222 = arith.constant 222 : index
    %890 = memref.load %arg2[%c222] : memref<432xf32, #tpu.memory_space<smem>>
    %c223 = arith.constant 223 : index
    %891 = memref.load %arg2[%c223] : memref<432xf32, #tpu.memory_space<smem>>
    %892 = vector.broadcast %876 : f32 to vector<14x14xf32>
    %893 = arith.mulf %892, %875 : vector<14x14xf32>
    %894 = arith.addf %828, %893 : vector<14x14xf32>
    %895 = vector.broadcast %877 : f32 to vector<14x14xf32>
    %896 = arith.mulf %895, %875 : vector<14x14xf32>
    %897 = arith.addf %831, %896 : vector<14x14xf32>
    %898 = vector.broadcast %878 : f32 to vector<14x14xf32>
    %899 = arith.mulf %898, %875 : vector<14x14xf32>
    %900 = arith.addf %834, %899 : vector<14x14xf32>
    %901 = vector.broadcast %879 : f32 to vector<14x14xf32>
    %902 = arith.mulf %901, %875 : vector<14x14xf32>
    %903 = arith.addf %837, %902 : vector<14x14xf32>
    %904 = vector.broadcast %880 : f32 to vector<14x14xf32>
    %905 = arith.mulf %904, %875 : vector<14x14xf32>
    %906 = arith.addf %840, %905 : vector<14x14xf32>
    %907 = vector.broadcast %881 : f32 to vector<14x14xf32>
    %908 = arith.mulf %907, %875 : vector<14x14xf32>
    %909 = arith.addf %843, %908 : vector<14x14xf32>
    %910 = vector.broadcast %882 : f32 to vector<14x14xf32>
    %911 = arith.mulf %910, %875 : vector<14x14xf32>
    %912 = arith.addf %846, %911 : vector<14x14xf32>
    %913 = vector.broadcast %883 : f32 to vector<14x14xf32>
    %914 = arith.mulf %913, %875 : vector<14x14xf32>
    %915 = arith.addf %849, %914 : vector<14x14xf32>
    %916 = vector.broadcast %884 : f32 to vector<14x14xf32>
    %917 = arith.mulf %916, %875 : vector<14x14xf32>
    %918 = arith.addf %852, %917 : vector<14x14xf32>
    %919 = vector.broadcast %885 : f32 to vector<14x14xf32>
    %920 = arith.mulf %919, %875 : vector<14x14xf32>
    %921 = arith.addf %855, %920 : vector<14x14xf32>
    %922 = vector.broadcast %886 : f32 to vector<14x14xf32>
    %923 = arith.mulf %922, %875 : vector<14x14xf32>
    %924 = arith.addf %858, %923 : vector<14x14xf32>
    %925 = vector.broadcast %887 : f32 to vector<14x14xf32>
    %926 = arith.mulf %925, %875 : vector<14x14xf32>
    %927 = arith.addf %861, %926 : vector<14x14xf32>
    %928 = vector.broadcast %888 : f32 to vector<14x14xf32>
    %929 = arith.mulf %928, %875 : vector<14x14xf32>
    %930 = arith.addf %864, %929 : vector<14x14xf32>
    %931 = vector.broadcast %889 : f32 to vector<14x14xf32>
    %932 = arith.mulf %931, %875 : vector<14x14xf32>
    %933 = arith.addf %867, %932 : vector<14x14xf32>
    %934 = vector.broadcast %890 : f32 to vector<14x14xf32>
    %935 = arith.mulf %934, %875 : vector<14x14xf32>
    %936 = arith.addf %870, %935 : vector<14x14xf32>
    %937 = vector.broadcast %891 : f32 to vector<14x14xf32>
    %938 = arith.mulf %937, %875 : vector<14x14xf32>
    %939 = arith.addf %873, %938 : vector<14x14xf32>
    %c0_71 = arith.constant 0 : index
    %c6_72 = arith.constant 6 : index
    %c0_73 = arith.constant 0 : index
    %c1_74 = arith.constant 1 : index
    %940 = vector.load %arg1[%c0_71, %c6_72, %c0_73, %c1_74] : memref<1x12x15x15xf32, #tpu.memory_space<vmem>>, vector<1x1x14x14xf32>
    %941 = vector.shape_cast %940 : vector<1x1x14x14xf32> to vector<14x14xf32>
    %c224 = arith.constant 224 : index
    %942 = memref.load %arg2[%c224] : memref<432xf32, #tpu.memory_space<smem>>
    %c225 = arith.constant 225 : index
    %943 = memref.load %arg2[%c225] : memref<432xf32, #tpu.memory_space<smem>>
    %c226 = arith.constant 226 : index
    %944 = memref.load %arg2[%c226] : memref<432xf32, #tpu.memory_space<smem>>
    %c227 = arith.constant 227 : index
    %945 = memref.load %arg2[%c227] : memref<432xf32, #tpu.memory_space<smem>>
    %c228 = arith.constant 228 : index
    %946 = memref.load %arg2[%c228] : memref<432xf32, #tpu.memory_space<smem>>
    %c229 = arith.constant 229 : index
    %947 = memref.load %arg2[%c229] : memref<432xf32, #tpu.memory_space<smem>>
    %c230 = arith.constant 230 : index
    %948 = memref.load %arg2[%c230] : memref<432xf32, #tpu.memory_space<smem>>
    %c231 = arith.constant 231 : index
    %949 = memref.load %arg2[%c231] : memref<432xf32, #tpu.memory_space<smem>>
    %c232 = arith.constant 232 : index
    %950 = memref.load %arg2[%c232] : memref<432xf32, #tpu.memory_space<smem>>
    %c233 = arith.constant 233 : index
    %951 = memref.load %arg2[%c233] : memref<432xf32, #tpu.memory_space<smem>>
    %c234 = arith.constant 234 : index
    %952 = memref.load %arg2[%c234] : memref<432xf32, #tpu.memory_space<smem>>
    %c235 = arith.constant 235 : index
    %953 = memref.load %arg2[%c235] : memref<432xf32, #tpu.memory_space<smem>>
    %c236 = arith.constant 236 : index
    %954 = memref.load %arg2[%c236] : memref<432xf32, #tpu.memory_space<smem>>
    %c237 = arith.constant 237 : index
    %955 = memref.load %arg2[%c237] : memref<432xf32, #tpu.memory_space<smem>>
    %c238 = arith.constant 238 : index
    %956 = memref.load %arg2[%c238] : memref<432xf32, #tpu.memory_space<smem>>
    %c239 = arith.constant 239 : index
    %957 = memref.load %arg2[%c239] : memref<432xf32, #tpu.memory_space<smem>>
    %958 = vector.broadcast %942 : f32 to vector<14x14xf32>
    %959 = arith.mulf %958, %941 : vector<14x14xf32>
    %960 = arith.addf %894, %959 : vector<14x14xf32>
    %961 = vector.broadcast %943 : f32 to vector<14x14xf32>
    %962 = arith.mulf %961, %941 : vector<14x14xf32>
    %963 = arith.addf %897, %962 : vector<14x14xf32>
    %964 = vector.broadcast %944 : f32 to vector<14x14xf32>
    %965 = arith.mulf %964, %941 : vector<14x14xf32>
    %966 = arith.addf %900, %965 : vector<14x14xf32>
    %967 = vector.broadcast %945 : f32 to vector<14x14xf32>
    %968 = arith.mulf %967, %941 : vector<14x14xf32>
    %969 = arith.addf %903, %968 : vector<14x14xf32>
    %970 = vector.broadcast %946 : f32 to vector<14x14xf32>
    %971 = arith.mulf %970, %941 : vector<14x14xf32>
    %972 = arith.addf %906, %971 : vector<14x14xf32>
    %973 = vector.broadcast %947 : f32 to vector<14x14xf32>
    %974 = arith.mulf %973, %941 : vector<14x14xf32>
    %975 = arith.addf %909, %974 : vector<14x14xf32>
    %976 = vector.broadcast %948 : f32 to vector<14x14xf32>
    %977 = arith.mulf %976, %941 : vector<14x14xf32>
    %978 = arith.addf %912, %977 : vector<14x14xf32>
    %979 = vector.broadcast %949 : f32 to vector<14x14xf32>
    %980 = arith.mulf %979, %941 : vector<14x14xf32>
    %981 = arith.addf %915, %980 : vector<14x14xf32>
    %982 = vector.broadcast %950 : f32 to vector<14x14xf32>
    %983 = arith.mulf %982, %941 : vector<14x14xf32>
    %984 = arith.addf %918, %983 : vector<14x14xf32>
    %985 = vector.broadcast %951 : f32 to vector<14x14xf32>
    %986 = arith.mulf %985, %941 : vector<14x14xf32>
    %987 = arith.addf %921, %986 : vector<14x14xf32>
    %988 = vector.broadcast %952 : f32 to vector<14x14xf32>
    %989 = arith.mulf %988, %941 : vector<14x14xf32>
    %990 = arith.addf %924, %989 : vector<14x14xf32>
    %991 = vector.broadcast %953 : f32 to vector<14x14xf32>
    %992 = arith.mulf %991, %941 : vector<14x14xf32>
    %993 = arith.addf %927, %992 : vector<14x14xf32>
    %994 = vector.broadcast %954 : f32 to vector<14x14xf32>
    %995 = arith.mulf %994, %941 : vector<14x14xf32>
    %996 = arith.addf %930, %995 : vector<14x14xf32>
    %997 = vector.broadcast %955 : f32 to vector<14x14xf32>
    %998 = arith.mulf %997, %941 : vector<14x14xf32>
    %999 = arith.addf %933, %998 : vector<14x14xf32>
    %1000 = vector.broadcast %956 : f32 to vector<14x14xf32>
    %1001 = arith.mulf %1000, %941 : vector<14x14xf32>
    %1002 = arith.addf %936, %1001 : vector<14x14xf32>
    %1003 = vector.broadcast %957 : f32 to vector<14x14xf32>
    %1004 = arith.mulf %1003, %941 : vector<14x14xf32>
    %1005 = arith.addf %939, %1004 : vector<14x14xf32>
    %c0_75 = arith.constant 0 : index
    %c4_76 = arith.constant 4 : index
    %c1_77 = arith.constant 1 : index
    %c0_78 = arith.constant 0 : index
    %1006 = vector.load %arg1[%c0_75, %c4_76, %c1_77, %c0_78] : memref<1x12x15x15xf32, #tpu.memory_space<vmem>>, vector<1x1x14x14xf32>
    %1007 = vector.shape_cast %1006 : vector<1x1x14x14xf32> to vector<14x14xf32>
    %c240 = arith.constant 240 : index
    %1008 = memref.load %arg2[%c240] : memref<432xf32, #tpu.memory_space<smem>>
    %c241 = arith.constant 241 : index
    %1009 = memref.load %arg2[%c241] : memref<432xf32, #tpu.memory_space<smem>>
    %c242 = arith.constant 242 : index
    %1010 = memref.load %arg2[%c242] : memref<432xf32, #tpu.memory_space<smem>>
    %c243 = arith.constant 243 : index
    %1011 = memref.load %arg2[%c243] : memref<432xf32, #tpu.memory_space<smem>>
    %c244 = arith.constant 244 : index
    %1012 = memref.load %arg2[%c244] : memref<432xf32, #tpu.memory_space<smem>>
    %c245 = arith.constant 245 : index
    %1013 = memref.load %arg2[%c245] : memref<432xf32, #tpu.memory_space<smem>>
    %c246 = arith.constant 246 : index
    %1014 = memref.load %arg2[%c246] : memref<432xf32, #tpu.memory_space<smem>>
    %c247 = arith.constant 247 : index
    %1015 = memref.load %arg2[%c247] : memref<432xf32, #tpu.memory_space<smem>>
    %c248 = arith.constant 248 : index
    %1016 = memref.load %arg2[%c248] : memref<432xf32, #tpu.memory_space<smem>>
    %c249 = arith.constant 249 : index
    %1017 = memref.load %arg2[%c249] : memref<432xf32, #tpu.memory_space<smem>>
    %c250 = arith.constant 250 : index
    %1018 = memref.load %arg2[%c250] : memref<432xf32, #tpu.memory_space<smem>>
    %c251 = arith.constant 251 : index
    %1019 = memref.load %arg2[%c251] : memref<432xf32, #tpu.memory_space<smem>>
    %c252 = arith.constant 252 : index
    %1020 = memref.load %arg2[%c252] : memref<432xf32, #tpu.memory_space<smem>>
    %c253 = arith.constant 253 : index
    %1021 = memref.load %arg2[%c253] : memref<432xf32, #tpu.memory_space<smem>>
    %c254 = arith.constant 254 : index
    %1022 = memref.load %arg2[%c254] : memref<432xf32, #tpu.memory_space<smem>>
    %c255 = arith.constant 255 : index
    %1023 = memref.load %arg2[%c255] : memref<432xf32, #tpu.memory_space<smem>>
    %1024 = vector.broadcast %1008 : f32 to vector<14x14xf32>
    %1025 = arith.mulf %1024, %1007 : vector<14x14xf32>
    %1026 = arith.addf %960, %1025 : vector<14x14xf32>
    %1027 = vector.broadcast %1009 : f32 to vector<14x14xf32>
    %1028 = arith.mulf %1027, %1007 : vector<14x14xf32>
    %1029 = arith.addf %963, %1028 : vector<14x14xf32>
    %1030 = vector.broadcast %1010 : f32 to vector<14x14xf32>
    %1031 = arith.mulf %1030, %1007 : vector<14x14xf32>
    %1032 = arith.addf %966, %1031 : vector<14x14xf32>
    %1033 = vector.broadcast %1011 : f32 to vector<14x14xf32>
    %1034 = arith.mulf %1033, %1007 : vector<14x14xf32>
    %1035 = arith.addf %969, %1034 : vector<14x14xf32>
    %1036 = vector.broadcast %1012 : f32 to vector<14x14xf32>
    %1037 = arith.mulf %1036, %1007 : vector<14x14xf32>
    %1038 = arith.addf %972, %1037 : vector<14x14xf32>
    %1039 = vector.broadcast %1013 : f32 to vector<14x14xf32>
    %1040 = arith.mulf %1039, %1007 : vector<14x14xf32>
    %1041 = arith.addf %975, %1040 : vector<14x14xf32>
    %1042 = vector.broadcast %1014 : f32 to vector<14x14xf32>
    %1043 = arith.mulf %1042, %1007 : vector<14x14xf32>
    %1044 = arith.addf %978, %1043 : vector<14x14xf32>
    %1045 = vector.broadcast %1015 : f32 to vector<14x14xf32>
    %1046 = arith.mulf %1045, %1007 : vector<14x14xf32>
    %1047 = arith.addf %981, %1046 : vector<14x14xf32>
    %1048 = vector.broadcast %1016 : f32 to vector<14x14xf32>
    %1049 = arith.mulf %1048, %1007 : vector<14x14xf32>
    %1050 = arith.addf %984, %1049 : vector<14x14xf32>
    %1051 = vector.broadcast %1017 : f32 to vector<14x14xf32>
    %1052 = arith.mulf %1051, %1007 : vector<14x14xf32>
    %1053 = arith.addf %987, %1052 : vector<14x14xf32>
    %1054 = vector.broadcast %1018 : f32 to vector<14x14xf32>
    %1055 = arith.mulf %1054, %1007 : vector<14x14xf32>
    %1056 = arith.addf %990, %1055 : vector<14x14xf32>
    %1057 = vector.broadcast %1019 : f32 to vector<14x14xf32>
    %1058 = arith.mulf %1057, %1007 : vector<14x14xf32>
    %1059 = arith.addf %993, %1058 : vector<14x14xf32>
    %1060 = vector.broadcast %1020 : f32 to vector<14x14xf32>
    %1061 = arith.mulf %1060, %1007 : vector<14x14xf32>
    %1062 = arith.addf %996, %1061 : vector<14x14xf32>
    %1063 = vector.broadcast %1021 : f32 to vector<14x14xf32>
    %1064 = arith.mulf %1063, %1007 : vector<14x14xf32>
    %1065 = arith.addf %999, %1064 : vector<14x14xf32>
    %1066 = vector.broadcast %1022 : f32 to vector<14x14xf32>
    %1067 = arith.mulf %1066, %1007 : vector<14x14xf32>
    %1068 = arith.addf %1002, %1067 : vector<14x14xf32>
    %1069 = vector.broadcast %1023 : f32 to vector<14x14xf32>
    %1070 = arith.mulf %1069, %1007 : vector<14x14xf32>
    %1071 = arith.addf %1005, %1070 : vector<14x14xf32>
    %c0_79 = arith.constant 0 : index
    %c5_80 = arith.constant 5 : index
    %c1_81 = arith.constant 1 : index
    %c0_82 = arith.constant 0 : index
    %1072 = vector.load %arg1[%c0_79, %c5_80, %c1_81, %c0_82] : memref<1x12x15x15xf32, #tpu.memory_space<vmem>>, vector<1x1x14x14xf32>
    %1073 = vector.shape_cast %1072 : vector<1x1x14x14xf32> to vector<14x14xf32>
    %c256 = arith.constant 256 : index
    %1074 = memref.load %arg2[%c256] : memref<432xf32, #tpu.memory_space<smem>>
    %c257 = arith.constant 257 : index
    %1075 = memref.load %arg2[%c257] : memref<432xf32, #tpu.memory_space<smem>>
    %c258 = arith.constant 258 : index
    %1076 = memref.load %arg2[%c258] : memref<432xf32, #tpu.memory_space<smem>>
    %c259 = arith.constant 259 : index
    %1077 = memref.load %arg2[%c259] : memref<432xf32, #tpu.memory_space<smem>>
    %c260 = arith.constant 260 : index
    %1078 = memref.load %arg2[%c260] : memref<432xf32, #tpu.memory_space<smem>>
    %c261 = arith.constant 261 : index
    %1079 = memref.load %arg2[%c261] : memref<432xf32, #tpu.memory_space<smem>>
    %c262 = arith.constant 262 : index
    %1080 = memref.load %arg2[%c262] : memref<432xf32, #tpu.memory_space<smem>>
    %c263 = arith.constant 263 : index
    %1081 = memref.load %arg2[%c263] : memref<432xf32, #tpu.memory_space<smem>>
    %c264 = arith.constant 264 : index
    %1082 = memref.load %arg2[%c264] : memref<432xf32, #tpu.memory_space<smem>>
    %c265 = arith.constant 265 : index
    %1083 = memref.load %arg2[%c265] : memref<432xf32, #tpu.memory_space<smem>>
    %c266 = arith.constant 266 : index
    %1084 = memref.load %arg2[%c266] : memref<432xf32, #tpu.memory_space<smem>>
    %c267 = arith.constant 267 : index
    %1085 = memref.load %arg2[%c267] : memref<432xf32, #tpu.memory_space<smem>>
    %c268 = arith.constant 268 : index
    %1086 = memref.load %arg2[%c268] : memref<432xf32, #tpu.memory_space<smem>>
    %c269 = arith.constant 269 : index
    %1087 = memref.load %arg2[%c269] : memref<432xf32, #tpu.memory_space<smem>>
    %c270 = arith.constant 270 : index
    %1088 = memref.load %arg2[%c270] : memref<432xf32, #tpu.memory_space<smem>>
    %c271 = arith.constant 271 : index
    %1089 = memref.load %arg2[%c271] : memref<432xf32, #tpu.memory_space<smem>>
    %1090 = vector.broadcast %1074 : f32 to vector<14x14xf32>
    %1091 = arith.mulf %1090, %1073 : vector<14x14xf32>
    %1092 = arith.addf %1026, %1091 : vector<14x14xf32>
    %1093 = vector.broadcast %1075 : f32 to vector<14x14xf32>
    %1094 = arith.mulf %1093, %1073 : vector<14x14xf32>
    %1095 = arith.addf %1029, %1094 : vector<14x14xf32>
    %1096 = vector.broadcast %1076 : f32 to vector<14x14xf32>
    %1097 = arith.mulf %1096, %1073 : vector<14x14xf32>
    %1098 = arith.addf %1032, %1097 : vector<14x14xf32>
    %1099 = vector.broadcast %1077 : f32 to vector<14x14xf32>
    %1100 = arith.mulf %1099, %1073 : vector<14x14xf32>
    %1101 = arith.addf %1035, %1100 : vector<14x14xf32>
    %1102 = vector.broadcast %1078 : f32 to vector<14x14xf32>
    %1103 = arith.mulf %1102, %1073 : vector<14x14xf32>
    %1104 = arith.addf %1038, %1103 : vector<14x14xf32>
    %1105 = vector.broadcast %1079 : f32 to vector<14x14xf32>
    %1106 = arith.mulf %1105, %1073 : vector<14x14xf32>
    %1107 = arith.addf %1041, %1106 : vector<14x14xf32>
    %1108 = vector.broadcast %1080 : f32 to vector<14x14xf32>
    %1109 = arith.mulf %1108, %1073 : vector<14x14xf32>
    %1110 = arith.addf %1044, %1109 : vector<14x14xf32>
    %1111 = vector.broadcast %1081 : f32 to vector<14x14xf32>
    %1112 = arith.mulf %1111, %1073 : vector<14x14xf32>
    %1113 = arith.addf %1047, %1112 : vector<14x14xf32>
    %1114 = vector.broadcast %1082 : f32 to vector<14x14xf32>
    %1115 = arith.mulf %1114, %1073 : vector<14x14xf32>
    %1116 = arith.addf %1050, %1115 : vector<14x14xf32>
    %1117 = vector.broadcast %1083 : f32 to vector<14x14xf32>
    %1118 = arith.mulf %1117, %1073 : vector<14x14xf32>
    %1119 = arith.addf %1053, %1118 : vector<14x14xf32>
    %1120 = vector.broadcast %1084 : f32 to vector<14x14xf32>
    %1121 = arith.mulf %1120, %1073 : vector<14x14xf32>
    %1122 = arith.addf %1056, %1121 : vector<14x14xf32>
    %1123 = vector.broadcast %1085 : f32 to vector<14x14xf32>
    %1124 = arith.mulf %1123, %1073 : vector<14x14xf32>
    %1125 = arith.addf %1059, %1124 : vector<14x14xf32>
    %1126 = vector.broadcast %1086 : f32 to vector<14x14xf32>
    %1127 = arith.mulf %1126, %1073 : vector<14x14xf32>
    %1128 = arith.addf %1062, %1127 : vector<14x14xf32>
    %1129 = vector.broadcast %1087 : f32 to vector<14x14xf32>
    %1130 = arith.mulf %1129, %1073 : vector<14x14xf32>
    %1131 = arith.addf %1065, %1130 : vector<14x14xf32>
    %1132 = vector.broadcast %1088 : f32 to vector<14x14xf32>
    %1133 = arith.mulf %1132, %1073 : vector<14x14xf32>
    %1134 = arith.addf %1068, %1133 : vector<14x14xf32>
    %1135 = vector.broadcast %1089 : f32 to vector<14x14xf32>
    %1136 = arith.mulf %1135, %1073 : vector<14x14xf32>
    %1137 = arith.addf %1071, %1136 : vector<14x14xf32>
    %c0_83 = arith.constant 0 : index
    %c4_84 = arith.constant 4 : index
    %c1_85 = arith.constant 1 : index
    %c1_86 = arith.constant 1 : index
    %1138 = vector.load %arg1[%c0_83, %c4_84, %c1_85, %c1_86] : memref<1x12x15x15xf32, #tpu.memory_space<vmem>>, vector<1x1x14x14xf32>
    %1139 = vector.shape_cast %1138 : vector<1x1x14x14xf32> to vector<14x14xf32>
    %c272 = arith.constant 272 : index
    %1140 = memref.load %arg2[%c272] : memref<432xf32, #tpu.memory_space<smem>>
    %c273 = arith.constant 273 : index
    %1141 = memref.load %arg2[%c273] : memref<432xf32, #tpu.memory_space<smem>>
    %c274 = arith.constant 274 : index
    %1142 = memref.load %arg2[%c274] : memref<432xf32, #tpu.memory_space<smem>>
    %c275 = arith.constant 275 : index
    %1143 = memref.load %arg2[%c275] : memref<432xf32, #tpu.memory_space<smem>>
    %c276 = arith.constant 276 : index
    %1144 = memref.load %arg2[%c276] : memref<432xf32, #tpu.memory_space<smem>>
    %c277 = arith.constant 277 : index
    %1145 = memref.load %arg2[%c277] : memref<432xf32, #tpu.memory_space<smem>>
    %c278 = arith.constant 278 : index
    %1146 = memref.load %arg2[%c278] : memref<432xf32, #tpu.memory_space<smem>>
    %c279 = arith.constant 279 : index
    %1147 = memref.load %arg2[%c279] : memref<432xf32, #tpu.memory_space<smem>>
    %c280 = arith.constant 280 : index
    %1148 = memref.load %arg2[%c280] : memref<432xf32, #tpu.memory_space<smem>>
    %c281 = arith.constant 281 : index
    %1149 = memref.load %arg2[%c281] : memref<432xf32, #tpu.memory_space<smem>>
    %c282 = arith.constant 282 : index
    %1150 = memref.load %arg2[%c282] : memref<432xf32, #tpu.memory_space<smem>>
    %c283 = arith.constant 283 : index
    %1151 = memref.load %arg2[%c283] : memref<432xf32, #tpu.memory_space<smem>>
    %c284 = arith.constant 284 : index
    %1152 = memref.load %arg2[%c284] : memref<432xf32, #tpu.memory_space<smem>>
    %c285 = arith.constant 285 : index
    %1153 = memref.load %arg2[%c285] : memref<432xf32, #tpu.memory_space<smem>>
    %c286 = arith.constant 286 : index
    %1154 = memref.load %arg2[%c286] : memref<432xf32, #tpu.memory_space<smem>>
    %c287 = arith.constant 287 : index
    %1155 = memref.load %arg2[%c287] : memref<432xf32, #tpu.memory_space<smem>>
    %1156 = vector.broadcast %1140 : f32 to vector<14x14xf32>
    %1157 = arith.mulf %1156, %1139 : vector<14x14xf32>
    %1158 = arith.addf %1092, %1157 : vector<14x14xf32>
    %1159 = vector.broadcast %1141 : f32 to vector<14x14xf32>
    %1160 = arith.mulf %1159, %1139 : vector<14x14xf32>
    %1161 = arith.addf %1095, %1160 : vector<14x14xf32>
    %1162 = vector.broadcast %1142 : f32 to vector<14x14xf32>
    %1163 = arith.mulf %1162, %1139 : vector<14x14xf32>
    %1164 = arith.addf %1098, %1163 : vector<14x14xf32>
    %1165 = vector.broadcast %1143 : f32 to vector<14x14xf32>
    %1166 = arith.mulf %1165, %1139 : vector<14x14xf32>
    %1167 = arith.addf %1101, %1166 : vector<14x14xf32>
    %1168 = vector.broadcast %1144 : f32 to vector<14x14xf32>
    %1169 = arith.mulf %1168, %1139 : vector<14x14xf32>
    %1170 = arith.addf %1104, %1169 : vector<14x14xf32>
    %1171 = vector.broadcast %1145 : f32 to vector<14x14xf32>
    %1172 = arith.mulf %1171, %1139 : vector<14x14xf32>
    %1173 = arith.addf %1107, %1172 : vector<14x14xf32>
    %1174 = vector.broadcast %1146 : f32 to vector<14x14xf32>
    %1175 = arith.mulf %1174, %1139 : vector<14x14xf32>
    %1176 = arith.addf %1110, %1175 : vector<14x14xf32>
    %1177 = vector.broadcast %1147 : f32 to vector<14x14xf32>
    %1178 = arith.mulf %1177, %1139 : vector<14x14xf32>
    %1179 = arith.addf %1113, %1178 : vector<14x14xf32>
    %1180 = vector.broadcast %1148 : f32 to vector<14x14xf32>
    %1181 = arith.mulf %1180, %1139 : vector<14x14xf32>
    %1182 = arith.addf %1116, %1181 : vector<14x14xf32>
    %1183 = vector.broadcast %1149 : f32 to vector<14x14xf32>
    %1184 = arith.mulf %1183, %1139 : vector<14x14xf32>
    %1185 = arith.addf %1119, %1184 : vector<14x14xf32>
    %1186 = vector.broadcast %1150 : f32 to vector<14x14xf32>
    %1187 = arith.mulf %1186, %1139 : vector<14x14xf32>
    %1188 = arith.addf %1122, %1187 : vector<14x14xf32>
    %1189 = vector.broadcast %1151 : f32 to vector<14x14xf32>
    %1190 = arith.mulf %1189, %1139 : vector<14x14xf32>
    %1191 = arith.addf %1125, %1190 : vector<14x14xf32>
    %1192 = vector.broadcast %1152 : f32 to vector<14x14xf32>
    %1193 = arith.mulf %1192, %1139 : vector<14x14xf32>
    %1194 = arith.addf %1128, %1193 : vector<14x14xf32>
    %1195 = vector.broadcast %1153 : f32 to vector<14x14xf32>
    %1196 = arith.mulf %1195, %1139 : vector<14x14xf32>
    %1197 = arith.addf %1131, %1196 : vector<14x14xf32>
    %1198 = vector.broadcast %1154 : f32 to vector<14x14xf32>
    %1199 = arith.mulf %1198, %1139 : vector<14x14xf32>
    %1200 = arith.addf %1134, %1199 : vector<14x14xf32>
    %1201 = vector.broadcast %1155 : f32 to vector<14x14xf32>
    %1202 = arith.mulf %1201, %1139 : vector<14x14xf32>
    %1203 = arith.addf %1137, %1202 : vector<14x14xf32>
    %c0_87 = arith.constant 0 : index
    %c8_88 = arith.constant 8 : index
    %c0_89 = arith.constant 0 : index
    %c0_90 = arith.constant 0 : index
    %1204 = vector.load %arg1[%c0_87, %c8_88, %c0_89, %c0_90] : memref<1x12x15x15xf32, #tpu.memory_space<vmem>>, vector<1x1x14x14xf32>
    %1205 = vector.shape_cast %1204 : vector<1x1x14x14xf32> to vector<14x14xf32>
    %c288 = arith.constant 288 : index
    %1206 = memref.load %arg2[%c288] : memref<432xf32, #tpu.memory_space<smem>>
    %c289 = arith.constant 289 : index
    %1207 = memref.load %arg2[%c289] : memref<432xf32, #tpu.memory_space<smem>>
    %c290 = arith.constant 290 : index
    %1208 = memref.load %arg2[%c290] : memref<432xf32, #tpu.memory_space<smem>>
    %c291 = arith.constant 291 : index
    %1209 = memref.load %arg2[%c291] : memref<432xf32, #tpu.memory_space<smem>>
    %c292 = arith.constant 292 : index
    %1210 = memref.load %arg2[%c292] : memref<432xf32, #tpu.memory_space<smem>>
    %c293 = arith.constant 293 : index
    %1211 = memref.load %arg2[%c293] : memref<432xf32, #tpu.memory_space<smem>>
    %c294 = arith.constant 294 : index
    %1212 = memref.load %arg2[%c294] : memref<432xf32, #tpu.memory_space<smem>>
    %c295 = arith.constant 295 : index
    %1213 = memref.load %arg2[%c295] : memref<432xf32, #tpu.memory_space<smem>>
    %c296 = arith.constant 296 : index
    %1214 = memref.load %arg2[%c296] : memref<432xf32, #tpu.memory_space<smem>>
    %c297 = arith.constant 297 : index
    %1215 = memref.load %arg2[%c297] : memref<432xf32, #tpu.memory_space<smem>>
    %c298 = arith.constant 298 : index
    %1216 = memref.load %arg2[%c298] : memref<432xf32, #tpu.memory_space<smem>>
    %c299 = arith.constant 299 : index
    %1217 = memref.load %arg2[%c299] : memref<432xf32, #tpu.memory_space<smem>>
    %c300 = arith.constant 300 : index
    %1218 = memref.load %arg2[%c300] : memref<432xf32, #tpu.memory_space<smem>>
    %c301 = arith.constant 301 : index
    %1219 = memref.load %arg2[%c301] : memref<432xf32, #tpu.memory_space<smem>>
    %c302 = arith.constant 302 : index
    %1220 = memref.load %arg2[%c302] : memref<432xf32, #tpu.memory_space<smem>>
    %c303 = arith.constant 303 : index
    %1221 = memref.load %arg2[%c303] : memref<432xf32, #tpu.memory_space<smem>>
    %1222 = vector.broadcast %1206 : f32 to vector<14x14xf32>
    %1223 = arith.mulf %1222, %1205 : vector<14x14xf32>
    %1224 = arith.addf %1158, %1223 : vector<14x14xf32>
    %1225 = vector.broadcast %1207 : f32 to vector<14x14xf32>
    %1226 = arith.mulf %1225, %1205 : vector<14x14xf32>
    %1227 = arith.addf %1161, %1226 : vector<14x14xf32>
    %1228 = vector.broadcast %1208 : f32 to vector<14x14xf32>
    %1229 = arith.mulf %1228, %1205 : vector<14x14xf32>
    %1230 = arith.addf %1164, %1229 : vector<14x14xf32>
    %1231 = vector.broadcast %1209 : f32 to vector<14x14xf32>
    %1232 = arith.mulf %1231, %1205 : vector<14x14xf32>
    %1233 = arith.addf %1167, %1232 : vector<14x14xf32>
    %1234 = vector.broadcast %1210 : f32 to vector<14x14xf32>
    %1235 = arith.mulf %1234, %1205 : vector<14x14xf32>
    %1236 = arith.addf %1170, %1235 : vector<14x14xf32>
    %1237 = vector.broadcast %1211 : f32 to vector<14x14xf32>
    %1238 = arith.mulf %1237, %1205 : vector<14x14xf32>
    %1239 = arith.addf %1173, %1238 : vector<14x14xf32>
    %1240 = vector.broadcast %1212 : f32 to vector<14x14xf32>
    %1241 = arith.mulf %1240, %1205 : vector<14x14xf32>
    %1242 = arith.addf %1176, %1241 : vector<14x14xf32>
    %1243 = vector.broadcast %1213 : f32 to vector<14x14xf32>
    %1244 = arith.mulf %1243, %1205 : vector<14x14xf32>
    %1245 = arith.addf %1179, %1244 : vector<14x14xf32>
    %1246 = vector.broadcast %1214 : f32 to vector<14x14xf32>
    %1247 = arith.mulf %1246, %1205 : vector<14x14xf32>
    %1248 = arith.addf %1182, %1247 : vector<14x14xf32>
    %1249 = vector.broadcast %1215 : f32 to vector<14x14xf32>
    %1250 = arith.mulf %1249, %1205 : vector<14x14xf32>
    %1251 = arith.addf %1185, %1250 : vector<14x14xf32>
    %1252 = vector.broadcast %1216 : f32 to vector<14x14xf32>
    %1253 = arith.mulf %1252, %1205 : vector<14x14xf32>
    %1254 = arith.addf %1188, %1253 : vector<14x14xf32>
    %1255 = vector.broadcast %1217 : f32 to vector<14x14xf32>
    %1256 = arith.mulf %1255, %1205 : vector<14x14xf32>
    %1257 = arith.addf %1191, %1256 : vector<14x14xf32>
    %1258 = vector.broadcast %1218 : f32 to vector<14x14xf32>
    %1259 = arith.mulf %1258, %1205 : vector<14x14xf32>
    %1260 = arith.addf %1194, %1259 : vector<14x14xf32>
    %1261 = vector.broadcast %1219 : f32 to vector<14x14xf32>
    %1262 = arith.mulf %1261, %1205 : vector<14x14xf32>
    %1263 = arith.addf %1197, %1262 : vector<14x14xf32>
    %1264 = vector.broadcast %1220 : f32 to vector<14x14xf32>
    %1265 = arith.mulf %1264, %1205 : vector<14x14xf32>
    %1266 = arith.addf %1200, %1265 : vector<14x14xf32>
    %1267 = vector.broadcast %1221 : f32 to vector<14x14xf32>
    %1268 = arith.mulf %1267, %1205 : vector<14x14xf32>
    %1269 = arith.addf %1203, %1268 : vector<14x14xf32>
    %c0_91 = arith.constant 0 : index
    %c9_92 = arith.constant 9 : index
    %c0_93 = arith.constant 0 : index
    %c0_94 = arith.constant 0 : index
    %1270 = vector.load %arg1[%c0_91, %c9_92, %c0_93, %c0_94] : memref<1x12x15x15xf32, #tpu.memory_space<vmem>>, vector<1x1x14x14xf32>
    %1271 = vector.shape_cast %1270 : vector<1x1x14x14xf32> to vector<14x14xf32>
    %c304 = arith.constant 304 : index
    %1272 = memref.load %arg2[%c304] : memref<432xf32, #tpu.memory_space<smem>>
    %c305 = arith.constant 305 : index
    %1273 = memref.load %arg2[%c305] : memref<432xf32, #tpu.memory_space<smem>>
    %c306 = arith.constant 306 : index
    %1274 = memref.load %arg2[%c306] : memref<432xf32, #tpu.memory_space<smem>>
    %c307 = arith.constant 307 : index
    %1275 = memref.load %arg2[%c307] : memref<432xf32, #tpu.memory_space<smem>>
    %c308 = arith.constant 308 : index
    %1276 = memref.load %arg2[%c308] : memref<432xf32, #tpu.memory_space<smem>>
    %c309 = arith.constant 309 : index
    %1277 = memref.load %arg2[%c309] : memref<432xf32, #tpu.memory_space<smem>>
    %c310 = arith.constant 310 : index
    %1278 = memref.load %arg2[%c310] : memref<432xf32, #tpu.memory_space<smem>>
    %c311 = arith.constant 311 : index
    %1279 = memref.load %arg2[%c311] : memref<432xf32, #tpu.memory_space<smem>>
    %c312 = arith.constant 312 : index
    %1280 = memref.load %arg2[%c312] : memref<432xf32, #tpu.memory_space<smem>>
    %c313 = arith.constant 313 : index
    %1281 = memref.load %arg2[%c313] : memref<432xf32, #tpu.memory_space<smem>>
    %c314 = arith.constant 314 : index
    %1282 = memref.load %arg2[%c314] : memref<432xf32, #tpu.memory_space<smem>>
    %c315 = arith.constant 315 : index
    %1283 = memref.load %arg2[%c315] : memref<432xf32, #tpu.memory_space<smem>>
    %c316 = arith.constant 316 : index
    %1284 = memref.load %arg2[%c316] : memref<432xf32, #tpu.memory_space<smem>>
    %c317 = arith.constant 317 : index
    %1285 = memref.load %arg2[%c317] : memref<432xf32, #tpu.memory_space<smem>>
    %c318 = arith.constant 318 : index
    %1286 = memref.load %arg2[%c318] : memref<432xf32, #tpu.memory_space<smem>>
    %c319 = arith.constant 319 : index
    %1287 = memref.load %arg2[%c319] : memref<432xf32, #tpu.memory_space<smem>>
    %1288 = vector.broadcast %1272 : f32 to vector<14x14xf32>
    %1289 = arith.mulf %1288, %1271 : vector<14x14xf32>
    %1290 = arith.addf %1224, %1289 : vector<14x14xf32>
    %1291 = vector.broadcast %1273 : f32 to vector<14x14xf32>
    %1292 = arith.mulf %1291, %1271 : vector<14x14xf32>
    %1293 = arith.addf %1227, %1292 : vector<14x14xf32>
    %1294 = vector.broadcast %1274 : f32 to vector<14x14xf32>
    %1295 = arith.mulf %1294, %1271 : vector<14x14xf32>
    %1296 = arith.addf %1230, %1295 : vector<14x14xf32>
    %1297 = vector.broadcast %1275 : f32 to vector<14x14xf32>
    %1298 = arith.mulf %1297, %1271 : vector<14x14xf32>
    %1299 = arith.addf %1233, %1298 : vector<14x14xf32>
    %1300 = vector.broadcast %1276 : f32 to vector<14x14xf32>
    %1301 = arith.mulf %1300, %1271 : vector<14x14xf32>
    %1302 = arith.addf %1236, %1301 : vector<14x14xf32>
    %1303 = vector.broadcast %1277 : f32 to vector<14x14xf32>
    %1304 = arith.mulf %1303, %1271 : vector<14x14xf32>
    %1305 = arith.addf %1239, %1304 : vector<14x14xf32>
    %1306 = vector.broadcast %1278 : f32 to vector<14x14xf32>
    %1307 = arith.mulf %1306, %1271 : vector<14x14xf32>
    %1308 = arith.addf %1242, %1307 : vector<14x14xf32>
    %1309 = vector.broadcast %1279 : f32 to vector<14x14xf32>
    %1310 = arith.mulf %1309, %1271 : vector<14x14xf32>
    %1311 = arith.addf %1245, %1310 : vector<14x14xf32>
    %1312 = vector.broadcast %1280 : f32 to vector<14x14xf32>
    %1313 = arith.mulf %1312, %1271 : vector<14x14xf32>
    %1314 = arith.addf %1248, %1313 : vector<14x14xf32>
    %1315 = vector.broadcast %1281 : f32 to vector<14x14xf32>
    %1316 = arith.mulf %1315, %1271 : vector<14x14xf32>
    %1317 = arith.addf %1251, %1316 : vector<14x14xf32>
    %1318 = vector.broadcast %1282 : f32 to vector<14x14xf32>
    %1319 = arith.mulf %1318, %1271 : vector<14x14xf32>
    %1320 = arith.addf %1254, %1319 : vector<14x14xf32>
    %1321 = vector.broadcast %1283 : f32 to vector<14x14xf32>
    %1322 = arith.mulf %1321, %1271 : vector<14x14xf32>
    %1323 = arith.addf %1257, %1322 : vector<14x14xf32>
    %1324 = vector.broadcast %1284 : f32 to vector<14x14xf32>
    %1325 = arith.mulf %1324, %1271 : vector<14x14xf32>
    %1326 = arith.addf %1260, %1325 : vector<14x14xf32>
    %1327 = vector.broadcast %1285 : f32 to vector<14x14xf32>
    %1328 = arith.mulf %1327, %1271 : vector<14x14xf32>
    %1329 = arith.addf %1263, %1328 : vector<14x14xf32>
    %1330 = vector.broadcast %1286 : f32 to vector<14x14xf32>
    %1331 = arith.mulf %1330, %1271 : vector<14x14xf32>
    %1332 = arith.addf %1266, %1331 : vector<14x14xf32>
    %1333 = vector.broadcast %1287 : f32 to vector<14x14xf32>
    %1334 = arith.mulf %1333, %1271 : vector<14x14xf32>
    %1335 = arith.addf %1269, %1334 : vector<14x14xf32>
    %c0_95 = arith.constant 0 : index
    %c8_96 = arith.constant 8 : index
    %c0_97 = arith.constant 0 : index
    %c1_98 = arith.constant 1 : index
    %1336 = vector.load %arg1[%c0_95, %c8_96, %c0_97, %c1_98] : memref<1x12x15x15xf32, #tpu.memory_space<vmem>>, vector<1x1x14x14xf32>
    %1337 = vector.shape_cast %1336 : vector<1x1x14x14xf32> to vector<14x14xf32>
    %c320 = arith.constant 320 : index
    %1338 = memref.load %arg2[%c320] : memref<432xf32, #tpu.memory_space<smem>>
    %c321 = arith.constant 321 : index
    %1339 = memref.load %arg2[%c321] : memref<432xf32, #tpu.memory_space<smem>>
    %c322 = arith.constant 322 : index
    %1340 = memref.load %arg2[%c322] : memref<432xf32, #tpu.memory_space<smem>>
    %c323 = arith.constant 323 : index
    %1341 = memref.load %arg2[%c323] : memref<432xf32, #tpu.memory_space<smem>>
    %c324 = arith.constant 324 : index
    %1342 = memref.load %arg2[%c324] : memref<432xf32, #tpu.memory_space<smem>>
    %c325 = arith.constant 325 : index
    %1343 = memref.load %arg2[%c325] : memref<432xf32, #tpu.memory_space<smem>>
    %c326 = arith.constant 326 : index
    %1344 = memref.load %arg2[%c326] : memref<432xf32, #tpu.memory_space<smem>>
    %c327 = arith.constant 327 : index
    %1345 = memref.load %arg2[%c327] : memref<432xf32, #tpu.memory_space<smem>>
    %c328 = arith.constant 328 : index
    %1346 = memref.load %arg2[%c328] : memref<432xf32, #tpu.memory_space<smem>>
    %c329 = arith.constant 329 : index
    %1347 = memref.load %arg2[%c329] : memref<432xf32, #tpu.memory_space<smem>>
    %c330 = arith.constant 330 : index
    %1348 = memref.load %arg2[%c330] : memref<432xf32, #tpu.memory_space<smem>>
    %c331 = arith.constant 331 : index
    %1349 = memref.load %arg2[%c331] : memref<432xf32, #tpu.memory_space<smem>>
    %c332 = arith.constant 332 : index
    %1350 = memref.load %arg2[%c332] : memref<432xf32, #tpu.memory_space<smem>>
    %c333 = arith.constant 333 : index
    %1351 = memref.load %arg2[%c333] : memref<432xf32, #tpu.memory_space<smem>>
    %c334 = arith.constant 334 : index
    %1352 = memref.load %arg2[%c334] : memref<432xf32, #tpu.memory_space<smem>>
    %c335 = arith.constant 335 : index
    %1353 = memref.load %arg2[%c335] : memref<432xf32, #tpu.memory_space<smem>>
    %1354 = vector.broadcast %1338 : f32 to vector<14x14xf32>
    %1355 = arith.mulf %1354, %1337 : vector<14x14xf32>
    %1356 = arith.addf %1290, %1355 : vector<14x14xf32>
    %1357 = vector.broadcast %1339 : f32 to vector<14x14xf32>
    %1358 = arith.mulf %1357, %1337 : vector<14x14xf32>
    %1359 = arith.addf %1293, %1358 : vector<14x14xf32>
    %1360 = vector.broadcast %1340 : f32 to vector<14x14xf32>
    %1361 = arith.mulf %1360, %1337 : vector<14x14xf32>
    %1362 = arith.addf %1296, %1361 : vector<14x14xf32>
    %1363 = vector.broadcast %1341 : f32 to vector<14x14xf32>
    %1364 = arith.mulf %1363, %1337 : vector<14x14xf32>
    %1365 = arith.addf %1299, %1364 : vector<14x14xf32>
    %1366 = vector.broadcast %1342 : f32 to vector<14x14xf32>
    %1367 = arith.mulf %1366, %1337 : vector<14x14xf32>
    %1368 = arith.addf %1302, %1367 : vector<14x14xf32>
    %1369 = vector.broadcast %1343 : f32 to vector<14x14xf32>
    %1370 = arith.mulf %1369, %1337 : vector<14x14xf32>
    %1371 = arith.addf %1305, %1370 : vector<14x14xf32>
    %1372 = vector.broadcast %1344 : f32 to vector<14x14xf32>
    %1373 = arith.mulf %1372, %1337 : vector<14x14xf32>
    %1374 = arith.addf %1308, %1373 : vector<14x14xf32>
    %1375 = vector.broadcast %1345 : f32 to vector<14x14xf32>
    %1376 = arith.mulf %1375, %1337 : vector<14x14xf32>
    %1377 = arith.addf %1311, %1376 : vector<14x14xf32>
    %1378 = vector.broadcast %1346 : f32 to vector<14x14xf32>
    %1379 = arith.mulf %1378, %1337 : vector<14x14xf32>
    %1380 = arith.addf %1314, %1379 : vector<14x14xf32>
    %1381 = vector.broadcast %1347 : f32 to vector<14x14xf32>
    %1382 = arith.mulf %1381, %1337 : vector<14x14xf32>
    %1383 = arith.addf %1317, %1382 : vector<14x14xf32>
    %1384 = vector.broadcast %1348 : f32 to vector<14x14xf32>
    %1385 = arith.mulf %1384, %1337 : vector<14x14xf32>
    %1386 = arith.addf %1320, %1385 : vector<14x14xf32>
    %1387 = vector.broadcast %1349 : f32 to vector<14x14xf32>
    %1388 = arith.mulf %1387, %1337 : vector<14x14xf32>
    %1389 = arith.addf %1323, %1388 : vector<14x14xf32>
    %1390 = vector.broadcast %1350 : f32 to vector<14x14xf32>
    %1391 = arith.mulf %1390, %1337 : vector<14x14xf32>
    %1392 = arith.addf %1326, %1391 : vector<14x14xf32>
    %1393 = vector.broadcast %1351 : f32 to vector<14x14xf32>
    %1394 = arith.mulf %1393, %1337 : vector<14x14xf32>
    %1395 = arith.addf %1329, %1394 : vector<14x14xf32>
    %1396 = vector.broadcast %1352 : f32 to vector<14x14xf32>
    %1397 = arith.mulf %1396, %1337 : vector<14x14xf32>
    %1398 = arith.addf %1332, %1397 : vector<14x14xf32>
    %1399 = vector.broadcast %1353 : f32 to vector<14x14xf32>
    %1400 = arith.mulf %1399, %1337 : vector<14x14xf32>
    %1401 = arith.addf %1335, %1400 : vector<14x14xf32>
    %c0_99 = arith.constant 0 : index
    %c10_100 = arith.constant 10 : index
    %c0_101 = arith.constant 0 : index
    %c0_102 = arith.constant 0 : index
    %1402 = vector.load %arg1[%c0_99, %c10_100, %c0_101, %c0_102] : memref<1x12x15x15xf32, #tpu.memory_space<vmem>>, vector<1x1x14x14xf32>
    %1403 = vector.shape_cast %1402 : vector<1x1x14x14xf32> to vector<14x14xf32>
    %c336 = arith.constant 336 : index
    %1404 = memref.load %arg2[%c336] : memref<432xf32, #tpu.memory_space<smem>>
    %c337 = arith.constant 337 : index
    %1405 = memref.load %arg2[%c337] : memref<432xf32, #tpu.memory_space<smem>>
    %c338 = arith.constant 338 : index
    %1406 = memref.load %arg2[%c338] : memref<432xf32, #tpu.memory_space<smem>>
    %c339 = arith.constant 339 : index
    %1407 = memref.load %arg2[%c339] : memref<432xf32, #tpu.memory_space<smem>>
    %c340 = arith.constant 340 : index
    %1408 = memref.load %arg2[%c340] : memref<432xf32, #tpu.memory_space<smem>>
    %c341 = arith.constant 341 : index
    %1409 = memref.load %arg2[%c341] : memref<432xf32, #tpu.memory_space<smem>>
    %c342 = arith.constant 342 : index
    %1410 = memref.load %arg2[%c342] : memref<432xf32, #tpu.memory_space<smem>>
    %c343 = arith.constant 343 : index
    %1411 = memref.load %arg2[%c343] : memref<432xf32, #tpu.memory_space<smem>>
    %c344 = arith.constant 344 : index
    %1412 = memref.load %arg2[%c344] : memref<432xf32, #tpu.memory_space<smem>>
    %c345 = arith.constant 345 : index
    %1413 = memref.load %arg2[%c345] : memref<432xf32, #tpu.memory_space<smem>>
    %c346 = arith.constant 346 : index
    %1414 = memref.load %arg2[%c346] : memref<432xf32, #tpu.memory_space<smem>>
    %c347 = arith.constant 347 : index
    %1415 = memref.load %arg2[%c347] : memref<432xf32, #tpu.memory_space<smem>>
    %c348 = arith.constant 348 : index
    %1416 = memref.load %arg2[%c348] : memref<432xf32, #tpu.memory_space<smem>>
    %c349 = arith.constant 349 : index
    %1417 = memref.load %arg2[%c349] : memref<432xf32, #tpu.memory_space<smem>>
    %c350 = arith.constant 350 : index
    %1418 = memref.load %arg2[%c350] : memref<432xf32, #tpu.memory_space<smem>>
    %c351 = arith.constant 351 : index
    %1419 = memref.load %arg2[%c351] : memref<432xf32, #tpu.memory_space<smem>>
    %1420 = vector.broadcast %1404 : f32 to vector<14x14xf32>
    %1421 = arith.mulf %1420, %1403 : vector<14x14xf32>
    %1422 = arith.addf %1356, %1421 : vector<14x14xf32>
    %1423 = vector.broadcast %1405 : f32 to vector<14x14xf32>
    %1424 = arith.mulf %1423, %1403 : vector<14x14xf32>
    %1425 = arith.addf %1359, %1424 : vector<14x14xf32>
    %1426 = vector.broadcast %1406 : f32 to vector<14x14xf32>
    %1427 = arith.mulf %1426, %1403 : vector<14x14xf32>
    %1428 = arith.addf %1362, %1427 : vector<14x14xf32>
    %1429 = vector.broadcast %1407 : f32 to vector<14x14xf32>
    %1430 = arith.mulf %1429, %1403 : vector<14x14xf32>
    %1431 = arith.addf %1365, %1430 : vector<14x14xf32>
    %1432 = vector.broadcast %1408 : f32 to vector<14x14xf32>
    %1433 = arith.mulf %1432, %1403 : vector<14x14xf32>
    %1434 = arith.addf %1368, %1433 : vector<14x14xf32>
    %1435 = vector.broadcast %1409 : f32 to vector<14x14xf32>
    %1436 = arith.mulf %1435, %1403 : vector<14x14xf32>
    %1437 = arith.addf %1371, %1436 : vector<14x14xf32>
    %1438 = vector.broadcast %1410 : f32 to vector<14x14xf32>
    %1439 = arith.mulf %1438, %1403 : vector<14x14xf32>
    %1440 = arith.addf %1374, %1439 : vector<14x14xf32>
    %1441 = vector.broadcast %1411 : f32 to vector<14x14xf32>
    %1442 = arith.mulf %1441, %1403 : vector<14x14xf32>
    %1443 = arith.addf %1377, %1442 : vector<14x14xf32>
    %1444 = vector.broadcast %1412 : f32 to vector<14x14xf32>
    %1445 = arith.mulf %1444, %1403 : vector<14x14xf32>
    %1446 = arith.addf %1380, %1445 : vector<14x14xf32>
    %1447 = vector.broadcast %1413 : f32 to vector<14x14xf32>
    %1448 = arith.mulf %1447, %1403 : vector<14x14xf32>
    %1449 = arith.addf %1383, %1448 : vector<14x14xf32>
    %1450 = vector.broadcast %1414 : f32 to vector<14x14xf32>
    %1451 = arith.mulf %1450, %1403 : vector<14x14xf32>
    %1452 = arith.addf %1386, %1451 : vector<14x14xf32>
    %1453 = vector.broadcast %1415 : f32 to vector<14x14xf32>
    %1454 = arith.mulf %1453, %1403 : vector<14x14xf32>
    %1455 = arith.addf %1389, %1454 : vector<14x14xf32>
    %1456 = vector.broadcast %1416 : f32 to vector<14x14xf32>
    %1457 = arith.mulf %1456, %1403 : vector<14x14xf32>
    %1458 = arith.addf %1392, %1457 : vector<14x14xf32>
    %1459 = vector.broadcast %1417 : f32 to vector<14x14xf32>
    %1460 = arith.mulf %1459, %1403 : vector<14x14xf32>
    %1461 = arith.addf %1395, %1460 : vector<14x14xf32>
    %1462 = vector.broadcast %1418 : f32 to vector<14x14xf32>
    %1463 = arith.mulf %1462, %1403 : vector<14x14xf32>
    %1464 = arith.addf %1398, %1463 : vector<14x14xf32>
    %1465 = vector.broadcast %1419 : f32 to vector<14x14xf32>
    %1466 = arith.mulf %1465, %1403 : vector<14x14xf32>
    %1467 = arith.addf %1401, %1466 : vector<14x14xf32>
    %c0_103 = arith.constant 0 : index
    %c11_104 = arith.constant 11 : index
    %c0_105 = arith.constant 0 : index
    %c0_106 = arith.constant 0 : index
    %1468 = vector.load %arg1[%c0_103, %c11_104, %c0_105, %c0_106] : memref<1x12x15x15xf32, #tpu.memory_space<vmem>>, vector<1x1x14x14xf32>
    %1469 = vector.shape_cast %1468 : vector<1x1x14x14xf32> to vector<14x14xf32>
    %c352 = arith.constant 352 : index
    %1470 = memref.load %arg2[%c352] : memref<432xf32, #tpu.memory_space<smem>>
    %c353 = arith.constant 353 : index
    %1471 = memref.load %arg2[%c353] : memref<432xf32, #tpu.memory_space<smem>>
    %c354 = arith.constant 354 : index
    %1472 = memref.load %arg2[%c354] : memref<432xf32, #tpu.memory_space<smem>>
    %c355 = arith.constant 355 : index
    %1473 = memref.load %arg2[%c355] : memref<432xf32, #tpu.memory_space<smem>>
    %c356 = arith.constant 356 : index
    %1474 = memref.load %arg2[%c356] : memref<432xf32, #tpu.memory_space<smem>>
    %c357 = arith.constant 357 : index
    %1475 = memref.load %arg2[%c357] : memref<432xf32, #tpu.memory_space<smem>>
    %c358 = arith.constant 358 : index
    %1476 = memref.load %arg2[%c358] : memref<432xf32, #tpu.memory_space<smem>>
    %c359 = arith.constant 359 : index
    %1477 = memref.load %arg2[%c359] : memref<432xf32, #tpu.memory_space<smem>>
    %c360 = arith.constant 360 : index
    %1478 = memref.load %arg2[%c360] : memref<432xf32, #tpu.memory_space<smem>>
    %c361 = arith.constant 361 : index
    %1479 = memref.load %arg2[%c361] : memref<432xf32, #tpu.memory_space<smem>>
    %c362 = arith.constant 362 : index
    %1480 = memref.load %arg2[%c362] : memref<432xf32, #tpu.memory_space<smem>>
    %c363 = arith.constant 363 : index
    %1481 = memref.load %arg2[%c363] : memref<432xf32, #tpu.memory_space<smem>>
    %c364 = arith.constant 364 : index
    %1482 = memref.load %arg2[%c364] : memref<432xf32, #tpu.memory_space<smem>>
    %c365 = arith.constant 365 : index
    %1483 = memref.load %arg2[%c365] : memref<432xf32, #tpu.memory_space<smem>>
    %c366 = arith.constant 366 : index
    %1484 = memref.load %arg2[%c366] : memref<432xf32, #tpu.memory_space<smem>>
    %c367 = arith.constant 367 : index
    %1485 = memref.load %arg2[%c367] : memref<432xf32, #tpu.memory_space<smem>>
    %1486 = vector.broadcast %1470 : f32 to vector<14x14xf32>
    %1487 = arith.mulf %1486, %1469 : vector<14x14xf32>
    %1488 = arith.addf %1422, %1487 : vector<14x14xf32>
    %1489 = vector.broadcast %1471 : f32 to vector<14x14xf32>
    %1490 = arith.mulf %1489, %1469 : vector<14x14xf32>
    %1491 = arith.addf %1425, %1490 : vector<14x14xf32>
    %1492 = vector.broadcast %1472 : f32 to vector<14x14xf32>
    %1493 = arith.mulf %1492, %1469 : vector<14x14xf32>
    %1494 = arith.addf %1428, %1493 : vector<14x14xf32>
    %1495 = vector.broadcast %1473 : f32 to vector<14x14xf32>
    %1496 = arith.mulf %1495, %1469 : vector<14x14xf32>
    %1497 = arith.addf %1431, %1496 : vector<14x14xf32>
    %1498 = vector.broadcast %1474 : f32 to vector<14x14xf32>
    %1499 = arith.mulf %1498, %1469 : vector<14x14xf32>
    %1500 = arith.addf %1434, %1499 : vector<14x14xf32>
    %1501 = vector.broadcast %1475 : f32 to vector<14x14xf32>
    %1502 = arith.mulf %1501, %1469 : vector<14x14xf32>
    %1503 = arith.addf %1437, %1502 : vector<14x14xf32>
    %1504 = vector.broadcast %1476 : f32 to vector<14x14xf32>
    %1505 = arith.mulf %1504, %1469 : vector<14x14xf32>
    %1506 = arith.addf %1440, %1505 : vector<14x14xf32>
    %1507 = vector.broadcast %1477 : f32 to vector<14x14xf32>
    %1508 = arith.mulf %1507, %1469 : vector<14x14xf32>
    %1509 = arith.addf %1443, %1508 : vector<14x14xf32>
    %1510 = vector.broadcast %1478 : f32 to vector<14x14xf32>
    %1511 = arith.mulf %1510, %1469 : vector<14x14xf32>
    %1512 = arith.addf %1446, %1511 : vector<14x14xf32>
    %1513 = vector.broadcast %1479 : f32 to vector<14x14xf32>
    %1514 = arith.mulf %1513, %1469 : vector<14x14xf32>
    %1515 = arith.addf %1449, %1514 : vector<14x14xf32>
    %1516 = vector.broadcast %1480 : f32 to vector<14x14xf32>
    %1517 = arith.mulf %1516, %1469 : vector<14x14xf32>
    %1518 = arith.addf %1452, %1517 : vector<14x14xf32>
    %1519 = vector.broadcast %1481 : f32 to vector<14x14xf32>
    %1520 = arith.mulf %1519, %1469 : vector<14x14xf32>
    %1521 = arith.addf %1455, %1520 : vector<14x14xf32>
    %1522 = vector.broadcast %1482 : f32 to vector<14x14xf32>
    %1523 = arith.mulf %1522, %1469 : vector<14x14xf32>
    %1524 = arith.addf %1458, %1523 : vector<14x14xf32>
    %1525 = vector.broadcast %1483 : f32 to vector<14x14xf32>
    %1526 = arith.mulf %1525, %1469 : vector<14x14xf32>
    %1527 = arith.addf %1461, %1526 : vector<14x14xf32>
    %1528 = vector.broadcast %1484 : f32 to vector<14x14xf32>
    %1529 = arith.mulf %1528, %1469 : vector<14x14xf32>
    %1530 = arith.addf %1464, %1529 : vector<14x14xf32>
    %1531 = vector.broadcast %1485 : f32 to vector<14x14xf32>
    %1532 = arith.mulf %1531, %1469 : vector<14x14xf32>
    %1533 = arith.addf %1467, %1532 : vector<14x14xf32>
    %c0_107 = arith.constant 0 : index
    %c10_108 = arith.constant 10 : index
    %c0_109 = arith.constant 0 : index
    %c1_110 = arith.constant 1 : index
    %1534 = vector.load %arg1[%c0_107, %c10_108, %c0_109, %c1_110] : memref<1x12x15x15xf32, #tpu.memory_space<vmem>>, vector<1x1x14x14xf32>
    %1535 = vector.shape_cast %1534 : vector<1x1x14x14xf32> to vector<14x14xf32>
    %c368 = arith.constant 368 : index
    %1536 = memref.load %arg2[%c368] : memref<432xf32, #tpu.memory_space<smem>>
    %c369 = arith.constant 369 : index
    %1537 = memref.load %arg2[%c369] : memref<432xf32, #tpu.memory_space<smem>>
    %c370 = arith.constant 370 : index
    %1538 = memref.load %arg2[%c370] : memref<432xf32, #tpu.memory_space<smem>>
    %c371 = arith.constant 371 : index
    %1539 = memref.load %arg2[%c371] : memref<432xf32, #tpu.memory_space<smem>>
    %c372 = arith.constant 372 : index
    %1540 = memref.load %arg2[%c372] : memref<432xf32, #tpu.memory_space<smem>>
    %c373 = arith.constant 373 : index
    %1541 = memref.load %arg2[%c373] : memref<432xf32, #tpu.memory_space<smem>>
    %c374 = arith.constant 374 : index
    %1542 = memref.load %arg2[%c374] : memref<432xf32, #tpu.memory_space<smem>>
    %c375 = arith.constant 375 : index
    %1543 = memref.load %arg2[%c375] : memref<432xf32, #tpu.memory_space<smem>>
    %c376 = arith.constant 376 : index
    %1544 = memref.load %arg2[%c376] : memref<432xf32, #tpu.memory_space<smem>>
    %c377 = arith.constant 377 : index
    %1545 = memref.load %arg2[%c377] : memref<432xf32, #tpu.memory_space<smem>>
    %c378 = arith.constant 378 : index
    %1546 = memref.load %arg2[%c378] : memref<432xf32, #tpu.memory_space<smem>>
    %c379 = arith.constant 379 : index
    %1547 = memref.load %arg2[%c379] : memref<432xf32, #tpu.memory_space<smem>>
    %c380 = arith.constant 380 : index
    %1548 = memref.load %arg2[%c380] : memref<432xf32, #tpu.memory_space<smem>>
    %c381 = arith.constant 381 : index
    %1549 = memref.load %arg2[%c381] : memref<432xf32, #tpu.memory_space<smem>>
    %c382 = arith.constant 382 : index
    %1550 = memref.load %arg2[%c382] : memref<432xf32, #tpu.memory_space<smem>>
    %c383 = arith.constant 383 : index
    %1551 = memref.load %arg2[%c383] : memref<432xf32, #tpu.memory_space<smem>>
    %1552 = vector.broadcast %1536 : f32 to vector<14x14xf32>
    %1553 = arith.mulf %1552, %1535 : vector<14x14xf32>
    %1554 = arith.addf %1488, %1553 : vector<14x14xf32>
    %1555 = vector.broadcast %1537 : f32 to vector<14x14xf32>
    %1556 = arith.mulf %1555, %1535 : vector<14x14xf32>
    %1557 = arith.addf %1491, %1556 : vector<14x14xf32>
    %1558 = vector.broadcast %1538 : f32 to vector<14x14xf32>
    %1559 = arith.mulf %1558, %1535 : vector<14x14xf32>
    %1560 = arith.addf %1494, %1559 : vector<14x14xf32>
    %1561 = vector.broadcast %1539 : f32 to vector<14x14xf32>
    %1562 = arith.mulf %1561, %1535 : vector<14x14xf32>
    %1563 = arith.addf %1497, %1562 : vector<14x14xf32>
    %1564 = vector.broadcast %1540 : f32 to vector<14x14xf32>
    %1565 = arith.mulf %1564, %1535 : vector<14x14xf32>
    %1566 = arith.addf %1500, %1565 : vector<14x14xf32>
    %1567 = vector.broadcast %1541 : f32 to vector<14x14xf32>
    %1568 = arith.mulf %1567, %1535 : vector<14x14xf32>
    %1569 = arith.addf %1503, %1568 : vector<14x14xf32>
    %1570 = vector.broadcast %1542 : f32 to vector<14x14xf32>
    %1571 = arith.mulf %1570, %1535 : vector<14x14xf32>
    %1572 = arith.addf %1506, %1571 : vector<14x14xf32>
    %1573 = vector.broadcast %1543 : f32 to vector<14x14xf32>
    %1574 = arith.mulf %1573, %1535 : vector<14x14xf32>
    %1575 = arith.addf %1509, %1574 : vector<14x14xf32>
    %1576 = vector.broadcast %1544 : f32 to vector<14x14xf32>
    %1577 = arith.mulf %1576, %1535 : vector<14x14xf32>
    %1578 = arith.addf %1512, %1577 : vector<14x14xf32>
    %1579 = vector.broadcast %1545 : f32 to vector<14x14xf32>
    %1580 = arith.mulf %1579, %1535 : vector<14x14xf32>
    %1581 = arith.addf %1515, %1580 : vector<14x14xf32>
    %1582 = vector.broadcast %1546 : f32 to vector<14x14xf32>
    %1583 = arith.mulf %1582, %1535 : vector<14x14xf32>
    %1584 = arith.addf %1518, %1583 : vector<14x14xf32>
    %1585 = vector.broadcast %1547 : f32 to vector<14x14xf32>
    %1586 = arith.mulf %1585, %1535 : vector<14x14xf32>
    %1587 = arith.addf %1521, %1586 : vector<14x14xf32>
    %1588 = vector.broadcast %1548 : f32 to vector<14x14xf32>
    %1589 = arith.mulf %1588, %1535 : vector<14x14xf32>
    %1590 = arith.addf %1524, %1589 : vector<14x14xf32>
    %1591 = vector.broadcast %1549 : f32 to vector<14x14xf32>
    %1592 = arith.mulf %1591, %1535 : vector<14x14xf32>
    %1593 = arith.addf %1527, %1592 : vector<14x14xf32>
    %1594 = vector.broadcast %1550 : f32 to vector<14x14xf32>
    %1595 = arith.mulf %1594, %1535 : vector<14x14xf32>
    %1596 = arith.addf %1530, %1595 : vector<14x14xf32>
    %1597 = vector.broadcast %1551 : f32 to vector<14x14xf32>
    %1598 = arith.mulf %1597, %1535 : vector<14x14xf32>
    %1599 = arith.addf %1533, %1598 : vector<14x14xf32>
    %c0_111 = arith.constant 0 : index
    %c8_112 = arith.constant 8 : index
    %c1_113 = arith.constant 1 : index
    %c0_114 = arith.constant 0 : index
    %1600 = vector.load %arg1[%c0_111, %c8_112, %c1_113, %c0_114] : memref<1x12x15x15xf32, #tpu.memory_space<vmem>>, vector<1x1x14x14xf32>
    %1601 = vector.shape_cast %1600 : vector<1x1x14x14xf32> to vector<14x14xf32>
    %c384 = arith.constant 384 : index
    %1602 = memref.load %arg2[%c384] : memref<432xf32, #tpu.memory_space<smem>>
    %c385 = arith.constant 385 : index
    %1603 = memref.load %arg2[%c385] : memref<432xf32, #tpu.memory_space<smem>>
    %c386 = arith.constant 386 : index
    %1604 = memref.load %arg2[%c386] : memref<432xf32, #tpu.memory_space<smem>>
    %c387 = arith.constant 387 : index
    %1605 = memref.load %arg2[%c387] : memref<432xf32, #tpu.memory_space<smem>>
    %c388 = arith.constant 388 : index
    %1606 = memref.load %arg2[%c388] : memref<432xf32, #tpu.memory_space<smem>>
    %c389 = arith.constant 389 : index
    %1607 = memref.load %arg2[%c389] : memref<432xf32, #tpu.memory_space<smem>>
    %c390 = arith.constant 390 : index
    %1608 = memref.load %arg2[%c390] : memref<432xf32, #tpu.memory_space<smem>>
    %c391 = arith.constant 391 : index
    %1609 = memref.load %arg2[%c391] : memref<432xf32, #tpu.memory_space<smem>>
    %c392 = arith.constant 392 : index
    %1610 = memref.load %arg2[%c392] : memref<432xf32, #tpu.memory_space<smem>>
    %c393 = arith.constant 393 : index
    %1611 = memref.load %arg2[%c393] : memref<432xf32, #tpu.memory_space<smem>>
    %c394 = arith.constant 394 : index
    %1612 = memref.load %arg2[%c394] : memref<432xf32, #tpu.memory_space<smem>>
    %c395 = arith.constant 395 : index
    %1613 = memref.load %arg2[%c395] : memref<432xf32, #tpu.memory_space<smem>>
    %c396 = arith.constant 396 : index
    %1614 = memref.load %arg2[%c396] : memref<432xf32, #tpu.memory_space<smem>>
    %c397 = arith.constant 397 : index
    %1615 = memref.load %arg2[%c397] : memref<432xf32, #tpu.memory_space<smem>>
    %c398 = arith.constant 398 : index
    %1616 = memref.load %arg2[%c398] : memref<432xf32, #tpu.memory_space<smem>>
    %c399 = arith.constant 399 : index
    %1617 = memref.load %arg2[%c399] : memref<432xf32, #tpu.memory_space<smem>>
    %1618 = vector.broadcast %1602 : f32 to vector<14x14xf32>
    %1619 = arith.mulf %1618, %1601 : vector<14x14xf32>
    %1620 = arith.addf %1554, %1619 : vector<14x14xf32>
    %1621 = vector.broadcast %1603 : f32 to vector<14x14xf32>
    %1622 = arith.mulf %1621, %1601 : vector<14x14xf32>
    %1623 = arith.addf %1557, %1622 : vector<14x14xf32>
    %1624 = vector.broadcast %1604 : f32 to vector<14x14xf32>
    %1625 = arith.mulf %1624, %1601 : vector<14x14xf32>
    %1626 = arith.addf %1560, %1625 : vector<14x14xf32>
    %1627 = vector.broadcast %1605 : f32 to vector<14x14xf32>
    %1628 = arith.mulf %1627, %1601 : vector<14x14xf32>
    %1629 = arith.addf %1563, %1628 : vector<14x14xf32>
    %1630 = vector.broadcast %1606 : f32 to vector<14x14xf32>
    %1631 = arith.mulf %1630, %1601 : vector<14x14xf32>
    %1632 = arith.addf %1566, %1631 : vector<14x14xf32>
    %1633 = vector.broadcast %1607 : f32 to vector<14x14xf32>
    %1634 = arith.mulf %1633, %1601 : vector<14x14xf32>
    %1635 = arith.addf %1569, %1634 : vector<14x14xf32>
    %1636 = vector.broadcast %1608 : f32 to vector<14x14xf32>
    %1637 = arith.mulf %1636, %1601 : vector<14x14xf32>
    %1638 = arith.addf %1572, %1637 : vector<14x14xf32>
    %1639 = vector.broadcast %1609 : f32 to vector<14x14xf32>
    %1640 = arith.mulf %1639, %1601 : vector<14x14xf32>
    %1641 = arith.addf %1575, %1640 : vector<14x14xf32>
    %1642 = vector.broadcast %1610 : f32 to vector<14x14xf32>
    %1643 = arith.mulf %1642, %1601 : vector<14x14xf32>
    %1644 = arith.addf %1578, %1643 : vector<14x14xf32>
    %1645 = vector.broadcast %1611 : f32 to vector<14x14xf32>
    %1646 = arith.mulf %1645, %1601 : vector<14x14xf32>
    %1647 = arith.addf %1581, %1646 : vector<14x14xf32>
    %1648 = vector.broadcast %1612 : f32 to vector<14x14xf32>
    %1649 = arith.mulf %1648, %1601 : vector<14x14xf32>
    %1650 = arith.addf %1584, %1649 : vector<14x14xf32>
    %1651 = vector.broadcast %1613 : f32 to vector<14x14xf32>
    %1652 = arith.mulf %1651, %1601 : vector<14x14xf32>
    %1653 = arith.addf %1587, %1652 : vector<14x14xf32>
    %1654 = vector.broadcast %1614 : f32 to vector<14x14xf32>
    %1655 = arith.mulf %1654, %1601 : vector<14x14xf32>
    %1656 = arith.addf %1590, %1655 : vector<14x14xf32>
    %1657 = vector.broadcast %1615 : f32 to vector<14x14xf32>
    %1658 = arith.mulf %1657, %1601 : vector<14x14xf32>
    %1659 = arith.addf %1593, %1658 : vector<14x14xf32>
    %1660 = vector.broadcast %1616 : f32 to vector<14x14xf32>
    %1661 = arith.mulf %1660, %1601 : vector<14x14xf32>
    %1662 = arith.addf %1596, %1661 : vector<14x14xf32>
    %1663 = vector.broadcast %1617 : f32 to vector<14x14xf32>
    %1664 = arith.mulf %1663, %1601 : vector<14x14xf32>
    %1665 = arith.addf %1599, %1664 : vector<14x14xf32>
    %c0_115 = arith.constant 0 : index
    %c9_116 = arith.constant 9 : index
    %c1_117 = arith.constant 1 : index
    %c0_118 = arith.constant 0 : index
    %1666 = vector.load %arg1[%c0_115, %c9_116, %c1_117, %c0_118] : memref<1x12x15x15xf32, #tpu.memory_space<vmem>>, vector<1x1x14x14xf32>
    %1667 = vector.shape_cast %1666 : vector<1x1x14x14xf32> to vector<14x14xf32>
    %c400 = arith.constant 400 : index
    %1668 = memref.load %arg2[%c400] : memref<432xf32, #tpu.memory_space<smem>>
    %c401 = arith.constant 401 : index
    %1669 = memref.load %arg2[%c401] : memref<432xf32, #tpu.memory_space<smem>>
    %c402 = arith.constant 402 : index
    %1670 = memref.load %arg2[%c402] : memref<432xf32, #tpu.memory_space<smem>>
    %c403 = arith.constant 403 : index
    %1671 = memref.load %arg2[%c403] : memref<432xf32, #tpu.memory_space<smem>>
    %c404 = arith.constant 404 : index
    %1672 = memref.load %arg2[%c404] : memref<432xf32, #tpu.memory_space<smem>>
    %c405 = arith.constant 405 : index
    %1673 = memref.load %arg2[%c405] : memref<432xf32, #tpu.memory_space<smem>>
    %c406 = arith.constant 406 : index
    %1674 = memref.load %arg2[%c406] : memref<432xf32, #tpu.memory_space<smem>>
    %c407 = arith.constant 407 : index
    %1675 = memref.load %arg2[%c407] : memref<432xf32, #tpu.memory_space<smem>>
    %c408 = arith.constant 408 : index
    %1676 = memref.load %arg2[%c408] : memref<432xf32, #tpu.memory_space<smem>>
    %c409 = arith.constant 409 : index
    %1677 = memref.load %arg2[%c409] : memref<432xf32, #tpu.memory_space<smem>>
    %c410 = arith.constant 410 : index
    %1678 = memref.load %arg2[%c410] : memref<432xf32, #tpu.memory_space<smem>>
    %c411 = arith.constant 411 : index
    %1679 = memref.load %arg2[%c411] : memref<432xf32, #tpu.memory_space<smem>>
    %c412 = arith.constant 412 : index
    %1680 = memref.load %arg2[%c412] : memref<432xf32, #tpu.memory_space<smem>>
    %c413 = arith.constant 413 : index
    %1681 = memref.load %arg2[%c413] : memref<432xf32, #tpu.memory_space<smem>>
    %c414 = arith.constant 414 : index
    %1682 = memref.load %arg2[%c414] : memref<432xf32, #tpu.memory_space<smem>>
    %c415 = arith.constant 415 : index
    %1683 = memref.load %arg2[%c415] : memref<432xf32, #tpu.memory_space<smem>>
    %1684 = vector.broadcast %1668 : f32 to vector<14x14xf32>
    %1685 = arith.mulf %1684, %1667 : vector<14x14xf32>
    %1686 = arith.addf %1620, %1685 : vector<14x14xf32>
    %1687 = vector.broadcast %1669 : f32 to vector<14x14xf32>
    %1688 = arith.mulf %1687, %1667 : vector<14x14xf32>
    %1689 = arith.addf %1623, %1688 : vector<14x14xf32>
    %1690 = vector.broadcast %1670 : f32 to vector<14x14xf32>
    %1691 = arith.mulf %1690, %1667 : vector<14x14xf32>
    %1692 = arith.addf %1626, %1691 : vector<14x14xf32>
    %1693 = vector.broadcast %1671 : f32 to vector<14x14xf32>
    %1694 = arith.mulf %1693, %1667 : vector<14x14xf32>
    %1695 = arith.addf %1629, %1694 : vector<14x14xf32>
    %1696 = vector.broadcast %1672 : f32 to vector<14x14xf32>
    %1697 = arith.mulf %1696, %1667 : vector<14x14xf32>
    %1698 = arith.addf %1632, %1697 : vector<14x14xf32>
    %1699 = vector.broadcast %1673 : f32 to vector<14x14xf32>
    %1700 = arith.mulf %1699, %1667 : vector<14x14xf32>
    %1701 = arith.addf %1635, %1700 : vector<14x14xf32>
    %1702 = vector.broadcast %1674 : f32 to vector<14x14xf32>
    %1703 = arith.mulf %1702, %1667 : vector<14x14xf32>
    %1704 = arith.addf %1638, %1703 : vector<14x14xf32>
    %1705 = vector.broadcast %1675 : f32 to vector<14x14xf32>
    %1706 = arith.mulf %1705, %1667 : vector<14x14xf32>
    %1707 = arith.addf %1641, %1706 : vector<14x14xf32>
    %1708 = vector.broadcast %1676 : f32 to vector<14x14xf32>
    %1709 = arith.mulf %1708, %1667 : vector<14x14xf32>
    %1710 = arith.addf %1644, %1709 : vector<14x14xf32>
    %1711 = vector.broadcast %1677 : f32 to vector<14x14xf32>
    %1712 = arith.mulf %1711, %1667 : vector<14x14xf32>
    %1713 = arith.addf %1647, %1712 : vector<14x14xf32>
    %1714 = vector.broadcast %1678 : f32 to vector<14x14xf32>
    %1715 = arith.mulf %1714, %1667 : vector<14x14xf32>
    %1716 = arith.addf %1650, %1715 : vector<14x14xf32>
    %1717 = vector.broadcast %1679 : f32 to vector<14x14xf32>
    %1718 = arith.mulf %1717, %1667 : vector<14x14xf32>
    %1719 = arith.addf %1653, %1718 : vector<14x14xf32>
    %1720 = vector.broadcast %1680 : f32 to vector<14x14xf32>
    %1721 = arith.mulf %1720, %1667 : vector<14x14xf32>
    %1722 = arith.addf %1656, %1721 : vector<14x14xf32>
    %1723 = vector.broadcast %1681 : f32 to vector<14x14xf32>
    %1724 = arith.mulf %1723, %1667 : vector<14x14xf32>
    %1725 = arith.addf %1659, %1724 : vector<14x14xf32>
    %1726 = vector.broadcast %1682 : f32 to vector<14x14xf32>
    %1727 = arith.mulf %1726, %1667 : vector<14x14xf32>
    %1728 = arith.addf %1662, %1727 : vector<14x14xf32>
    %1729 = vector.broadcast %1683 : f32 to vector<14x14xf32>
    %1730 = arith.mulf %1729, %1667 : vector<14x14xf32>
    %1731 = arith.addf %1665, %1730 : vector<14x14xf32>
    %c0_119 = arith.constant 0 : index
    %c8_120 = arith.constant 8 : index
    %c1_121 = arith.constant 1 : index
    %c1_122 = arith.constant 1 : index
    %1732 = vector.load %arg1[%c0_119, %c8_120, %c1_121, %c1_122] : memref<1x12x15x15xf32, #tpu.memory_space<vmem>>, vector<1x1x14x14xf32>
    %1733 = vector.shape_cast %1732 : vector<1x1x14x14xf32> to vector<14x14xf32>
    %c416 = arith.constant 416 : index
    %1734 = memref.load %arg2[%c416] : memref<432xf32, #tpu.memory_space<smem>>
    %c417 = arith.constant 417 : index
    %1735 = memref.load %arg2[%c417] : memref<432xf32, #tpu.memory_space<smem>>
    %c418 = arith.constant 418 : index
    %1736 = memref.load %arg2[%c418] : memref<432xf32, #tpu.memory_space<smem>>
    %c419 = arith.constant 419 : index
    %1737 = memref.load %arg2[%c419] : memref<432xf32, #tpu.memory_space<smem>>
    %c420 = arith.constant 420 : index
    %1738 = memref.load %arg2[%c420] : memref<432xf32, #tpu.memory_space<smem>>
    %c421 = arith.constant 421 : index
    %1739 = memref.load %arg2[%c421] : memref<432xf32, #tpu.memory_space<smem>>
    %c422 = arith.constant 422 : index
    %1740 = memref.load %arg2[%c422] : memref<432xf32, #tpu.memory_space<smem>>
    %c423 = arith.constant 423 : index
    %1741 = memref.load %arg2[%c423] : memref<432xf32, #tpu.memory_space<smem>>
    %c424 = arith.constant 424 : index
    %1742 = memref.load %arg2[%c424] : memref<432xf32, #tpu.memory_space<smem>>
    %c425 = arith.constant 425 : index
    %1743 = memref.load %arg2[%c425] : memref<432xf32, #tpu.memory_space<smem>>
    %c426 = arith.constant 426 : index
    %1744 = memref.load %arg2[%c426] : memref<432xf32, #tpu.memory_space<smem>>
    %c427 = arith.constant 427 : index
    %1745 = memref.load %arg2[%c427] : memref<432xf32, #tpu.memory_space<smem>>
    %c428 = arith.constant 428 : index
    %1746 = memref.load %arg2[%c428] : memref<432xf32, #tpu.memory_space<smem>>
    %c429 = arith.constant 429 : index
    %1747 = memref.load %arg2[%c429] : memref<432xf32, #tpu.memory_space<smem>>
    %c430 = arith.constant 430 : index
    %1748 = memref.load %arg2[%c430] : memref<432xf32, #tpu.memory_space<smem>>
    %c431 = arith.constant 431 : index
    %1749 = memref.load %arg2[%c431] : memref<432xf32, #tpu.memory_space<smem>>
    %1750 = vector.broadcast %1734 : f32 to vector<14x14xf32>
    %1751 = arith.mulf %1750, %1733 : vector<14x14xf32>
    %1752 = arith.addf %1686, %1751 : vector<14x14xf32>
    %1753 = vector.broadcast %1735 : f32 to vector<14x14xf32>
    %1754 = arith.mulf %1753, %1733 : vector<14x14xf32>
    %1755 = arith.addf %1689, %1754 : vector<14x14xf32>
    %1756 = vector.broadcast %1736 : f32 to vector<14x14xf32>
    %1757 = arith.mulf %1756, %1733 : vector<14x14xf32>
    %1758 = arith.addf %1692, %1757 : vector<14x14xf32>
    %1759 = vector.broadcast %1737 : f32 to vector<14x14xf32>
    %1760 = arith.mulf %1759, %1733 : vector<14x14xf32>
    %1761 = arith.addf %1695, %1760 : vector<14x14xf32>
    %1762 = vector.broadcast %1738 : f32 to vector<14x14xf32>
    %1763 = arith.mulf %1762, %1733 : vector<14x14xf32>
    %1764 = arith.addf %1698, %1763 : vector<14x14xf32>
    %1765 = vector.broadcast %1739 : f32 to vector<14x14xf32>
    %1766 = arith.mulf %1765, %1733 : vector<14x14xf32>
    %1767 = arith.addf %1701, %1766 : vector<14x14xf32>
    %1768 = vector.broadcast %1740 : f32 to vector<14x14xf32>
    %1769 = arith.mulf %1768, %1733 : vector<14x14xf32>
    %1770 = arith.addf %1704, %1769 : vector<14x14xf32>
    %1771 = vector.broadcast %1741 : f32 to vector<14x14xf32>
    %1772 = arith.mulf %1771, %1733 : vector<14x14xf32>
    %1773 = arith.addf %1707, %1772 : vector<14x14xf32>
    %1774 = vector.broadcast %1742 : f32 to vector<14x14xf32>
    %1775 = arith.mulf %1774, %1733 : vector<14x14xf32>
    %1776 = arith.addf %1710, %1775 : vector<14x14xf32>
    %1777 = vector.broadcast %1743 : f32 to vector<14x14xf32>
    %1778 = arith.mulf %1777, %1733 : vector<14x14xf32>
    %1779 = arith.addf %1713, %1778 : vector<14x14xf32>
    %1780 = vector.broadcast %1744 : f32 to vector<14x14xf32>
    %1781 = arith.mulf %1780, %1733 : vector<14x14xf32>
    %1782 = arith.addf %1716, %1781 : vector<14x14xf32>
    %1783 = vector.broadcast %1745 : f32 to vector<14x14xf32>
    %1784 = arith.mulf %1783, %1733 : vector<14x14xf32>
    %1785 = arith.addf %1719, %1784 : vector<14x14xf32>
    %1786 = vector.broadcast %1746 : f32 to vector<14x14xf32>
    %1787 = arith.mulf %1786, %1733 : vector<14x14xf32>
    %1788 = arith.addf %1722, %1787 : vector<14x14xf32>
    %1789 = vector.broadcast %1747 : f32 to vector<14x14xf32>
    %1790 = arith.mulf %1789, %1733 : vector<14x14xf32>
    %1791 = arith.addf %1725, %1790 : vector<14x14xf32>
    %1792 = vector.broadcast %1748 : f32 to vector<14x14xf32>
    %1793 = arith.mulf %1792, %1733 : vector<14x14xf32>
    %1794 = arith.addf %1728, %1793 : vector<14x14xf32>
    %1795 = vector.broadcast %1749 : f32 to vector<14x14xf32>
    %1796 = arith.mulf %1795, %1733 : vector<14x14xf32>
    %1797 = arith.addf %1731, %1796 : vector<14x14xf32>
    %c0_123 = arith.constant 0 : index
    %1798 = memref.load %arg3[%c0_123] : memref<16xf32, #tpu.memory_space<smem>>
    %1799 = vector.broadcast %1798 : f32 to vector<14x14xf32>
    %1800 = arith.addf %1752, %1799 : vector<14x14xf32>
    %cst_124 = arith.constant 5.000000e-01 : f32
    %1801 = vector.broadcast %cst_124 : f32 to vector<14x14xf32>
    %1802 = arith.mulf %1801, %1800 : vector<14x14xf32>
    %1803 = math.tanh %1802 : vector<14x14xf32>
    %cst_125 = arith.constant 5.000000e-01 : f32
    %1804 = vector.broadcast %cst_125 : f32 to vector<14x14xf32>
    %1805 = arith.mulf %1804, %1803 : vector<14x14xf32>
    %cst_126 = arith.constant 5.000000e-01 : f32
    %1806 = vector.broadcast %cst_126 : f32 to vector<14x14xf32>
    %1807 = arith.addf %1805, %1806 : vector<14x14xf32>
    %c0_127 = arith.constant 0 : index
    %c0_128 = arith.constant 0 : index
    %c0_129 = arith.constant 0 : index
    %c0_130 = arith.constant 0 : index
    %1808 = vector.load %arg4[%c0_127, %c0_128, %c0_129, %c0_130] : memref<1x16x14x14xf32, #tpu.memory_space<vmem>>, vector<1x1x14x14xf32>
    %1809 = vector.shape_cast %1808 : vector<1x1x14x14xf32> to vector<14x14xf32>
    %1810 = vector.shape_cast %1807 : vector<14x14xf32> to vector<1x1x14x14xf32>
    tpu.vector_store %arg4[%c0_127, %c0_128, %c0_129, %c0_130], %1810 {strides = array<i32>} : memref<1x16x14x14xf32, #tpu.memory_space<vmem>>, vector<1x1x14x14xf32>,
    %c1_131 = arith.constant 1 : index
    %1811 = memref.load %arg3[%c1_131] : memref<16xf32, #tpu.memory_space<smem>>
    %1812 = vector.broadcast %1811 : f32 to vector<14x14xf32>
    %1813 = arith.addf %1755, %1812 : vector<14x14xf32>
    %cst_132 = arith.constant 5.000000e-01 : f32
    %1814 = vector.broadcast %cst_132 : f32 to vector<14x14xf32>
    %1815 = arith.mulf %1814, %1813 : vector<14x14xf32>
    %1816 = math.tanh %1815 : vector<14x14xf32>
    %cst_133 = arith.constant 5.000000e-01 : f32
    %1817 = vector.broadcast %cst_133 : f32 to vector<14x14xf32>
    %1818 = arith.mulf %1817, %1816 : vector<14x14xf32>
    %cst_134 = arith.constant 5.000000e-01 : f32
    %1819 = vector.broadcast %cst_134 : f32 to vector<14x14xf32>
    %1820 = arith.addf %1818, %1819 : vector<14x14xf32>
    %c0_135 = arith.constant 0 : index
    %c1_136 = arith.constant 1 : index
    %c0_137 = arith.constant 0 : index
    %c0_138 = arith.constant 0 : index
    %1821 = vector.load %arg4[%c0_135, %c1_136, %c0_137, %c0_138] : memref<1x16x14x14xf32, #tpu.memory_space<vmem>>, vector<1x1x14x14xf32>
    %1822 = vector.shape_cast %1821 : vector<1x1x14x14xf32> to vector<14x14xf32>
    %1823 = vector.shape_cast %1820 : vector<14x14xf32> to vector<1x1x14x14xf32>
    tpu.vector_store %arg4[%c0_135, %c1_136, %c0_137, %c0_138], %1823 {strides = array<i32>} : memref<1x16x14x14xf32, #tpu.memory_space<vmem>>, vector<1x1x14x14xf32>,
    %c2_139 = arith.constant 2 : index
    %1824 = memref.load %arg3[%c2_139] : memref<16xf32, #tpu.memory_space<smem>>
    %1825 = vector.broadcast %1824 : f32 to vector<14x14xf32>
    %1826 = arith.addf %1758, %1825 : vector<14x14xf32>
    %cst_140 = arith.constant 5.000000e-01 : f32
    %1827 = vector.broadcast %cst_140 : f32 to vector<14x14xf32>
    %1828 = arith.mulf %1827, %1826 : vector<14x14xf32>
    %1829 = math.tanh %1828 : vector<14x14xf32>
    %cst_141 = arith.constant 5.000000e-01 : f32
    %1830 = vector.broadcast %cst_141 : f32 to vector<14x14xf32>
    %1831 = arith.mulf %1830, %1829 : vector<14x14xf32>
    %cst_142 = arith.constant 5.000000e-01 : f32
    %1832 = vector.broadcast %cst_142 : f32 to vector<14x14xf32>
    %1833 = arith.addf %1831, %1832 : vector<14x14xf32>
    %c0_143 = arith.constant 0 : index
    %c2_144 = arith.constant 2 : index
    %c0_145 = arith.constant 0 : index
    %c0_146 = arith.constant 0 : index
    %1834 = vector.load %arg4[%c0_143, %c2_144, %c0_145, %c0_146] : memref<1x16x14x14xf32, #tpu.memory_space<vmem>>, vector<1x1x14x14xf32>
    %1835 = vector.shape_cast %1834 : vector<1x1x14x14xf32> to vector<14x14xf32>
    %1836 = vector.shape_cast %1833 : vector<14x14xf32> to vector<1x1x14x14xf32>
    tpu.vector_store %arg4[%c0_143, %c2_144, %c0_145, %c0_146], %1836 {strides = array<i32>} : memref<1x16x14x14xf32, #tpu.memory_space<vmem>>, vector<1x1x14x14xf32>,
    %c3_147 = arith.constant 3 : index
    %1837 = memref.load %arg3[%c3_147] : memref<16xf32, #tpu.memory_space<smem>>
    %1838 = vector.broadcast %1837 : f32 to vector<14x14xf32>
    %1839 = arith.addf %1761, %1838 : vector<14x14xf32>
    %cst_148 = arith.constant 5.000000e-01 : f32
    %1840 = vector.broadcast %cst_148 : f32 to vector<14x14xf32>
    %1841 = arith.mulf %1840, %1839 : vector<14x14xf32>
    %1842 = math.tanh %1841 : vector<14x14xf32>
    %cst_149 = arith.constant 5.000000e-01 : f32
    %1843 = vector.broadcast %cst_149 : f32 to vector<14x14xf32>
    %1844 = arith.mulf %1843, %1842 : vector<14x14xf32>
    %cst_150 = arith.constant 5.000000e-01 : f32
    %1845 = vector.broadcast %cst_150 : f32 to vector<14x14xf32>
    %1846 = arith.addf %1844, %1845 : vector<14x14xf32>
    %c0_151 = arith.constant 0 : index
    %c3_152 = arith.constant 3 : index
    %c0_153 = arith.constant 0 : index
    %c0_154 = arith.constant 0 : index
    %1847 = vector.load %arg4[%c0_151, %c3_152, %c0_153, %c0_154] : memref<1x16x14x14xf32, #tpu.memory_space<vmem>>, vector<1x1x14x14xf32>
    %1848 = vector.shape_cast %1847 : vector<1x1x14x14xf32> to vector<14x14xf32>
    %1849 = vector.shape_cast %1846 : vector<14x14xf32> to vector<1x1x14x14xf32>
    tpu.vector_store %arg4[%c0_151, %c3_152, %c0_153, %c0_154], %1849 {strides = array<i32>} : memref<1x16x14x14xf32, #tpu.memory_space<vmem>>, vector<1x1x14x14xf32>,
    %c4_155 = arith.constant 4 : index
    %1850 = memref.load %arg3[%c4_155] : memref<16xf32, #tpu.memory_space<smem>>
    %1851 = vector.broadcast %1850 : f32 to vector<14x14xf32>
    %1852 = arith.addf %1764, %1851 : vector<14x14xf32>
    %cst_156 = arith.constant 5.000000e-01 : f32
    %1853 = vector.broadcast %cst_156 : f32 to vector<14x14xf32>
    %1854 = arith.mulf %1853, %1852 : vector<14x14xf32>
    %1855 = math.tanh %1854 : vector<14x14xf32>
    %cst_157 = arith.constant 5.000000e-01 : f32
    %1856 = vector.broadcast %cst_157 : f32 to vector<14x14xf32>
    %1857 = arith.mulf %1856, %1855 : vector<14x14xf32>
    %cst_158 = arith.constant 5.000000e-01 : f32
    %1858 = vector.broadcast %cst_158 : f32 to vector<14x14xf32>
    %1859 = arith.addf %1857, %1858 : vector<14x14xf32>
    %c0_159 = arith.constant 0 : index
    %c4_160 = arith.constant 4 : index
    %c0_161 = arith.constant 0 : index
    %c0_162 = arith.constant 0 : index
    %1860 = vector.load %arg4[%c0_159, %c4_160, %c0_161, %c0_162] : memref<1x16x14x14xf32, #tpu.memory_space<vmem>>, vector<1x1x14x14xf32>
    %1861 = vector.shape_cast %1860 : vector<1x1x14x14xf32> to vector<14x14xf32>
    %1862 = vector.shape_cast %1859 : vector<14x14xf32> to vector<1x1x14x14xf32>
    tpu.vector_store %arg4[%c0_159, %c4_160, %c0_161, %c0_162], %1862 {strides = array<i32>} : memref<1x16x14x14xf32, #tpu.memory_space<vmem>>, vector<1x1x14x14xf32>,
    %c5_163 = arith.constant 5 : index
    %1863 = memref.load %arg3[%c5_163] : memref<16xf32, #tpu.memory_space<smem>>
    %1864 = vector.broadcast %1863 : f32 to vector<14x14xf32>
    %1865 = arith.addf %1767, %1864 : vector<14x14xf32>
    %cst_164 = arith.constant 5.000000e-01 : f32
    %1866 = vector.broadcast %cst_164 : f32 to vector<14x14xf32>
    %1867 = arith.mulf %1866, %1865 : vector<14x14xf32>
    %1868 = math.tanh %1867 : vector<14x14xf32>
    %cst_165 = arith.constant 5.000000e-01 : f32
    %1869 = vector.broadcast %cst_165 : f32 to vector<14x14xf32>
    %1870 = arith.mulf %1869, %1868 : vector<14x14xf32>
    %cst_166 = arith.constant 5.000000e-01 : f32
    %1871 = vector.broadcast %cst_166 : f32 to vector<14x14xf32>
    %1872 = arith.addf %1870, %1871 : vector<14x14xf32>
    %c0_167 = arith.constant 0 : index
    %c5_168 = arith.constant 5 : index
    %c0_169 = arith.constant 0 : index
    %c0_170 = arith.constant 0 : index
    %1873 = vector.load %arg4[%c0_167, %c5_168, %c0_169, %c0_170] : memref<1x16x14x14xf32, #tpu.memory_space<vmem>>, vector<1x1x14x14xf32>
    %1874 = vector.shape_cast %1873 : vector<1x1x14x14xf32> to vector<14x14xf32>
    %1875 = vector.shape_cast %1872 : vector<14x14xf32> to vector<1x1x14x14xf32>
    tpu.vector_store %arg4[%c0_167, %c5_168, %c0_169, %c0_170], %1875 {strides = array<i32>} : memref<1x16x14x14xf32, #tpu.memory_space<vmem>>, vector<1x1x14x14xf32>,
    %c6_171 = arith.constant 6 : index
    %1876 = memref.load %arg3[%c6_171] : memref<16xf32, #tpu.memory_space<smem>>
    %1877 = vector.broadcast %1876 : f32 to vector<14x14xf32>
    %1878 = arith.addf %1770, %1877 : vector<14x14xf32>
    %cst_172 = arith.constant 5.000000e-01 : f32
    %1879 = vector.broadcast %cst_172 : f32 to vector<14x14xf32>
    %1880 = arith.mulf %1879, %1878 : vector<14x14xf32>
    %1881 = math.tanh %1880 : vector<14x14xf32>
    %cst_173 = arith.constant 5.000000e-01 : f32
    %1882 = vector.broadcast %cst_173 : f32 to vector<14x14xf32>
    %1883 = arith.mulf %1882, %1881 : vector<14x14xf32>
    %cst_174 = arith.constant 5.000000e-01 : f32
    %1884 = vector.broadcast %cst_174 : f32 to vector<14x14xf32>
    %1885 = arith.addf %1883, %1884 : vector<14x14xf32>
    %c0_175 = arith.constant 0 : index
    %c6_176 = arith.constant 6 : index
    %c0_177 = arith.constant 0 : index
    %c0_178 = arith.constant 0 : index
    %1886 = vector.load %arg4[%c0_175, %c6_176, %c0_177, %c0_178] : memref<1x16x14x14xf32, #tpu.memory_space<vmem>>, vector<1x1x14x14xf32>
    %1887 = vector.shape_cast %1886 : vector<1x1x14x14xf32> to vector<14x14xf32>
    %1888 = vector.shape_cast %1885 : vector<14x14xf32> to vector<1x1x14x14xf32>
    tpu.vector_store %arg4[%c0_175, %c6_176, %c0_177, %c0_178], %1888 {strides = array<i32>} : memref<1x16x14x14xf32, #tpu.memory_space<vmem>>, vector<1x1x14x14xf32>,
    %c7_179 = arith.constant 7 : index
    %1889 = memref.load %arg3[%c7_179] : memref<16xf32, #tpu.memory_space<smem>>
    %1890 = vector.broadcast %1889 : f32 to vector<14x14xf32>
    %1891 = arith.addf %1773, %1890 : vector<14x14xf32>
    %cst_180 = arith.constant 5.000000e-01 : f32
    %1892 = vector.broadcast %cst_180 : f32 to vector<14x14xf32>
    %1893 = arith.mulf %1892, %1891 : vector<14x14xf32>
    %1894 = math.tanh %1893 : vector<14x14xf32>
    %cst_181 = arith.constant 5.000000e-01 : f32
    %1895 = vector.broadcast %cst_181 : f32 to vector<14x14xf32>
    %1896 = arith.mulf %1895, %1894 : vector<14x14xf32>
    %cst_182 = arith.constant 5.000000e-01 : f32
    %1897 = vector.broadcast %cst_182 : f32 to vector<14x14xf32>
    %1898 = arith.addf %1896, %1897 : vector<14x14xf32>
    %c0_183 = arith.constant 0 : index
    %c7_184 = arith.constant 7 : index
    %c0_185 = arith.constant 0 : index
    %c0_186 = arith.constant 0 : index
    %1899 = vector.load %arg4[%c0_183, %c7_184, %c0_185, %c0_186] : memref<1x16x14x14xf32, #tpu.memory_space<vmem>>, vector<1x1x14x14xf32>
    %1900 = vector.shape_cast %1899 : vector<1x1x14x14xf32> to vector<14x14xf32>
    %1901 = vector.shape_cast %1898 : vector<14x14xf32> to vector<1x1x14x14xf32>
    tpu.vector_store %arg4[%c0_183, %c7_184, %c0_185, %c0_186], %1901 {strides = array<i32>} : memref<1x16x14x14xf32, #tpu.memory_space<vmem>>, vector<1x1x14x14xf32>,
    %c8_187 = arith.constant 8 : index
    %1902 = memref.load %arg3[%c8_187] : memref<16xf32, #tpu.memory_space<smem>>
    %1903 = vector.broadcast %1902 : f32 to vector<14x14xf32>
    %1904 = arith.addf %1776, %1903 : vector<14x14xf32>
    %cst_188 = arith.constant 5.000000e-01 : f32
    %1905 = vector.broadcast %cst_188 : f32 to vector<14x14xf32>
    %1906 = arith.mulf %1905, %1904 : vector<14x14xf32>
    %1907 = math.tanh %1906 : vector<14x14xf32>
    %cst_189 = arith.constant 5.000000e-01 : f32
    %1908 = vector.broadcast %cst_189 : f32 to vector<14x14xf32>
    %1909 = arith.mulf %1908, %1907 : vector<14x14xf32>
    %cst_190 = arith.constant 5.000000e-01 : f32
    %1910 = vector.broadcast %cst_190 : f32 to vector<14x14xf32>
    %1911 = arith.addf %1909, %1910 : vector<14x14xf32>
    %c0_191 = arith.constant 0 : index
    %c8_192 = arith.constant 8 : index
    %c0_193 = arith.constant 0 : index
    %c0_194 = arith.constant 0 : index
    %1912 = vector.load %arg4[%c0_191, %c8_192, %c0_193, %c0_194] : memref<1x16x14x14xf32, #tpu.memory_space<vmem>>, vector<1x1x14x14xf32>
    %1913 = vector.shape_cast %1912 : vector<1x1x14x14xf32> to vector<14x14xf32>
    %1914 = vector.shape_cast %1911 : vector<14x14xf32> to vector<1x1x14x14xf32>
    tpu.vector_store %arg4[%c0_191, %c8_192, %c0_193, %c0_194], %1914 {strides = array<i32>} : memref<1x16x14x14xf32, #tpu.memory_space<vmem>>, vector<1x1x14x14xf32>,
    %c9_195 = arith.constant 9 : index
    %1915 = memref.load %arg3[%c9_195] : memref<16xf32, #tpu.memory_space<smem>>
    %1916 = vector.broadcast %1915 : f32 to vector<14x14xf32>
    %1917 = arith.addf %1779, %1916 : vector<14x14xf32>
    %cst_196 = arith.constant 5.000000e-01 : f32
    %1918 = vector.broadcast %cst_196 : f32 to vector<14x14xf32>
    %1919 = arith.mulf %1918, %1917 : vector<14x14xf32>
    %1920 = math.tanh %1919 : vector<14x14xf32>
    %cst_197 = arith.constant 5.000000e-01 : f32
    %1921 = vector.broadcast %cst_197 : f32 to vector<14x14xf32>
    %1922 = arith.mulf %1921, %1920 : vector<14x14xf32>
    %cst_198 = arith.constant 5.000000e-01 : f32
    %1923 = vector.broadcast %cst_198 : f32 to vector<14x14xf32>
    %1924 = arith.addf %1922, %1923 : vector<14x14xf32>
    %c0_199 = arith.constant 0 : index
    %c9_200 = arith.constant 9 : index
    %c0_201 = arith.constant 0 : index
    %c0_202 = arith.constant 0 : index
    %1925 = vector.load %arg4[%c0_199, %c9_200, %c0_201, %c0_202] : memref<1x16x14x14xf32, #tpu.memory_space<vmem>>, vector<1x1x14x14xf32>
    %1926 = vector.shape_cast %1925 : vector<1x1x14x14xf32> to vector<14x14xf32>
    %1927 = vector.shape_cast %1924 : vector<14x14xf32> to vector<1x1x14x14xf32>
    tpu.vector_store %arg4[%c0_199, %c9_200, %c0_201, %c0_202], %1927 {strides = array<i32>} : memref<1x16x14x14xf32, #tpu.memory_space<vmem>>, vector<1x1x14x14xf32>,
    %c10_203 = arith.constant 10 : index
    %1928 = memref.load %arg3[%c10_203] : memref<16xf32, #tpu.memory_space<smem>>
    %1929 = vector.broadcast %1928 : f32 to vector<14x14xf32>
    %1930 = arith.addf %1782, %1929 : vector<14x14xf32>
    %cst_204 = arith.constant 5.000000e-01 : f32
    %1931 = vector.broadcast %cst_204 : f32 to vector<14x14xf32>
    %1932 = arith.mulf %1931, %1930 : vector<14x14xf32>
    %1933 = math.tanh %1932 : vector<14x14xf32>
    %cst_205 = arith.constant 5.000000e-01 : f32
    %1934 = vector.broadcast %cst_205 : f32 to vector<14x14xf32>
    %1935 = arith.mulf %1934, %1933 : vector<14x14xf32>
    %cst_206 = arith.constant 5.000000e-01 : f32
    %1936 = vector.broadcast %cst_206 : f32 to vector<14x14xf32>
    %1937 = arith.addf %1935, %1936 : vector<14x14xf32>
    %c0_207 = arith.constant 0 : index
    %c10_208 = arith.constant 10 : index
    %c0_209 = arith.constant 0 : index
    %c0_210 = arith.constant 0 : index
    %1938 = vector.load %arg4[%c0_207, %c10_208, %c0_209, %c0_210] : memref<1x16x14x14xf32, #tpu.memory_space<vmem>>, vector<1x1x14x14xf32>
    %1939 = vector.shape_cast %1938 : vector<1x1x14x14xf32> to vector<14x14xf32>
    %1940 = vector.shape_cast %1937 : vector<14x14xf32> to vector<1x1x14x14xf32>
    tpu.vector_store %arg4[%c0_207, %c10_208, %c0_209, %c0_210], %1940 {strides = array<i32>} : memref<1x16x14x14xf32, #tpu.memory_space<vmem>>, vector<1x1x14x14xf32>,
    %c11_211 = arith.constant 11 : index
    %1941 = memref.load %arg3[%c11_211] : memref<16xf32, #tpu.memory_space<smem>>
    %1942 = vector.broadcast %1941 : f32 to vector<14x14xf32>
    %1943 = arith.addf %1785, %1942 : vector<14x14xf32>
    %cst_212 = arith.constant 5.000000e-01 : f32
    %1944 = vector.broadcast %cst_212 : f32 to vector<14x14xf32>
    %1945 = arith.mulf %1944, %1943 : vector<14x14xf32>
    %1946 = math.tanh %1945 : vector<14x14xf32>
    %cst_213 = arith.constant 5.000000e-01 : f32
    %1947 = vector.broadcast %cst_213 : f32 to vector<14x14xf32>
    %1948 = arith.mulf %1947, %1946 : vector<14x14xf32>
    %cst_214 = arith.constant 5.000000e-01 : f32
    %1949 = vector.broadcast %cst_214 : f32 to vector<14x14xf32>
    %1950 = arith.addf %1948, %1949 : vector<14x14xf32>
    %c0_215 = arith.constant 0 : index
    %c11_216 = arith.constant 11 : index
    %c0_217 = arith.constant 0 : index
    %c0_218 = arith.constant 0 : index
    %1951 = vector.load %arg4[%c0_215, %c11_216, %c0_217, %c0_218] : memref<1x16x14x14xf32, #tpu.memory_space<vmem>>, vector<1x1x14x14xf32>
    %1952 = vector.shape_cast %1951 : vector<1x1x14x14xf32> to vector<14x14xf32>
    %1953 = vector.shape_cast %1950 : vector<14x14xf32> to vector<1x1x14x14xf32>
    tpu.vector_store %arg4[%c0_215, %c11_216, %c0_217, %c0_218], %1953 {strides = array<i32>} : memref<1x16x14x14xf32, #tpu.memory_space<vmem>>, vector<1x1x14x14xf32>,
    %c12_219 = arith.constant 12 : index
    %1954 = memref.load %arg3[%c12_219] : memref<16xf32, #tpu.memory_space<smem>>
    %1955 = vector.broadcast %1954 : f32 to vector<14x14xf32>
    %1956 = arith.addf %1788, %1955 : vector<14x14xf32>
    %cst_220 = arith.constant 5.000000e-01 : f32
    %1957 = vector.broadcast %cst_220 : f32 to vector<14x14xf32>
    %1958 = arith.mulf %1957, %1956 : vector<14x14xf32>
    %1959 = math.tanh %1958 : vector<14x14xf32>
    %cst_221 = arith.constant 5.000000e-01 : f32
    %1960 = vector.broadcast %cst_221 : f32 to vector<14x14xf32>
    %1961 = arith.mulf %1960, %1959 : vector<14x14xf32>
    %cst_222 = arith.constant 5.000000e-01 : f32
    %1962 = vector.broadcast %cst_222 : f32 to vector<14x14xf32>
    %1963 = arith.addf %1961, %1962 : vector<14x14xf32>
    %c0_223 = arith.constant 0 : index
    %c12_224 = arith.constant 12 : index
    %c0_225 = arith.constant 0 : index
    %c0_226 = arith.constant 0 : index
    %1964 = vector.load %arg4[%c0_223, %c12_224, %c0_225, %c0_226] : memref<1x16x14x14xf32, #tpu.memory_space<vmem>>, vector<1x1x14x14xf32>
    %1965 = vector.shape_cast %1964 : vector<1x1x14x14xf32> to vector<14x14xf32>
    %1966 = vector.shape_cast %1963 : vector<14x14xf32> to vector<1x1x14x14xf32>
    tpu.vector_store %arg4[%c0_223, %c12_224, %c0_225, %c0_226], %1966 {strides = array<i32>} : memref<1x16x14x14xf32, #tpu.memory_space<vmem>>, vector<1x1x14x14xf32>,
    %c13_227 = arith.constant 13 : index
    %1967 = memref.load %arg3[%c13_227] : memref<16xf32, #tpu.memory_space<smem>>
    %1968 = vector.broadcast %1967 : f32 to vector<14x14xf32>
    %1969 = arith.addf %1791, %1968 : vector<14x14xf32>
    %cst_228 = arith.constant 5.000000e-01 : f32
    %1970 = vector.broadcast %cst_228 : f32 to vector<14x14xf32>
    %1971 = arith.mulf %1970, %1969 : vector<14x14xf32>
    %1972 = math.tanh %1971 : vector<14x14xf32>
    %cst_229 = arith.constant 5.000000e-01 : f32
    %1973 = vector.broadcast %cst_229 : f32 to vector<14x14xf32>
    %1974 = arith.mulf %1973, %1972 : vector<14x14xf32>
    %cst_230 = arith.constant 5.000000e-01 : f32
    %1975 = vector.broadcast %cst_230 : f32 to vector<14x14xf32>
    %1976 = arith.addf %1974, %1975 : vector<14x14xf32>
    %c0_231 = arith.constant 0 : index
    %c13_232 = arith.constant 13 : index
    %c0_233 = arith.constant 0 : index
    %c0_234 = arith.constant 0 : index
    %1977 = vector.load %arg4[%c0_231, %c13_232, %c0_233, %c0_234] : memref<1x16x14x14xf32, #tpu.memory_space<vmem>>, vector<1x1x14x14xf32>
    %1978 = vector.shape_cast %1977 : vector<1x1x14x14xf32> to vector<14x14xf32>
    %1979 = vector.shape_cast %1976 : vector<14x14xf32> to vector<1x1x14x14xf32>
    tpu.vector_store %arg4[%c0_231, %c13_232, %c0_233, %c0_234], %1979 {strides = array<i32>} : memref<1x16x14x14xf32, #tpu.memory_space<vmem>>, vector<1x1x14x14xf32>,
    %c14_235 = arith.constant 14 : index
    %1980 = memref.load %arg3[%c14_235] : memref<16xf32, #tpu.memory_space<smem>>
    %1981 = vector.broadcast %1980 : f32 to vector<14x14xf32>
    %1982 = arith.addf %1794, %1981 : vector<14x14xf32>
    %cst_236 = arith.constant 5.000000e-01 : f32
    %1983 = vector.broadcast %cst_236 : f32 to vector<14x14xf32>
    %1984 = arith.mulf %1983, %1982 : vector<14x14xf32>
    %1985 = math.tanh %1984 : vector<14x14xf32>
    %cst_237 = arith.constant 5.000000e-01 : f32
    %1986 = vector.broadcast %cst_237 : f32 to vector<14x14xf32>
    %1987 = arith.mulf %1986, %1985 : vector<14x14xf32>
    %cst_238 = arith.constant 5.000000e-01 : f32
    %1988 = vector.broadcast %cst_238 : f32 to vector<14x14xf32>
    %1989 = arith.addf %1987, %1988 : vector<14x14xf32>
    %c0_239 = arith.constant 0 : index
    %c14_240 = arith.constant 14 : index
    %c0_241 = arith.constant 0 : index
    %c0_242 = arith.constant 0 : index
    %1990 = vector.load %arg4[%c0_239, %c14_240, %c0_241, %c0_242] : memref<1x16x14x14xf32, #tpu.memory_space<vmem>>, vector<1x1x14x14xf32>
    %1991 = vector.shape_cast %1990 : vector<1x1x14x14xf32> to vector<14x14xf32>
    %1992 = vector.shape_cast %1989 : vector<14x14xf32> to vector<1x1x14x14xf32>
    tpu.vector_store %arg4[%c0_239, %c14_240, %c0_241, %c0_242], %1992 {strides = array<i32>} : memref<1x16x14x14xf32, #tpu.memory_space<vmem>>, vector<1x1x14x14xf32>,
    %c15_243 = arith.constant 15 : index
    %1993 = memref.load %arg3[%c15_243] : memref<16xf32, #tpu.memory_space<smem>>
    %1994 = vector.broadcast %1993 : f32 to vector<14x14xf32>
    %1995 = arith.addf %1797, %1994 : vector<14x14xf32>
    %cst_244 = arith.constant 5.000000e-01 : f32
    %1996 = vector.broadcast %cst_244 : f32 to vector<14x14xf32>
    %1997 = arith.mulf %1996, %1995 : vector<14x14xf32>
    %1998 = math.tanh %1997 : vector<14x14xf32>
    %cst_245 = arith.constant 5.000000e-01 : f32
    %1999 = vector.broadcast %cst_245 : f32 to vector<14x14xf32>
    %2000 = arith.mulf %1999, %1998 : vector<14x14xf32>
    %cst_246 = arith.constant 5.000000e-01 : f32
    %2001 = vector.broadcast %cst_246 : f32 to vector<14x14xf32>
    %2002 = arith.addf %2000, %2001 : vector<14x14xf32>
    %c0_247 = arith.constant 0 : index
    %c15_248 = arith.constant 15 : index
    %c0_249 = arith.constant 0 : index
    %c0_250 = arith.constant 0 : index
    %2003 = vector.load %arg4[%c0_247, %c15_248, %c0_249, %c0_250] : memref<1x16x14x14xf32, #tpu.memory_space<vmem>>, vector<1x1x14x14xf32>
    %2004 = vector.shape_cast %2003 : vector<1x1x14x14xf32> to vector<14x14xf32>
    %2005 = vector.shape_cast %2002 : vector<14x14xf32> to vector<1x1x14x14xf32>
    tpu.vector_store %arg4[%c0_247, %c15_248, %c0_249, %c0_250], %2005 {strides = array<i32>} : memref<1x16x14x14xf32, #tpu.memory_space<vmem>>, vector<1x1x14x14xf32>,
    return
  }
  func.func @transform_0(%arg0: i32) -> (i32, i32, i32, i32) {
    %c0_i32 = arith.constant 0 : i32
    %c0_i32_0 = arith.constant 0 : i32
    %c0_i32_1 = arith.constant 0 : i32
    %c0_i32_2 = arith.constant 0 : i32
    return %arg0, %c0_i32, %c0_i32_0, %c0_i32_1 : i32, i32, i32, i32
  }
  func.func @transform_1(%arg0: i32) -> i32 {
    %c0_i32 = arith.constant 0 : i32
    %c0_i32_0 = arith.constant 0 : i32
    return %c0_i32 : i32
  }
  func.func @transform_2(%arg0: i32) -> i32 {
    %c0_i32 = arith.constant 0 : i32
    %c0_i32_0 = arith.constant 0 : i32
    return %c0_i32 : i32
  }
  func.func @transform_3(%arg0: i32) -> (i32, i32, i32, i32) {
    %c0_i32 = arith.constant 0 : i32
    %c0_i32_0 = arith.constant 0 : i32
    %c0_i32_1 = arith.constant 0 : i32
    %c0_i32_2 = arith.constant 0 : i32
    return %arg0, %c0_i32, %c0_i32_0, %c0_i32_1 : i32, i32, i32, i32
  }
}

</mosaic_0001>

<llo_original>
// kernel: conv2d_sigmoid.1
$region0: #{conv2d_sigmoid.1}
  #allocation0 [shape = 'u32[]', space=smem, size = 0x4, offset = 0x4, fixed_abs, tag = 'smem constant byte address 0x4 - core index']
  #allocation1 [shape = 'u32[144,128]{1,0:T(1,128)}', space=vmem, size = 0x12000, scoped, tag = 'internal scratch']
  %s0 = inlined_call_operand.vmem [shape: f32[1,12,15,15], index: 0, kind: input, shape index: {}]
  %s1 = inlined_call_operand.vmem [shape: f32[432], index: 1, kind: input, shape index: {}]
  %s2 = inlined_call_operand.vmem [shape: f32[16], index: 2, kind: input, shape index: {}]
  %s3 = inlined_call_operand.vmem [shape: f32[1,16,14,14], index: 3, kind: output, shape index: {}]
  %s4 = sld [smem:[#allocation0]]
  $region30: #{conv2d_sigmoid.1} parent=0
    _
  %s6 = ssub.s32 1, %s4
  %s7 = scalar_select 0, %s6, %s4
  $region1: #{conv2d_sigmoid.1} parent=0
    #allocation2 [shape = 'u8[2048]{0}', space=smem, size = 0x800, scoped, tag = 'input window, operand 1, single buffered']
    #allocation3 [shape = 's32[1]{0}', space=sflag, size = 0x4, scoped, tag = 'scoped memory for conv2d_sigmoid.1']
    #allocation4 [shape = 'u8[512]{0}', space=smem, size = 0x200, scoped, tag = 'input window, operand 2, single buffered']
    #allocation5 [shape = 's32[1]{0}', space=sflag, size = 0x4, scoped, tag = 'scoped memory for conv2d_sigmoid.1']
    %8 = vsyncpa [#allocation3], 0
    %9 = vsyncpa [#allocation5], 0
    // Predicated region
    $region2: #{conv2d_sigmoid.1} parent=1 // pred_check
      _
    $region3: #{conv2d_sigmoid.1} parent=1 // pred_check_branch
      %11 = sbr.rel (0) target = $region5
    $region4: #{conv2d_sigmoid.1} parent=1 // pred_region
      _
    $region5: #{conv2d_sigmoid.1} parent=1 // pred_fallthru
      _
    // Predicated region
    $region6: #{conv2d_sigmoid.1} parent=1 // pred_check
      _
    $region7: #{conv2d_sigmoid.1} parent=1 // pred_check_branch
      %13 = sbr.rel (0) target = $region9
    $region8: #{conv2d_sigmoid.1} parent=1 // pred_region
      %s15 = ssub.s32 64, 64
      %16 = vsyncadd [#allocation3], %s15
      %s18 = sshll.u32 %s1, 4
      %s19 = int_to_ptr.vmem [resolvable:$true] %s18
      %21 = dma.vmem_to_smem %s19, 64, [#allocation2], [#allocation3]
    $region9: #{conv2d_sigmoid.1} parent=1 // pred_fallthru
      _
    // Predicated region
    $region10: #{conv2d_sigmoid.1} parent=1 // pred_check
      _
    $region11: #{conv2d_sigmoid.1} parent=1 // pred_check_branch
      %23 = sbr.rel (0) target = $region13
    $region12: #{conv2d_sigmoid.1} parent=1 // pred_region
      %s25 = ssub.s32 16, 16
      %26 = vsyncadd [#allocation5], %s25
      %s28 = sshll.u32 %s2, 4
      %s29 = int_to_ptr.vmem [resolvable:$true] %s28
      %31 = dma.vmem_to_smem %s29, 16, [#allocation4], [#allocation5]
    $region13: #{conv2d_sigmoid.1} parent=1 // pred_fallthru
      _
    // Predicated region
    $region14: #{conv2d_sigmoid.1} parent=1 // pred_check
      _
    $region15: #{conv2d_sigmoid.1} parent=1 // pred_check_branch
      %33 = sbr.rel (0) target = $region17
    $region16: #{conv2d_sigmoid.1} parent=1 // pred_region
      %34 = dma.done [#allocation3], 64
    $region17: #{conv2d_sigmoid.1} parent=1 // pred_fallthru
      _
    // Predicated region
    $region18: #{conv2d_sigmoid.1} parent=1 // pred_check
      _
    $region19: #{conv2d_sigmoid.1} parent=1 // pred_check_branch
      %36 = sbr.rel (0) target = $region21
    $region20: #{conv2d_sigmoid.1} parent=1 // pred_region
      %37 = dma.done [#allocation5], 16
    $region21: #{conv2d_sigmoid.1} parent=1 // pred_fallthru
      _
    %38 = sfence
    %v39 = vld [vmem:[%s0] sm:$0xff]
    %v40 = vld [vmem:[%s0 + $0x8] sm:$0x3f]
    %s41 = sld [smem:[#allocation2]]
    %s42 = sld [smem:[#allocation2 + $0x1]]
    %s43 = sld [smem:[#allocation2 + $0x2]]
    %s44 = sld [smem:[#allocation2 + $0x3]]
    %s45 = sld [smem:[#allocation2 + $0x4]]
    %s46 = sld [smem:[#allocation2 + $0x5]]
    %s47 = sld [smem:[#allocation2 + $0x6]]
    %s48 = sld [smem:[#allocation2 + $0x7]]
    %s49 = sld [smem:[#allocation2 + $0x8]]
    %s50 = sld [smem:[#allocation2 + $0x9]]
    %s51 = sld [smem:[#allocation2 + $0xa]]
    %s52 = sld [smem:[#allocation2 + $0xb]]
    %s53 = sld [smem:[#allocation2 + $0xc]]
    %s54 = sld [smem:[#allocation2 + $0xd]]
    %s55 = sld [smem:[#allocation2 + $0xe]]
    %s56 = sld [smem:[#allocation2 + $0xf]]
    %v57 = vstv %s41
    %v58 = vmul.f32 %v57, %v39
    %v59 = vmul.f32 %v57, %v40
    %v60 = vadd.f32 %v58, 0.0
    %v61 = vadd.f32 %v59, 0.0
    %v62 = vstv %s42
    %v63 = vmul.f32 %v62, %v39
    %v64 = vmul.f32 %v62, %v40
    %v65 = vadd.f32 %v63, 0.0
    %v66 = vadd.f32 %v64, 0.0
    %v67 = vstv %s43
    %v68 = vmul.f32 %v67, %v39
    %v69 = vmul.f32 %v67, %v40
    %v70 = vadd.f32 %v68, 0.0
    %v71 = vadd.f32 %v69, 0.0
    %v72 = vstv %s44
    %v73 = vmul.f32 %v72, %v39
    %v74 = vmul.f32 %v72, %v40
    %v75 = vadd.f32 %v73, 0.0
    %v76 = vadd.f32 %v74, 0.0
    %v77 = vstv %s45
    %v78 = vmul.f32 %v77, %v39
    %v79 = vmul.f32 %v77, %v40
    %v80 = vadd.f32 %v78, 0.0
    %v81 = vadd.f32 %v79, 0.0
    %v82 = vstv %s46
    %v83 = vmul.f32 %v82, %v39
    %v84 = vmul.f32 %v82, %v40
    %v85 = vadd.f32 %v83, 0.0
    %v86 = vadd.f32 %v84, 0.0
    %v87 = vstv %s47
    %v88 = vmul.f32 %v87, %v39
    %v89 = vmul.f32 %v87, %v40
    %v90 = vadd.f32 %v88, 0.0
    %v91 = vadd.f32 %v89, 0.0
    %v92 = vstv %s48
    %v93 = vmul.f32 %v92, %v39
    %v94 = vmul.f32 %v92, %v40
    %v95 = vadd.f32 %v93, 0.0
    %v96 = vadd.f32 %v94, 0.0
    %v97 = vstv %s49
    %v98 = vmul.f32 %v97, %v39
    %v99 = vmul.f32 %v97, %v40
    %v100 = vadd.f32 %v98, 0.0
    %v101 = vadd.f32 %v99, 0.0
    %v102 = vstv %s50
    %v103 = vmul.f32 %v102, %v39
    %v104 = vmul.f32 %v102, %v40
    %v105 = vadd.f32 %v103, 0.0
    %v106 = vadd.f32 %v104, 0.0
    %v107 = vstv %s51
    %v108 = vmul.f32 %v107, %v39
    %v109 = vmul.f32 %v107, %v40
    %v110 = vadd.f32 %v108, 0.0
    %v111 = vadd.f32 %v109, 0.0
    %v112 = vstv %s52
    %v113 = vmul.f32 %v112, %v39
    %v114 = vmul.f32 %v112, %v40
    %v115 = vadd.f32 %v113, 0.0
    %v116 = vadd.f32 %v114, 0.0
    %v117 = vstv %s53
    %v118 = vmul.f32 %v117, %v39
    %v119 = vmul.f32 %v117, %v40
    %v120 = vadd.f32 %v118, 0.0
    %v121 = vadd.f32 %v119, 0.0
    %v122 = vstv %s54
    %v123 = vmul.f32 %v122, %v39
    %v124 = vmul.f32 %v122, %v40
    %v125 = vadd.f32 %v123, 0.0
    %v126 = vadd.f32 %v124, 0.0
    %v127 = vstv %s55
    %v128 = vmul.f32 %v127, %v39
    %v129 = vmul.f32 %v127, %v40
    %v130 = vadd.f32 %v128, 0.0
    %v131 = vadd.f32 %v129, 0.0
    %v132 = vstv %s56
    %v133 = vmul.f32 %v132, %v39
    %v134 = vmul.f32 %v132, %v40
    %v135 = vadd.f32 %v133, 0.0
    %v136 = vadd.f32 %v134, 0.0
    %s137 = scalar_lea.vmem %s0, 16
    %v138 = vld [vmem:[%s137] sm:$0xff]
    %v139 = vld [vmem:[%s137 + $0x8] sm:$0x3f]
    %s140 = sld [smem:[#allocation2 + $0x10]]
    %s141 = sld [smem:[#allocation2 + $0x11]]
    %s142 = sld [smem:[#allocation2 + $0x12]]
    %s143 = sld [smem:[#allocation2 + $0x13]]
    %s144 = sld [smem:[#allocation2 + $0x14]]
    %s145 = sld [smem:[#allocation2 + $0x15]]
    %s146 = sld [smem:[#allocation2 + $0x16]]
    %s147 = sld [smem:[#allocation2 + $0x17]]
    %s148 = sld [smem:[#allocation2 + $0x18]]
    %s149 = sld [smem:[#allocation2 + $0x19]]
    %s150 = sld [smem:[#allocation2 + $0x1a]]
    %s151 = sld [smem:[#allocation2 + $0x1b]]
    %s152 = sld [smem:[#allocation2 + $0x1c]]
    %s153 = sld [smem:[#allocation2 + $0x1d]]
    %s154 = sld [smem:[#allocation2 + $0x1e]]
    %s155 = sld [smem:[#allocation2 + $0x1f]]
    %v156 = vstv %s140
    %v157 = vmul.f32 %v156, %v138
    %v158 = vmul.f32 %v156, %v139
    %v159 = vadd.f32 %v60, %v157
    %v160 = vadd.f32 %v61, %v158
    %v161 = vstv %s141
    %v162 = vmul.f32 %v161, %v138
    %v163 = vmul.f32 %v161, %v139
    %v164 = vadd.f32 %v65, %v162
    %v165 = vadd.f32 %v66, %v163
    %v166 = vstv %s142
    %v167 = vmul.f32 %v166, %v138
    %v168 = vmul.f32 %v166, %v139
    %v169 = vadd.f32 %v70, %v167
    %v170 = vadd.f32 %v71, %v168
    %v171 = vstv %s143
    %v172 = vmul.f32 %v171, %v138
    %v173 = vmul.f32 %v171, %v139
    %v174 = vadd.f32 %v75, %v172
    %v175 = vadd.f32 %v76, %v173
    %v176 = vstv %s144
    %v177 = vmul.f32 %v176, %v138
    %v178 = vmul.f32 %v176, %v139
    %v179 = vadd.f32 %v80, %v177
    %v180 = vadd.f32 %v81, %v178
    %v181 = vstv %s145
    %v182 = vmul.f32 %v181, %v138
    %v183 = vmul.f32 %v181, %v139
    %v184 = vadd.f32 %v85, %v182
    %v185 = vadd.f32 %v86, %v183
    %v186 = vstv %s146
    %v187 = vmul.f32 %v186, %v138
    %v188 = vmul.f32 %v186, %v139
    %v189 = vadd.f32 %v90, %v187
    %v190 = vadd.f32 %v91, %v188
    %v191 = vstv %s147
    %v192 = vmul.f32 %v191, %v138
    %v193 = vmul.f32 %v191, %v139
    %v194 = vadd.f32 %v95, %v192
    %v195 = vadd.f32 %v96, %v193
    %v196 = vstv %s148
    %v197 = vmul.f32 %v196, %v138
    %v198 = vmul.f32 %v196, %v139
    %v199 = vadd.f32 %v100, %v197
    %v200 = vadd.f32 %v101, %v198
    %v201 = vstv %s149
    %v202 = vmul.f32 %v201, %v138
    %v203 = vmul.f32 %v201, %v139
    %v204 = vadd.f32 %v105, %v202
    %v205 = vadd.f32 %v106, %v203
    %v206 = vstv %s150
    %v207 = vmul.f32 %v206, %v138
    %v208 = vmul.f32 %v206, %v139
    %v209 = vadd.f32 %v110, %v207
    %v210 = vadd.f32 %v111, %v208
    %v211 = vstv %s151
    %v212 = vmul.f32 %v211, %v138
    %v213 = vmul.f32 %v211, %v139
    %v214 = vadd.f32 %v115, %v212
    %v215 = vadd.f32 %v116, %v213
    %v216 = vstv %s152
    %v217 = vmul.f32 %v216, %v138
    %v218 = vmul.f32 %v216, %v139
    %v219 = vadd.f32 %v120, %v217
    %v220 = vadd.f32 %v121, %v218
    %v221 = vstv %s153
    %v222 = vmul.f32 %v221, %v138
    %v223 = vmul.f32 %v221, %v139
    %v224 = vadd.f32 %v125, %v222
    %v225 = vadd.f32 %v126, %v223
    %v226 = vstv %s154
    %v227 = vmul.f32 %v226, %v138
    %v228 = vmul.f32 %v226, %v139
    %v229 = vadd.f32 %v130, %v227
    %v230 = vadd.f32 %v131, %v228
    %v231 = vstv %s155
    %v232 = vmul.f32 %v231, %v138
    %v233 = vmul.f32 %v231, %v139
    %v234 = vadd.f32 %v135, %v232
    %v235 = vadd.f32 %v136, %v233
    %s236 = sld [smem:[#allocation2 + $0x20]]
    %s237 = sld [smem:[#allocation2 + $0x21]]
    %s238 = sld [smem:[#allocation2 + $0x22]]
    %s239 = sld [smem:[#allocation2 + $0x23]]
    %s240 = sld [smem:[#allocation2 + $0x24]]
    %s241 = sld [smem:[#allocation2 + $0x25]]
    %s242 = sld [smem:[#allocation2 + $0x26]]
    %s243 = sld [smem:[#allocation2 + $0x27]]
    %s244 = sld [smem:[#allocation2 + $0x28]]
    %s245 = sld [smem:[#allocation2 + $0x29]]
    %s246 = sld [smem:[#allocation2 + $0x2a]]
    %s247 = sld [smem:[#allocation2 + $0x2b]]
    %s248 = sld [smem:[#allocation2 + $0x2c]]
    %s249 = sld [smem:[#allocation2 + $0x2d]]
    %s250 = sld [smem:[#allocation2 + $0x2e]]
    %s251 = sld [smem:[#allocation2 + $0x2f]]
    %v252 = vstv %s236
    %v253 = vmul.f32 %v252, %v39
    %v254 = vmul.f32 %v252, %v40
    %257 = vrot.lane.b32.xlu0 %v253, 127
    %v258 = vpop.permute.xlu0 %257
    %259 = vrot.lane.b32.xlu0 %v254, 127
    %v260 = vpop.permute.xlu0 %259
    %v263 = vadd.f32 %v159, %v258
    %v264 = vadd.f32 %v160, %v260
    %v265 = vstv %s237
    %v266 = vmul.f32 %v265, %v39
    %v267 = vmul.f32 %v265, %v40
    %270 = vrot.lane.b32.xlu0 %v266, 127
    %v271 = vpop.permute.xlu0 %270
    %272 = vrot.lane.b32.xlu0 %v267, 127
    %v273 = vpop.permute.xlu0 %272
    %v276 = vadd.f32 %v164, %v271
    %v277 = vadd.f32 %v165, %v273
    %v278 = vstv %s238
    %v279 = vmul.f32 %v278, %v39
    %v280 = vmul.f32 %v278, %v40
    %283 = vrot.lane.b32.xlu0 %v279, 127
    %v284 = vpop.permute.xlu0 %283
    %285 = vrot.lane.b32.xlu0 %v280, 127
    %v286 = vpop.permute.xlu0 %285
    %v289 = vadd.f32 %v169, %v284
    %v290 = vadd.f32 %v170, %v286
    %v291 = vstv %s239
    %v292 = vmul.f32 %v291, %v39
    %v293 = vmul.f32 %v291, %v40
    %296 = vrot.lane.b32.xlu0 %v292, 127
    %v297 = vpop.permute.xlu0 %296
    %298 = vrot.lane.b32.xlu0 %v293, 127
    %v299 = vpop.permute.xlu0 %298
    %v302 = vadd.f32 %v174, %v297
    %v303 = vadd.f32 %v175, %v299
    %v304 = vstv %s240
    %v305 = vmul.f32 %v304, %v39
    %v306 = vmul.f32 %v304, %v40
    %309 = vrot.lane.b32.xlu0 %v305, 127
    %v310 = vpop.permute.xlu0 %309
    %311 = vrot.lane.b32.xlu0 %v306, 127
    %v312 = vpop.permute.xlu0 %311
    %v315 = vadd.f32 %v179, %v310
    %v316 = vadd.f32 %v180, %v312
    %v317 = vstv %s241
    %v318 = vmul.f32 %v317, %v39
    %v319 = vmul.f32 %v317, %v40
    %322 = vrot.lane.b32.xlu0 %v318, 127
    %v323 = vpop.permute.xlu0 %322
    %324 = vrot.lane.b32.xlu0 %v319, 127
    %v325 = vpop.permute.xlu0 %324
    %v328 = vadd.f32 %v184, %v323
    %v329 = vadd.f32 %v185, %v325
    %v330 = vstv %s242
    %v331 = vmul.f32 %v330, %v39
    %v332 = vmul.f32 %v330, %v40
    %335 = vrot.lane.b32.xlu0 %v331, 127
    %v336 = vpop.permute.xlu0 %335
    %337 = vrot.lane.b32.xlu0 %v332, 127
    %v338 = vpop.permute.xlu0 %337
    %v341 = vadd.f32 %v189, %v336
    %v342 = vadd.f32 %v190, %v338
    %v343 = vstv %s243
    %v344 = vmul.f32 %v343, %v39
    %v345 = vmul.f32 %v343, %v40
    %348 = vrot.lane.b32.xlu0 %v344, 127
    %v349 = vpop.permute.xlu0 %348
    %350 = vrot.lane.b32.xlu0 %v345, 127
    %v351 = vpop.permute.xlu0 %350
    %v354 = vadd.f32 %v194, %v349
    %v355 = vadd.f32 %v195, %v351
    %v356 = vstv %s244
    %v357 = vmul.f32 %v356, %v39
    %v358 = vmul.f32 %v356, %v40
    %361 = vrot.lane.b32.xlu0 %v357, 127
    %v362 = vpop.permute.xlu0 %361
    %363 = vrot.lane.b32.xlu0 %v358, 127
    %v364 = vpop.permute.xlu0 %363
    %v367 = vadd.f32 %v199, %v362
    %v368 = vadd.f32 %v200, %v364
    %v369 = vstv %s245
    %v370 = vmul.f32 %v369, %v39
    %v371 = vmul.f32 %v369, %v40
    %374 = vrot.lane.b32.xlu0 %v370, 127
    %v375 = vpop.permute.xlu0 %374
    %376 = vrot.lane.b32.xlu0 %v371, 127
    %v377 = vpop.permute.xlu0 %376
    %v380 = vadd.f32 %v204, %v375
    %v381 = vadd.f32 %v205, %v377
    %v382 = vstv %s246
    %v383 = vmul.f32 %v382, %v39
    %v384 = vmul.f32 %v382, %v40
    %387 = vrot.lane.b32.xlu0 %v383, 127
    %v388 = vpop.permute.xlu0 %387
    %389 = vrot.lane.b32.xlu0 %v384, 127
    %v390 = vpop.permute.xlu0 %389
    %v393 = vadd.f32 %v209, %v388
    %v394 = vadd.f32 %v210, %v390
    %v395 = vstv %s247
    %v396 = vmul.f32 %v395, %v39
    %v397 = vmul.f32 %v395, %v40
    %400 = vrot.lane.b32.xlu0 %v396, 127
    %v401 = vpop.permute.xlu0 %400
    %402 = vrot.lane.b32.xlu0 %v397, 127
    %v403 = vpop.permute.xlu0 %402
    %v406 = vadd.f32 %v214, %v401
    %v407 = vadd.f32 %v215, %v403
    %v408 = vstv %s248
    %v409 = vmul.f32 %v408, %v39
    %v410 = vmul.f32 %v408, %v40
    %413 = vrot.lane.b32.xlu0 %v409, 127
    %v414 = vpop.permute.xlu0 %413
    %415 = vrot.lane.b32.xlu0 %v410, 127
    %v416 = vpop.permute.xlu0 %415
    %v419 = vadd.f32 %v219, %v414
    %v420 = vadd.f32 %v220, %v416
    %v421 = vstv %s249
    %v422 = vmul.f32 %v421, %v39
    %v423 = vmul.f32 %v421, %v40
    %426 = vrot.lane.b32.xlu0 %v422, 127
    %v427 = vpop.permute.xlu0 %426
    %428 = vrot.lane.b32.xlu0 %v423, 127
    %v429 = vpop.permute.xlu0 %428
    %v432 = vadd.f32 %v224, %v427
    %v433 = vadd.f32 %v225, %v429
    %v434 = vstv %s250
    %v435 = vmul.f32 %v434, %v39
    %v436 = vmul.f32 %v434, %v40
    %439 = vrot.lane.b32.xlu0 %v435, 127
    %v440 = vpop.permute.xlu0 %439
    %441 = vrot.lane.b32.xlu0 %v436, 127
    %v442 = vpop.permute.xlu0 %441
    %v445 = vadd.f32 %v229, %v440
    %v446 = vadd.f32 %v230, %v442
    %v447 = vstv %s251
    %v448 = vmul.f32 %v447, %v39
    %v449 = vmul.f32 %v447, %v40
    %452 = vrot.lane.b32.xlu0 %v448, 127
    %v453 = vpop.permute.xlu0 %452
    %454 = vrot.lane.b32.xlu0 %v449, 127
    %v455 = vpop.permute.xlu0 %454
    %v458 = vadd.f32 %v234, %v453
    %v459 = vadd.f32 %v235, %v455
    %s460 = scalar_lea.vmem %s0, 32
    %v461 = vld [vmem:[%s460] sm:$0xff]
    %v462 = vld [vmem:[%s460 + $0x8] sm:$0x3f]
    %s463 = sld [smem:[#allocation2 + $0x30]]
    %s464 = sld [smem:[#allocation2 + $0x31]]
    %s465 = sld [smem:[#allocation2 + $0x32]]
    %s466 = sld [smem:[#allocation2 + $0x33]]
    %s467 = sld [smem:[#allocation2 + $0x34]]
    %s468 = sld [smem:[#allocation2 + $0x35]]
    %s469 = sld [smem:[#allocation2 + $0x36]]
    %s470 = sld [smem:[#allocation2 + $0x37]]
    %s471 = sld [smem:[#allocation2 + $0x38]]
    %s472 = sld [smem:[#allocation2 + $0x39]]
    %s473 = sld [smem:[#allocation2 + $0x3a]]
    %s474 = sld [smem:[#allocation2 + $0x3b]]
    %s475 = sld [smem:[#allocation2 + $0x3c]]
    %s476 = sld [smem:[#allocation2 + $0x3d]]
    %s477 = sld [smem:[#allocation2 + $0x3e]]
    %s478 = sld [smem:[#allocation2 + $0x3f]]
    %v479 = vstv %s463
    %v480 = vmul.f32 %v479, %v461
    %v481 = vmul.f32 %v479, %v462
    %v482 = vadd.f32 %v263, %v480
    %v483 = vadd.f32 %v264, %v481
    %v484 = vstv %s464
    %v485 = vmul.f32 %v484, %v461
    %v486 = vmul.f32 %v484, %v462
    %v487 = vadd.f32 %v276, %v485
    %v488 = vadd.f32 %v277, %v486
    %v489 = vstv %s465
    %v490 = vmul.f32 %v489, %v461
    %v491 = vmul.f32 %v489, %v462
    %v492 = vadd.f32 %v289, %v490
    %v493 = vadd.f32 %v290, %v491
    %v494 = vstv %s466
    %v495 = vmul.f32 %v494, %v461
    %v496 = vmul.f32 %v494, %v462
    %v497 = vadd.f32 %v302, %v495
    %v498 = vadd.f32 %v303, %v496
    %v499 = vstv %s467
    %v500 = vmul.f32 %v499, %v461
    %v501 = vmul.f32 %v499, %v462
    %v502 = vadd.f32 %v315, %v500
    %v503 = vadd.f32 %v316, %v501
    %v504 = vstv %s468
    %v505 = vmul.f32 %v504, %v461
    %v506 = vmul.f32 %v504, %v462
    %v507 = vadd.f32 %v328, %v505
    %v508 = vadd.f32 %v329, %v506
    %v509 = vstv %s469
    %v510 = vmul.f32 %v509, %v461
    %v511 = vmul.f32 %v509, %v462
    %v512 = vadd.f32 %v341, %v510
    %v513 = vadd.f32 %v342, %v511
    %v514 = vstv %s470
    %v515 = vmul.f32 %v514, %v461
    %v516 = vmul.f32 %v514, %v462
    %v517 = vadd.f32 %v354, %v515
    %v518 = vadd.f32 %v355, %v516
    %v519 = vstv %s471
    %v520 = vmul.f32 %v519, %v461
    %v521 = vmul.f32 %v519, %v462
    %v522 = vadd.f32 %v367, %v520
    %v523 = vadd.f32 %v368, %v521
    %v524 = vstv %s472
    %v525 = vmul.f32 %v524, %v461
    %v526 = vmul.f32 %v524, %v462
    %v527 = vadd.f32 %v380, %v525
    %v528 = vadd.f32 %v381, %v526
    %v529 = vstv %s473
    %v530 = vmul.f32 %v529, %v461
    %v531 = vmul.f32 %v529, %v462
    %v532 = vadd.f32 %v393, %v530
    %v533 = vadd.f32 %v394, %v531
    %v534 = vstv %s474
    %v535 = vmul.f32 %v534, %v461
    %v536 = vmul.f32 %v534, %v462
    %v537 = vadd.f32 %v406, %v535
    %v538 = vadd.f32 %v407, %v536
    %v539 = vstv %s475
    %v540 = vmul.f32 %v539, %v461
    %v541 = vmul.f32 %v539, %v462
    %v542 = vadd.f32 %v419, %v540
    %v543 = vadd.f32 %v420, %v541
    %v544 = vstv %s476
    %v545 = vmul.f32 %v544, %v461
    %v546 = vmul.f32 %v544, %v462
    %v547 = vadd.f32 %v432, %v545
    %v548 = vadd.f32 %v433, %v546
    %v549 = vstv %s477
    %v550 = vmul.f32 %v549, %v461
    %v551 = vmul.f32 %v549, %v462
    %v552 = vadd.f32 %v445, %v550
    %v553 = vadd.f32 %v446, %v551
    %v554 = vstv %s478
    %v555 = vmul.f32 %v554, %v461
    %v556 = vmul.f32 %v554, %v462
    %v557 = vadd.f32 %v458, %v555
    %v558 = vadd.f32 %v459, %v556
    %s559 = scalar_lea.vmem %s0, 48
    %v560 = vld [vmem:[%s559] sm:$0xff]
    %v561 = vld [vmem:[%s559 + $0x8] sm:$0x3f]
    %s562 = sld [smem:[#allocation2 + $0x40]]
    %s563 = sld [smem:[#allocation2 + $0x41]]
    %s564 = sld [smem:[#allocation2 + $0x42]]
    %s565 = sld [smem:[#allocation2 + $0x43]]
    %s566 = sld [smem:[#allocation2 + $0x44]]
    %s567 = sld [smem:[#allocation2 + $0x45]]
    %s568 = sld [smem:[#allocation2 + $0x46]]
    %s569 = sld [smem:[#allocation2 + $0x47]]
    %s570 = sld [smem:[#allocation2 + $0x48]]
    %s571 = sld [smem:[#allocation2 + $0x49]]
    %s572 = sld [smem:[#allocation2 + $0x4a]]
    %s573 = sld [smem:[#allocation2 + $0x4b]]
    %s574 = sld [smem:[#allocation2 + $0x4c]]
    %s575 = sld [smem:[#allocation2 + $0x4d]]
    %s576 = sld [smem:[#allocation2 + $0x4e]]
    %s577 = sld [smem:[#allocation2 + $0x4f]]
    %v578 = vstv %s562
    %v579 = vmul.f32 %v578, %v560
    %v580 = vmul.f32 %v578, %v561
    %v581 = vadd.f32 %v482, %v579
    %v582 = vadd.f32 %v483, %v580
    %v583 = vstv %s563
    %v584 = vmul.f32 %v583, %v560
    %v585 = vmul.f32 %v583, %v561
    %v586 = vadd.f32 %v487, %v584
    %v587 = vadd.f32 %v488, %v585
    %v588 = vstv %s564
    %v589 = vmul.f32 %v588, %v560
    %v590 = vmul.f32 %v588, %v561
    %v591 = vadd.f32 %v492, %v589
    %v592 = vadd.f32 %v493, %v590
    %v593 = vstv %s565
    %v594 = vmul.f32 %v593, %v560
    %v595 = vmul.f32 %v593, %v561
    %v596 = vadd.f32 %v497, %v594
    %v597 = vadd.f32 %v498, %v595
    %v598 = vstv %s566
    %v599 = vmul.f32 %v598, %v560
    %v600 = vmul.f32 %v598, %v561
    %v601 = vadd.f32 %v502, %v599
    %v602 = vadd.f32 %v503, %v600
    %v603 = vstv %s567
    %v604 = vmul.f32 %v603, %v560
    %v605 = vmul.f32 %v603, %v561
    %v606 = vadd.f32 %v507, %v604
    %v607 = vadd.f32 %v508, %v605
    %v608 = vstv %s568
    %v609 = vmul.f32 %v608, %v560
    %v610 = vmul.f32 %v608, %v561
    %v611 = vadd.f32 %v512, %v609
    %v612 = vadd.f32 %v513, %v610
    %v613 = vstv %s569
    %v614 = vmul.f32 %v613, %v560
    %v615 = vmul.f32 %v613, %v561
    %v616 = vadd.f32 %v517, %v614
    %v617 = vadd.f32 %v518, %v615
    %v618 = vstv %s570
    %v619 = vmul.f32 %v618, %v560
    %v620 = vmul.f32 %v618, %v561
    %v621 = vadd.f32 %v522, %v619
    %v622 = vadd.f32 %v523, %v620
    %v623 = vstv %s571
    %v624 = vmul.f32 %v623, %v560
    %v625 = vmul.f32 %v623, %v561
    %v626 = vadd.f32 %v527, %v624
    %v627 = vadd.f32 %v528, %v625
    %v628 = vstv %s572
    %v629 = vmul.f32 %v628, %v560
    %v630 = vmul.f32 %v628, %v561
    %v631 = vadd.f32 %v532, %v629
    %v632 = vadd.f32 %v533, %v630
    %v633 = vstv %s573
    %v634 = vmul.f32 %v633, %v560
    %v635 = vmul.f32 %v633, %v561
    %v636 = vadd.f32 %v537, %v634
    %v637 = vadd.f32 %v538, %v635
    %v638 = vstv %s574
    %v639 = vmul.f32 %v638, %v560
    %v640 = vmul.f32 %v638, %v561
    %v641 = vadd.f32 %v542, %v639
    %v642 = vadd.f32 %v543, %v640
    %v643 = vstv %s575
    %v644 = vmul.f32 %v643, %v560
    %v645 = vmul.f32 %v643, %v561
    %v646 = vadd.f32 %v547, %v644
    %v647 = vadd.f32 %v548, %v645
    %v648 = vstv %s576
    %v649 = vmul.f32 %v648, %v560
    %v650 = vmul.f32 %v648, %v561
    %v651 = vadd.f32 %v552, %v649
    %v652 = vadd.f32 %v553, %v650
    %v653 = vstv %s577
    %v654 = vmul.f32 %v653, %v560
    %v655 = vmul.f32 %v653, %v561
    %v656 = vadd.f32 %v557, %v654
    %v657 = vadd.f32 %v558, %v655
    %s658 = sld [smem:[#allocation2 + $0x50]]
    %s659 = sld [smem:[#allocation2 + $0x51]]
    %s660 = sld [smem:[#allocation2 + $0x52]]
    %s661 = sld [smem:[#allocation2 + $0x53]]
    %s662 = sld [smem:[#allocation2 + $0x54]]
    %s663 = sld [smem:[#allocation2 + $0x55]]
    %s664 = sld [smem:[#allocation2 + $0x56]]
    %s665 = sld [smem:[#allocation2 + $0x57]]
    %s666 = sld [smem:[#allocation2 + $0x58]]
    %s667 = sld [smem:[#allocation2 + $0x59]]
    %s668 = sld [smem:[#allocation2 + $0x5a]]
    %s669 = sld [smem:[#allocation2 + $0x5b]]
    %s670 = sld [smem:[#allocation2 + $0x5c]]
    %s671 = sld [smem:[#allocation2 + $0x5d]]
    %s672 = sld [smem:[#allocation2 + $0x5e]]
    %s673 = sld [smem:[#allocation2 + $0x5f]]
    %v674 = vstv %s658
    %v675 = vmul.f32 %v674, %v461
    %v676 = vmul.f32 %v674, %v462
    %679 = vrot.lane.b32.xlu0 %v675, 127
    %v680 = vpop.permute.xlu0 %679
    %681 = vrot.lane.b32.xlu0 %v676, 127
    %v682 = vpop.permute.xlu0 %681
    %v685 = vadd.f32 %v581, %v680
    %v686 = vadd.f32 %v582, %v682
    %v687 = vstv %s659
    %v688 = vmul.f32 %v687, %v461
    %v689 = vmul.f32 %v687, %v462
    %692 = vrot.lane.b32.xlu0 %v688, 127
    %v693 = vpop.permute.xlu0 %692
    %694 = vrot.lane.b32.xlu0 %v689, 127
    %v695 = vpop.permute.xlu0 %694
    %v698 = vadd.f32 %v586, %v693
    %v699 = vadd.f32 %v587, %v695
    %v700 = vstv %s660
    %v701 = vmul.f32 %v700, %v461
    %v702 = vmul.f32 %v700, %v462
    %705 = vrot.lane.b32.xlu0 %v701, 127
    %v706 = vpop.permute.xlu0 %705
    %707 = vrot.lane.b32.xlu0 %v702, 127
    %v708 = vpop.permute.xlu0 %707
    %v711 = vadd.f32 %v591, %v706
    %v712 = vadd.f32 %v592, %v708
    %v713 = vstv %s661
    %v714 = vmul.f32 %v713, %v461
    %v715 = vmul.f32 %v713, %v462
    %718 = vrot.lane.b32.xlu0 %v714, 127
    %v719 = vpop.permute.xlu0 %718
    %720 = vrot.lane.b32.xlu0 %v715, 127
    %v721 = vpop.permute.xlu0 %720
    %v724 = vadd.f32 %v596, %v719
    %v725 = vadd.f32 %v597, %v721
    %v726 = vstv %s662
    %v727 = vmul.f32 %v726, %v461
    %v728 = vmul.f32 %v726, %v462
    %731 = vrot.lane.b32.xlu0 %v727, 127
    %v732 = vpop.permute.xlu0 %731
    %733 = vrot.lane.b32.xlu0 %v728, 127
    %v734 = vpop.permute.xlu0 %733
    %v737 = vadd.f32 %v601, %v732
    %v738 = vadd.f32 %v602, %v734
    %v739 = vstv %s663
    %v740 = vmul.f32 %v739, %v461
    %v741 = vmul.f32 %v739, %v462
    %744 = vrot.lane.b32.xlu0 %v740, 127
    %v745 = vpop.permute.xlu0 %744
    %746 = vrot.lane.b32.xlu0 %v741, 127
    %v747 = vpop.permute.xlu0 %746
    %v750 = vadd.f32 %v606, %v745
    %v751 = vadd.f32 %v607, %v747
    %v752 = vstv %s664
    %v753 = vmul.f32 %v752, %v461
    %v754 = vmul.f32 %v752, %v462
    %757 = vrot.lane.b32.xlu0 %v753, 127
    %v758 = vpop.permute.xlu0 %757
    %759 = vrot.lane.b32.xlu0 %v754, 127
    %v760 = vpop.permute.xlu0 %759
    %v763 = vadd.f32 %v611, %v758
    %v764 = vadd.f32 %v612, %v760
    %v765 = vstv %s665
    %v766 = vmul.f32 %v765, %v461
    %v767 = vmul.f32 %v765, %v462
    %770 = vrot.lane.b32.xlu0 %v766, 127
    %v771 = vpop.permute.xlu0 %770
    %772 = vrot.lane.b32.xlu0 %v767, 127
    %v773 = vpop.permute.xlu0 %772
    %v776 = vadd.f32 %v616, %v771
    %v777 = vadd.f32 %v617, %v773
    %v778 = vstv %s666
    %v779 = vmul.f32 %v778, %v461
    %v780 = vmul.f32 %v778, %v462
    %783 = vrot.lane.b32.xlu0 %v779, 127
    %v784 = vpop.permute.xlu0 %783
    %785 = vrot.lane.b32.xlu0 %v780, 127
    %v786 = vpop.permute.xlu0 %785
    %v789 = vadd.f32 %v621, %v784
    %v790 = vadd.f32 %v622, %v786
    %v791 = vstv %s667
    %v792 = vmul.f32 %v791, %v461
    %v793 = vmul.f32 %v791, %v462
    %796 = vrot.lane.b32.xlu0 %v792, 127
    %v797 = vpop.permute.xlu0 %796
    %798 = vrot.lane.b32.xlu0 %v793, 127
    %v799 = vpop.permute.xlu0 %798
    %v802 = vadd.f32 %v626, %v797
    %v803 = vadd.f32 %v627, %v799
    %v804 = vstv %s668
    %v805 = vmul.f32 %v804, %v461
    %v806 = vmul.f32 %v804, %v462
    %809 = vrot.lane.b32.xlu0 %v805, 127
    %v810 = vpop.permute.xlu0 %809
    %811 = vrot.lane.b32.xlu0 %v806, 127
    %v812 = vpop.permute.xlu0 %811
    %v815 = vadd.f32 %v631, %v810
    %v816 = vadd.f32 %v632, %v812
    %v817 = vstv %s669
    %v818 = vmul.f32 %v817, %v461
    %v819 = vmul.f32 %v817, %v462
    %822 = vrot.lane.b32.xlu0 %v818, 127
    %v823 = vpop.permute.xlu0 %822
    %824 = vrot.lane.b32.xlu0 %v819, 127
    %v825 = vpop.permute.xlu0 %824
    %v828 = vadd.f32 %v636, %v823
    %v829 = vadd.f32 %v637, %v825
    %v830 = vstv %s670
    %v831 = vmul.f32 %v830, %v461
    %v832 = vmul.f32 %v830, %v462
    %835 = vrot.lane.b32.xlu0 %v831, 127
    %v836 = vpop.permute.xlu0 %835
    %837 = vrot.lane.b32.xlu0 %v832, 127
    %v838 = vpop.permute.xlu0 %837
    %v841 = vadd.f32 %v641, %v836
    %v842 = vadd.f32 %v642, %v838
    %v843 = vstv %s671
    %v844 = vmul.f32 %v843, %v461
    %v845 = vmul.f32 %v843, %v462
    %848 = vrot.lane.b32.xlu0 %v844, 127
    %v849 = vpop.permute.xlu0 %848
    %850 = vrot.lane.b32.xlu0 %v845, 127
    %v851 = vpop.permute.xlu0 %850
    %v854 = vadd.f32 %v646, %v849
    %v855 = vadd.f32 %v647, %v851
    %v856 = vstv %s672
    %v857 = vmul.f32 %v856, %v461
    %v858 = vmul.f32 %v856, %v462
    %861 = vrot.lane.b32.xlu0 %v857, 127
    %v862 = vpop.permute.xlu0 %861
    %863 = vrot.lane.b32.xlu0 %v858, 127
    %v864 = vpop.permute.xlu0 %863
    %v867 = vadd.f32 %v651, %v862
    %v868 = vadd.f32 %v652, %v864
    %v869 = vstv %s673
    %v870 = vmul.f32 %v869, %v461
    %v871 = vmul.f32 %v869, %v462
    %874 = vrot.lane.b32.xlu0 %v870, 127
    %v875 = vpop.permute.xlu0 %874
    %876 = vrot.lane.b32.xlu0 %v871, 127
    %v877 = vpop.permute.xlu0 %876
    %v880 = vadd.f32 %v656, %v875
    %v881 = vadd.f32 %v657, %v877
    %v882 = vld [vmem:[%s0 + $0x1] sm:$0xff]
    %v883 = vld [vmem:[%s0 + $0x9] sm:$0x3f]
    %s884 = sld [smem:[#allocation2 + $0x60]]
    %s885 = sld [smem:[#allocation2 + $0x61]]
    %s886 = sld [smem:[#allocation2 + $0x62]]
    %s887 = sld [smem:[#allocation2 + $0x63]]
    %s888 = sld [smem:[#allocation2 + $0x64]]
    %s889 = sld [smem:[#allocation2 + $0x65]]
    %s890 = sld [smem:[#allocation2 + $0x66]]
    %s891 = sld [smem:[#allocation2 + $0x67]]
    %s892 = sld [smem:[#allocation2 + $0x68]]
    %s893 = sld [smem:[#allocation2 + $0x69]]
    %s894 = sld [smem:[#allocation2 + $0x6a]]
    %s895 = sld [smem:[#allocation2 + $0x6b]]
    %s896 = sld [smem:[#allocation2 + $0x6c]]
    %s897 = sld [smem:[#allocation2 + $0x6d]]
    %s898 = sld [smem:[#allocation2 + $0x6e]]
    %s899 = sld [smem:[#allocation2 + $0x6f]]
    %v900 = vstv %s884
    %v901 = vmul.f32 %v900, %v882
    %v902 = vmul.f32 %v900, %v883
    %v903 = vadd.f32 %v685, %v901
    %v904 = vadd.f32 %v686, %v902
    %v905 = vstv %s885
    %v906 = vmul.f32 %v905, %v882
    %v907 = vmul.f32 %v905, %v883
    %v908 = vadd.f32 %v698, %v906
    %v909 = vadd.f32 %v699, %v907
    %v910 = vstv %s886
    %v911 = vmul.f32 %v910, %v882
    %v912 = vmul.f32 %v910, %v883
    %v913 = vadd.f32 %v711, %v911
    %v914 = vadd.f32 %v712, %v912
    %v915 = vstv %s887
    %v916 = vmul.f32 %v915, %v882
    %v917 = vmul.f32 %v915, %v883
    %v918 = vadd.f32 %v724, %v916
    %v919 = vadd.f32 %v725, %v917
    %v920 = vstv %s888
    %v921 = vmul.f32 %v920, %v882
    %v922 = vmul.f32 %v920, %v883
    %v923 = vadd.f32 %v737, %v921
    %v924 = vadd.f32 %v738, %v922
    %v925 = vstv %s889
    %v926 = vmul.f32 %v925, %v882
    %v927 = vmul.f32 %v925, %v883
    %v928 = vadd.f32 %v750, %v926
    %v929 = vadd.f32 %v751, %v927
    %v930 = vstv %s890
    %v931 = vmul.f32 %v930, %v882
    %v932 = vmul.f32 %v930, %v883
    %v933 = vadd.f32 %v763, %v931
    %v934 = vadd.f32 %v764, %v932
    %v935 = vstv %s891
    %v936 = vmul.f32 %v935, %v882
    %v937 = vmul.f32 %v935, %v883
    %v938 = vadd.f32 %v776, %v936
    %v939 = vadd.f32 %v777, %v937
    %v940 = vstv %s892
    %v941 = vmul.f32 %v940, %v882
    %v942 = vmul.f32 %v940, %v883
    %v943 = vadd.f32 %v789, %v941
    %v944 = vadd.f32 %v790, %v942
    %v945 = vstv %s893
    %v946 = vmul.f32 %v945, %v882
    %v947 = vmul.f32 %v945, %v883
    %v948 = vadd.f32 %v802, %v946
    %v949 = vadd.f32 %v803, %v947
    %v950 = vstv %s894
    %v951 = vmul.f32 %v950, %v882
    %v952 = vmul.f32 %v950, %v883
    %v953 = vadd.f32 %v815, %v951
    %v954 = vadd.f32 %v816, %v952
    %v955 = vstv %s895
    %v956 = vmul.f32 %v955, %v882
    %v957 = vmul.f32 %v955, %v883
    %v958 = vadd.f32 %v828, %v956
    %v959 = vadd.f32 %v829, %v957
    %v960 = vstv %s896
    %v961 = vmul.f32 %v960, %v882
    %v962 = vmul.f32 %v960, %v883
    %v963 = vadd.f32 %v841, %v961
    %v964 = vadd.f32 %v842, %v962
    %v965 = vstv %s897
    %v966 = vmul.f32 %v965, %v882
    %v967 = vmul.f32 %v965, %v883
    %v968 = vadd.f32 %v854, %v966
    %v969 = vadd.f32 %v855, %v967
    %v970 = vstv %s898
    %v971 = vmul.f32 %v970, %v882
    %v972 = vmul.f32 %v970, %v883
    %v973 = vadd.f32 %v867, %v971
    %v974 = vadd.f32 %v868, %v972
    %v975 = vstv %s899
    %v976 = vmul.f32 %v975, %v882
    %v977 = vmul.f32 %v975, %v883
    %v978 = vadd.f32 %v880, %v976
    %v979 = vadd.f32 %v881, %v977
    %v980 = vld [vmem:[%s137 + $0x1] sm:$0xff]
    %v981 = vld [vmem:[%s137 + $0x9] sm:$0x3f]
    %s982 = sld [smem:[#allocation2 + $0x70]]
    %s983 = sld [smem:[#allocation2 + $0x71]]
    %s984 = sld [smem:[#allocation2 + $0x72]]
    %s985 = sld [smem:[#allocation2 + $0x73]]
    %s986 = sld [smem:[#allocation2 + $0x74]]
    %s987 = sld [smem:[#allocation2 + $0x75]]
    %s988 = sld [smem:[#allocation2 + $0x76]]
    %s989 = sld [smem:[#allocation2 + $0x77]]
    %s990 = sld [smem:[#allocation2 + $0x78]]
    %s991 = sld [smem:[#allocation2 + $0x79]]
    %s992 = sld [smem:[#allocation2 + $0x7a]]
    %s993 = sld [smem:[#allocation2 + $0x7b]]
    %s994 = sld [smem:[#allocation2 + $0x7c]]
    %s995 = sld [smem:[#allocation2 + $0x7d]]
    %s996 = sld [smem:[#allocation2 + $0x7e]]
    %s997 = sld [smem:[#allocation2 + $0x7f]]
    %v998 = vstv %s982
    %v999 = vmul.f32 %v998, %v980
    %v1000 = vmul.f32 %v998, %v981
    %v1001 = vadd.f32 %v903, %v999
    %v1002 = vadd.f32 %v904, %v1000
    %v1003 = vstv %s983
    %v1004 = vmul.f32 %v1003, %v980
    %v1005 = vmul.f32 %v1003, %v981
    %v1006 = vadd.f32 %v908, %v1004
    %v1007 = vadd.f32 %v909, %v1005
    %v1008 = vstv %s984
    %v1009 = vmul.f32 %v1008, %v980
    %v1010 = vmul.f32 %v1008, %v981
    %v1011 = vadd.f32 %v913, %v1009
    %v1012 = vadd.f32 %v914, %v1010
    %v1013 = vstv %s985
    %v1014 = vmul.f32 %v1013, %v980
    %v1015 = vmul.f32 %v1013, %v981
    %v1016 = vadd.f32 %v918, %v1014
    %v1017 = vadd.f32 %v919, %v1015
    %v1018 = vstv %s986
    %v1019 = vmul.f32 %v1018, %v980
    %v1020 = vmul.f32 %v1018, %v981
    %v1021 = vadd.f32 %v923, %v1019
    %v1022 = vadd.f32 %v924, %v1020
    %v1023 = vstv %s987
    %v1024 = vmul.f32 %v1023, %v980
    %v1025 = vmul.f32 %v1023, %v981
    %v1026 = vadd.f32 %v928, %v1024
    %v1027 = vadd.f32 %v929, %v1025
    %v1028 = vstv %s988
    %v1029 = vmul.f32 %v1028, %v980
    %v1030 = vmul.f32 %v1028, %v981
    %v1031 = vadd.f32 %v933, %v1029
    %v1032 = vadd.f32 %v934, %v1030
    %v1033 = vstv %s989
    %v1034 = vmul.f32 %v1033, %v980
    %v1035 = vmul.f32 %v1033, %v981
    %v1036 = vadd.f32 %v938, %v1034
    %v1037 = vadd.f32 %v939, %v1035
    %v1038 = vstv %s990
    %v1039 = vmul.f32 %v1038, %v980
    %v1040 = vmul.f32 %v1038, %v981
    %v1041 = vadd.f32 %v943, %v1039
    %v1042 = vadd.f32 %v944, %v1040
    %v1043 = vstv %s991
    %v1044 = vmul.f32 %v1043, %v980
    %v1045 = vmul.f32 %v1043, %v981
    %v1046 = vadd.f32 %v948, %v1044
    %v1047 = vadd.f32 %v949, %v1045
    %v1048 = vstv %s992
    %v1049 = vmul.f32 %v1048, %v980
    %v1050 = vmul.f32 %v1048, %v981
    %v1051 = vadd.f32 %v953, %v1049
    %v1052 = vadd.f32 %v954, %v1050
    %v1053 = vstv %s993
    %v1054 = vmul.f32 %v1053, %v980
    %v1055 = vmul.f32 %v1053, %v981
    %v1056 = vadd.f32 %v958, %v1054
    %v1057 = vadd.f32 %v959, %v1055
    %v1058 = vstv %s994
    %v1059 = vmul.f32 %v1058, %v980
    %v1060 = vmul.f32 %v1058, %v981
    %v1061 = vadd.f32 %v963, %v1059
    %v1062 = vadd.f32 %v964, %v1060
    %v1063 = vstv %s995
    %v1064 = vmul.f32 %v1063, %v980
    %v1065 = vmul.f32 %v1063, %v981
    %v1066 = vadd.f32 %v968, %v1064
    %v1067 = vadd.f32 %v969, %v1065
    %v1068 = vstv %s996
    %v1069 = vmul.f32 %v1068, %v980
    %v1070 = vmul.f32 %v1068, %v981
    %v1071 = vadd.f32 %v973, %v1069
    %v1072 = vadd.f32 %v974, %v1070
    %v1073 = vstv %s997
    %v1074 = vmul.f32 %v1073, %v980
    %v1075 = vmul.f32 %v1073, %v981
    %v1076 = vadd.f32 %v978, %v1074
    %v1077 = vadd.f32 %v979, %v1075
    %s1078 = sld [smem:[#allocation2 + $0x80]]
    %s1079 = sld [smem:[#allocation2 + $0x81]]
    %s1080 = sld [smem:[#allocation2 + $0x82]]
    %s1081 = sld [smem:[#allocation2 + $0x83]]
    %s1082 = sld [smem:[#allocation2 + $0x84]]
    %s1083 = sld [smem:[#allocation2 + $0x85]]
    %s1084 = sld [smem:[#allocation2 + $0x86]]
    %s1085 = sld [smem:[#allocation2 + $0x87]]
    %s1086 = sld [smem:[#allocation2 + $0x88]]
    %s1087 = sld [smem:[#allocation2 + $0x89]]
    %s1088 = sld [smem:[#allocation2 + $0x8a]]
    %s1089 = sld [smem:[#allocation2 + $0x8b]]
    %s1090 = sld [smem:[#allocation2 + $0x8c]]
    %s1091 = sld [smem:[#allocation2 + $0x8d]]
    %s1092 = sld [smem:[#allocation2 + $0x8e]]
    %s1093 = sld [smem:[#allocation2 + $0x8f]]
    %v1094 = vstv %s1078
    %v1095 = vmul.f32 %v1094, %v882
    %v1096 = vmul.f32 %v1094, %v883
    %1099 = vrot.lane.b32.xlu0 %v1095, 127
    %v1100 = vpop.permute.xlu0 %1099
    %1101 = vrot.lane.b32.xlu0 %v1096, 127
    %v1102 = vpop.permute.xlu0 %1101
    %v1105 = vadd.f32 %v1001, %v1100
    %v1106 = vadd.f32 %v1002, %v1102
    %v1107 = vstv %s1079
    %v1108 = vmul.f32 %v1107, %v882
    %v1109 = vmul.f32 %v1107, %v883
    %1112 = vrot.lane.b32.xlu0 %v1108, 127
    %v1113 = vpop.permute.xlu0 %1112
    %1114 = vrot.lane.b32.xlu0 %v1109, 127
    %v1115 = vpop.permute.xlu0 %1114
    %v1118 = vadd.f32 %v1006, %v1113
    %v1119 = vadd.f32 %v1007, %v1115
    %v1120 = vstv %s1080
    %v1121 = vmul.f32 %v1120, %v882
    %v1122 = vmul.f32 %v1120, %v883
    %1125 = vrot.lane.b32.xlu0 %v1121, 127
    %v1126 = vpop.permute.xlu0 %1125
    %1127 = vrot.lane.b32.xlu0 %v1122, 127
    %v1128 = vpop.permute.xlu0 %1127
    %v1131 = vadd.f32 %v1011, %v1126
    %v1132 = vadd.f32 %v1012, %v1128
    %v1133 = vstv %s1081
    %v1134 = vmul.f32 %v1133, %v882
    %v1135 = vmul.f32 %v1133, %v883
    %1138 = vrot.lane.b32.xlu0 %v1134, 127
    %v1139 = vpop.permute.xlu0 %1138
    %1140 = vrot.lane.b32.xlu0 %v1135, 127
    %v1141 = vpop.permute.xlu0 %1140
    %v1144 = vadd.f32 %v1016, %v1139
    %v1145 = vadd.f32 %v1017, %v1141
    %v1146 = vstv %s1082
    %v1147 = vmul.f32 %v1146, %v882
    %v1148 = vmul.f32 %v1146, %v883
    %1151 = vrot.lane.b32.xlu0 %v1147, 127
    %v1152 = vpop.permute.xlu0 %1151
    %1153 = vrot.lane.b32.xlu0 %v1148, 127
    %v1154 = vpop.permute.xlu0 %1153
    %v1157 = vadd.f32 %v1021, %v1152
    %v1158 = vadd.f32 %v1022, %v1154
    %v1159 = vstv %s1083
    %v1160 = vmul.f32 %v1159, %v882
    %v1161 = vmul.f32 %v1159, %v883
    %1164 = vrot.lane.b32.xlu0 %v1160, 127
    %v1165 = vpop.permute.xlu0 %1164
    %1166 = vrot.lane.b32.xlu0 %v1161, 127
    %v1167 = vpop.permute.xlu0 %1166
    %v1170 = vadd.f32 %v1026, %v1165
    %v1171 = vadd.f32 %v1027, %v1167
    %v1172 = vstv %s1084
    %v1173 = vmul.f32 %v1172, %v882
    %v1174 = vmul.f32 %v1172, %v883
    %1177 = vrot.lane.b32.xlu0 %v1173, 127
    %v1178 = vpop.permute.xlu0 %1177
    %1179 = vrot.lane.b32.xlu0 %v1174, 127
    %v1180 = vpop.permute.xlu0 %1179
    %v1183 = vadd.f32 %v1031, %v1178
    %v1184 = vadd.f32 %v1032, %v1180
    %v1185 = vstv %s1085
    %v1186 = vmul.f32 %v1185, %v882
    %v1187 = vmul.f32 %v1185, %v883
    %1190 = vrot.lane.b32.xlu0 %v1186, 127
    %v1191 = vpop.permute.xlu0 %1190
    %1192 = vrot.lane.b32.xlu0 %v1187, 127
    %v1193 = vpop.permute.xlu0 %1192
    %v1196 = vadd.f32 %v1036, %v1191
    %v1197 = vadd.f32 %v1037, %v1193
    %v1198 = vstv %s1086
    %v1199 = vmul.f32 %v1198, %v882
    %v1200 = vmul.f32 %v1198, %v883
    %1203 = vrot.lane.b32.xlu0 %v1199, 127
    %v1204 = vpop.permute.xlu0 %1203
    %1205 = vrot.lane.b32.xlu0 %v1200, 127
    %v1206 = vpop.permute.xlu0 %1205
    %v1209 = vadd.f32 %v1041, %v1204
    %v1210 = vadd.f32 %v1042, %v1206
    %v1211 = vstv %s1087
    %v1212 = vmul.f32 %v1211, %v882
    %v1213 = vmul.f32 %v1211, %v883
    %1216 = vrot.lane.b32.xlu0 %v1212, 127
    %v1217 = vpop.permute.xlu0 %1216
    %1218 = vrot.lane.b32.xlu0 %v1213, 127
    %v1219 = vpop.permute.xlu0 %1218
    %v1222 = vadd.f32 %v1046, %v1217
    %v1223 = vadd.f32 %v1047, %v1219
    %v1224 = vstv %s1088
    %v1225 = vmul.f32 %v1224, %v882
    %v1226 = vmul.f32 %v1224, %v883
    %1229 = vrot.lane.b32.xlu0 %v1225, 127
    %v1230 = vpop.permute.xlu0 %1229
    %1231 = vrot.lane.b32.xlu0 %v1226, 127
    %v1232 = vpop.permute.xlu0 %1231
    %v1235 = vadd.f32 %v1051, %v1230
    %v1236 = vadd.f32 %v1052, %v1232
    %v1237 = vstv %s1089
    %v1238 = vmul.f32 %v1237, %v882
    %v1239 = vmul.f32 %v1237, %v883
    %1242 = vrot.lane.b32.xlu0 %v1238, 127
    %v1243 = vpop.permute.xlu0 %1242
    %1244 = vrot.lane.b32.xlu0 %v1239, 127
    %v1245 = vpop.permute.xlu0 %1244
    %v1248 = vadd.f32 %v1056, %v1243
    %v1249 = vadd.f32 %v1057, %v1245
    %v1250 = vstv %s1090
    %v1251 = vmul.f32 %v1250, %v882
    %v1252 = vmul.f32 %v1250, %v883
    %1255 = vrot.lane.b32.xlu0 %v1251, 127
    %v1256 = vpop.permute.xlu0 %1255
    %1257 = vrot.lane.b32.xlu0 %v1252, 127
    %v1258 = vpop.permute.xlu0 %1257
    %v1261 = vadd.f32 %v1061, %v1256
    %v1262 = vadd.f32 %v1062, %v1258
    %v1263 = vstv %s1091
    %v1264 = vmul.f32 %v1263, %v882
    %v1265 = vmul.f32 %v1263, %v883
    %1268 = vrot.lane.b32.xlu0 %v1264, 127
    %v1269 = vpop.permute.xlu0 %1268
    %1270 = vrot.lane.b32.xlu0 %v1265, 127
    %v1271 = vpop.permute.xlu0 %1270
    %v1274 = vadd.f32 %v1066, %v1269
    %v1275 = vadd.f32 %v1067, %v1271
    %v1276 = vstv %s1092
    %v1277 = vmul.f32 %v1276, %v882
    %v1278 = vmul.f32 %v1276, %v883
    %1281 = vrot.lane.b32.xlu0 %v1277, 127
    %v1282 = vpop.permute.xlu0 %1281
    %1283 = vrot.lane.b32.xlu0 %v1278, 127
    %v1284 = vpop.permute.xlu0 %1283
    %v1287 = vadd.f32 %v1071, %v1282
    %v1288 = vadd.f32 %v1072, %v1284
    %v1289 = vstv %s1093
    %v1290 = vmul.f32 %v1289, %v882
    %v1291 = vmul.f32 %v1289, %v883
    %1294 = vrot.lane.b32.xlu0 %v1290, 127
    %v1295 = vpop.permute.xlu0 %1294
    %1296 = vrot.lane.b32.xlu0 %v1291, 127
    %v1297 = vpop.permute.xlu0 %1296
    %v1300 = vadd.f32 %v1076, %v1295
    %v1301 = vadd.f32 %v1077, %v1297
    %s1302 = scalar_lea.vmem %s0, 64
    %v1303 = vld [vmem:[%s1302] sm:$0xff]
    %v1304 = vld [vmem:[%s1302 + $0x8] sm:$0x3f]
    %s1305 = sld [smem:[#allocation2 + $0x90]]
    %s1306 = sld [smem:[#allocation2 + $0x91]]
    %s1307 = sld [smem:[#allocation2 + $0x92]]
    %s1308 = sld [smem:[#allocation2 + $0x93]]
    %s1309 = sld [smem:[#allocation2 + $0x94]]
    %s1310 = sld [smem:[#allocation2 + $0x95]]
    %s1311 = sld [smem:[#allocation2 + $0x96]]
    %s1312 = sld [smem:[#allocation2 + $0x97]]
    %s1313 = sld [smem:[#allocation2 + $0x98]]
    %s1314 = sld [smem:[#allocation2 + $0x99]]
    %s1315 = sld [smem:[#allocation2 + $0x9a]]
    %s1316 = sld [smem:[#allocation2 + $0x9b]]
    %s1317 = sld [smem:[#allocation2 + $0x9c]]
    %s1318 = sld [smem:[#allocation2 + $0x9d]]
    %s1319 = sld [smem:[#allocation2 + $0x9e]]
    %s1320 = sld [smem:[#allocation2 + $0x9f]]
    %v1321 = vstv %s1305
    %v1322 = vmul.f32 %v1321, %v1303
    %v1323 = vmul.f32 %v1321, %v1304
    %v1324 = vadd.f32 %v1105, %v1322
    %v1325 = vadd.f32 %v1106, %v1323
    %v1326 = vstv %s1306
    %v1327 = vmul.f32 %v1326, %v1303
    %v1328 = vmul.f32 %v1326, %v1304
    %v1329 = vadd.f32 %v1118, %v1327
    %v1330 = vadd.f32 %v1119, %v1328
    %v1331 = vstv %s1307
    %v1332 = vmul.f32 %v1331, %v1303
    %v1333 = vmul.f32 %v1331, %v1304
    %v1334 = vadd.f32 %v1131, %v1332
    %v1335 = vadd.f32 %v1132, %v1333
    %v1336 = vstv %s1308
    %v1337 = vmul.f32 %v1336, %v1303
    %v1338 = vmul.f32 %v1336, %v1304
    %v1339 = vadd.f32 %v1144, %v1337
    %v1340 = vadd.f32 %v1145, %v1338
    %v1341 = vstv %s1309
    %v1342 = vmul.f32 %v1341, %v1303
    %v1343 = vmul.f32 %v1341, %v1304
    %v1344 = vadd.f32 %v1157, %v1342
    %v1345 = vadd.f32 %v1158, %v1343
    %v1346 = vstv %s1310
    %v1347 = vmul.f32 %v1346, %v1303
    %v1348 = vmul.f32 %v1346, %v1304
    %v1349 = vadd.f32 %v1170, %v1347
    %v1350 = vadd.f32 %v1171, %v1348
    %v1351 = vstv %s1311
    %v1352 = vmul.f32 %v1351, %v1303
    %v1353 = vmul.f32 %v1351, %v1304
    %v1354 = vadd.f32 %v1183, %v1352
    %v1355 = vadd.f32 %v1184, %v1353
    %v1356 = vstv %s1312
    %v1357 = vmul.f32 %v1356, %v1303
    %v1358 = vmul.f32 %v1356, %v1304
    %v1359 = vadd.f32 %v1196, %v1357
    %v1360 = vadd.f32 %v1197, %v1358
    %v1361 = vstv %s1313
    %v1362 = vmul.f32 %v1361, %v1303
    %v1363 = vmul.f32 %v1361, %v1304
    %v1364 = vadd.f32 %v1209, %v1362
    %v1365 = vadd.f32 %v1210, %v1363
    %v1366 = vstv %s1314
    %v1367 = vmul.f32 %v1366, %v1303
    %v1368 = vmul.f32 %v1366, %v1304
    %v1369 = vadd.f32 %v1222, %v1367
    %v1370 = vadd.f32 %v1223, %v1368
    %v1371 = vstv %s1315
    %v1372 = vmul.f32 %v1371, %v1303
    %v1373 = vmul.f32 %v1371, %v1304
    %v1374 = vadd.f32 %v1235, %v1372
    %v1375 = vadd.f32 %v1236, %v1373
    %v1376 = vstv %s1316
    %v1377 = vmul.f32 %v1376, %v1303
    %v1378 = vmul.f32 %v1376, %v1304
    %v1379 = vadd.f32 %v1248, %v1377
    %v1380 = vadd.f32 %v1249, %v1378
    %v1381 = vstv %s1317
    %v1382 = vmul.f32 %v1381, %v1303
    %v1383 = vmul.f32 %v1381, %v1304
    %v1384 = vadd.f32 %v1261, %v1382
    %v1385 = vadd.f32 %v1262, %v1383
    %v1386 = vstv %s1318
    %v1387 = vmul.f32 %v1386, %v1303
    %v1388 = vmul.f32 %v1386, %v1304
    %v1389 = vadd.f32 %v1274, %v1387
    %v1390 = vadd.f32 %v1275, %v1388
    %v1391 = vstv %s1319
    %v1392 = vmul.f32 %v1391, %v1303
    %v1393 = vmul.f32 %v1391, %v1304
    %v1394 = vadd.f32 %v1287, %v1392
    %v1395 = vadd.f32 %v1288, %v1393
    %v1396 = vstv %s1320
    %v1397 = vmul.f32 %v1396, %v1303
    %v1398 = vmul.f32 %v1396, %v1304
    %v1399 = vadd.f32 %v1300, %v1397
    %v1400 = vadd.f32 %v1301, %v1398
    %s1401 = scalar_lea.vmem %s0, 80
    %v1402 = vld [vmem:[%s1401] sm:$0xff]
    %v1403 = vld [vmem:[%s1401 + $0x8] sm:$0x3f]
    %s1404 = sld [smem:[#allocation2 + $0xa0]]
    %s1405 = sld [smem:[#allocation2 + $0xa1]]
    %s1406 = sld [smem:[#allocation2 + $0xa2]]
    %s1407 = sld [smem:[#allocation2 + $0xa3]]
    %s1408 = sld [smem:[#allocation2 + $0xa4]]
    %s1409 = sld [smem:[#allocation2 + $0xa5]]
    %s1410 = sld [smem:[#allocation2 + $0xa6]]
    %s1411 = sld [smem:[#allocation2 + $0xa7]]
    %s1412 = sld [smem:[#allocation2 + $0xa8]]
    %s1413 = sld [smem:[#allocation2 + $0xa9]]
    %s1414 = sld [smem:[#allocation2 + $0xaa]]
    %s1415 = sld [smem:[#allocation2 + $0xab]]
    %s1416 = sld [smem:[#allocation2 + $0xac]]
    %s1417 = sld [smem:[#allocation2 + $0xad]]
    %s1418 = sld [smem:[#allocation2 + $0xae]]
    %s1419 = sld [smem:[#allocation2 + $0xaf]]
    %v1420 = vstv %s1404
    %v1421 = vmul.f32 %v1420, %v1402
    %v1422 = vmul.f32 %v1420, %v1403
    %v1423 = vadd.f32 %v1324, %v1421
    %v1424 = vadd.f32 %v1325, %v1422
    %v1425 = vstv %s1405
    %v1426 = vmul.f32 %v1425, %v1402
    %v1427 = vmul.f32 %v1425, %v1403
    %v1428 = vadd.f32 %v1329, %v1426
    %v1429 = vadd.f32 %v1330, %v1427
    %v1430 = vstv %s1406
    %v1431 = vmul.f32 %v1430, %v1402
    %v1432 = vmul.f32 %v1430, %v1403
    %v1433 = vadd.f32 %v1334, %v1431
    %v1434 = vadd.f32 %v1335, %v1432
    %v1435 = vstv %s1407
    %v1436 = vmul.f32 %v1435, %v1402
    %v1437 = vmul.f32 %v1435, %v1403
    %v1438 = vadd.f32 %v1339, %v1436
    %v1439 = vadd.f32 %v1340, %v1437
    %v1440 = vstv %s1408
    %v1441 = vmul.f32 %v1440, %v1402
    %v1442 = vmul.f32 %v1440, %v1403
    %v1443 = vadd.f32 %v1344, %v1441
    %v1444 = vadd.f32 %v1345, %v1442
    %v1445 = vstv %s1409
    %v1446 = vmul.f32 %v1445, %v1402
    %v1447 = vmul.f32 %v1445, %v1403
    %v1448 = vadd.f32 %v1349, %v1446
    %v1449 = vadd.f32 %v1350, %v1447
    %v1450 = vstv %s1410
    %v1451 = vmul.f32 %v1450, %v1402
    %v1452 = vmul.f32 %v1450, %v1403
    %v1453 = vadd.f32 %v1354, %v1451
    %v1454 = vadd.f32 %v1355, %v1452
    %v1455 = vstv %s1411
    %v1456 = vmul.f32 %v1455, %v1402
    %v1457 = vmul.f32 %v1455, %v1403
    %v1458 = vadd.f32 %v1359, %v1456
    %v1459 = vadd.f32 %v1360, %v1457
    %v1460 = vstv %s1412
    %v1461 = vmul.f32 %v1460, %v1402
    %v1462 = vmul.f32 %v1460, %v1403
    %v1463 = vadd.f32 %v1364, %v1461
    %v1464 = vadd.f32 %v1365, %v1462
    %v1465 = vstv %s1413
    %v1466 = vmul.f32 %v1465, %v1402
    %v1467 = vmul.f32 %v1465, %v1403
    %v1468 = vadd.f32 %v1369, %v1466
    %v1469 = vadd.f32 %v1370, %v1467
    %v1470 = vstv %s1414
    %v1471 = vmul.f32 %v1470, %v1402
    %v1472 = vmul.f32 %v1470, %v1403
    %v1473 = vadd.f32 %v1374, %v1471
    %v1474 = vadd.f32 %v1375, %v1472
    %v1475 = vstv %s1415
    %v1476 = vmul.f32 %v1475, %v1402
    %v1477 = vmul.f32 %v1475, %v1403
    %v1478 = vadd.f32 %v1379, %v1476
    %v1479 = vadd.f32 %v1380, %v1477
    %v1480 = vstv %s1416
    %v1481 = vmul.f32 %v1480, %v1402
    %v1482 = vmul.f32 %v1480, %v1403
    %v1483 = vadd.f32 %v1384, %v1481
    %v1484 = vadd.f32 %v1385, %v1482
    %v1485 = vstv %s1417
    %v1486 = vmul.f32 %v1485, %v1402
    %v1487 = vmul.f32 %v1485, %v1403
    %v1488 = vadd.f32 %v1389, %v1486
    %v1489 = vadd.f32 %v1390, %v1487
    %v1490 = vstv %s1418
    %v1491 = vmul.f32 %v1490, %v1402
    %v1492 = vmul.f32 %v1490, %v1403
    %v1493 = vadd.f32 %v1394, %v1491
    %v1494 = vadd.f32 %v1395, %v1492
    %v1495 = vstv %s1419
    %v1496 = vmul.f32 %v1495, %v1402
    %v1497 = vmul.f32 %v1495, %v1403
    %v1498 = vadd.f32 %v1399, %v1496
    %v1499 = vadd.f32 %v1400, %v1497
    %s1500 = sld [smem:[#allocation2 + $0xb0]]
    %s1501 = sld [smem:[#allocation2 + $0xb1]]
    %s1502 = sld [smem:[#allocation2 + $0xb2]]
    %s1503 = sld [smem:[#allocation2 + $0xb3]]
    %s1504 = sld [smem:[#allocation2 + $0xb4]]
    %s1505 = sld [smem:[#allocation2 + $0xb5]]
    %s1506 = sld [smem:[#allocation2 + $0xb6]]
    %s1507 = sld [smem:[#allocation2 + $0xb7]]
    %s1508 = sld [smem:[#allocation2 + $0xb8]]
    %s1509 = sld [smem:[#allocation2 + $0xb9]]
    %s1510 = sld [smem:[#allocation2 + $0xba]]
    %s1511 = sld [smem:[#allocation2 + $0xbb]]
    %s1512 = sld [smem:[#allocation2 + $0xbc]]
    %s1513 = sld [smem:[#allocation2 + $0xbd]]
    %s1514 = sld [smem:[#allocation2 + $0xbe]]
    %s1515 = sld [smem:[#allocation2 + $0xbf]]
    %v1516 = vstv %s1500
    %v1517 = vmul.f32 %v1516, %v1303
    %v1518 = vmul.f32 %v1516, %v1304
    %1521 = vrot.lane.b32.xlu0 %v1517, 127
    %v1522 = vpop.permute.xlu0 %1521
    %1523 = vrot.lane.b32.xlu0 %v1518, 127
    %v1524 = vpop.permute.xlu0 %1523
    %v1527 = vadd.f32 %v1423, %v1522
    %v1528 = vadd.f32 %v1424, %v1524
    %v1529 = vstv %s1501
    %v1530 = vmul.f32 %v1529, %v1303
    %v1531 = vmul.f32 %v1529, %v1304
    %1534 = vrot.lane.b32.xlu0 %v1530, 127
    %v1535 = vpop.permute.xlu0 %1534
    %1536 = vrot.lane.b32.xlu0 %v1531, 127
    %v1537 = vpop.permute.xlu0 %1536
    %v1540 = vadd.f32 %v1428, %v1535
    %v1541 = vadd.f32 %v1429, %v1537
    %v1542 = vstv %s1502
    %v1543 = vmul.f32 %v1542, %v1303
    %v1544 = vmul.f32 %v1542, %v1304
    %1547 = vrot.lane.b32.xlu0 %v1543, 127
    %v1548 = vpop.permute.xlu0 %1547
    %1549 = vrot.lane.b32.xlu0 %v1544, 127
    %v1550 = vpop.permute.xlu0 %1549
    %v1553 = vadd.f32 %v1433, %v1548
    %v1554 = vadd.f32 %v1434, %v1550
    %v1555 = vstv %s1503
    %v1556 = vmul.f32 %v1555, %v1303
    %v1557 = vmul.f32 %v1555, %v1304
    %1560 = vrot.lane.b32.xlu0 %v1556, 127
    %v1561 = vpop.permute.xlu0 %1560
    %1562 = vrot.lane.b32.xlu0 %v1557, 127
    %v1563 = vpop.permute.xlu0 %1562
    %v1566 = vadd.f32 %v1438, %v1561
    %v1567 = vadd.f32 %v1439, %v1563
    %v1568 = vstv %s1504
    %v1569 = vmul.f32 %v1568, %v1303
    %v1570 = vmul.f32 %v1568, %v1304
    %1573 = vrot.lane.b32.xlu0 %v1569, 127
    %v1574 = vpop.permute.xlu0 %1573
    %1575 = vrot.lane.b32.xlu0 %v1570, 127
    %v1576 = vpop.permute.xlu0 %1575
    %v1579 = vadd.f32 %v1443, %v1574
    %v1580 = vadd.f32 %v1444, %v1576
    %v1581 = vstv %s1505
    %v1582 = vmul.f32 %v1581, %v1303
    %v1583 = vmul.f32 %v1581, %v1304
    %1586 = vrot.lane.b32.xlu0 %v1582, 127
    %v1587 = vpop.permute.xlu0 %1586
    %1588 = vrot.lane.b32.xlu0 %v1583, 127
    %v1589 = vpop.permute.xlu0 %1588
    %v1592 = vadd.f32 %v1448, %v1587
    %v1593 = vadd.f32 %v1449, %v1589
    %v1594 = vstv %s1506
    %v1595 = vmul.f32 %v1594, %v1303
    %v1596 = vmul.f32 %v1594, %v1304
    %1599 = vrot.lane.b32.xlu0 %v1595, 127
    %v1600 = vpop.permute.xlu0 %1599
    %1601 = vrot.lane.b32.xlu0 %v1596, 127
    %v1602 = vpop.permute.xlu0 %1601
    %v1605 = vadd.f32 %v1453, %v1600
    %v1606 = vadd.f32 %v1454, %v1602
    %v1607 = vstv %s1507
    %v1608 = vmul.f32 %v1607, %v1303
    %v1609 = vmul.f32 %v1607, %v1304
    %1612 = vrot.lane.b32.xlu0 %v1608, 127
    %v1613 = vpop.permute.xlu0 %1612
    %1614 = vrot.lane.b32.xlu0 %v1609, 127
    %v1615 = vpop.permute.xlu0 %1614
    %v1618 = vadd.f32 %v1458, %v1613
    %v1619 = vadd.f32 %v1459, %v1615
    %v1620 = vstv %s1508
    %v1621 = vmul.f32 %v1620, %v1303
    %v1622 = vmul.f32 %v1620, %v1304
    %1625 = vrot.lane.b32.xlu0 %v1621, 127
    %v1626 = vpop.permute.xlu0 %1625
    %1627 = vrot.lane.b32.xlu0 %v1622, 127
    %v1628 = vpop.permute.xlu0 %1627
    %v1631 = vadd.f32 %v1463, %v1626
    %v1632 = vadd.f32 %v1464, %v1628
    %v1633 = vstv %s1509
    %v1634 = vmul.f32 %v1633, %v1303
    %v1635 = vmul.f32 %v1633, %v1304
    %1638 = vrot.lane.b32.xlu0 %v1634, 127
    %v1639 = vpop.permute.xlu0 %1638
    %1640 = vrot.lane.b32.xlu0 %v1635, 127
    %v1641 = vpop.permute.xlu0 %1640
    %v1644 = vadd.f32 %v1468, %v1639
    %v1645 = vadd.f32 %v1469, %v1641
    %v1646 = vstv %s1510
    %v1647 = vmul.f32 %v1646, %v1303
    %v1648 = vmul.f32 %v1646, %v1304
    %1651 = vrot.lane.b32.xlu0 %v1647, 127
    %v1652 = vpop.permute.xlu0 %1651
    %1653 = vrot.lane.b32.xlu0 %v1648, 127
    %v1654 = vpop.permute.xlu0 %1653
    %v1657 = vadd.f32 %v1473, %v1652
    %v1658 = vadd.f32 %v1474, %v1654
    %v1659 = vstv %s1511
    %v1660 = vmul.f32 %v1659, %v1303
    %v1661 = vmul.f32 %v1659, %v1304
    %1664 = vrot.lane.b32.xlu0 %v1660, 127
    %v1665 = vpop.permute.xlu0 %1664
    %1666 = vrot.lane.b32.xlu0 %v1661, 127
    %v1667 = vpop.permute.xlu0 %1666
    %v1670 = vadd.f32 %v1478, %v1665
    %v1671 = vadd.f32 %v1479, %v1667
    %v1672 = vstv %s1512
    %v1673 = vmul.f32 %v1672, %v1303
    %v1674 = vmul.f32 %v1672, %v1304
    %1677 = vrot.lane.b32.xlu0 %v1673, 127
    %v1678 = vpop.permute.xlu0 %1677
    %1679 = vrot.lane.b32.xlu0 %v1674, 127
    %v1680 = vpop.permute.xlu0 %1679
    %v1683 = vadd.f32 %v1483, %v1678
    %v1684 = vadd.f32 %v1484, %v1680
    %v1685 = vstv %s1513
    %v1686 = vmul.f32 %v1685, %v1303
    %v1687 = vmul.f32 %v1685, %v1304
    %1690 = vrot.lane.b32.xlu0 %v1686, 127
    %v1691 = vpop.permute.xlu0 %1690
    %1692 = vrot.lane.b32.xlu0 %v1687, 127
    %v1693 = vpop.permute.xlu0 %1692
    %v1696 = vadd.f32 %v1488, %v1691
    %v1697 = vadd.f32 %v1489, %v1693
    %v1698 = vstv %s1514
    %v1699 = vmul.f32 %v1698, %v1303
    %v1700 = vmul.f32 %v1698, %v1304
    %1703 = vrot.lane.b32.xlu0 %v1699, 127
    %v1704 = vpop.permute.xlu0 %1703
    %1705 = vrot.lane.b32.xlu0 %v1700, 127
    %v1706 = vpop.permute.xlu0 %1705
    %v1709 = vadd.f32 %v1493, %v1704
    %v1710 = vadd.f32 %v1494, %v1706
    %v1711 = vstv %s1515
    %v1712 = vmul.f32 %v1711, %v1303
    %v1713 = vmul.f32 %v1711, %v1304
    %1716 = vrot.lane.b32.xlu0 %v1712, 127
    %v1717 = vpop.permute.xlu0 %1716
    %1718 = vrot.lane.b32.xlu0 %v1713, 127
    %v1719 = vpop.permute.xlu0 %1718
    %v1722 = vadd.f32 %v1498, %v1717
    %v1723 = vadd.f32 %v1499, %v1719
    %s1724 = scalar_lea.vmem %s0, 96
    %v1725 = vld [vmem:[%s1724] sm:$0xff]
    %v1726 = vld [vmem:[%s1724 + $0x8] sm:$0x3f]
    %s1727 = sld [smem:[#allocation2 + $0xc0]]
    %s1728 = sld [smem:[#allocation2 + $0xc1]]
    %s1729 = sld [smem:[#allocation2 + $0xc2]]
    %s1730 = sld [smem:[#allocation2 + $0xc3]]
    %s1731 = sld [smem:[#allocation2 + $0xc4]]
    %s1732 = sld [smem:[#allocation2 + $0xc5]]
    %s1733 = sld [smem:[#allocation2 + $0xc6]]
    %s1734 = sld [smem:[#allocation2 + $0xc7]]
    %s1735 = sld [smem:[#allocation2 + $0xc8]]
    %s1736 = sld [smem:[#allocation2 + $0xc9]]
    %s1737 = sld [smem:[#allocation2 + $0xca]]
    %s1738 = sld [smem:[#allocation2 + $0xcb]]
    %s1739 = sld [smem:[#allocation2 + $0xcc]]
    %s1740 = sld [smem:[#allocation2 + $0xcd]]
    %s1741 = sld [smem:[#allocation2 + $0xce]]
    %s1742 = sld [smem:[#allocation2 + $0xcf]]
    %v1743 = vstv %s1727
    %v1744 = vmul.f32 %v1743, %v1725
    %v1745 = vmul.f32 %v1743, %v1726
    %v1746 = vadd.f32 %v1527, %v1744
    %v1747 = vadd.f32 %v1528, %v1745
    %v1748 = vstv %s1728
    %v1749 = vmul.f32 %v1748, %v1725
    %v1750 = vmul.f32 %v1748, %v1726
    %v1751 = vadd.f32 %v1540, %v1749
    %v1752 = vadd.f32 %v1541, %v1750
    %v1753 = vstv %s1729
    %v1754 = vmul.f32 %v1753, %v1725
    %v1755 = vmul.f32 %v1753, %v1726
    %v1756 = vadd.f32 %v1553, %v1754
    %v1757 = vadd.f32 %v1554, %v1755
    %v1758 = vstv %s1730
    %v1759 = vmul.f32 %v1758, %v1725
    %v1760 = vmul.f32 %v1758, %v1726
    %v1761 = vadd.f32 %v1566, %v1759
    %v1762 = vadd.f32 %v1567, %v1760
    %v1763 = vstv %s1731
    %v1764 = vmul.f32 %v1763, %v1725
    %v1765 = vmul.f32 %v1763, %v1726
    %v1766 = vadd.f32 %v1579, %v1764
    %v1767 = vadd.f32 %v1580, %v1765
    %v1768 = vstv %s1732
    %v1769 = vmul.f32 %v1768, %v1725
    %v1770 = vmul.f32 %v1768, %v1726
    %v1771 = vadd.f32 %v1592, %v1769
    %v1772 = vadd.f32 %v1593, %v1770
    %v1773 = vstv %s1733
    %v1774 = vmul.f32 %v1773, %v1725
    %v1775 = vmul.f32 %v1773, %v1726
    %v1776 = vadd.f32 %v1605, %v1774
    %v1777 = vadd.f32 %v1606, %v1775
    %v1778 = vstv %s1734
    %v1779 = vmul.f32 %v1778, %v1725
    %v1780 = vmul.f32 %v1778, %v1726
    %v1781 = vadd.f32 %v1618, %v1779
    %v1782 = vadd.f32 %v1619, %v1780
    %v1783 = vstv %s1735
    %v1784 = vmul.f32 %v1783, %v1725
    %v1785 = vmul.f32 %v1783, %v1726
    %v1786 = vadd.f32 %v1631, %v1784
    %v1787 = vadd.f32 %v1632, %v1785
    %v1788 = vstv %s1736
    %v1789 = vmul.f32 %v1788, %v1725
    %v1790 = vmul.f32 %v1788, %v1726
    %v1791 = vadd.f32 %v1644, %v1789
    %v1792 = vadd.f32 %v1645, %v1790
    %v1793 = vstv %s1737
    %v1794 = vmul.f32 %v1793, %v1725
    %v1795 = vmul.f32 %v1793, %v1726
    %v1796 = vadd.f32 %v1657, %v1794
    %v1797 = vadd.f32 %v1658, %v1795
    %v1798 = vstv %s1738
    %v1799 = vmul.f32 %v1798, %v1725
    %v1800 = vmul.f32 %v1798, %v1726
    %v1801 = vadd.f32 %v1670, %v1799
    %v1802 = vadd.f32 %v1671, %v1800
    %v1803 = vstv %s1739
    %v1804 = vmul.f32 %v1803, %v1725
    %v1805 = vmul.f32 %v1803, %v1726
    %v1806 = vadd.f32 %v1683, %v1804
    %v1807 = vadd.f32 %v1684, %v1805
    %v1808 = vstv %s1740
    %v1809 = vmul.f32 %v1808, %v1725
    %v1810 = vmul.f32 %v1808, %v1726
    %v1811 = vadd.f32 %v1696, %v1809
    %v1812 = vadd.f32 %v1697, %v1810
    %v1813 = vstv %s1741
    %v1814 = vmul.f32 %v1813, %v1725
    %v1815 = vmul.f32 %v1813, %v1726
    %v1816 = vadd.f32 %v1709, %v1814
    %v1817 = vadd.f32 %v1710, %v1815
    %v1818 = vstv %s1742
    %v1819 = vmul.f32 %v1818, %v1725
    %v1820 = vmul.f32 %v1818, %v1726
    %v1821 = vadd.f32 %v1722, %v1819
    %v1822 = vadd.f32 %v1723, %v1820
    %s1823 = scalar_lea.vmem %s0, 112
    %v1824 = vld [vmem:[%s1823] sm:$0xff]
    %v1825 = vld [vmem:[%s1823 + $0x8] sm:$0x3f]
    %s1826 = sld [smem:[#allocation2 + $0xd0]]
    %s1827 = sld [smem:[#allocation2 + $0xd1]]
    %s1828 = sld [smem:[#allocation2 + $0xd2]]
    %s1829 = sld [smem:[#allocation2 + $0xd3]]
    %s1830 = sld [smem:[#allocation2 + $0xd4]]
    %s1831 = sld [smem:[#allocation2 + $0xd5]]
    %s1832 = sld [smem:[#allocation2 + $0xd6]]
    %s1833 = sld [smem:[#allocation2 + $0xd7]]
    %s1834 = sld [smem:[#allocation2 + $0xd8]]
    %s1835 = sld [smem:[#allocation2 + $0xd9]]
    %s1836 = sld [smem:[#allocation2 + $0xda]]
    %s1837 = sld [smem:[#allocation2 + $0xdb]]
    %s1838 = sld [smem:[#allocation2 + $0xdc]]
    %s1839 = sld [smem:[#allocation2 + $0xdd]]
    %s1840 = sld [smem:[#allocation2 + $0xde]]
    %s1841 = sld [smem:[#allocation2 + $0xdf]]
    %v1842 = vstv %s1826
    %v1843 = vmul.f32 %v1842, %v1824
    %v1844 = vmul.f32 %v1842, %v1825
    %v1845 = vadd.f32 %v1746, %v1843
    %v1846 = vadd.f32 %v1747, %v1844
    %v1847 = vstv %s1827
    %v1848 = vmul.f32 %v1847, %v1824
    %v1849 = vmul.f32 %v1847, %v1825
    %v1850 = vadd.f32 %v1751, %v1848
    %v1851 = vadd.f32 %v1752, %v1849
    %v1852 = vstv %s1828
    %v1853 = vmul.f32 %v1852, %v1824
    %v1854 = vmul.f32 %v1852, %v1825
    %v1855 = vadd.f32 %v1756, %v1853
    %v1856 = vadd.f32 %v1757, %v1854
    %v1857 = vstv %s1829
    %v1858 = vmul.f32 %v1857, %v1824
    %v1859 = vmul.f32 %v1857, %v1825
    %v1860 = vadd.f32 %v1761, %v1858
    %v1861 = vadd.f32 %v1762, %v1859
    %v1862 = vstv %s1830
    %v1863 = vmul.f32 %v1862, %v1824
    %v1864 = vmul.f32 %v1862, %v1825
    %v1865 = vadd.f32 %v1766, %v1863
    %v1866 = vadd.f32 %v1767, %v1864
    %v1867 = vstv %s1831
    %v1868 = vmul.f32 %v1867, %v1824
    %v1869 = vmul.f32 %v1867, %v1825
    %v1870 = vadd.f32 %v1771, %v1868
    %v1871 = vadd.f32 %v1772, %v1869
    %v1872 = vstv %s1832
    %v1873 = vmul.f32 %v1872, %v1824
    %v1874 = vmul.f32 %v1872, %v1825
    %v1875 = vadd.f32 %v1776, %v1873
    %v1876 = vadd.f32 %v1777, %v1874
    %v1877 = vstv %s1833
    %v1878 = vmul.f32 %v1877, %v1824
    %v1879 = vmul.f32 %v1877, %v1825
    %v1880 = vadd.f32 %v1781, %v1878
    %v1881 = vadd.f32 %v1782, %v1879
    %v1882 = vstv %s1834
    %v1883 = vmul.f32 %v1882, %v1824
    %v1884 = vmul.f32 %v1882, %v1825
    %v1885 = vadd.f32 %v1786, %v1883
    %v1886 = vadd.f32 %v1787, %v1884
    %v1887 = vstv %s1835
    %v1888 = vmul.f32 %v1887, %v1824
    %v1889 = vmul.f32 %v1887, %v1825
    %v1890 = vadd.f32 %v1791, %v1888
    %v1891 = vadd.f32 %v1792, %v1889
    %v1892 = vstv %s1836
    %v1893 = vmul.f32 %v1892, %v1824
    %v1894 = vmul.f32 %v1892, %v1825
    %v1895 = vadd.f32 %v1796, %v1893
    %v1896 = vadd.f32 %v1797, %v1894
    %v1897 = vstv %s1837
    %v1898 = vmul.f32 %v1897, %v1824
    %v1899 = vmul.f32 %v1897, %v1825
    %v1900 = vadd.f32 %v1801, %v1898
    %v1901 = vadd.f32 %v1802, %v1899
    %v1902 = vstv %s1838
    %v1903 = vmul.f32 %v1902, %v1824
    %v1904 = vmul.f32 %v1902, %v1825
    %v1905 = vadd.f32 %v1806, %v1903
    %v1906 = vadd.f32 %v1807, %v1904
    %v1907 = vstv %s1839
    %v1908 = vmul.f32 %v1907, %v1824
    %v1909 = vmul.f32 %v1907, %v1825
    %v1910 = vadd.f32 %v1811, %v1908
    %v1911 = vadd.f32 %v1812, %v1909
    %v1912 = vstv %s1840
    %v1913 = vmul.f32 %v1912, %v1824
    %v1914 = vmul.f32 %v1912, %v1825
    %v1915 = vadd.f32 %v1816, %v1913
    %v1916 = vadd.f32 %v1817, %v1914
    %v1917 = vstv %s1841
    %v1918 = vmul.f32 %v1917, %v1824
    %v1919 = vmul.f32 %v1917, %v1825
    %v1920 = vadd.f32 %v1821, %v1918
    %v1921 = vadd.f32 %v1822, %v1919
    %s1922 = sld [smem:[#allocation2 + $0xe0]]
    %s1923 = sld [smem:[#allocation2 + $0xe1]]
    %s1924 = sld [smem:[#allocation2 + $0xe2]]
    %s1925 = sld [smem:[#allocation2 + $0xe3]]
    %s1926 = sld [smem:[#allocation2 + $0xe4]]
    %s1927 = sld [smem:[#allocation2 + $0xe5]]
    %s1928 = sld [smem:[#allocation2 + $0xe6]]
    %s1929 = sld [smem:[#allocation2 + $0xe7]]
    %s1930 = sld [smem:[#allocation2 + $0xe8]]
    %s1931 = sld [smem:[#allocation2 + $0xe9]]
    %s1932 = sld [smem:[#allocation2 + $0xea]]
    %s1933 = sld [smem:[#allocation2 + $0xeb]]
    %s1934 = sld [smem:[#allocation2 + $0xec]]
    %s1935 = sld [smem:[#allocation2 + $0xed]]
    %s1936 = sld [smem:[#allocation2 + $0xee]]
    %s1937 = sld [smem:[#allocation2 + $0xef]]
    %v1938 = vstv %s1922
    %v1939 = vmul.f32 %v1938, %v1725
    %v1940 = vmul.f32 %v1938, %v1726
    %1943 = vrot.lane.b32.xlu0 %v1939, 127
    %v1944 = vpop.permute.xlu0 %1943
    %1945 = vrot.lane.b32.xlu0 %v1940, 127
    %v1946 = vpop.permute.xlu0 %1945
    %v1949 = vadd.f32 %v1845, %v1944
    %v1950 = vadd.f32 %v1846, %v1946
    %v1951 = vstv %s1923
    %v1952 = vmul.f32 %v1951, %v1725
    %v1953 = vmul.f32 %v1951, %v1726
    %1956 = vrot.lane.b32.xlu0 %v1952, 127
    %v1957 = vpop.permute.xlu0 %1956
    %1958 = vrot.lane.b32.xlu0 %v1953, 127
    %v1959 = vpop.permute.xlu0 %1958
    %v1962 = vadd.f32 %v1850, %v1957
    %v1963 = vadd.f32 %v1851, %v1959
    %v1964 = vstv %s1924
    %v1965 = vmul.f32 %v1964, %v1725
    %v1966 = vmul.f32 %v1964, %v1726
    %1969 = vrot.lane.b32.xlu0 %v1965, 127
    %v1970 = vpop.permute.xlu0 %1969
    %1971 = vrot.lane.b32.xlu0 %v1966, 127
    %v1972 = vpop.permute.xlu0 %1971
    %v1975 = vadd.f32 %v1855, %v1970
    %v1976 = vadd.f32 %v1856, %v1972
    %v1977 = vstv %s1925
    %v1978 = vmul.f32 %v1977, %v1725
    %v1979 = vmul.f32 %v1977, %v1726
    %1982 = vrot.lane.b32.xlu0 %v1978, 127
    %v1983 = vpop.permute.xlu0 %1982
    %1984 = vrot.lane.b32.xlu0 %v1979, 127
    %v1985 = vpop.permute.xlu0 %1984
    %v1988 = vadd.f32 %v1860, %v1983
    %v1989 = vadd.f32 %v1861, %v1985
    %v1990 = vstv %s1926
    %v1991 = vmul.f32 %v1990, %v1725
    %v1992 = vmul.f32 %v1990, %v1726
    %1995 = vrot.lane.b32.xlu0 %v1991, 127
    %v1996 = vpop.permute.xlu0 %1995
    %1997 = vrot.lane.b32.xlu0 %v1992, 127
    %v1998 = vpop.permute.xlu0 %1997
    %v2001 = vadd.f32 %v1865, %v1996
    %v2002 = vadd.f32 %v1866, %v1998
    %v2003 = vstv %s1927
    %v2004 = vmul.f32 %v2003, %v1725
    %v2005 = vmul.f32 %v2003, %v1726
    %2008 = vrot.lane.b32.xlu0 %v2004, 127
    %v2009 = vpop.permute.xlu0 %2008
    %2010 = vrot.lane.b32.xlu0 %v2005, 127
    %v2011 = vpop.permute.xlu0 %2010
    %v2014 = vadd.f32 %v1870, %v2009
    %v2015 = vadd.f32 %v1871, %v2011
    %v2016 = vstv %s1928
    %v2017 = vmul.f32 %v2016, %v1725
    %v2018 = vmul.f32 %v2016, %v1726
    %2021 = vrot.lane.b32.xlu0 %v2017, 127
    %v2022 = vpop.permute.xlu0 %2021
    %2023 = vrot.lane.b32.xlu0 %v2018, 127
    %v2024 = vpop.permute.xlu0 %2023
    %v2027 = vadd.f32 %v1875, %v2022
    %v2028 = vadd.f32 %v1876, %v2024
    %v2029 = vstv %s1929
    %v2030 = vmul.f32 %v2029, %v1725
    %v2031 = vmul.f32 %v2029, %v1726
    %2034 = vrot.lane.b32.xlu0 %v2030, 127
    %v2035 = vpop.permute.xlu0 %2034
    %2036 = vrot.lane.b32.xlu0 %v2031, 127
    %v2037 = vpop.permute.xlu0 %2036
    %v2040 = vadd.f32 %v1880, %v2035
    %v2041 = vadd.f32 %v1881, %v2037
    %v2042 = vstv %s1930
    %v2043 = vmul.f32 %v2042, %v1725
    %v2044 = vmul.f32 %v2042, %v1726
    %2047 = vrot.lane.b32.xlu0 %v2043, 127
    %v2048 = vpop.permute.xlu0 %2047
    %2049 = vrot.lane.b32.xlu0 %v2044, 127
    %v2050 = vpop.permute.xlu0 %2049
    %v2053 = vadd.f32 %v1885, %v2048
    %v2054 = vadd.f32 %v1886, %v2050
    %v2055 = vstv %s1931
    %v2056 = vmul.f32 %v2055, %v1725
    %v2057 = vmul.f32 %v2055, %v1726
    %2060 = vrot.lane.b32.xlu0 %v2056, 127
    %v2061 = vpop.permute.xlu0 %2060
    %2062 = vrot.lane.b32.xlu0 %v2057, 127
    %v2063 = vpop.permute.xlu0 %2062
    %v2066 = vadd.f32 %v1890, %v2061
    %v2067 = vadd.f32 %v1891, %v2063
    %v2068 = vstv %s1932
    %v2069 = vmul.f32 %v2068, %v1725
    %v2070 = vmul.f32 %v2068, %v1726
    %2073 = vrot.lane.b32.xlu0 %v2069, 127
    %v2074 = vpop.permute.xlu0 %2073
    %2075 = vrot.lane.b32.xlu0 %v2070, 127
    %v2076 = vpop.permute.xlu0 %2075
    %v2079 = vadd.f32 %v1895, %v2074
    %v2080 = vadd.f32 %v1896, %v2076
    %v2081 = vstv %s1933
    %v2082 = vmul.f32 %v2081, %v1725
    %v2083 = vmul.f32 %v2081, %v1726
    %2086 = vrot.lane.b32.xlu0 %v2082, 127
    %v2087 = vpop.permute.xlu0 %2086
    %2088 = vrot.lane.b32.xlu0 %v2083, 127
    %v2089 = vpop.permute.xlu0 %2088
    %v2092 = vadd.f32 %v1900, %v2087
    %v2093 = vadd.f32 %v1901, %v2089
    %v2094 = vstv %s1934
    %v2095 = vmul.f32 %v2094, %v1725
    %v2096 = vmul.f32 %v2094, %v1726
    %2099 = vrot.lane.b32.xlu0 %v2095, 127
    %v2100 = vpop.permute.xlu0 %2099
    %2101 = vrot.lane.b32.xlu0 %v2096, 127
    %v2102 = vpop.permute.xlu0 %2101
    %v2105 = vadd.f32 %v1905, %v2100
    %v2106 = vadd.f32 %v1906, %v2102
    %v2107 = vstv %s1935
    %v2108 = vmul.f32 %v2107, %v1725
    %v2109 = vmul.f32 %v2107, %v1726
    %2112 = vrot.lane.b32.xlu0 %v2108, 127
    %v2113 = vpop.permute.xlu0 %2112
    %2114 = vrot.lane.b32.xlu0 %v2109, 127
    %v2115 = vpop.permute.xlu0 %2114
    %v2118 = vadd.f32 %v1910, %v2113
    %v2119 = vadd.f32 %v1911, %v2115
    %v2120 = vstv %s1936
    %v2121 = vmul.f32 %v2120, %v1725
    %v2122 = vmul.f32 %v2120, %v1726
    %2125 = vrot.lane.b32.xlu0 %v2121, 127
    %v2126 = vpop.permute.xlu0 %2125
    %2127 = vrot.lane.b32.xlu0 %v2122, 127
    %v2128 = vpop.permute.xlu0 %2127
    %v2131 = vadd.f32 %v1915, %v2126
    %v2132 = vadd.f32 %v1916, %v2128
    %v2133 = vstv %s1937
    %v2134 = vmul.f32 %v2133, %v1725
    %v2135 = vmul.f32 %v2133, %v1726
    %2138 = vrot.lane.b32.xlu0 %v2134, 127
    %v2139 = vpop.permute.xlu0 %2138
    %2140 = vrot.lane.b32.xlu0 %v2135, 127
    %v2141 = vpop.permute.xlu0 %2140
    %v2144 = vadd.f32 %v1920, %v2139
    %v2145 = vadd.f32 %v1921, %v2141
    %v2146 = vld [vmem:[%s1302 + $0x1] sm:$0xff]
    %v2147 = vld [vmem:[%s1302 + $0x9] sm:$0x3f]
    %s2148 = sld [smem:[#allocation2 + $0xf0]]
    %s2149 = sld [smem:[#allocation2 + $0xf1]]
    %s2150 = sld [smem:[#allocation2 + $0xf2]]
    %s2151 = sld [smem:[#allocation2 + $0xf3]]
    %s2152 = sld [smem:[#allocation2 + $0xf4]]
    %s2153 = sld [smem:[#allocation2 + $0xf5]]
    %s2154 = sld [smem:[#allocation2 + $0xf6]]
    %s2155 = sld [smem:[#allocation2 + $0xf7]]
    %s2156 = sld [smem:[#allocation2 + $0xf8]]
    %s2157 = sld [smem:[#allocation2 + $0xf9]]
    %s2158 = sld [smem:[#allocation2 + $0xfa]]
    %s2159 = sld [smem:[#allocation2 + $0xfb]]
    %s2160 = sld [smem:[#allocation2 + $0xfc]]
    %s2161 = sld [smem:[#allocation2 + $0xfd]]
    %s2162 = sld [smem:[#allocation2 + $0xfe]]
    %s2163 = sld [smem:[#allocation2 + $0xff]]
    %v2164 = vstv %s2148
    %v2165 = vmul.f32 %v2164, %v2146
    %v2166 = vmul.f32 %v2164, %v2147
    %v2167 = vadd.f32 %v1949, %v2165
    %v2168 = vadd.f32 %v1950, %v2166
    %v2169 = vstv %s2149
    %v2170 = vmul.f32 %v2169, %v2146
    %v2171 = vmul.f32 %v2169, %v2147
    %v2172 = vadd.f32 %v1962, %v2170
    %v2173 = vadd.f32 %v1963, %v2171
    %v2174 = vstv %s2150
    %v2175 = vmul.f32 %v2174, %v2146
    %v2176 = vmul.f32 %v2174, %v2147
    %v2177 = vadd.f32 %v1975, %v2175
    %v2178 = vadd.f32 %v1976, %v2176
    %v2179 = vstv %s2151
    %v2180 = vmul.f32 %v2179, %v2146
    %v2181 = vmul.f32 %v2179, %v2147
    %v2182 = vadd.f32 %v1988, %v2180
    %v2183 = vadd.f32 %v1989, %v2181
    %v2184 = vstv %s2152
    %v2185 = vmul.f32 %v2184, %v2146
    %v2186 = vmul.f32 %v2184, %v2147
    %v2187 = vadd.f32 %v2001, %v2185
    %v2188 = vadd.f32 %v2002, %v2186
    %v2189 = vstv %s2153
    %v2190 = vmul.f32 %v2189, %v2146
    %v2191 = vmul.f32 %v2189, %v2147
    %v2192 = vadd.f32 %v2014, %v2190
    %v2193 = vadd.f32 %v2015, %v2191
    %v2194 = vstv %s2154
    %v2195 = vmul.f32 %v2194, %v2146
    %v2196 = vmul.f32 %v2194, %v2147
    %v2197 = vadd.f32 %v2027, %v2195
    %v2198 = vadd.f32 %v2028, %v2196
    %v2199 = vstv %s2155
    %v2200 = vmul.f32 %v2199, %v2146
    %v2201 = vmul.f32 %v2199, %v2147
    %v2202 = vadd.f32 %v2040, %v2200
    %v2203 = vadd.f32 %v2041, %v2201
    %v2204 = vstv %s2156
    %v2205 = vmul.f32 %v2204, %v2146
    %v2206 = vmul.f32 %v2204, %v2147
    %v2207 = vadd.f32 %v2053, %v2205
    %v2208 = vadd.f32 %v2054, %v2206
    %v2209 = vstv %s2157
    %v2210 = vmul.f32 %v2209, %v2146
    %v2211 = vmul.f32 %v2209, %v2147
    %v2212 = vadd.f32 %v2066, %v2210
    %v2213 = vadd.f32 %v2067, %v2211
    %v2214 = vstv %s2158
    %v2215 = vmul.f32 %v2214, %v2146
    %v2216 = vmul.f32 %v2214, %v2147
    %v2217 = vadd.f32 %v2079, %v2215
    %v2218 = vadd.f32 %v2080, %v2216
    %v2219 = vstv %s2159
    %v2220 = vmul.f32 %v2219, %v2146
    %v2221 = vmul.f32 %v2219, %v2147
    %v2222 = vadd.f32 %v2092, %v2220
    %v2223 = vadd.f32 %v2093, %v2221
    %v2224 = vstv %s2160
    %v2225 = vmul.f32 %v2224, %v2146
    %v2226 = vmul.f32 %v2224, %v2147
    %v2227 = vadd.f32 %v2105, %v2225
    %v2228 = vadd.f32 %v2106, %v2226
    %v2229 = vstv %s2161
    %v2230 = vmul.f32 %v2229, %v2146
    %v2231 = vmul.f32 %v2229, %v2147
    %v2232 = vadd.f32 %v2118, %v2230
    %v2233 = vadd.f32 %v2119, %v2231
    %v2234 = vstv %s2162
    %v2235 = vmul.f32 %v2234, %v2146
    %v2236 = vmul.f32 %v2234, %v2147
    %v2237 = vadd.f32 %v2131, %v2235
    %v2238 = vadd.f32 %v2132, %v2236
    %v2239 = vstv %s2163
    %v2240 = vmul.f32 %v2239, %v2146
    %v2241 = vmul.f32 %v2239, %v2147
    %v2242 = vadd.f32 %v2144, %v2240
    %v2243 = vadd.f32 %v2145, %v2241
    %v2244 = vld [vmem:[%s1401 + $0x1] sm:$0xff]
    %v2245 = vld [vmem:[%s1401 + $0x9] sm:$0x3f]
    %s2246 = sld [smem:[#allocation2 + $0x100]]
    %s2247 = sld [smem:[#allocation2 + $0x101]]
    %s2248 = sld [smem:[#allocation2 + $0x102]]
    %s2249 = sld [smem:[#allocation2 + $0x103]]
    %s2250 = sld [smem:[#allocation2 + $0x104]]
    %s2251 = sld [smem:[#allocation2 + $0x105]]
    %s2252 = sld [smem:[#allocation2 + $0x106]]
    %s2253 = sld [smem:[#allocation2 + $0x107]]
    %s2254 = sld [smem:[#allocation2 + $0x108]]
    %s2255 = sld [smem:[#allocation2 + $0x109]]
    %s2256 = sld [smem:[#allocation2 + $0x10a]]
    %s2257 = sld [smem:[#allocation2 + $0x10b]]
    %s2258 = sld [smem:[#allocation2 + $0x10c]]
    %s2259 = sld [smem:[#allocation2 + $0x10d]]
    %s2260 = sld [smem:[#allocation2 + $0x10e]]
    %s2261 = sld [smem:[#allocation2 + $0x10f]]
    %v2262 = vstv %s2246
    %v2263 = vmul.f32 %v2262, %v2244
    %v2264 = vmul.f32 %v2262, %v2245
    %v2265 = vadd.f32 %v2167, %v2263
    %v2266 = vadd.f32 %v2168, %v2264
    %v2267 = vstv %s2247
    %v2268 = vmul.f32 %v2267, %v2244
    %v2269 = vmul.f32 %v2267, %v2245
    %v2270 = vadd.f32 %v2172, %v2268
    %v2271 = vadd.f32 %v2173, %v2269
    %v2272 = vstv %s2248
    %v2273 = vmul.f32 %v2272, %v2244
    %v2274 = vmul.f32 %v2272, %v2245
    %v2275 = vadd.f32 %v2177, %v2273
    %v2276 = vadd.f32 %v2178, %v2274
    %v2277 = vstv %s2249
    %v2278 = vmul.f32 %v2277, %v2244
    %v2279 = vmul.f32 %v2277, %v2245
    %v2280 = vadd.f32 %v2182, %v2278
    %v2281 = vadd.f32 %v2183, %v2279
    %v2282 = vstv %s2250
    %v2283 = vmul.f32 %v2282, %v2244
    %v2284 = vmul.f32 %v2282, %v2245
    %v2285 = vadd.f32 %v2187, %v2283
    %v2286 = vadd.f32 %v2188, %v2284
    %v2287 = vstv %s2251
    %v2288 = vmul.f32 %v2287, %v2244
    %v2289 = vmul.f32 %v2287, %v2245
    %v2290 = vadd.f32 %v2192, %v2288
    %v2291 = vadd.f32 %v2193, %v2289
    %v2292 = vstv %s2252
    %v2293 = vmul.f32 %v2292, %v2244
    %v2294 = vmul.f32 %v2292, %v2245
    %v2295 = vadd.f32 %v2197, %v2293
    %v2296 = vadd.f32 %v2198, %v2294
    %v2297 = vstv %s2253
    %v2298 = vmul.f32 %v2297, %v2244
    %v2299 = vmul.f32 %v2297, %v2245
    %v2300 = vadd.f32 %v2202, %v2298
    %v2301 = vadd.f32 %v2203, %v2299
    %v2302 = vstv %s2254
    %v2303 = vmul.f32 %v2302, %v2244
    %v2304 = vmul.f32 %v2302, %v2245
    %v2305 = vadd.f32 %v2207, %v2303
    %v2306 = vadd.f32 %v2208, %v2304
    %v2307 = vstv %s2255
    %v2308 = vmul.f32 %v2307, %v2244
    %v2309 = vmul.f32 %v2307, %v2245
    %v2310 = vadd.f32 %v2212, %v2308
    %v2311 = vadd.f32 %v2213, %v2309
    %v2312 = vstv %s2256
    %v2313 = vmul.f32 %v2312, %v2244
    %v2314 = vmul.f32 %v2312, %v2245
    %v2315 = vadd.f32 %v2217, %v2313
    %v2316 = vadd.f32 %v2218, %v2314
    %v2317 = vstv %s2257
    %v2318 = vmul.f32 %v2317, %v2244
    %v2319 = vmul.f32 %v2317, %v2245
    %v2320 = vadd.f32 %v2222, %v2318
    %v2321 = vadd.f32 %v2223, %v2319
    %v2322 = vstv %s2258
    %v2323 = vmul.f32 %v2322, %v2244
    %v2324 = vmul.f32 %v2322, %v2245
    %v2325 = vadd.f32 %v2227, %v2323
    %v2326 = vadd.f32 %v2228, %v2324
    %v2327 = vstv %s2259
    %v2328 = vmul.f32 %v2327, %v2244
    %v2329 = vmul.f32 %v2327, %v2245
    %v2330 = vadd.f32 %v2232, %v2328
    %v2331 = vadd.f32 %v2233, %v2329
    %v2332 = vstv %s2260
    %v2333 = vmul.f32 %v2332, %v2244
    %v2334 = vmul.f32 %v2332, %v2245
    %v2335 = vadd.f32 %v2237, %v2333
    %v2336 = vadd.f32 %v2238, %v2334
    %v2337 = vstv %s2261
    %v2338 = vmul.f32 %v2337, %v2244
    %v2339 = vmul.f32 %v2337, %v2245
    %v2340 = vadd.f32 %v2242, %v2338
    %v2341 = vadd.f32 %v2243, %v2339
    %s2342 = sld [smem:[#allocation2 + $0x110]]
    %s2343 = sld [smem:[#allocation2 + $0x111]]
    %s2344 = sld [smem:[#allocation2 + $0x112]]
    %s2345 = sld [smem:[#allocation2 + $0x113]]
    %s2346 = sld [smem:[#allocation2 + $0x114]]
    %s2347 = sld [smem:[#allocation2 + $0x115]]
    %s2348 = sld [smem:[#allocation2 + $0x116]]
    %s2349 = sld [smem:[#allocation2 + $0x117]]
    %s2350 = sld [smem:[#allocation2 + $0x118]]
    %s2351 = sld [smem:[#allocation2 + $0x119]]
    %s2352 = sld [smem:[#allocation2 + $0x11a]]
    %s2353 = sld [smem:[#allocation2 + $0x11b]]
    %s2354 = sld [smem:[#allocation2 + $0x11c]]
    %s2355 = sld [smem:[#allocation2 + $0x11d]]
    %s2356 = sld [smem:[#allocation2 + $0x11e]]
    %s2357 = sld [smem:[#allocation2 + $0x11f]]
    %v2358 = vstv %s2342
    %v2359 = vmul.f32 %v2358, %v2146
    %v2360 = vmul.f32 %v2358, %v2147
    %2363 = vrot.lane.b32.xlu0 %v2359, 127
    %v2364 = vpop.permute.xlu0 %2363
    %2365 = vrot.lane.b32.xlu0 %v2360, 127
    %v2366 = vpop.permute.xlu0 %2365
    %v2369 = vadd.f32 %v2265, %v2364
    %v2370 = vadd.f32 %v2266, %v2366
    %v2371 = vstv %s2343
    %v2372 = vmul.f32 %v2371, %v2146
    %v2373 = vmul.f32 %v2371, %v2147
    %2376 = vrot.lane.b32.xlu0 %v2372, 127
    %v2377 = vpop.permute.xlu0 %2376
    %2378 = vrot.lane.b32.xlu0 %v2373, 127
    %v2379 = vpop.permute.xlu0 %2378
    %v2382 = vadd.f32 %v2270, %v2377
    %v2383 = vadd.f32 %v2271, %v2379
    %v2384 = vstv %s2344
    %v2385 = vmul.f32 %v2384, %v2146
    %v2386 = vmul.f32 %v2384, %v2147
    %2389 = vrot.lane.b32.xlu0 %v2385, 127
    %v2390 = vpop.permute.xlu0 %2389
    %2391 = vrot.lane.b32.xlu0 %v2386, 127
    %v2392 = vpop.permute.xlu0 %2391
    %v2395 = vadd.f32 %v2275, %v2390
    %v2396 = vadd.f32 %v2276, %v2392
    %v2397 = vstv %s2345
    %v2398 = vmul.f32 %v2397, %v2146
    %v2399 = vmul.f32 %v2397, %v2147
    %2402 = vrot.lane.b32.xlu0 %v2398, 127
    %v2403 = vpop.permute.xlu0 %2402
    %2404 = vrot.lane.b32.xlu0 %v2399, 127
    %v2405 = vpop.permute.xlu0 %2404
    %v2408 = vadd.f32 %v2280, %v2403
    %v2409 = vadd.f32 %v2281, %v2405
    %v2410 = vstv %s2346
    %v2411 = vmul.f32 %v2410, %v2146
    %v2412 = vmul.f32 %v2410, %v2147
    %2415 = vrot.lane.b32.xlu0 %v2411, 127
    %v2416 = vpop.permute.xlu0 %2415
    %2417 = vrot.lane.b32.xlu0 %v2412, 127
    %v2418 = vpop.permute.xlu0 %2417
    %v2421 = vadd.f32 %v2285, %v2416
    %v2422 = vadd.f32 %v2286, %v2418
    %v2423 = vstv %s2347
    %v2424 = vmul.f32 %v2423, %v2146
    %v2425 = vmul.f32 %v2423, %v2147
    %2428 = vrot.lane.b32.xlu0 %v2424, 127
    %v2429 = vpop.permute.xlu0 %2428
    %2430 = vrot.lane.b32.xlu0 %v2425, 127
    %v2431 = vpop.permute.xlu0 %2430
    %v2434 = vadd.f32 %v2290, %v2429
    %v2435 = vadd.f32 %v2291, %v2431
    %v2436 = vstv %s2348
    %v2437 = vmul.f32 %v2436, %v2146
    %v2438 = vmul.f32 %v2436, %v2147
    %2441 = vrot.lane.b32.xlu0 %v2437, 127
    %v2442 = vpop.permute.xlu0 %2441
    %2443 = vrot.lane.b32.xlu0 %v2438, 127
    %v2444 = vpop.permute.xlu0 %2443
    %v2447 = vadd.f32 %v2295, %v2442
    %v2448 = vadd.f32 %v2296, %v2444
    %v2449 = vstv %s2349
    %v2450 = vmul.f32 %v2449, %v2146
    %v2451 = vmul.f32 %v2449, %v2147
    %2454 = vrot.lane.b32.xlu0 %v2450, 127
    %v2455 = vpop.permute.xlu0 %2454
    %2456 = vrot.lane.b32.xlu0 %v2451, 127
    %v2457 = vpop.permute.xlu0 %2456
    %v2460 = vadd.f32 %v2300, %v2455
    %v2461 = vadd.f32 %v2301, %v2457
    %v2462 = vstv %s2350
    %v2463 = vmul.f32 %v2462, %v2146
    %v2464 = vmul.f32 %v2462, %v2147
    %2467 = vrot.lane.b32.xlu0 %v2463, 127
    %v2468 = vpop.permute.xlu0 %2467
    %2469 = vrot.lane.b32.xlu0 %v2464, 127
    %v2470 = vpop.permute.xlu0 %2469
    %v2473 = vadd.f32 %v2305, %v2468
    %v2474 = vadd.f32 %v2306, %v2470
    %v2475 = vstv %s2351
    %v2476 = vmul.f32 %v2475, %v2146
    %v2477 = vmul.f32 %v2475, %v2147
    %2480 = vrot.lane.b32.xlu0 %v2476, 127
    %v2481 = vpop.permute.xlu0 %2480
    %2482 = vrot.lane.b32.xlu0 %v2477, 127
    %v2483 = vpop.permute.xlu0 %2482
    %v2486 = vadd.f32 %v2310, %v2481
    %v2487 = vadd.f32 %v2311, %v2483
    %v2488 = vstv %s2352
    %v2489 = vmul.f32 %v2488, %v2146
    %v2490 = vmul.f32 %v2488, %v2147
    %2493 = vrot.lane.b32.xlu0 %v2489, 127
    %v2494 = vpop.permute.xlu0 %2493
    %2495 = vrot.lane.b32.xlu0 %v2490, 127
    %v2496 = vpop.permute.xlu0 %2495
    %v2499 = vadd.f32 %v2315, %v2494
    %v2500 = vadd.f32 %v2316, %v2496
    %v2501 = vstv %s2353
    %v2502 = vmul.f32 %v2501, %v2146
    %v2503 = vmul.f32 %v2501, %v2147
    %2506 = vrot.lane.b32.xlu0 %v2502, 127
    %v2507 = vpop.permute.xlu0 %2506
    %2508 = vrot.lane.b32.xlu0 %v2503, 127
    %v2509 = vpop.permute.xlu0 %2508
    %v2512 = vadd.f32 %v2320, %v2507
    %v2513 = vadd.f32 %v2321, %v2509
    %v2514 = vstv %s2354
    %v2515 = vmul.f32 %v2514, %v2146
    %v2516 = vmul.f32 %v2514, %v2147
    %2519 = vrot.lane.b32.xlu0 %v2515, 127
    %v2520 = vpop.permute.xlu0 %2519
    %2521 = vrot.lane.b32.xlu0 %v2516, 127
    %v2522 = vpop.permute.xlu0 %2521
    %v2525 = vadd.f32 %v2325, %v2520
    %v2526 = vadd.f32 %v2326, %v2522
    %v2527 = vstv %s2355
    %v2528 = vmul.f32 %v2527, %v2146
    %v2529 = vmul.f32 %v2527, %v2147
    %2532 = vrot.lane.b32.xlu0 %v2528, 127
    %v2533 = vpop.permute.xlu0 %2532
    %2534 = vrot.lane.b32.xlu0 %v2529, 127
    %v2535 = vpop.permute.xlu0 %2534
    %v2538 = vadd.f32 %v2330, %v2533
    %v2539 = vadd.f32 %v2331, %v2535
    %v2540 = vstv %s2356
    %v2541 = vmul.f32 %v2540, %v2146
    %v2542 = vmul.f32 %v2540, %v2147
    %2545 = vrot.lane.b32.xlu0 %v2541, 127
    %v2546 = vpop.permute.xlu0 %2545
    %2547 = vrot.lane.b32.xlu0 %v2542, 127
    %v2548 = vpop.permute.xlu0 %2547
    %v2551 = vadd.f32 %v2335, %v2546
    %v2552 = vadd.f32 %v2336, %v2548
    %v2553 = vstv %s2357
    %v2554 = vmul.f32 %v2553, %v2146
    %v2555 = vmul.f32 %v2553, %v2147
    %2558 = vrot.lane.b32.xlu0 %v2554, 127
    %v2559 = vpop.permute.xlu0 %2558
    %2560 = vrot.lane.b32.xlu0 %v2555, 127
    %v2561 = vpop.permute.xlu0 %2560
    %v2564 = vadd.f32 %v2340, %v2559
    %v2565 = vadd.f32 %v2341, %v2561
    %s2566 = scalar_lea.vmem %s0, 128
    %v2567 = vld [vmem:[%s2566] sm:$0xff]
    %v2568 = vld [vmem:[%s2566 + $0x8] sm:$0x3f]
    %s2569 = sld [smem:[#allocation2 + $0x120]]
    %s2570 = sld [smem:[#allocation2 + $0x121]]
    %s2571 = sld [smem:[#allocation2 + $0x122]]
    %s2572 = sld [smem:[#allocation2 + $0x123]]
    %s2573 = sld [smem:[#allocation2 + $0x124]]
    %s2574 = sld [smem:[#allocation2 + $0x125]]
    %s2575 = sld [smem:[#allocation2 + $0x126]]
    %s2576 = sld [smem:[#allocation2 + $0x127]]
    %s2577 = sld [smem:[#allocation2 + $0x128]]
    %s2578 = sld [smem:[#allocation2 + $0x129]]
    %s2579 = sld [smem:[#allocation2 + $0x12a]]
    %s2580 = sld [smem:[#allocation2 + $0x12b]]
    %s2581 = sld [smem:[#allocation2 + $0x12c]]
    %s2582 = sld [smem:[#allocation2 + $0x12d]]
    %s2583 = sld [smem:[#allocation2 + $0x12e]]
    %s2584 = sld [smem:[#allocation2 + $0x12f]]
    %v2585 = vstv %s2569
    %v2586 = vmul.f32 %v2585, %v2567
    %v2587 = vmul.f32 %v2585, %v2568
    %v2588 = vadd.f32 %v2369, %v2586
    %v2589 = vadd.f32 %v2370, %v2587
    %v2590 = vstv %s2570
    %v2591 = vmul.f32 %v2590, %v2567
    %v2592 = vmul.f32 %v2590, %v2568
    %v2593 = vadd.f32 %v2382, %v2591
    %v2594 = vadd.f32 %v2383, %v2592
    %v2595 = vstv %s2571
    %v2596 = vmul.f32 %v2595, %v2567
    %v2597 = vmul.f32 %v2595, %v2568
    %v2598 = vadd.f32 %v2395, %v2596
    %v2599 = vadd.f32 %v2396, %v2597
    %v2600 = vstv %s2572
    %v2601 = vmul.f32 %v2600, %v2567
    %v2602 = vmul.f32 %v2600, %v2568
    %v2603 = vadd.f32 %v2408, %v2601
    %v2604 = vadd.f32 %v2409, %v2602
    %v2605 = vstv %s2573
    %v2606 = vmul.f32 %v2605, %v2567
    %v2607 = vmul.f32 %v2605, %v2568
    %v2608 = vadd.f32 %v2421, %v2606
    %v2609 = vadd.f32 %v2422, %v2607
    %v2610 = vstv %s2574
    %v2611 = vmul.f32 %v2610, %v2567
    %v2612 = vmul.f32 %v2610, %v2568
    %v2613 = vadd.f32 %v2434, %v2611
    %v2614 = vadd.f32 %v2435, %v2612
    %v2615 = vstv %s2575
    %v2616 = vmul.f32 %v2615, %v2567
    %v2617 = vmul.f32 %v2615, %v2568
    %v2618 = vadd.f32 %v2447, %v2616
    %v2619 = vadd.f32 %v2448, %v2617
    %v2620 = vstv %s2576
    %v2621 = vmul.f32 %v2620, %v2567
    %v2622 = vmul.f32 %v2620, %v2568
    %v2623 = vadd.f32 %v2460, %v2621
    %v2624 = vadd.f32 %v2461, %v2622
    %v2625 = vstv %s2577
    %v2626 = vmul.f32 %v2625, %v2567
    %v2627 = vmul.f32 %v2625, %v2568
    %v2628 = vadd.f32 %v2473, %v2626
    %v2629 = vadd.f32 %v2474, %v2627
    %v2630 = vstv %s2578
    %v2631 = vmul.f32 %v2630, %v2567
    %v2632 = vmul.f32 %v2630, %v2568
    %v2633 = vadd.f32 %v2486, %v2631
    %v2634 = vadd.f32 %v2487, %v2632
    %v2635 = vstv %s2579
    %v2636 = vmul.f32 %v2635, %v2567
    %v2637 = vmul.f32 %v2635, %v2568
    %v2638 = vadd.f32 %v2499, %v2636
    %v2639 = vadd.f32 %v2500, %v2637
    %v2640 = vstv %s2580
    %v2641 = vmul.f32 %v2640, %v2567
    %v2642 = vmul.f32 %v2640, %v2568
    %v2643 = vadd.f32 %v2512, %v2641
    %v2644 = vadd.f32 %v2513, %v2642
    %v2645 = vstv %s2581
    %v2646 = vmul.f32 %v2645, %v2567
    %v2647 = vmul.f32 %v2645, %v2568
    %v2648 = vadd.f32 %v2525, %v2646
    %v2649 = vadd.f32 %v2526, %v2647
    %v2650 = vstv %s2582
    %v2651 = vmul.f32 %v2650, %v2567
    %v2652 = vmul.f32 %v2650, %v2568
    %v2653 = vadd.f32 %v2538, %v2651
    %v2654 = vadd.f32 %v2539, %v2652
    %v2655 = vstv %s2583
    %v2656 = vmul.f32 %v2655, %v2567
    %v2657 = vmul.f32 %v2655, %v2568
    %v2658 = vadd.f32 %v2551, %v2656
    %v2659 = vadd.f32 %v2552, %v2657
    %v2660 = vstv %s2584
    %v2661 = vmul.f32 %v2660, %v2567
    %v2662 = vmul.f32 %v2660, %v2568
    %v2663 = vadd.f32 %v2564, %v2661
    %v2664 = vadd.f32 %v2565, %v2662
    %s2665 = scalar_lea.vmem %s0, 144
    %v2666 = vld [vmem:[%s2665] sm:$0xff]
    %v2667 = vld [vmem:[%s2665 + $0x8] sm:$0x3f]
    %s2668 = sld [smem:[#allocation2 + $0x130]]
    %s2669 = sld [smem:[#allocation2 + $0x131]]
    %s2670 = sld [smem:[#allocation2 + $0x132]]
    %s2671 = sld [smem:[#allocation2 + $0x133]]
    %s2672 = sld [smem:[#allocation2 + $0x134]]
    %s2673 = sld [smem:[#allocation2 + $0x135]]
    %s2674 = sld [smem:[#allocation2 + $0x136]]
    %s2675 = sld [smem:[#allocation2 + $0x137]]
    %s2676 = sld [smem:[#allocation2 + $0x138]]
    %s2677 = sld [smem:[#allocation2 + $0x139]]
    %s2678 = sld [smem:[#allocation2 + $0x13a]]
    %s2679 = sld [smem:[#allocation2 + $0x13b]]
    %s2680 = sld [smem:[#allocation2 + $0x13c]]
    %s2681 = sld [smem:[#allocation2 + $0x13d]]
    %s2682 = sld [smem:[#allocation2 + $0x13e]]
    %s2683 = sld [smem:[#allocation2 + $0x13f]]
    %v2684 = vstv %s2668
    %v2685 = vmul.f32 %v2684, %v2666
    %v2686 = vmul.f32 %v2684, %v2667
    %v2687 = vadd.f32 %v2588, %v2685
    %v2688 = vadd.f32 %v2589, %v2686
    %v2689 = vstv %s2669
    %v2690 = vmul.f32 %v2689, %v2666
    %v2691 = vmul.f32 %v2689, %v2667
    %v2692 = vadd.f32 %v2593, %v2690
    %v2693 = vadd.f32 %v2594, %v2691
    %v2694 = vstv %s2670
    %v2695 = vmul.f32 %v2694, %v2666
    %v2696 = vmul.f32 %v2694, %v2667
    %v2697 = vadd.f32 %v2598, %v2695
    %v2698 = vadd.f32 %v2599, %v2696
    %v2699 = vstv %s2671
    %v2700 = vmul.f32 %v2699, %v2666
    %v2701 = vmul.f32 %v2699, %v2667
    %v2702 = vadd.f32 %v2603, %v2700
    %v2703 = vadd.f32 %v2604, %v2701
    %v2704 = vstv %s2672
    %v2705 = vmul.f32 %v2704, %v2666
    %v2706 = vmul.f32 %v2704, %v2667
    %v2707 = vadd.f32 %v2608, %v2705
    %v2708 = vadd.f32 %v2609, %v2706
    %v2709 = vstv %s2673
    %v2710 = vmul.f32 %v2709, %v2666
    %v2711 = vmul.f32 %v2709, %v2667
    %v2712 = vadd.f32 %v2613, %v2710
    %v2713 = vadd.f32 %v2614, %v2711
    %v2714 = vstv %s2674
    %v2715 = vmul.f32 %v2714, %v2666
    %v2716 = vmul.f32 %v2714, %v2667
    %v2717 = vadd.f32 %v2618, %v2715
    %v2718 = vadd.f32 %v2619, %v2716
    %v2719 = vstv %s2675
    %v2720 = vmul.f32 %v2719, %v2666
    %v2721 = vmul.f32 %v2719, %v2667
    %v2722 = vadd.f32 %v2623, %v2720
    %v2723 = vadd.f32 %v2624, %v2721
    %v2724 = vstv %s2676
    %v2725 = vmul.f32 %v2724, %v2666
    %v2726 = vmul.f32 %v2724, %v2667
    %v2727 = vadd.f32 %v2628, %v2725
    %v2728 = vadd.f32 %v2629, %v2726
    %v2729 = vstv %s2677
    %v2730 = vmul.f32 %v2729, %v2666
    %v2731 = vmul.f32 %v2729, %v2667
    %v2732 = vadd.f32 %v2633, %v2730
    %v2733 = vadd.f32 %v2634, %v2731
    %v2734 = vstv %s2678
    %v2735 = vmul.f32 %v2734, %v2666
    %v2736 = vmul.f32 %v2734, %v2667
    %v2737 = vadd.f32 %v2638, %v2735
    %v2738 = vadd.f32 %v2639, %v2736
    %v2739 = vstv %s2679
    %v2740 = vmul.f32 %v2739, %v2666
    %v2741 = vmul.f32 %v2739, %v2667
    %v2742 = vadd.f32 %v2643, %v2740
    %v2743 = vadd.f32 %v2644, %v2741
    %v2744 = vstv %s2680
    %v2745 = vmul.f32 %v2744, %v2666
    %v2746 = vmul.f32 %v2744, %v2667
    %v2747 = vadd.f32 %v2648, %v2745
    %v2748 = vadd.f32 %v2649, %v2746
    %v2749 = vstv %s2681
    %v2750 = vmul.f32 %v2749, %v2666
    %v2751 = vmul.f32 %v2749, %v2667
    %v2752 = vadd.f32 %v2653, %v2750
    %v2753 = vadd.f32 %v2654, %v2751
    %v2754 = vstv %s2682
    %v2755 = vmul.f32 %v2754, %v2666
    %v2756 = vmul.f32 %v2754, %v2667
    %v2757 = vadd.f32 %v2658, %v2755
    %v2758 = vadd.f32 %v2659, %v2756
    %v2759 = vstv %s2683
    %v2760 = vmul.f32 %v2759, %v2666
    %v2761 = vmul.f32 %v2759, %v2667
    %v2762 = vadd.f32 %v2663, %v2760
    %v2763 = vadd.f32 %v2664, %v2761
    %s2764 = sld [smem:[#allocation2 + $0x140]]
    %s2765 = sld [smem:[#allocation2 + $0x141]]
    %s2766 = sld [smem:[#allocation2 + $0x142]]
    %s2767 = sld [smem:[#allocation2 + $0x143]]
    %s2768 = sld [smem:[#allocation2 + $0x144]]
    %s2769 = sld [smem:[#allocation2 + $0x145]]
    %s2770 = sld [smem:[#allocation2 + $0x146]]
    %s2771 = sld [smem:[#allocation2 + $0x147]]
    %s2772 = sld [smem:[#allocation2 + $0x148]]
    %s2773 = sld [smem:[#allocation2 + $0x149]]
    %s2774 = sld [smem:[#allocation2 + $0x14a]]
    %s2775 = sld [smem:[#allocation2 + $0x14b]]
    %s2776 = sld [smem:[#allocation2 + $0x14c]]
    %s2777 = sld [smem:[#allocation2 + $0x14d]]
    %s2778 = sld [smem:[#allocation2 + $0x14e]]
    %s2779 = sld [smem:[#allocation2 + $0x14f]]
    %v2780 = vstv %s2764
    %v2781 = vmul.f32 %v2780, %v2567
    %v2782 = vmul.f32 %v2780, %v2568
    %2785 = vrot.lane.b32.xlu0 %v2781, 127
    %v2786 = vpop.permute.xlu0 %2785
    %2787 = vrot.lane.b32.xlu0 %v2782, 127
    %v2788 = vpop.permute.xlu0 %2787
    %v2791 = vadd.f32 %v2687, %v2786
    %v2792 = vadd.f32 %v2688, %v2788
    %v2793 = vstv %s2765
    %v2794 = vmul.f32 %v2793, %v2567
    %v2795 = vmul.f32 %v2793, %v2568
    %2798 = vrot.lane.b32.xlu0 %v2794, 127
    %v2799 = vpop.permute.xlu0 %2798
    %2800 = vrot.lane.b32.xlu0 %v2795, 127
    %v2801 = vpop.permute.xlu0 %2800
    %v2804 = vadd.f32 %v2692, %v2799
    %v2805 = vadd.f32 %v2693, %v2801
    %v2806 = vstv %s2766
    %v2807 = vmul.f32 %v2806, %v2567
    %v2808 = vmul.f32 %v2806, %v2568
    %2811 = vrot.lane.b32.xlu0 %v2807, 127
    %v2812 = vpop.permute.xlu0 %2811
    %2813 = vrot.lane.b32.xlu0 %v2808, 127
    %v2814 = vpop.permute.xlu0 %2813
    %v2817 = vadd.f32 %v2697, %v2812
    %v2818 = vadd.f32 %v2698, %v2814
    %v2819 = vstv %s2767
    %v2820 = vmul.f32 %v2819, %v2567
    %v2821 = vmul.f32 %v2819, %v2568
    %2824 = vrot.lane.b32.xlu0 %v2820, 127
    %v2825 = vpop.permute.xlu0 %2824
    %2826 = vrot.lane.b32.xlu0 %v2821, 127
    %v2827 = vpop.permute.xlu0 %2826
    %v2830 = vadd.f32 %v2702, %v2825
    %v2831 = vadd.f32 %v2703, %v2827
    %v2832 = vstv %s2768
    %v2833 = vmul.f32 %v2832, %v2567
    %v2834 = vmul.f32 %v2832, %v2568
    %2837 = vrot.lane.b32.xlu0 %v2833, 127
    %v2838 = vpop.permute.xlu0 %2837
    %2839 = vrot.lane.b32.xlu0 %v2834, 127
    %v2840 = vpop.permute.xlu0 %2839
    %v2843 = vadd.f32 %v2707, %v2838
    %v2844 = vadd.f32 %v2708, %v2840
    %v2845 = vstv %s2769
    %v2846 = vmul.f32 %v2845, %v2567
    %v2847 = vmul.f32 %v2845, %v2568
    %2850 = vrot.lane.b32.xlu0 %v2846, 127
    %v2851 = vpop.permute.xlu0 %2850
    %2852 = vrot.lane.b32.xlu0 %v2847, 127
    %v2853 = vpop.permute.xlu0 %2852
    %v2856 = vadd.f32 %v2712, %v2851
    %v2857 = vadd.f32 %v2713, %v2853
    %v2858 = vstv %s2770
    %v2859 = vmul.f32 %v2858, %v2567
    %v2860 = vmul.f32 %v2858, %v2568
    %2863 = vrot.lane.b32.xlu0 %v2859, 127
    %v2864 = vpop.permute.xlu0 %2863
    %2865 = vrot.lane.b32.xlu0 %v2860, 127
    %v2866 = vpop.permute.xlu0 %2865
    %v2869 = vadd.f32 %v2717, %v2864
    %v2870 = vadd.f32 %v2718, %v2866
    %v2871 = vstv %s2771
    %v2872 = vmul.f32 %v2871, %v2567
    %v2873 = vmul.f32 %v2871, %v2568
    %2876 = vrot.lane.b32.xlu0 %v2872, 127
    %v2877 = vpop.permute.xlu0 %2876
    %2878 = vrot.lane.b32.xlu0 %v2873, 127
    %v2879 = vpop.permute.xlu0 %2878
    %v2882 = vadd.f32 %v2722, %v2877
    %v2883 = vadd.f32 %v2723, %v2879
    %v2884 = vstv %s2772
    %v2885 = vmul.f32 %v2884, %v2567
    %v2886 = vmul.f32 %v2884, %v2568
    %2889 = vrot.lane.b32.xlu0 %v2885, 127
    %v2890 = vpop.permute.xlu0 %2889
    %2891 = vrot.lane.b32.xlu0 %v2886, 127
    %v2892 = vpop.permute.xlu0 %2891
    %v2895 = vadd.f32 %v2727, %v2890
    %v2896 = vadd.f32 %v2728, %v2892
    %v2897 = vstv %s2773
    %v2898 = vmul.f32 %v2897, %v2567
    %v2899 = vmul.f32 %v2897, %v2568
    %2902 = vrot.lane.b32.xlu0 %v2898, 127
    %v2903 = vpop.permute.xlu0 %2902
    %2904 = vrot.lane.b32.xlu0 %v2899, 127
    %v2905 = vpop.permute.xlu0 %2904
    %v2908 = vadd.f32 %v2732, %v2903
    %v2909 = vadd.f32 %v2733, %v2905
    %v2910 = vstv %s2774
    %v2911 = vmul.f32 %v2910, %v2567
    %v2912 = vmul.f32 %v2910, %v2568
    %2915 = vrot.lane.b32.xlu0 %v2911, 127
    %v2916 = vpop.permute.xlu0 %2915
    %2917 = vrot.lane.b32.xlu0 %v2912, 127
    %v2918 = vpop.permute.xlu0 %2917
    %v2921 = vadd.f32 %v2737, %v2916
    %v2922 = vadd.f32 %v2738, %v2918
    %v2923 = vstv %s2775
    %v2924 = vmul.f32 %v2923, %v2567
    %v2925 = vmul.f32 %v2923, %v2568
    %2928 = vrot.lane.b32.xlu0 %v2924, 127
    %v2929 = vpop.permute.xlu0 %2928
    %2930 = vrot.lane.b32.xlu0 %v2925, 127
    %v2931 = vpop.permute.xlu0 %2930
    %v2934 = vadd.f32 %v2742, %v2929
    %v2935 = vadd.f32 %v2743, %v2931
    %v2936 = vstv %s2776
    %v2937 = vmul.f32 %v2936, %v2567
    %v2938 = vmul.f32 %v2936, %v2568
    %2941 = vrot.lane.b32.xlu0 %v2937, 127
    %v2942 = vpop.permute.xlu0 %2941
    %2943 = vrot.lane.b32.xlu0 %v2938, 127
    %v2944 = vpop.permute.xlu0 %2943
    %v2947 = vadd.f32 %v2747, %v2942
    %v2948 = vadd.f32 %v2748, %v2944
    %v2949 = vstv %s2777
    %v2950 = vmul.f32 %v2949, %v2567
    %v2951 = vmul.f32 %v2949, %v2568
    %2954 = vrot.lane.b32.xlu0 %v2950, 127
    %v2955 = vpop.permute.xlu0 %2954
    %2956 = vrot.lane.b32.xlu0 %v2951, 127
    %v2957 = vpop.permute.xlu0 %2956
    %v2960 = vadd.f32 %v2752, %v2955
    %v2961 = vadd.f32 %v2753, %v2957
    %v2962 = vstv %s2778
    %v2963 = vmul.f32 %v2962, %v2567
    %v2964 = vmul.f32 %v2962, %v2568
    %2967 = vrot.lane.b32.xlu0 %v2963, 127
    %v2968 = vpop.permute.xlu0 %2967
    %2969 = vrot.lane.b32.xlu0 %v2964, 127
    %v2970 = vpop.permute.xlu0 %2969
    %v2973 = vadd.f32 %v2757, %v2968
    %v2974 = vadd.f32 %v2758, %v2970
    %v2975 = vstv %s2779
    %v2976 = vmul.f32 %v2975, %v2567
    %v2977 = vmul.f32 %v2975, %v2568
    %2980 = vrot.lane.b32.xlu0 %v2976, 127
    %v2981 = vpop.permute.xlu0 %2980
    %2982 = vrot.lane.b32.xlu0 %v2977, 127
    %v2983 = vpop.permute.xlu0 %2982
    %v2986 = vadd.f32 %v2762, %v2981
    %v2987 = vadd.f32 %v2763, %v2983
    %s2988 = scalar_lea.vmem %s0, 160
    %v2989 = vld [vmem:[%s2988] sm:$0xff]
    %v2990 = vld [vmem:[%s2988 + $0x8] sm:$0x3f]
    %s2991 = sld [smem:[#allocation2 + $0x150]]
    %s2992 = sld [smem:[#allocation2 + $0x151]]
    %s2993 = sld [smem:[#allocation2 + $0x152]]
    %s2994 = sld [smem:[#allocation2 + $0x153]]
    %s2995 = sld [smem:[#allocation2 + $0x154]]
    %s2996 = sld [smem:[#allocation2 + $0x155]]
    %s2997 = sld [smem:[#allocation2 + $0x156]]
    %s2998 = sld [smem:[#allocation2 + $0x157]]
    %s2999 = sld [smem:[#allocation2 + $0x158]]
    %s3000 = sld [smem:[#allocation2 + $0x159]]
    %s3001 = sld [smem:[#allocation2 + $0x15a]]
    %s3002 = sld [smem:[#allocation2 + $0x15b]]
    %s3003 = sld [smem:[#allocation2 + $0x15c]]
    %s3004 = sld [smem:[#allocation2 + $0x15d]]
    %s3005 = sld [smem:[#allocation2 + $0x15e]]
    %s3006 = sld [smem:[#allocation2 + $0x15f]]
    %v3007 = vstv %s2991
    %v3008 = vmul.f32 %v3007, %v2989
    %v3009 = vmul.f32 %v3007, %v2990
    %v3010 = vadd.f32 %v2791, %v3008
    %v3011 = vadd.f32 %v2792, %v3009
    %v3012 = vstv %s2992
    %v3013 = vmul.f32 %v3012, %v2989
    %v3014 = vmul.f32 %v3012, %v2990
    %v3015 = vadd.f32 %v2804, %v3013
    %v3016 = vadd.f32 %v2805, %v3014
    %v3017 = vstv %s2993
    %v3018 = vmul.f32 %v3017, %v2989
    %v3019 = vmul.f32 %v3017, %v2990
    %v3020 = vadd.f32 %v2817, %v3018
    %v3021 = vadd.f32 %v2818, %v3019
    %v3022 = vstv %s2994
    %v3023 = vmul.f32 %v3022, %v2989
    %v3024 = vmul.f32 %v3022, %v2990
    %v3025 = vadd.f32 %v2830, %v3023
    %v3026 = vadd.f32 %v2831, %v3024
    %v3027 = vstv %s2995
    %v3028 = vmul.f32 %v3027, %v2989
    %v3029 = vmul.f32 %v3027, %v2990
    %v3030 = vadd.f32 %v2843, %v3028
    %v3031 = vadd.f32 %v2844, %v3029
    %v3032 = vstv %s2996
    %v3033 = vmul.f32 %v3032, %v2989
    %v3034 = vmul.f32 %v3032, %v2990
    %v3035 = vadd.f32 %v2856, %v3033
    %v3036 = vadd.f32 %v2857, %v3034
    %v3037 = vstv %s2997
    %v3038 = vmul.f32 %v3037, %v2989
    %v3039 = vmul.f32 %v3037, %v2990
    %v3040 = vadd.f32 %v2869, %v3038
    %v3041 = vadd.f32 %v2870, %v3039
    %v3042 = vstv %s2998
    %v3043 = vmul.f32 %v3042, %v2989
    %v3044 = vmul.f32 %v3042, %v2990
    %v3045 = vadd.f32 %v2882, %v3043
    %v3046 = vadd.f32 %v2883, %v3044
    %v3047 = vstv %s2999
    %v3048 = vmul.f32 %v3047, %v2989
    %v3049 = vmul.f32 %v3047, %v2990
    %v3050 = vadd.f32 %v2895, %v3048
    %v3051 = vadd.f32 %v2896, %v3049
    %v3052 = vstv %s3000
    %v3053 = vmul.f32 %v3052, %v2989
    %v3054 = vmul.f32 %v3052, %v2990
    %v3055 = vadd.f32 %v2908, %v3053
    %v3056 = vadd.f32 %v2909, %v3054
    %v3057 = vstv %s3001
    %v3058 = vmul.f32 %v3057, %v2989
    %v3059 = vmul.f32 %v3057, %v2990
    %v3060 = vadd.f32 %v2921, %v3058
    %v3061 = vadd.f32 %v2922, %v3059
    %v3062 = vstv %s3002
    %v3063 = vmul.f32 %v3062, %v2989
    %v3064 = vmul.f32 %v3062, %v2990
    %v3065 = vadd.f32 %v2934, %v3063
    %v3066 = vadd.f32 %v2935, %v3064
    %v3067 = vstv %s3003
    %v3068 = vmul.f32 %v3067, %v2989
    %v3069 = vmul.f32 %v3067, %v2990
    %v3070 = vadd.f32 %v2947, %v3068
    %v3071 = vadd.f32 %v2948, %v3069
    %v3072 = vstv %s3004
    %v3073 = vmul.f32 %v3072, %v2989
    %v3074 = vmul.f32 %v3072, %v2990
    %v3075 = vadd.f32 %v2960, %v3073
    %v3076 = vadd.f32 %v2961, %v3074
    %v3077 = vstv %s3005
    %v3078 = vmul.f32 %v3077, %v2989
    %v3079 = vmul.f32 %v3077, %v2990
    %v3080 = vadd.f32 %v2973, %v3078
    %v3081 = vadd.f32 %v2974, %v3079
    %v3082 = vstv %s3006
    %v3083 = vmul.f32 %v3082, %v2989
    %v3084 = vmul.f32 %v3082, %v2990
    %v3085 = vadd.f32 %v2986, %v3083
    %v3086 = vadd.f32 %v2987, %v3084
    %s3087 = scalar_lea.vmem %s0, 176
    %v3088 = vld [vmem:[%s3087] sm:$0xff]
    %v3089 = vld [vmem:[%s3087 + $0x8] sm:$0x3f]
    %s3090 = sld [smem:[#allocation2 + $0x160]]
    %s3091 = sld [smem:[#allocation2 + $0x161]]
    %s3092 = sld [smem:[#allocation2 + $0x162]]
    %s3093 = sld [smem:[#allocation2 + $0x163]]
    %s3094 = sld [smem:[#allocation2 + $0x164]]
    %s3095 = sld [smem:[#allocation2 + $0x165]]
    %s3096 = sld [smem:[#allocation2 + $0x166]]
    %s3097 = sld [smem:[#allocation2 + $0x167]]
    %s3098 = sld [smem:[#allocation2 + $0x168]]
    %s3099 = sld [smem:[#allocation2 + $0x169]]
    %s3100 = sld [smem:[#allocation2 + $0x16a]]
    %s3101 = sld [smem:[#allocation2 + $0x16b]]
    %s3102 = sld [smem:[#allocation2 + $0x16c]]
    %s3103 = sld [smem:[#allocation2 + $0x16d]]
    %s3104 = sld [smem:[#allocation2 + $0x16e]]
    %s3105 = sld [smem:[#allocation2 + $0x16f]]
    %v3106 = vstv %s3090
    %v3107 = vmul.f32 %v3106, %v3088
    %v3108 = vmul.f32 %v3106, %v3089
    %v3109 = vadd.f32 %v3010, %v3107
    %v3110 = vadd.f32 %v3011, %v3108
    %v3111 = vstv %s3091
    %v3112 = vmul.f32 %v3111, %v3088
    %v3113 = vmul.f32 %v3111, %v3089
    %v3114 = vadd.f32 %v3015, %v3112
    %v3115 = vadd.f32 %v3016, %v3113
    %v3116 = vstv %s3092
    %v3117 = vmul.f32 %v3116, %v3088
    %v3118 = vmul.f32 %v3116, %v3089
    %v3119 = vadd.f32 %v3020, %v3117
    %v3120 = vadd.f32 %v3021, %v3118
    %v3121 = vstv %s3093
    %v3122 = vmul.f32 %v3121, %v3088
    %v3123 = vmul.f32 %v3121, %v3089
    %v3124 = vadd.f32 %v3025, %v3122
    %v3125 = vadd.f32 %v3026, %v3123
    %v3126 = vstv %s3094
    %v3127 = vmul.f32 %v3126, %v3088
    %v3128 = vmul.f32 %v3126, %v3089
    %v3129 = vadd.f32 %v3030, %v3127
    %v3130 = vadd.f32 %v3031, %v3128
    %v3131 = vstv %s3095
    %v3132 = vmul.f32 %v3131, %v3088
    %v3133 = vmul.f32 %v3131, %v3089
    %v3134 = vadd.f32 %v3035, %v3132
    %v3135 = vadd.f32 %v3036, %v3133
    %v3136 = vstv %s3096
    %v3137 = vmul.f32 %v3136, %v3088
    %v3138 = vmul.f32 %v3136, %v3089
    %v3139 = vadd.f32 %v3040, %v3137
    %v3140 = vadd.f32 %v3041, %v3138
    %v3141 = vstv %s3097
    %v3142 = vmul.f32 %v3141, %v3088
    %v3143 = vmul.f32 %v3141, %v3089
    %v3144 = vadd.f32 %v3045, %v3142
    %v3145 = vadd.f32 %v3046, %v3143
    %v3146 = vstv %s3098
    %v3147 = vmul.f32 %v3146, %v3088
    %v3148 = vmul.f32 %v3146, %v3089
    %v3149 = vadd.f32 %v3050, %v3147
    %v3150 = vadd.f32 %v3051, %v3148
    %v3151 = vstv %s3099
    %v3152 = vmul.f32 %v3151, %v3088
    %v3153 = vmul.f32 %v3151, %v3089
    %v3154 = vadd.f32 %v3055, %v3152
    %v3155 = vadd.f32 %v3056, %v3153
    %v3156 = vstv %s3100
    %v3157 = vmul.f32 %v3156, %v3088
    %v3158 = vmul.f32 %v3156, %v3089
    %v3159 = vadd.f32 %v3060, %v3157
    %v3160 = vadd.f32 %v3061, %v3158
    %v3161 = vstv %s3101
    %v3162 = vmul.f32 %v3161, %v3088
    %v3163 = vmul.f32 %v3161, %v3089
    %v3164 = vadd.f32 %v3065, %v3162
    %v3165 = vadd.f32 %v3066, %v3163
    %v3166 = vstv %s3102
    %v3167 = vmul.f32 %v3166, %v3088
    %v3168 = vmul.f32 %v3166, %v3089
    %v3169 = vadd.f32 %v3070, %v3167
    %v3170 = vadd.f32 %v3071, %v3168
    %v3171 = vstv %s3103
    %v3172 = vmul.f32 %v3171, %v3088
    %v3173 = vmul.f32 %v3171, %v3089
    %v3174 = vadd.f32 %v3075, %v3172
    %v3175 = vadd.f32 %v3076, %v3173
    %v3176 = vstv %s3104
    %v3177 = vmul.f32 %v3176, %v3088
    %v3178 = vmul.f32 %v3176, %v3089
    %v3179 = vadd.f32 %v3080, %v3177
    %v3180 = vadd.f32 %v3081, %v3178
    %v3181 = vstv %s3105
    %v3182 = vmul.f32 %v3181, %v3088
    %v3183 = vmul.f32 %v3181, %v3089
    %v3184 = vadd.f32 %v3085, %v3182
    %v3185 = vadd.f32 %v3086, %v3183
    %s3186 = sld [smem:[#allocation2 + $0x170]]
    %s3187 = sld [smem:[#allocation2 + $0x171]]
    %s3188 = sld [smem:[#allocation2 + $0x172]]
    %s3189 = sld [smem:[#allocation2 + $0x173]]
    %s3190 = sld [smem:[#allocation2 + $0x174]]
    %s3191 = sld [smem:[#allocation2 + $0x175]]
    %s3192 = sld [smem:[#allocation2 + $0x176]]
    %s3193 = sld [smem:[#allocation2 + $0x177]]
    %s3194 = sld [smem:[#allocation2 + $0x178]]
    %s3195 = sld [smem:[#allocation2 + $0x179]]
    %s3196 = sld [smem:[#allocation2 + $0x17a]]
    %s3197 = sld [smem:[#allocation2 + $0x17b]]
    %s3198 = sld [smem:[#allocation2 + $0x17c]]
    %s3199 = sld [smem:[#allocation2 + $0x17d]]
    %s3200 = sld [smem:[#allocation2 + $0x17e]]
    %s3201 = sld [smem:[#allocation2 + $0x17f]]
    %v3202 = vstv %s3186
    %v3203 = vmul.f32 %v3202, %v2989
    %v3204 = vmul.f32 %v3202, %v2990
    %3207 = vrot.lane.b32.xlu0 %v3203, 127
    %v3208 = vpop.permute.xlu0 %3207
    %3209 = vrot.lane.b32.xlu0 %v3204, 127
    %v3210 = vpop.permute.xlu0 %3209
    %v3213 = vadd.f32 %v3109, %v3208
    %v3214 = vadd.f32 %v3110, %v3210
    %v3215 = vstv %s3187
    %v3216 = vmul.f32 %v3215, %v2989
    %v3217 = vmul.f32 %v3215, %v2990
    %3220 = vrot.lane.b32.xlu0 %v3216, 127
    %v3221 = vpop.permute.xlu0 %3220
    %3222 = vrot.lane.b32.xlu0 %v3217, 127
    %v3223 = vpop.permute.xlu0 %3222
    %v3226 = vadd.f32 %v3114, %v3221
    %v3227 = vadd.f32 %v3115, %v3223
    %v3228 = vstv %s3188
    %v3229 = vmul.f32 %v3228, %v2989
    %v3230 = vmul.f32 %v3228, %v2990
    %3233 = vrot.lane.b32.xlu0 %v3229, 127
    %v3234 = vpop.permute.xlu0 %3233
    %3235 = vrot.lane.b32.xlu0 %v3230, 127
    %v3236 = vpop.permute.xlu0 %3235
    %v3239 = vadd.f32 %v3119, %v3234
    %v3240 = vadd.f32 %v3120, %v3236
    %v3241 = vstv %s3189
    %v3242 = vmul.f32 %v3241, %v2989
    %v3243 = vmul.f32 %v3241, %v2990
    %3246 = vrot.lane.b32.xlu0 %v3242, 127
    %v3247 = vpop.permute.xlu0 %3246
    %3248 = vrot.lane.b32.xlu0 %v3243, 127
    %v3249 = vpop.permute.xlu0 %3248
    %v3252 = vadd.f32 %v3124, %v3247
    %v3253 = vadd.f32 %v3125, %v3249
    %v3254 = vstv %s3190
    %v3255 = vmul.f32 %v3254, %v2989
    %v3256 = vmul.f32 %v3254, %v2990
    %3259 = vrot.lane.b32.xlu0 %v3255, 127
    %v3260 = vpop.permute.xlu0 %3259
    %3261 = vrot.lane.b32.xlu0 %v3256, 127
    %v3262 = vpop.permute.xlu0 %3261
    %v3265 = vadd.f32 %v3129, %v3260
    %v3266 = vadd.f32 %v3130, %v3262
    %v3267 = vstv %s3191
    %v3268 = vmul.f32 %v3267, %v2989
    %v3269 = vmul.f32 %v3267, %v2990
    %3272 = vrot.lane.b32.xlu0 %v3268, 127
    %v3273 = vpop.permute.xlu0 %3272
    %3274 = vrot.lane.b32.xlu0 %v3269, 127
    %v3275 = vpop.permute.xlu0 %3274
    %v3278 = vadd.f32 %v3134, %v3273
    %v3279 = vadd.f32 %v3135, %v3275
    %v3280 = vstv %s3192
    %v3281 = vmul.f32 %v3280, %v2989
    %v3282 = vmul.f32 %v3280, %v2990
    %3285 = vrot.lane.b32.xlu0 %v3281, 127
    %v3286 = vpop.permute.xlu0 %3285
    %3287 = vrot.lane.b32.xlu0 %v3282, 127
    %v3288 = vpop.permute.xlu0 %3287
    %v3291 = vadd.f32 %v3139, %v3286
    %v3292 = vadd.f32 %v3140, %v3288
    %v3293 = vstv %s3193
    %v3294 = vmul.f32 %v3293, %v2989
    %v3295 = vmul.f32 %v3293, %v2990
    %3298 = vrot.lane.b32.xlu0 %v3294, 127
    %v3299 = vpop.permute.xlu0 %3298
    %3300 = vrot.lane.b32.xlu0 %v3295, 127
    %v3301 = vpop.permute.xlu0 %3300
    %v3304 = vadd.f32 %v3144, %v3299
    %v3305 = vadd.f32 %v3145, %v3301
    %v3306 = vstv %s3194
    %v3307 = vmul.f32 %v3306, %v2989
    %v3308 = vmul.f32 %v3306, %v2990
    %3311 = vrot.lane.b32.xlu0 %v3307, 127
    %v3312 = vpop.permute.xlu0 %3311
    %3313 = vrot.lane.b32.xlu0 %v3308, 127
    %v3314 = vpop.permute.xlu0 %3313
    %v3317 = vadd.f32 %v3149, %v3312
    %v3318 = vadd.f32 %v3150, %v3314
    %v3319 = vstv %s3195
    %v3320 = vmul.f32 %v3319, %v2989
    %v3321 = vmul.f32 %v3319, %v2990
    %3324 = vrot.lane.b32.xlu0 %v3320, 127
    %v3325 = vpop.permute.xlu0 %3324
    %3326 = vrot.lane.b32.xlu0 %v3321, 127
    %v3327 = vpop.permute.xlu0 %3326
    %v3330 = vadd.f32 %v3154, %v3325
    %v3331 = vadd.f32 %v3155, %v3327
    %v3332 = vstv %s3196
    %v3333 = vmul.f32 %v3332, %v2989
    %v3334 = vmul.f32 %v3332, %v2990
    %3337 = vrot.lane.b32.xlu0 %v3333, 127
    %v3338 = vpop.permute.xlu0 %3337
    %3339 = vrot.lane.b32.xlu0 %v3334, 127
    %v3340 = vpop.permute.xlu0 %3339
    %v3343 = vadd.f32 %v3159, %v3338
    %v3344 = vadd.f32 %v3160, %v3340
    %v3345 = vstv %s3197
    %v3346 = vmul.f32 %v3345, %v2989
    %v3347 = vmul.f32 %v3345, %v2990
    %3350 = vrot.lane.b32.xlu0 %v3346, 127
    %v3351 = vpop.permute.xlu0 %3350
    %3352 = vrot.lane.b32.xlu0 %v3347, 127
    %v3353 = vpop.permute.xlu0 %3352
    %v3356 = vadd.f32 %v3164, %v3351
    %v3357 = vadd.f32 %v3165, %v3353
    %v3358 = vstv %s3198
    %v3359 = vmul.f32 %v3358, %v2989
    %v3360 = vmul.f32 %v3358, %v2990
    %3363 = vrot.lane.b32.xlu0 %v3359, 127
    %v3364 = vpop.permute.xlu0 %3363
    %3365 = vrot.lane.b32.xlu0 %v3360, 127
    %v3366 = vpop.permute.xlu0 %3365
    %v3369 = vadd.f32 %v3169, %v3364
    %v3370 = vadd.f32 %v3170, %v3366
    %v3371 = vstv %s3199
    %v3372 = vmul.f32 %v3371, %v2989
    %v3373 = vmul.f32 %v3371, %v2990
    %3376 = vrot.lane.b32.xlu0 %v3372, 127
    %v3377 = vpop.permute.xlu0 %3376
    %3378 = vrot.lane.b32.xlu0 %v3373, 127
    %v3379 = vpop.permute.xlu0 %3378
    %v3382 = vadd.f32 %v3174, %v3377
    %v3383 = vadd.f32 %v3175, %v3379
    %v3384 = vstv %s3200
    %v3385 = vmul.f32 %v3384, %v2989
    %v3386 = vmul.f32 %v3384, %v2990
    %3389 = vrot.lane.b32.xlu0 %v3385, 127
    %v3390 = vpop.permute.xlu0 %3389
    %3391 = vrot.lane.b32.xlu0 %v3386, 127
    %v3392 = vpop.permute.xlu0 %3391
    %v3395 = vadd.f32 %v3179, %v3390
    %v3396 = vadd.f32 %v3180, %v3392
    %v3397 = vstv %s3201
    %v3398 = vmul.f32 %v3397, %v2989
    %v3399 = vmul.f32 %v3397, %v2990
    %3402 = vrot.lane.b32.xlu0 %v3398, 127
    %v3403 = vpop.permute.xlu0 %3402
    %3404 = vrot.lane.b32.xlu0 %v3399, 127
    %v3405 = vpop.permute.xlu0 %3404
    %v3408 = vadd.f32 %v3184, %v3403
    %v3409 = vadd.f32 %v3185, %v3405
    %v3410 = vld [vmem:[%s2566 + $0x1] sm:$0xff]
    %v3411 = vld [vmem:[%s2566 + $0x9] sm:$0x3f]
    %s3412 = sld [smem:[#allocation2 + $0x180]]
    %s3413 = sld [smem:[#allocation2 + $0x181]]
    %s3414 = sld [smem:[#allocation2 + $0x182]]
    %s3415 = sld [smem:[#allocation2 + $0x183]]
    %s3416 = sld [smem:[#allocation2 + $0x184]]
    %s3417 = sld [smem:[#allocation2 + $0x185]]
    %s3418 = sld [smem:[#allocation2 + $0x186]]
    %s3419 = sld [smem:[#allocation2 + $0x187]]
    %s3420 = sld [smem:[#allocation2 + $0x188]]
    %s3421 = sld [smem:[#allocation2 + $0x189]]
    %s3422 = sld [smem:[#allocation2 + $0x18a]]
    %s3423 = sld [smem:[#allocation2 + $0x18b]]
    %s3424 = sld [smem:[#allocation2 + $0x18c]]
    %s3425 = sld [smem:[#allocation2 + $0x18d]]
    %s3426 = sld [smem:[#allocation2 + $0x18e]]
    %s3427 = sld [smem:[#allocation2 + $0x18f]]
    %v3428 = vstv %s3412
    %v3429 = vmul.f32 %v3428, %v3410
    %v3430 = vmul.f32 %v3428, %v3411
    %v3431 = vadd.f32 %v3213, %v3429
    %v3432 = vadd.f32 %v3214, %v3430
    %v3433 = vstv %s3413
    %v3434 = vmul.f32 %v3433, %v3410
    %v3435 = vmul.f32 %v3433, %v3411
    %v3436 = vadd.f32 %v3226, %v3434
    %v3437 = vadd.f32 %v3227, %v3435
    %v3438 = vstv %s3414
    %v3439 = vmul.f32 %v3438, %v3410
    %v3440 = vmul.f32 %v3438, %v3411
    %v3441 = vadd.f32 %v3239, %v3439
    %v3442 = vadd.f32 %v3240, %v3440
    %v3443 = vstv %s3415
    %v3444 = vmul.f32 %v3443, %v3410
    %v3445 = vmul.f32 %v3443, %v3411
    %v3446 = vadd.f32 %v3252, %v3444
    %v3447 = vadd.f32 %v3253, %v3445
    %v3448 = vstv %s3416
    %v3449 = vmul.f32 %v3448, %v3410
    %v3450 = vmul.f32 %v3448, %v3411
    %v3451 = vadd.f32 %v3265, %v3449
    %v3452 = vadd.f32 %v3266, %v3450
    %v3453 = vstv %s3417
    %v3454 = vmul.f32 %v3453, %v3410
    %v3455 = vmul.f32 %v3453, %v3411
    %v3456 = vadd.f32 %v3278, %v3454
    %v3457 = vadd.f32 %v3279, %v3455
    %v3458 = vstv %s3418
    %v3459 = vmul.f32 %v3458, %v3410
    %v3460 = vmul.f32 %v3458, %v3411
    %v3461 = vadd.f32 %v3291, %v3459
    %v3462 = vadd.f32 %v3292, %v3460
    %v3463 = vstv %s3419
    %v3464 = vmul.f32 %v3463, %v3410
    %v3465 = vmul.f32 %v3463, %v3411
    %v3466 = vadd.f32 %v3304, %v3464
    %v3467 = vadd.f32 %v3305, %v3465
    %v3468 = vstv %s3420
    %v3469 = vmul.f32 %v3468, %v3410
    %v3470 = vmul.f32 %v3468, %v3411
    %v3471 = vadd.f32 %v3317, %v3469
    %v3472 = vadd.f32 %v3318, %v3470
    %v3473 = vstv %s3421
    %v3474 = vmul.f32 %v3473, %v3410
    %v3475 = vmul.f32 %v3473, %v3411
    %v3476 = vadd.f32 %v3330, %v3474
    %v3477 = vadd.f32 %v3331, %v3475
    %v3478 = vstv %s3422
    %v3479 = vmul.f32 %v3478, %v3410
    %v3480 = vmul.f32 %v3478, %v3411
    %v3481 = vadd.f32 %v3343, %v3479
    %v3482 = vadd.f32 %v3344, %v3480
    %v3483 = vstv %s3423
    %v3484 = vmul.f32 %v3483, %v3410
    %v3485 = vmul.f32 %v3483, %v3411
    %v3486 = vadd.f32 %v3356, %v3484
    %v3487 = vadd.f32 %v3357, %v3485
    %v3488 = vstv %s3424
    %v3489 = vmul.f32 %v3488, %v3410
    %v3490 = vmul.f32 %v3488, %v3411
    %v3491 = vadd.f32 %v3369, %v3489
    %v3492 = vadd.f32 %v3370, %v3490
    %v3493 = vstv %s3425
    %v3494 = vmul.f32 %v3493, %v3410
    %v3495 = vmul.f32 %v3493, %v3411
    %v3496 = vadd.f32 %v3382, %v3494
    %v3497 = vadd.f32 %v3383, %v3495
    %v3498 = vstv %s3426
    %v3499 = vmul.f32 %v3498, %v3410
    %v3500 = vmul.f32 %v3498, %v3411
    %v3501 = vadd.f32 %v3395, %v3499
    %v3502 = vadd.f32 %v3396, %v3500
    %v3503 = vstv %s3427
    %v3504 = vmul.f32 %v3503, %v3410
    %v3505 = vmul.f32 %v3503, %v3411
    %v3506 = vadd.f32 %v3408, %v3504
    %v3507 = vadd.f32 %v3409, %v3505
    %v3508 = vld [vmem:[%s2665 + $0x1] sm:$0xff]
    %v3509 = vld [vmem:[%s2665 + $0x9] sm:$0x3f]
    %s3510 = sld [smem:[#allocation2 + $0x190]]
    %s3511 = sld [smem:[#allocation2 + $0x191]]
    %s3512 = sld [smem:[#allocation2 + $0x192]]
    %s3513 = sld [smem:[#allocation2 + $0x193]]
    %s3514 = sld [smem:[#allocation2 + $0x194]]
    %s3515 = sld [smem:[#allocation2 + $0x195]]
    %s3516 = sld [smem:[#allocation2 + $0x196]]
    %s3517 = sld [smem:[#allocation2 + $0x197]]
    %s3518 = sld [smem:[#allocation2 + $0x198]]
    %s3519 = sld [smem:[#allocation2 + $0x199]]
    %s3520 = sld [smem:[#allocation2 + $0x19a]]
    %s3521 = sld [smem:[#allocation2 + $0x19b]]
    %s3522 = sld [smem:[#allocation2 + $0x19c]]
    %s3523 = sld [smem:[#allocation2 + $0x19d]]
    %s3524 = sld [smem:[#allocation2 + $0x19e]]
    %s3525 = sld [smem:[#allocation2 + $0x19f]]
    %v3526 = vstv %s3510
    %v3527 = vmul.f32 %v3526, %v3508
    %v3528 = vmul.f32 %v3526, %v3509
    %v3529 = vadd.f32 %v3431, %v3527
    %v3530 = vadd.f32 %v3432, %v3528
    %v3531 = vstv %s3511
    %v3532 = vmul.f32 %v3531, %v3508
    %v3533 = vmul.f32 %v3531, %v3509
    %v3534 = vadd.f32 %v3436, %v3532
    %v3535 = vadd.f32 %v3437, %v3533
    %v3536 = vstv %s3512
    %v3537 = vmul.f32 %v3536, %v3508
    %v3538 = vmul.f32 %v3536, %v3509
    %v3539 = vadd.f32 %v3441, %v3537
    %v3540 = vadd.f32 %v3442, %v3538
    %v3541 = vstv %s3513
    %v3542 = vmul.f32 %v3541, %v3508
    %v3543 = vmul.f32 %v3541, %v3509
    %v3544 = vadd.f32 %v3446, %v3542
    %v3545 = vadd.f32 %v3447, %v3543
    %v3546 = vstv %s3514
    %v3547 = vmul.f32 %v3546, %v3508
    %v3548 = vmul.f32 %v3546, %v3509
    %v3549 = vadd.f32 %v3451, %v3547
    %v3550 = vadd.f32 %v3452, %v3548
    %v3551 = vstv %s3515
    %v3552 = vmul.f32 %v3551, %v3508
    %v3553 = vmul.f32 %v3551, %v3509
    %v3554 = vadd.f32 %v3456, %v3552
    %v3555 = vadd.f32 %v3457, %v3553
    %v3556 = vstv %s3516
    %v3557 = vmul.f32 %v3556, %v3508
    %v3558 = vmul.f32 %v3556, %v3509
    %v3559 = vadd.f32 %v3461, %v3557
    %v3560 = vadd.f32 %v3462, %v3558
    %v3561 = vstv %s3517
    %v3562 = vmul.f32 %v3561, %v3508
    %v3563 = vmul.f32 %v3561, %v3509
    %v3564 = vadd.f32 %v3466, %v3562
    %v3565 = vadd.f32 %v3467, %v3563
    %v3566 = vstv %s3518
    %v3567 = vmul.f32 %v3566, %v3508
    %v3568 = vmul.f32 %v3566, %v3509
    %v3569 = vadd.f32 %v3471, %v3567
    %v3570 = vadd.f32 %v3472, %v3568
    %v3571 = vstv %s3519
    %v3572 = vmul.f32 %v3571, %v3508
    %v3573 = vmul.f32 %v3571, %v3509
    %v3574 = vadd.f32 %v3476, %v3572
    %v3575 = vadd.f32 %v3477, %v3573
    %v3576 = vstv %s3520
    %v3577 = vmul.f32 %v3576, %v3508
    %v3578 = vmul.f32 %v3576, %v3509
    %v3579 = vadd.f32 %v3481, %v3577
    %v3580 = vadd.f32 %v3482, %v3578
    %v3581 = vstv %s3521
    %v3582 = vmul.f32 %v3581, %v3508
    %v3583 = vmul.f32 %v3581, %v3509
    %v3584 = vadd.f32 %v3486, %v3582
    %v3585 = vadd.f32 %v3487, %v3583
    %v3586 = vstv %s3522
    %v3587 = vmul.f32 %v3586, %v3508
    %v3588 = vmul.f32 %v3586, %v3509
    %v3589 = vadd.f32 %v3491, %v3587
    %v3590 = vadd.f32 %v3492, %v3588
    %v3591 = vstv %s3523
    %v3592 = vmul.f32 %v3591, %v3508
    %v3593 = vmul.f32 %v3591, %v3509
    %v3594 = vadd.f32 %v3496, %v3592
    %v3595 = vadd.f32 %v3497, %v3593
    %v3596 = vstv %s3524
    %v3597 = vmul.f32 %v3596, %v3508
    %v3598 = vmul.f32 %v3596, %v3509
    %v3599 = vadd.f32 %v3501, %v3597
    %v3600 = vadd.f32 %v3502, %v3598
    %v3601 = vstv %s3525
    %v3602 = vmul.f32 %v3601, %v3508
    %v3603 = vmul.f32 %v3601, %v3509
    %v3604 = vadd.f32 %v3506, %v3602
    %v3605 = vadd.f32 %v3507, %v3603
    %s3606 = sld [smem:[#allocation2 + $0x1a0]]
    %s3607 = sld [smem:[#allocation2 + $0x1a1]]
    %s3608 = sld [smem:[#allocation2 + $0x1a2]]
    %s3609 = sld [smem:[#allocation2 + $0x1a3]]
    %s3610 = sld [smem:[#allocation2 + $0x1a4]]
    %s3611 = sld [smem:[#allocation2 + $0x1a5]]
    %s3612 = sld [smem:[#allocation2 + $0x1a6]]
    %s3613 = sld [smem:[#allocation2 + $0x1a7]]
    %s3614 = sld [smem:[#allocation2 + $0x1a8]]
    %s3615 = sld [smem:[#allocation2 + $0x1a9]]
    %s3616 = sld [smem:[#allocation2 + $0x1aa]]
    %s3617 = sld [smem:[#allocation2 + $0x1ab]]
    %s3618 = sld [smem:[#allocation2 + $0x1ac]]
    %s3619 = sld [smem:[#allocation2 + $0x1ad]]
    %s3620 = sld [smem:[#allocation2 + $0x1ae]]
    %s3621 = sld [smem:[#allocation2 + $0x1af]]
    %v3622 = vstv %s3606
    %v3623 = vmul.f32 %v3622, %v3410
    %v3624 = vmul.f32 %v3622, %v3411
    %3627 = vrot.lane.b32.xlu0 %v3623, 127
    %v3628 = vpop.permute.xlu0 %3627
    %3629 = vrot.lane.b32.xlu0 %v3624, 127
    %v3630 = vpop.permute.xlu0 %3629
    %v3633 = vadd.f32 %v3529, %v3628
    %v3634 = vadd.f32 %v3530, %v3630
    %v3635 = vstv %s3607
    %v3636 = vmul.f32 %v3635, %v3410
    %v3637 = vmul.f32 %v3635, %v3411
    %3640 = vrot.lane.b32.xlu0 %v3636, 127
    %v3641 = vpop.permute.xlu0 %3640
    %3642 = vrot.lane.b32.xlu0 %v3637, 127
    %v3643 = vpop.permute.xlu0 %3642
    %v3646 = vadd.f32 %v3534, %v3641
    %v3647 = vadd.f32 %v3535, %v3643
    %v3648 = vstv %s3608
    %v3649 = vmul.f32 %v3648, %v3410
    %v3650 = vmul.f32 %v3648, %v3411
    %3653 = vrot.lane.b32.xlu0 %v3649, 127
    %v3654 = vpop.permute.xlu0 %3653
    %3655 = vrot.lane.b32.xlu0 %v3650, 127
    %v3656 = vpop.permute.xlu0 %3655
    %v3659 = vadd.f32 %v3539, %v3654
    %v3660 = vadd.f32 %v3540, %v3656
    %v3661 = vstv %s3609
    %v3662 = vmul.f32 %v3661, %v3410
    %v3663 = vmul.f32 %v3661, %v3411
    %3666 = vrot.lane.b32.xlu0 %v3662, 127
    %v3667 = vpop.permute.xlu0 %3666
    %3668 = vrot.lane.b32.xlu0 %v3663, 127
    %v3669 = vpop.permute.xlu0 %3668
    %v3672 = vadd.f32 %v3544, %v3667
    %v3673 = vadd.f32 %v3545, %v3669
    %v3674 = vstv %s3610
    %v3675 = vmul.f32 %v3674, %v3410
    %v3676 = vmul.f32 %v3674, %v3411
    %3679 = vrot.lane.b32.xlu0 %v3675, 127
    %v3680 = vpop.permute.xlu0 %3679
    %3681 = vrot.lane.b32.xlu0 %v3676, 127
    %v3682 = vpop.permute.xlu0 %3681
    %v3685 = vadd.f32 %v3549, %v3680
    %v3686 = vadd.f32 %v3550, %v3682
    %v3687 = vstv %s3611
    %v3688 = vmul.f32 %v3687, %v3410
    %v3689 = vmul.f32 %v3687, %v3411
    %3692 = vrot.lane.b32.xlu0 %v3688, 127
    %v3693 = vpop.permute.xlu0 %3692
    %3694 = vrot.lane.b32.xlu0 %v3689, 127
    %v3695 = vpop.permute.xlu0 %3694
    %v3698 = vadd.f32 %v3554, %v3693
    %v3699 = vadd.f32 %v3555, %v3695
    %v3700 = vstv %s3612
    %v3701 = vmul.f32 %v3700, %v3410
    %v3702 = vmul.f32 %v3700, %v3411
    %3705 = vrot.lane.b32.xlu0 %v3701, 127
    %v3706 = vpop.permute.xlu0 %3705
    %3707 = vrot.lane.b32.xlu0 %v3702, 127
    %v3708 = vpop.permute.xlu0 %3707
    %v3711 = vadd.f32 %v3559, %v3706
    %v3712 = vadd.f32 %v3560, %v3708
    %v3713 = vstv %s3613
    %v3714 = vmul.f32 %v3713, %v3410
    %v3715 = vmul.f32 %v3713, %v3411
    %3718 = vrot.lane.b32.xlu0 %v3714, 127
    %v3719 = vpop.permute.xlu0 %3718
    %3720 = vrot.lane.b32.xlu0 %v3715, 127
    %v3721 = vpop.permute.xlu0 %3720
    %v3724 = vadd.f32 %v3564, %v3719
    %v3725 = vadd.f32 %v3565, %v3721
    %v3726 = vstv %s3614
    %v3727 = vmul.f32 %v3726, %v3410
    %v3728 = vmul.f32 %v3726, %v3411
    %3731 = vrot.lane.b32.xlu0 %v3727, 127
    %v3732 = vpop.permute.xlu0 %3731
    %3733 = vrot.lane.b32.xlu0 %v3728, 127
    %v3734 = vpop.permute.xlu0 %3733
    %v3737 = vadd.f32 %v3569, %v3732
    %v3738 = vadd.f32 %v3570, %v3734
    %v3739 = vstv %s3615
    %v3740 = vmul.f32 %v3739, %v3410
    %v3741 = vmul.f32 %v3739, %v3411
    %3744 = vrot.lane.b32.xlu0 %v3740, 127
    %v3745 = vpop.permute.xlu0 %3744
    %3746 = vrot.lane.b32.xlu0 %v3741, 127
    %v3747 = vpop.permute.xlu0 %3746
    %v3750 = vadd.f32 %v3574, %v3745
    %v3751 = vadd.f32 %v3575, %v3747
    %v3752 = vstv %s3616
    %v3753 = vmul.f32 %v3752, %v3410
    %v3754 = vmul.f32 %v3752, %v3411
    %3757 = vrot.lane.b32.xlu0 %v3753, 127
    %v3758 = vpop.permute.xlu0 %3757
    %3759 = vrot.lane.b32.xlu0 %v3754, 127
    %v3760 = vpop.permute.xlu0 %3759
    %v3763 = vadd.f32 %v3579, %v3758
    %v3764 = vadd.f32 %v3580, %v3760
    %v3765 = vstv %s3617
    %v3766 = vmul.f32 %v3765, %v3410
    %v3767 = vmul.f32 %v3765, %v3411
    %3770 = vrot.lane.b32.xlu0 %v3766, 127
    %v3771 = vpop.permute.xlu0 %3770
    %3772 = vrot.lane.b32.xlu0 %v3767, 127
    %v3773 = vpop.permute.xlu0 %3772
    %v3776 = vadd.f32 %v3584, %v3771
    %v3777 = vadd.f32 %v3585, %v3773
    %v3778 = vstv %s3618
    %v3779 = vmul.f32 %v3778, %v3410
    %v3780 = vmul.f32 %v3778, %v3411
    %3783 = vrot.lane.b32.xlu0 %v3779, 127
    %v3784 = vpop.permute.xlu0 %3783
    %3785 = vrot.lane.b32.xlu0 %v3780, 127
    %v3786 = vpop.permute.xlu0 %3785
    %v3789 = vadd.f32 %v3589, %v3784
    %v3790 = vadd.f32 %v3590, %v3786
    %v3791 = vstv %s3619
    %v3792 = vmul.f32 %v3791, %v3410
    %v3793 = vmul.f32 %v3791, %v3411
    %3796 = vrot.lane.b32.xlu0 %v3792, 127
    %v3797 = vpop.permute.xlu0 %3796
    %3798 = vrot.lane.b32.xlu0 %v3793, 127
    %v3799 = vpop.permute.xlu0 %3798
    %v3802 = vadd.f32 %v3594, %v3797
    %v3803 = vadd.f32 %v3595, %v3799
    %v3804 = vstv %s3620
    %v3805 = vmul.f32 %v3804, %v3410
    %v3806 = vmul.f32 %v3804, %v3411
    %3809 = vrot.lane.b32.xlu0 %v3805, 127
    %v3810 = vpop.permute.xlu0 %3809
    %3811 = vrot.lane.b32.xlu0 %v3806, 127
    %v3812 = vpop.permute.xlu0 %3811
    %v3815 = vadd.f32 %v3599, %v3810
    %v3816 = vadd.f32 %v3600, %v3812
    %v3817 = vstv %s3621
    %v3818 = vmul.f32 %v3817, %v3410
    %v3819 = vmul.f32 %v3817, %v3411
    %3822 = vrot.lane.b32.xlu0 %v3818, 127
    %v3823 = vpop.permute.xlu0 %3822
    %3824 = vrot.lane.b32.xlu0 %v3819, 127
    %v3825 = vpop.permute.xlu0 %3824
    %v3828 = vadd.f32 %v3604, %v3823
    %v3829 = vadd.f32 %v3605, %v3825
    %s3830 = sld [smem:[#allocation4]]
    %v3831 = vstv %s3830
    %v3832 = vadd.f32 %v3633, %v3831
    %v3833 = vadd.f32 %v3634, %v3831
    %v3834 = vmul.f32 %v3832, 0.5
    %v3835 = vmul.f32 %v3833, 0.5
    %v3836 = vtanh.pop %v3834
    %v3837 = vtanh.pop %v3835
    %v3838 = vmul.f32 %v3836, 0.5
    %v3839 = vmul.f32 %v3837, 0.5
    %v3840 = vadd.f32 %v3838, 0.5
    %v3841 = vadd.f32 %v3839, 0.5
    %vm3842 = vcmask 113664
    %3843 = vst.msk [vmem:[%s3] sm:$0xff] %vm3842, %v3840
    %vm3844 = vcmask 111616
    %3845 = vst.msk [vmem:[%s3 + $0x8] sm:$0x3f] %vm3844, %v3841
    %s3846 = sld [smem:[#allocation4 + $0x1]]
    %v3847 = vstv %s3846
    %v3848 = vadd.f32 %v3646, %v3847
    %v3849 = vadd.f32 %v3647, %v3847
    %v3850 = vmul.f32 %v3848, 0.5
    %v3851 = vmul.f32 %v3849, 0.5
    %v3852 = vtanh.pop %v3850
    %v3853 = vtanh.pop %v3851
    %v3854 = vmul.f32 %v3852, 0.5
    %v3855 = vmul.f32 %v3853, 0.5
    %v3856 = vadd.f32 %v3854, 0.5
    %v3857 = vadd.f32 %v3855, 0.5
    %s3858 = scalar_lea.vmem %s3, 16
    %3859 = vst.msk [vmem:[%s3858] sm:$0xff] %vm3842, %v3856
    %3860 = vst.msk [vmem:[%s3858 + $0x8] sm:$0x3f] %vm3844, %v3857
    %s3861 = sld [smem:[#allocation4 + $0x2]]
    %v3862 = vstv %s3861
    %v3863 = vadd.f32 %v3659, %v3862
    %v3864 = vadd.f32 %v3660, %v3862
    %v3865 = vmul.f32 %v3863, 0.5
    %v3866 = vmul.f32 %v3864, 0.5
    %v3867 = vtanh.pop %v3865
    %v3868 = vtanh.pop %v3866
    %v3869 = vmul.f32 %v3867, 0.5
    %v3870 = vmul.f32 %v3868, 0.5
    %v3871 = vadd.f32 %v3869, 0.5
    %v3872 = vadd.f32 %v3870, 0.5
    %s3873 = scalar_lea.vmem %s3, 32
    %3874 = vst.msk [vmem:[%s3873] sm:$0xff] %vm3842, %v3871
    %3875 = vst.msk [vmem:[%s3873 + $0x8] sm:$0x3f] %vm3844, %v3872
    %s3876 = sld [smem:[#allocation4 + $0x3]]
    %v3877 = vstv %s3876
    %v3878 = vadd.f32 %v3672, %v3877
    %v3879 = vadd.f32 %v3673, %v3877
    %v3880 = vmul.f32 %v3878, 0.5
    %v3881 = vmul.f32 %v3879, 0.5
    %v3882 = vtanh.pop %v3880
    %v3883 = vtanh.pop %v3881
    %v3884 = vmul.f32 %v3882, 0.5
    %v3885 = vmul.f32 %v3883, 0.5
    %v3886 = vadd.f32 %v3884, 0.5
    %v3887 = vadd.f32 %v3885, 0.5
    %s3888 = scalar_lea.vmem %s3, 48
    %3889 = vst.msk [vmem:[%s3888] sm:$0xff] %vm3842, %v3886
    %3890 = vst.msk [vmem:[%s3888 + $0x8] sm:$0x3f] %vm3844, %v3887
    %s3891 = sld [smem:[#allocation4 + $0x4]]
    %v3892 = vstv %s3891
    %v3893 = vadd.f32 %v3685, %v3892
    %v3894 = vadd.f32 %v3686, %v3892
    %v3895 = vmul.f32 %v3893, 0.5
    %v3896 = vmul.f32 %v3894, 0.5
    %v3897 = vtanh.pop %v3895
    %v3898 = vtanh.pop %v3896
    %v3899 = vmul.f32 %v3897, 0.5
    %v3900 = vmul.f32 %v3898, 0.5
    %v3901 = vadd.f32 %v3899, 0.5
    %v3902 = vadd.f32 %v3900, 0.5
    %s3903 = scalar_lea.vmem %s3, 64
    %3904 = vst.msk [vmem:[%s3903] sm:$0xff] %vm3842, %v3901
    %3905 = vst.msk [vmem:[%s3903 + $0x8] sm:$0x3f] %vm3844, %v3902
    %s3906 = sld [smem:[#allocation4 + $0x5]]
    %v3907 = vstv %s3906
    %v3908 = vadd.f32 %v3698, %v3907
    %v3909 = vadd.f32 %v3699, %v3907
    %v3910 = vmul.f32 %v3908, 0.5
    %v3911 = vmul.f32 %v3909, 0.5
    %v3912 = vtanh.pop %v3910
    %v3913 = vtanh.pop %v3911
    %v3914 = vmul.f32 %v3912, 0.5
    %v3915 = vmul.f32 %v3913, 0.5
    %v3916 = vadd.f32 %v3914, 0.5
    %v3917 = vadd.f32 %v3915, 0.5
    %s3918 = scalar_lea.vmem %s3, 80
    %3919 = vst.msk [vmem:[%s3918] sm:$0xff] %vm3842, %v3916
    %3920 = vst.msk [vmem:[%s3918 + $0x8] sm:$0x3f] %vm3844, %v3917
    %s3921 = sld [smem:[#allocation4 + $0x6]]
    %v3922 = vstv %s3921
    %v3923 = vadd.f32 %v3711, %v3922
    %v3924 = vadd.f32 %v3712, %v3922
    %v3925 = vmul.f32 %v3923, 0.5
    %v3926 = vmul.f32 %v3924, 0.5
    %v3927 = vtanh.pop %v3925
    %v3928 = vtanh.pop %v3926
    %v3929 = vmul.f32 %v3927, 0.5
    %v3930 = vmul.f32 %v3928, 0.5
    %v3931 = vadd.f32 %v3929, 0.5
    %v3932 = vadd.f32 %v3930, 0.5
    %s3933 = scalar_lea.vmem %s3, 96
    %3934 = vst.msk [vmem:[%s3933] sm:$0xff] %vm3842, %v3931
    %3935 = vst.msk [vmem:[%s3933 + $0x8] sm:$0x3f] %vm3844, %v3932
    %s3936 = sld [smem:[#allocation4 + $0x7]]
    %v3937 = vstv %s3936
    %v3938 = vadd.f32 %v3724, %v3937
    %v3939 = vadd.f32 %v3725, %v3937
    %v3940 = vmul.f32 %v3938, 0.5
    %v3941 = vmul.f32 %v3939, 0.5
    %v3942 = vtanh.pop %v3940
    %v3943 = vtanh.pop %v3941
    %v3944 = vmul.f32 %v3942, 0.5
    %v3945 = vmul.f32 %v3943, 0.5
    %v3946 = vadd.f32 %v3944, 0.5
    %v3947 = vadd.f32 %v3945, 0.5
    %s3948 = scalar_lea.vmem %s3, 112
    %3949 = vst.msk [vmem:[%s3948] sm:$0xff] %vm3842, %v3946
    %3950 = vst.msk [vmem:[%s3948 + $0x8] sm:$0x3f] %vm3844, %v3947
    %s3951 = sld [smem:[#allocation4 + $0x8]]
    %v3952 = vstv %s3951
    %v3953 = vadd.f32 %v3737, %v3952
    %v3954 = vadd.f32 %v3738, %v3952
    %v3955 = vmul.f32 %v3953, 0.5
    %v3956 = vmul.f32 %v3954, 0.5
    %v3957 = vtanh.pop %v3955
    %v3958 = vtanh.pop %v3956
    %v3959 = vmul.f32 %v3957, 0.5
    %v3960 = vmul.f32 %v3958, 0.5
    %v3961 = vadd.f32 %v3959, 0.5
    %v3962 = vadd.f32 %v3960, 0.5
    %s3963 = scalar_lea.vmem %s3, 128
    %3964 = vst.msk [vmem:[%s3963] sm:$0xff] %vm3842, %v3961
    %3965 = vst.msk [vmem:[%s3963 + $0x8] sm:$0x3f] %vm3844, %v3962
    %s3966 = sld [smem:[#allocation4 + $0x9]]
    %v3967 = vstv %s3966
    %v3968 = vadd.f32 %v3750, %v3967
    %v3969 = vadd.f32 %v3751, %v3967
    %v3970 = vmul.f32 %v3968, 0.5
    %v3971 = vmul.f32 %v3969, 0.5
    %v3972 = vtanh.pop %v3970
    %v3973 = vtanh.pop %v3971
    %v3974 = vmul.f32 %v3972, 0.5
    %v3975 = vmul.f32 %v3973, 0.5
    %v3976 = vadd.f32 %v3974, 0.5
    %v3977 = vadd.f32 %v3975, 0.5
    %s3978 = scalar_lea.vmem %s3, 144
    %3979 = vst.msk [vmem:[%s3978] sm:$0xff] %vm3842, %v3976
    %3980 = vst.msk [vmem:[%s3978 + $0x8] sm:$0x3f] %vm3844, %v3977
    %s3981 = sld [smem:[#allocation4 + $0xa]]
    %v3982 = vstv %s3981
    %v3983 = vadd.f32 %v3763, %v3982
    %v3984 = vadd.f32 %v3764, %v3982
    %v3985 = vmul.f32 %v3983, 0.5
    %v3986 = vmul.f32 %v3984, 0.5
    %v3987 = vtanh.pop %v3985
    %v3988 = vtanh.pop %v3986
    %v3989 = vmul.f32 %v3987, 0.5
    %v3990 = vmul.f32 %v3988, 0.5
    %v3991 = vadd.f32 %v3989, 0.5
    %v3992 = vadd.f32 %v3990, 0.5
    %s3993 = scalar_lea.vmem %s3, 160
    %3994 = vst.msk [vmem:[%s3993] sm:$0xff] %vm3842, %v3991
    %3995 = vst.msk [vmem:[%s3993 + $0x8] sm:$0x3f] %vm3844, %v3992
    %s3996 = sld [smem:[#allocation4 + $0xb]]
    %v3997 = vstv %s3996
    %v3998 = vadd.f32 %v3776, %v3997
    %v3999 = vadd.f32 %v3777, %v3997
    %v4000 = vmul.f32 %v3998, 0.5
    %v4001 = vmul.f32 %v3999, 0.5
    %v4002 = vtanh.pop %v4000
    %v4003 = vtanh.pop %v4001
    %v4004 = vmul.f32 %v4002, 0.5
    %v4005 = vmul.f32 %v4003, 0.5
    %v4006 = vadd.f32 %v4004, 0.5
    %v4007 = vadd.f32 %v4005, 0.5
    %s4008 = scalar_lea.vmem %s3, 176
    %4009 = vst.msk [vmem:[%s4008] sm:$0xff] %vm3842, %v4006
    %4010 = vst.msk [vmem:[%s4008 + $0x8] sm:$0x3f] %vm3844, %v4007
    %s4011 = sld [smem:[#allocation4 + $0xc]]
    %v4012 = vstv %s4011
    %v4013 = vadd.f32 %v3789, %v4012
    %v4014 = vadd.f32 %v3790, %v4012
    %v4015 = vmul.f32 %v4013, 0.5
    %v4016 = vmul.f32 %v4014, 0.5
    %v4017 = vtanh.pop %v4015
    %v4018 = vtanh.pop %v4016
    %v4019 = vmul.f32 %v4017, 0.5
    %v4020 = vmul.f32 %v4018, 0.5
    %v4021 = vadd.f32 %v4019, 0.5
    %v4022 = vadd.f32 %v4020, 0.5
    %s4023 = scalar_lea.vmem %s3, 192
    %4024 = vst.msk [vmem:[%s4023] sm:$0xff] %vm3842, %v4021
    %4025 = vst.msk [vmem:[%s4023 + $0x8] sm:$0x3f] %vm3844, %v4022
    %s4026 = sld [smem:[#allocation4 + $0xd]]
    %v4027 = vstv %s4026
    %v4028 = vadd.f32 %v3802, %v4027
    %v4029 = vadd.f32 %v3803, %v4027
    %v4030 = vmul.f32 %v4028, 0.5
    %v4031 = vmul.f32 %v4029, 0.5
    %v4032 = vtanh.pop %v4030
    %v4033 = vtanh.pop %v4031
    %v4034 = vmul.f32 %v4032, 0.5
    %v4035 = vmul.f32 %v4033, 0.5
    %v4036 = vadd.f32 %v4034, 0.5
    %v4037 = vadd.f32 %v4035, 0.5
    %s4038 = scalar_lea.vmem %s3, 208
    %4039 = vst.msk [vmem:[%s4038] sm:$0xff] %vm3842, %v4036
    %4040 = vst.msk [vmem:[%s4038 + $0x8] sm:$0x3f] %vm3844, %v4037
    %s4041 = sld [smem:[#allocation4 + $0xe]]
    %v4042 = vstv %s4041
    %v4043 = vadd.f32 %v3815, %v4042
    %v4044 = vadd.f32 %v3816, %v4042
    %v4045 = vmul.f32 %v4043, 0.5
    %v4046 = vmul.f32 %v4044, 0.5
    %v4047 = vtanh.pop %v4045
    %v4048 = vtanh.pop %v4046
    %v4049 = vmul.f32 %v4047, 0.5
    %v4050 = vmul.f32 %v4048, 0.5
    %v4051 = vadd.f32 %v4049, 0.5
    %v4052 = vadd.f32 %v4050, 0.5
    %s4053 = scalar_lea.vmem %s3, 224
    %4054 = vst.msk [vmem:[%s4053] sm:$0xff] %vm3842, %v4051
    %4055 = vst.msk [vmem:[%s4053 + $0x8] sm:$0x3f] %vm3844, %v4052
    %s4056 = sld [smem:[#allocation4 + $0xf]]
    %v4057 = vstv %s4056
    %v4058 = vadd.f32 %v3828, %v4057
    %v4059 = vadd.f32 %v3829, %v4057
    %v4060 = vmul.f32 %v4058, 0.5
    %v4061 = vmul.f32 %v4059, 0.5
    %v4062 = vtanh.pop %v4060
    %v4063 = vtanh.pop %v4061
    %v4064 = vmul.f32 %v4062, 0.5
    %v4065 = vmul.f32 %v4063, 0.5
    %v4066 = vadd.f32 %v4064, 0.5
    %v4067 = vadd.f32 %v4065, 0.5
    %s4068 = scalar_lea.vmem %s3, 240
    %4069 = vst.msk [vmem:[%s4068] sm:$0xff] %vm3842, %v4066
    %4070 = vst.msk [vmem:[%s4068 + $0x8] sm:$0x3f] %vm3844, %v4067
    // Predicated region
    $region22: #{conv2d_sigmoid.1} parent=1 // pred_check
      _
    $region23: #{conv2d_sigmoid.1} parent=1 // pred_check_branch
      %4072 = sbr.rel (0) target = $region25
    $region24: #{conv2d_sigmoid.1} parent=1 // pred_region
      _
    $region25: #{conv2d_sigmoid.1} parent=1 // pred_fallthru
      _
    // Predicated region
    $region26: #{conv2d_sigmoid.1} parent=1 // pred_check
      _
    $region27: #{conv2d_sigmoid.1} parent=1 // pred_check_branch
      %4074 = sbr.rel (0) target = $region29
    $region28: #{conv2d_sigmoid.1} parent=1 // pred_region
      _
    $region29: #{conv2d_sigmoid.1} parent=1 // pred_fallthru
      _
    %4075 = vsyncpa [#allocation3], 1
    %4076 = vsyncpa [#allocation5], 1

</llo_original>
